<compile_context>
chip_gen: v7x
topology: tpu7x:2x2x1
jax: 0.10.0
libtpu: 0.0.40
codegen_flags: <defaults>
</compile_context>

<pallas_src>
import numpy as np

import jax
import jax.numpy as jnp
from jax.experimental import pallas as pl
from jax.experimental.pallas import tpu as pltpu


_HALO = 4  # 1 halo row per 3x3 conv in the fused chain (convA, conv2, conv3, out)


# ----------------------------------------------------------------------------
# Bilinear interpolation matrices
# (torch F.interpolate, mode='bilinear', align_corners=False, antialias=False)
# ----------------------------------------------------------------------------
def _interp_matrix(out_size, in_size):
    o = np.arange(out_size, dtype=np.float64)
    src = np.maximum((o + 0.5) * (in_size / out_size) - 0.5, 0.0)
    i0 = np.minimum(np.floor(src), in_size - 1).astype(np.int64)
    i1 = np.minimum(i0 + 1, in_size - 1)
    frac = (src - i0).astype(np.float32)
    m = np.zeros((out_size, in_size), np.float32)
    rows = np.arange(out_size)
    m[rows, i0] += 1.0 - frac
    m[rows, i1] += frac
    return jnp.asarray(m)


# ----------------------------------------------------------------------------
# Fused quarter-resolution ResBlock + out_conv (row-tiled Pallas kernel)
# ----------------------------------------------------------------------------
def _pick_conv_row_tile(hq, wq, cin, cb, budget_bytes=8 << 20):
    """Largest divisor of hq whose per-tile working set (dominated by the
    layer-A im2col and f32 activations) stays under `budget_bytes`."""
    best = 1
    for th in range(1, hq + 1):
        if hq % th:
            continue
        m1 = (th + 6) * wq
        est = (9 * cin * m1 * 2              # layer-A im2col (bf16)
               + 2 * 9 * cb * m1 * 2         # conv2/conv3 im2col (bf16)
               + 6 * cb * m1 * 4             # f32 activations / residual branch
               + 2 * cin * (th + 2 * _HALO) * (wq + 2) * 2)  # dbl-buffered input
        if est <= budget_bytes:
            best = th
    return best


def fused_masknet_convs(x_windows, wa, ba, w2, b2, w3, b3, wo, bo, *, hq, wq, th):
    """x_windows: (B, n_tiles, Cin, TH+8, wq+2) bf16 overlapping row windows.
    Returns quarter-resolution mask logits (B, hq, wq) f32."""
    b, n_tiles, cin = x_windows.shape[:3]
    cb = w2.shape[0]
    r1, r2, r3 = th + 6, th + 4, th + 2          # rows after convA / conv2 / conv3

    def kernel(xw_ref, wa_ref, ba_ref, w2_ref, b2_ref, w3_ref, b3_ref,
               wo_ref, bo_ref, o_ref, pad_ref):
        base = pl.program_id(1) * th

        # Persistent width-halo scratch: re-zeroed each step (cheap vs. the
        # matmuls and megacore-safe); halo columns 0 and wq+1 stay zero.
        pad_ref[...] = jnp.zeros_like(pad_ref)

        def lrelu(v):                                # LeakyReLU(0.2): mul + max
            return jnp.maximum(v, 0.2 * v)

        def row_mask(rows, off):
            # 1.0 on rows inside the original image, 0.0 on halo rows that must
            # act as the zero padding of the next conv.
            g = jax.lax.broadcasted_iota(jnp.int32, (1, rows, wq), 1) + (base - off)
            return jnp.logical_and(g >= 0, g < hq).astype(jnp.float32)

        def im2col(src, c, rows_out):
            # src: (c, rows_out+2, wq+2) bf16 -> (9c, rows_out*wq) bf16
            taps = [src[:, dy:dy + rows_out, dx:dx + wq].reshape(c, rows_out * wq)
                    for dy in range(3) for dx in range(3)]
            return jnp.concatenate(taps, axis=0)

        x = xw_ref[0, 0]                             # (cin, th+8, wq+2) bf16

        # conv_in & conv_block[0] share the input: one (2cb,9cin)x(9cin,m) matmul.
        ya = jnp.dot(wa_ref[...], im2col(x, cin, r1),
                     preferred_element_type=jnp.float32)            # (2cb, r1*wq)
        acta = lrelu(ya + ba_ref[...]).reshape(2 * cb, r1, wq) * row_mask(r1, 3)
        x_in = acta[:cb, 2:2 + r3, :]                # residual branch (f32)
        pad_ref[:, :r1, 1:wq + 1] = acta[cb:].astype(jnp.bfloat16)

        # conv_block[2] + LeakyReLU
        y2 = jnp.dot(w2_ref[...], im2col(pad_ref[:, :r1, :], cb, r2),
                     preferred_element_type=jnp.float32)
        act2 = lrelu(y2 + b2_ref[...]).reshape(cb, r2, wq) * row_mask(r2, 2)
        pad_ref[:, :r2, 1:wq + 1] = act2.astype(jnp.bfloat16)

        # conv_block[4] (linear) + residual
        y3 = jnp.dot(w3_ref[...], im2col(pad_ref[:, :r2, :], cb, r3),
                     preferred_element_type=jnp.float32)
        res = ((y3 + b3_ref[...]).reshape(cb, r3, wq) + x_in) * row_mask(r3, 1)
        pad_ref[:, :r3, 1:wq + 1] = res.astype(jnp.bfloat16)

        # out_conv (Cout=1): 9-tap / 72-MAC VPU weighted sum -- no third im2col
        # and no 1-column MXU matmul; weights are scalars read from SMEM.
        logit = jnp.zeros((th, wq), jnp.float32) + bo_ref[0, 0]
        k = 0
        for dy in range(3):
            for dx in range(3):
                tap = pad_ref[:, dy:dy + th, dx:dx + wq].astype(jnp.float32)
                for c in range(cb):
                    logit = logit + wo_ref[k, c] * tap[c]
                k += 1
        o_ref[0, 0] = logit

    out = pl.pallas_call(
        kernel,
        out_shape=jax.ShapeDtypeStruct((b, n_tiles, th, wq), jnp.float32),
        grid=(b, n_tiles),
        in_specs=[
            pl.BlockSpec((1, 1, cin, th + 2 * _HALO, wq + 2),
                         lambda i, r: (i, r, 0, 0, 0)),
            pl.BlockSpec(wa.shape, lambda i, r: (0, 0)),
            pl.BlockSpec(ba.shape, lambda i, r: (0, 0)),
            pl.BlockSpec(w2.shape, lambda i, r: (0, 0)),
            pl.BlockSpec(b2.shape, lambda i, r: (0, 0)),
            pl.BlockSpec(w3.shape, lambda i, r: (0, 0)),
            pl.BlockSpec(b3.shape, lambda i, r: (0, 0)),
            pl.BlockSpec(memory_space=pltpu.MemorySpace.SMEM),   # wo (scalars)
            pl.BlockSpec(memory_space=pltpu.MemorySpace.SMEM),   # bo (scalar)
        ],
        out_specs=pl.BlockSpec((1, 1, th, wq), lambda i, r: (i, r, 0, 0)),
        scratch_shapes=[pltpu.VMEM((cb, th + 6, wq + 2), jnp.bfloat16)],
        compiler_params=pltpu.CompilerParams(
            dimension_semantics=("parallel", "parallel"),
            vmem_limit_bytes=48 * 1024 * 1024),
    )(x_windows, wa, ba, w2, b2, w3, b3, wo, bo)
    return out.reshape(b, hq, wq)


# ----------------------------------------------------------------------------
# Fused 4x bilinear upsample + sigmoid + blend (lane-dense NCHW, row tiled)
# ----------------------------------------------------------------------------
def _pick_blend_rows(h, c, w, target_bytes=2 << 20):
    """Row-tile height: biggest tile whose f32 (1,C,TH,W) operand block stays
    ~<=2 MiB so 3 operands x 2 pipeline buffers fit the default scoped-VMEM
    limit on every generation (v5e 16 MiB)."""
    if c * h * w * 4 <= target_bytes:
        return h
    cands = [th for th in range(8, h, 8) if h % th == 0]
    fitting = [th for th in cands if c * th * w * 4 <= target_bytes]
    if fitting:
        return max(fitting)
    return min(cands) if cands else h


def _blend_kernel(mq_ref, uh_ref, uwt_ref, i0_ref, i1_ref, o_ref):
    """out = i0 + sigmoid(upsample(mask_q)) * (i1 - i0) for one (batch, row tile)."""
    rows = jnp.dot(uh_ref[...], mq_ref[0], preferred_element_type=jnp.float32)
    logits = jnp.dot(rows, uwt_ref[...], preferred_element_type=jnp.float32)
    mask = jax.nn.sigmoid(logits)[None, :, :]            # (1, TH, W); EUP sigmoid
    i0 = i0_ref[0]
    i1 = i1_ref[0]
    o_ref[0] = (i0 + mask * (i1 - i0)).astype(o_ref.dtype)


def sigmoid_blend_upsample(i0tf, i1tf, mask_q, uh, uwt):
    """i0tf/i1tf: (B, C, H, W); mask_q: (B, hq, wq); uh: (H, hq); uwt: (wq, W)."""
    b, c, h, w = i0tf.shape
    hq, wq = mask_q.shape[1:]
    th = _pick_blend_rows(h, c, w)
    # TODO(synk): optionally carry i0tf/i1tf/out as bf16 through this stage to
    # halve HBM traffic if downstream consumers accept bf16 frames.
    return pl.pallas_call(
        _blend_kernel,
        out_shape=jax.ShapeDtypeStruct((b, c, h, w), i0tf.dtype),
        grid=(b, h // th),
        in_specs=[
            pl.BlockSpec((1, hq, wq), lambda i, r: (i, 0, 0)),
            pl.BlockSpec((th, hq), lambda i, r: (r, 0)),
            pl.BlockSpec((wq, w), lambda i, r: (0, 0)),
            pl.BlockSpec((1, c, th, w), lambda i, r: (i, 0, r, 0)),
            pl.BlockSpec((1, c, th, w), lambda i, r: (i, 0, r, 0)),
        ],
        out_specs=pl.BlockSpec((1, c, th, w), lambda i, r: (i, 0, r, 0)),
        compiler_params=pltpu.CompilerParams(
            dimension_semantics=("parallel", "parallel"),
            vmem_limit_bytes=48 * 1024 * 1024),
    )(mask_q, uh, uwt, i0tf, i1tf)


# ----------------------------------------------------------------------------
# Parameter handling / forward pass
# ----------------------------------------------------------------------------
def _pack_w(w_hwio, dtype=jnp.bfloat16):
    """(3,3,Cin,Cout) HWIO -> (Cout, 9*Cin); column order (dy*3+dx)*Cin + c."""
    k9 = w_hwio.reshape(-1, w_hwio.shape[-1])            # (9*Cin, Cout)
    return k9.T.astype(dtype)


def init_masknet_params(key, in_channel, base_channel, scale=0.05):
    ks = jax.random.split(key, 10)

    def wk(k, cin, cout):
        return scale * jax.random.normal(k, (3, 3, cin, cout), jnp.float32)

    def bk(k, cout):
        return scale * jax.random.normal(k, (cout,), jnp.float32)

    return {
        "w_in": wk(ks[0], in_channel, base_channel), "b_in": bk(ks[1], base_channel),
        "w1": wk(ks[2], in_channel, base_channel), "b1": bk(ks[3], base_channel),
        "w2": wk(ks[4], base_channel, base_channel), "b2": bk(ks[5], base_channel),
        "w3": wk(ks[6], base_channel, base_channel), "b3": bk(ks[7], base_channel),
        "w_out": wk(ks[8], base_channel, 1), "b_out": bk(ks[9], 1),
    }


def masknet_forward(params, im0, im1, i0tf, i1tf, t, f_t0, f_t1):
    """All image/flow inputs NCHW (PyTorch convention); t: (B, 1, 1, 1)."""
    b, _, h, w = im0.shape
    assert h % 4 == 0 and w % 4 == 0, "MaskNet requires H, W divisible by 4"
    hq, wq = h // 4, w // 4

    # 0.25x bilinear downsample per input (two dense matmuls each) and concat
    # at QUARTER resolution; the constant t channel is synthesized directly.
    dh = _interp_matrix(hq, h)                           # (hq, H)
    dw = _interp_matrix(wq, w)                           # (wq, W)

    def down(x):
        return jnp.einsum("bchw,qh,pw->bcqp", x, dh, dw)

    tq = jnp.broadcast_to(t.astype(jnp.float32), (b, 1, hq, wq))
    xq = jnp.concatenate(
        [down(im0), down(im1), down(i0tf), down(i1tf), tq, down(f_t0), down(f_t1)],
        axis=1).astype(jnp.bfloat16)                     # (B, 17, hq, wq)
    cin = xq.shape[1]
    cb = params["w2"].shape[-1]

    # Row tiling of the conv stage (recompute halo of 4 rows on each side).
    th = _pick_conv_row_tile(hq, wq, cin, cb)
    n_tiles = hq // th
    xq_pad = jnp.pad(xq, ((0, 0), (0, 0), (_HALO, _HALO), (1, 1)))
    if n_tiles == 1:
        x_win = xq_pad[:, None]
    else:
        # Overlapping row windows (cheap at quarter res) keep the Pallas input
        # pipeline on plain Blocked BlockSpecs (auto double-buffered DMA).
        x_win = jnp.stack(
            [xq_pad[:, :, i * th:i * th + th + 2 * _HALO, :] for i in range(n_tiles)],
            axis=1)

    # Pack conv weights: conv_in and conv_block[0] merged along Cout; biases
    # stay f32 and are added post-matmul on the VPU.
    wa = _pack_w(jnp.concatenate([params["w_in"], params["w1"]], axis=-1))
    ba = jnp.concatenate([params["b_in"], params["b1"]])[:, None].astype(jnp.float32)
    w2 = _pack_w(params["w2"])
    b2 = params["b2"][:, None].astype(jnp.float32)
    w3 = _pack_w(params["w3"])
    b3 = params["b3"][:, None].astype(jnp.float32)
    wo = params["w_out"][..., 0].reshape(9, cb).astype(jnp.float32)   # tap-major
    bo = params["b_out"].reshape(1, 1).astype(jnp.float32)

    # Fused ResBlock + out_conv (single Pallas kernel, quarter resolution).
    mask_q = fused_masknet_convs(x_win, wa, ba, w2, b2, w3, b3, wo, bo,
                                 hq=hq, wq=wq, th=th)

    # Fused 4x bilinear upsample + sigmoid + blend (NCHW, row tiled).
    uh = _interp_matrix(h, hq)                           # (H, hq)
    uwt = _interp_matrix(w, wq).T                        # (wq, W)
    return sigmoid_blend_upsample(i0tf, i1tf, mask_q, uh, uwt)


# ----------------------------------------------------------------------------
# Pure-JAX f32 reference (same interpolation semantics) for validation
# ----------------------------------------------------------------------------
def _conv3x3_ref(x, w, b_vec):
    y = jax.lax.conv_general_dilated(
        x, w, window_strides=(1, 1), padding=((1, 1), (1, 1)),
        dimension_numbers=("NHWC", "HWIO", "NHWC"))
    return y + b_vec


def masknet_reference(params, im0, im1, i0tf, i1tf, t, f_t0, f_t1):
    b, _, h, w = im0.shape
    hq, wq = h // 4, w // 4
    t_full = jnp.broadcast_to(t.astype(jnp.float32), (b, 1, h, w))
    data_in = jnp.concatenate([im0, im1, i0tf, i1tf, t_full, f_t0, f_t1], axis=1)
    xq = jnp.einsum("bchw,qh,pw->bqpc", data_in,
                    _interp_matrix(hq, h), _interp_matrix(wq, w))
    lre = lambda v: jnp.where(v >= 0, v, 0.2 * v)
    x_in = lre(_conv3x3_ref(xq, params["w_in"], params["b_in"]))
    a = lre(_conv3x3_ref(xq, params["w1"], params["b1"]))
    a = lre(_conv3x3_ref(a, params["w2"], params["b2"]))
    a = _conv3x3_ref(a, params["w3"], params["b3"])
    out_q = _conv3x3_ref(a + x_in, params["w_out"], params["b_out"])[..., 0]
    logits = jnp.einsum("bqp,hq,wp->bhw", out_q,
                        _interp_matrix(h, hq), _interp_matrix(w, wq))
    mask = jax.nn.sigmoid(logits)[:, None, :, :]
    return i0tf * (1.0 - mask) + mask * i1tf


# ----------------------------------------------------------------------------
# Main
# ----------------------------------------------------------------------------
if __name__ == "__main__":
    B, C, H, W = 2, 3, 16, 16
    in_channel = 3 + 3 + 3 + 3 + 1 + 2 + 2       # = 17
    base_channel = 8

    key = jax.random.PRNGKey(0)
    k_params, k_in = jax.random.split(key)
    params = init_masknet_params(k_params, in_channel, base_channel)

    ks = jax.random.split(k_in, 7)
    im0 = jax.random.uniform(ks[0], (B, 3, H, W), jnp.float32)
    im1 = jax.random.uniform(ks[1], (B, 3, H, W), jnp.float32)
    i0tf = jax.random.uniform(ks[2], (B, 3, H, W), jnp.float32)
    i1tf = jax.random.uniform(ks[3], (B, 3, H, W), jnp.float32)
    t = jax.random.uniform(ks[4], (B, 1, 1, 1), jnp.float32)
    f_t0 = jax.random.normal(ks[5], (B, 2, H, W), jnp.float32)
    f_t1 = jax.random.normal(ks[6], (B, 2, H, W), jnp.float32)

    fwd = jax.jit(masknet_forward)
    out = fwd(params, im0, im1, i0tf, i1tf, t, f_t0, f_t1)
    jax.block_until_ready(out)

    assert out.shape == (B, 3, H, W), out.shape
    assert bool(jnp.all(jnp.isfinite(out)))

    # Validate against the pure-JAX f32 reference (bf16 MXU operands => loose tol).
    ref = masknet_reference(params, im0, im1, i0tf, i1tf, t, f_t0, f_t1)
    max_err = float(jnp.max(jnp.abs(out - ref)))
    assert max_err < 2e-2, f"max |pallas - reference| = {max_err}"

    print("KERNEL_OK")
</pallas_src>

<mosaic_0001>
module attributes {stable_mosaic.version = 11 : i64} {
  func.func @_blend_kernel(%arg0: i32, %arg1: i32, %arg2: memref<1x4x4xf32, #tpu.memory_space<vmem>>, %arg3: memref<16x4xf32, #tpu.memory_space<vmem>>, %arg4: memref<4x16xf32, #tpu.memory_space<vmem>>, %arg5: memref<1x3x16x16xf32, #tpu.memory_space<vmem>>, %arg6: memref<1x3x16x16xf32, #tpu.memory_space<vmem>>, %arg7: memref<1x3x16x16xf32, #tpu.memory_space<vmem>>) attributes {dimension_semantics = [#tpu.dimension_semantics<parallel>, #tpu.dimension_semantics<parallel>], iteration_bounds = array<i64: 2, 1>, scalar_prefetch = 0 : i64, scratch_operands = 0 : i64, tpu.core_type = #tpu.core_type<tc>, window_params = [{transform_indices = @transform_0, window_bounds = array<i64: 1, 4, 4>}, {transform_indices = @transform_1, window_bounds = array<i64: 16, 4>}, {pipeline_mode = #tpu.pipeline_mode<synchronous>, transform_indices = @transform_2, window_bounds = array<i64: 4, 16>}, {transform_indices = @transform_3, window_bounds = array<i64: 1, 3, 16, 16>}, {transform_indices = @transform_4, window_bounds = array<i64: 1, 3, 16, 16>}, {transform_indices = @transform_5, window_bounds = array<i64: 1, 3, 16, 16>}]} {
    %c0 = arith.constant 0 : index
    %c0_0 = arith.constant 0 : index
    %0 = vector.load %arg3[%c0, %c0_0] : memref<16x4xf32, #tpu.memory_space<vmem>>, vector<16x4xf32>
    %c0_1 = arith.constant 0 : index
    %c0_2 = arith.constant 0 : index
    %c0_3 = arith.constant 0 : index
    %1 = vector.load %arg2[%c0_1, %c0_2, %c0_3] : memref<1x4x4xf32, #tpu.memory_space<vmem>>, vector<1x4x4xf32>
    %2 = vector.shape_cast %1 : vector<1x4x4xf32> to vector<4x4xf32>
    %cst = arith.constant dense<0.000000e+00> : vector<16x4xf32>
    %3 = tpu.matmul %0, %2, %cst {dimension_numbers = #tpu.dot_dimension_numbers<[1], [0], [0], [1], [0, 0, 1, 1], [], []>} : vector<16x4xf32>, vector<4x4xf32>, vector<16x4xf32> -> vector<16x4xf32>
    %c0_4 = arith.constant 0 : index
    %c0_5 = arith.constant 0 : index
    %4 = vector.load %arg4[%c0_4, %c0_5] : memref<4x16xf32, #tpu.memory_space<vmem>>, vector<4x16xf32>
    %cst_6 = arith.constant dense<0.000000e+00> : vector<16x16xf32>
    %5 = tpu.matmul %3, %4, %cst_6 {dimension_numbers = #tpu.dot_dimension_numbers<[1], [0], [0], [1], [0, 0, 1, 1], [], []>} : vector<16x4xf32>, vector<4x16xf32>, vector<16x16xf32> -> vector<16x16xf32>
    %6 = arith.negf %5 : vector<16x16xf32>
    %7 = math.exp %6 : vector<16x16xf32>
    %cst_7 = arith.constant 1.000000e+00 : f32
    %8 = vector.broadcast %cst_7 : f32 to vector<16x16xf32>
    %9 = arith.addf %8, %7 : vector<16x16xf32>
    %10 = arith.divf %8, %9 : vector<16x16xf32>
    %11 = vector.shape_cast %10 : vector<16x16xf32> to vector<1x16x16xf32>
    %c0_8 = arith.constant 0 : index
    %c0_9 = arith.constant 0 : index
    %c0_10 = arith.constant 0 : index
    %c0_11 = arith.constant 0 : index
    %12 = vector.load %arg5[%c0_8, %c0_9, %c0_10, %c0_11] : memref<1x3x16x16xf32, #tpu.memory_space<vmem>>, vector<1x3x16x16xf32>
    %13 = vector.shape_cast %12 : vector<1x3x16x16xf32> to vector<3x16x16xf32>
    %c0_12 = arith.constant 0 : index
    %c0_13 = arith.constant 0 : index
    %c0_14 = arith.constant 0 : index
    %c0_15 = arith.constant 0 : index
    %14 = vector.load %arg6[%c0_12, %c0_13, %c0_14, %c0_15] : memref<1x3x16x16xf32, #tpu.memory_space<vmem>>, vector<1x3x16x16xf32>
    %15 = vector.shape_cast %14 : vector<1x3x16x16xf32> to vector<3x16x16xf32>
    %16 = arith.subf %15, %13 : vector<3x16x16xf32>
    %17 = vector.broadcast %11 : vector<1x16x16xf32> to vector<3x16x16xf32>
    %18 = arith.mulf %17, %16 : vector<3x16x16xf32>
    %19 = arith.addf %13, %18 : vector<3x16x16xf32>
    %c0_16 = arith.constant 0 : index
    %c0_17 = arith.constant 0 : index
    %c0_18 = arith.constant 0 : index
    %c0_19 = arith.constant 0 : index
    %20 = vector.load %arg7[%c0_16, %c0_17, %c0_18, %c0_19] : memref<1x3x16x16xf32, #tpu.memory_space<vmem>>, vector<1x3x16x16xf32>
    %21 = vector.shape_cast %20 : vector<1x3x16x16xf32> to vector<3x16x16xf32>
    %22 = vector.shape_cast %19 : vector<3x16x16xf32> to vector<1x3x16x16xf32>
    tpu.vector_store %arg7[%c0_16, %c0_17, %c0_18, %c0_19], %22 {strides = array<i32>} : memref<1x3x16x16xf32, #tpu.memory_space<vmem>>, vector<1x3x16x16xf32>,
    return
  }
  func.func @transform_0(%arg0: i32, %arg1: i32) -> (i32, i32, i32) {
    %c0_i32 = arith.constant 0 : i32
    %c0_i32_0 = arith.constant 0 : i32
    %c0_i32_1 = arith.constant 0 : i32
    return %arg0, %c0_i32, %c0_i32_0 : i32, i32, i32
  }
  func.func @transform_1(%arg0: i32, %arg1: i32) -> (i32, i32) {
    %c0_i32 = arith.constant 0 : i32
    %c0_i32_0 = arith.constant 0 : i32
    return %arg1, %c0_i32 : i32, i32
  }
  func.func @transform_2(%arg0: i32, %arg1: i32) -> (i32, i32) {
    %c0_i32 = arith.constant 0 : i32
    %c0_i32_0 = arith.constant 0 : i32
    %c0_i32_1 = arith.constant 0 : i32
    return %c0_i32, %c0_i32_0 : i32, i32
  }
  func.func @transform_3(%arg0: i32, %arg1: i32) -> (i32, i32, i32, i32) {
    %c0_i32 = arith.constant 0 : i32
    %c0_i32_0 = arith.constant 0 : i32
    %c0_i32_1 = arith.constant 0 : i32
    return %arg0, %c0_i32, %arg1, %c0_i32_0 : i32, i32, i32, i32
  }
  func.func @transform_4(%arg0: i32, %arg1: i32) -> (i32, i32, i32, i32) {
    %c0_i32 = arith.constant 0 : i32
    %c0_i32_0 = arith.constant 0 : i32
    %c0_i32_1 = arith.constant 0 : i32
    return %arg0, %c0_i32, %arg1, %c0_i32_0 : i32, i32, i32, i32
  }
  func.func @transform_5(%arg0: i32, %arg1: i32) -> (i32, i32, i32, i32) {
    %c0_i32 = arith.constant 0 : i32
    %c0_i32_0 = arith.constant 0 : i32
    %c0_i32_1 = arith.constant 0 : i32
    return %arg0, %c0_i32, %arg1, %c0_i32_0 : i32, i32, i32, i32
  }
}

module attributes {stable_mosaic.version = 11 : i64} {
  func.func @kernel(%arg0: i32, %arg1: i32, %arg2: memref<1x1x17x12x6xbf16, #tpu.memory_space<vmem>>, %arg3: memref<16x153xbf16, #tpu.memory_space<vmem>>, %arg4: memref<16x1xf32, #tpu.memory_space<vmem>>, %arg5: memref<8x72xbf16, #tpu.memory_space<vmem>>, %arg6: memref<8x1xf32, #tpu.memory_space<vmem>>, %arg7: memref<8x72xbf16, #tpu.memory_space<vmem>>, %arg8: memref<8x1xf32, #tpu.memory_space<vmem>>, %arg9: memref<9x8xf32, #tpu.memory_space<smem>>, %arg10: memref<1x1xf32, #tpu.memory_space<smem>>, %arg11: memref<1x1x4x4xf32, #tpu.memory_space<vmem>>, %arg12: memref<8x10x6xbf16, #tpu.memory_space<vmem>>) attributes {dimension_semantics = [#tpu.dimension_semantics<parallel>, #tpu.dimension_semantics<parallel>], iteration_bounds = array<i64: 2, 1>, scalar_prefetch = 0 : i64, scratch_operands = 1 : i64, tpu.core_type = #tpu.core_type<tc>, window_params = [{transform_indices = @transform_0, window_bounds = array<i64: 1, 1, 17, 12, 6>}, {pipeline_mode = #tpu.pipeline_mode<synchronous>, transform_indices = @transform_1, window_bounds = array<i64: 16, 153>}, {pipeline_mode = #tpu.pipeline_mode<synchronous>, transform_indices = @transform_2, window_bounds = array<i64: 16, 1>}, {pipeline_mode = #tpu.pipeline_mode<synchronous>, transform_indices = @transform_3, window_bounds = array<i64: 8, 72>}, {pipeline_mode = #tpu.pipeline_mode<synchronous>, transform_indices = @transform_4, window_bounds = array<i64: 8, 1>}, {pipeline_mode = #tpu.pipeline_mode<synchronous>, transform_indices = @transform_5, window_bounds = array<i64: 8, 72>}, {pipeline_mode = #tpu.pipeline_mode<synchronous>, transform_indices = @transform_6, window_bounds = array<i64: 8, 1>}, {transform_indices = @transform_7, window_bounds = array<i64: 9, 8>}, {transform_indices = @transform_8, window_bounds = array<i64: 1, 1>}, {transform_indices = @transform_9, window_bounds = array<i64: 1, 1, 4, 4>}]} {
    %c4_i32 = arith.constant 4 : i32
    %0 = arith.muli %arg1, %c4_i32 : i32
    %cst = arith.constant 0.000000e+00 : bf16
    %1 = vector.broadcast %cst : bf16 to vector<8x10x6xbf16>
    %c0 = arith.constant 0 : index
    %c0_0 = arith.constant 0 : index
    %c0_1 = arith.constant 0 : index
    %2 = vector.load %arg12[%c0, %c0_0, %c0_1] : memref<8x10x6xbf16, #tpu.memory_space<vmem>>, vector<8x10x6xbf16>
    tpu.vector_store %arg12[%c0, %c0_0, %c0_1], %1 {strides = array<i32>} : memref<8x10x6xbf16, #tpu.memory_space<vmem>>, vector<8x10x6xbf16>,
    %c0_2 = arith.constant 0 : index
    %c0_3 = arith.constant 0 : index
    %c0_4 = arith.constant 0 : index
    %c0_5 = arith.constant 0 : index
    %c0_6 = arith.constant 0 : index
    %3 = vector.load %arg2[%c0_2, %c0_3, %c0_4, %c0_5, %c0_6] : memref<1x1x17x12x6xbf16, #tpu.memory_space<vmem>>, vector<1x1x17x12x6xbf16>
    %4 = vector.shape_cast %3 : vector<1x1x17x12x6xbf16> to vector<17x12x6xbf16>
    %c0_7 = arith.constant 0 : index
    %c0_8 = arith.constant 0 : index
    %5 = vector.load %arg3[%c0_7, %c0_8] : memref<16x153xbf16, #tpu.memory_space<vmem>>, vector<16x153xbf16>
    %6 = vector.extract_strided_slice %4 {offsets = [0, 0, 0], sizes = [17, 10, 4], strides = [1, 1, 1]} : vector<17x12x6xbf16> to vector<17x10x4xbf16>
    %7 = vector.shape_cast %6 : vector<17x10x4xbf16> to vector<17x40xbf16>
    %8 = vector.extract_strided_slice %4 {offsets = [0, 0, 1], sizes = [17, 10, 4], strides = [1, 1, 1]} : vector<17x12x6xbf16> to vector<17x10x4xbf16>
    %9 = vector.shape_cast %8 : vector<17x10x4xbf16> to vector<17x40xbf16>
    %10 = vector.extract_strided_slice %4 {offsets = [0, 0, 2], sizes = [17, 10, 4], strides = [1, 1, 1]} : vector<17x12x6xbf16> to vector<17x10x4xbf16>
    %11 = vector.shape_cast %10 : vector<17x10x4xbf16> to vector<17x40xbf16>
    %12 = vector.extract_strided_slice %4 {offsets = [0, 1, 0], sizes = [17, 10, 4], strides = [1, 1, 1]} : vector<17x12x6xbf16> to vector<17x10x4xbf16>
    %13 = vector.shape_cast %12 : vector<17x10x4xbf16> to vector<17x40xbf16>
    %14 = vector.extract_strided_slice %4 {offsets = [0, 1, 1], sizes = [17, 10, 4], strides = [1, 1, 1]} : vector<17x12x6xbf16> to vector<17x10x4xbf16>
    %15 = vector.shape_cast %14 : vector<17x10x4xbf16> to vector<17x40xbf16>
    %16 = vector.extract_strided_slice %4 {offsets = [0, 1, 2], sizes = [17, 10, 4], strides = [1, 1, 1]} : vector<17x12x6xbf16> to vector<17x10x4xbf16>
    %17 = vector.shape_cast %16 : vector<17x10x4xbf16> to vector<17x40xbf16>
    %18 = vector.extract_strided_slice %4 {offsets = [0, 2, 0], sizes = [17, 10, 4], strides = [1, 1, 1]} : vector<17x12x6xbf16> to vector<17x10x4xbf16>
    %19 = vector.shape_cast %18 : vector<17x10x4xbf16> to vector<17x40xbf16>
    %20 = vector.extract_strided_slice %4 {offsets = [0, 2, 1], sizes = [17, 10, 4], strides = [1, 1, 1]} : vector<17x12x6xbf16> to vector<17x10x4xbf16>
    %21 = vector.shape_cast %20 : vector<17x10x4xbf16> to vector<17x40xbf16>
    %22 = vector.extract_strided_slice %4 {offsets = [0, 2, 2], sizes = [17, 10, 4], strides = [1, 1, 1]} : vector<17x12x6xbf16> to vector<17x10x4xbf16>
    %23 = vector.shape_cast %22 : vector<17x10x4xbf16> to vector<17x40xbf16>
    %24 = tpu.concatenate %7, %9, %11, %13, %15, %17, %19, %21, %23 in 0 : vector<17x40xbf16>, vector<17x40xbf16>, vector<17x40xbf16>, vector<17x40xbf16>, vector<17x40xbf16>, vector<17x40xbf16>, vector<17x40xbf16>, vector<17x40xbf16>, vector<17x40xbf16> -> vector<153x40xbf16>
    %cst_9 = arith.constant dense<0.000000e+00> : vector<16x40xf32>
    %25 = tpu.matmul %5, %24, %cst_9 {dimension_numbers = #tpu.dot_dimension_numbers<[1], [0], [0], [1], [0, 0, 1, 1], [], []>} : vector<16x153xbf16>, vector<153x40xbf16>, vector<16x40xf32> -> vector<16x40xf32>
    %c0_10 = arith.constant 0 : index
    %c0_11 = arith.constant 0 : index
    %26 = vector.load %arg4[%c0_10, %c0_11] : memref<16x1xf32, #tpu.memory_space<vmem>>, vector<16x1xf32>
    %27 = vector.broadcast %26 : vector<16x1xf32> to vector<16x40xf32>
    %28 = arith.addf %25, %27 : vector<16x40xf32>
    %cst_12 = arith.constant 2.000000e-01 : f32
    %29 = vector.broadcast %cst_12 : f32 to vector<16x40xf32>
    %30 = arith.mulf %29, %28 : vector<16x40xf32>
    %31 = arith.maximumf %28, %30 : vector<16x40xf32>
    %32 = vector.shape_cast %31 : vector<16x40xf32> to vector<16x10x4xf32>
    %33 = tpu.iota {dimensions = array<i32: 1>} : vector<1x10x4xi32>
    %c3_i32 = arith.constant 3 : i32
    %34 = arith.subi %0, %c3_i32 : i32
    %35 = vector.broadcast %34 : i32 to vector<1x10x4xi32>
    %36 = arith.addi %33, %35 : vector<1x10x4xi32>
    %c0_i32 = arith.constant 0 : i32
    %37 = vector.broadcast %c0_i32 : i32 to vector<1x10x4xi32>
    %38 = arith.cmpi sge, %36, %37 : vector<1x10x4xi32>
    %c4_i32_13 = arith.constant 4 : i32
    %39 = vector.broadcast %c4_i32_13 : i32 to vector<1x10x4xi32>
    %40 = arith.cmpi slt, %36, %39 : vector<1x10x4xi32>
    %41 = arith.andi %38, %40 : vector<1x10x4xi1>
    %42 = arith.extui %41 : vector<1x10x4xi1> to vector<1x10x4xi32>
    %43 = arith.sitofp %42 : vector<1x10x4xi32> to vector<1x10x4xf32>
    %44 = vector.broadcast %43 : vector<1x10x4xf32> to vector<16x10x4xf32>
    %45 = arith.mulf %32, %44 : vector<16x10x4xf32>
    %46 = vector.extract_strided_slice %45 {offsets = [0, 2, 0], sizes = [8, 6, 4], strides = [1, 1, 1]} : vector<16x10x4xf32> to vector<8x6x4xf32>
    %47 = vector.extract_strided_slice %45 {offsets = [8, 0, 0], sizes = [8, 10, 4], strides = [1, 1, 1]} : vector<16x10x4xf32> to vector<8x10x4xf32>
    %48 = arith.truncf %47 : vector<8x10x4xf32> to vector<8x10x4xbf16>
    %c0_14 = arith.constant 0 : index
    %c0_15 = arith.constant 0 : index
    %c1 = arith.constant 1 : index
    %49 = vector.load %arg12[%c0_14, %c0_15, %c1] : memref<8x10x6xbf16, #tpu.memory_space<vmem>>, vector<8x10x4xbf16>
    tpu.vector_store %arg12[%c0_14, %c0_15, %c1], %48 {strides = array<i32>} : memref<8x10x6xbf16, #tpu.memory_space<vmem>>, vector<8x10x4xbf16>,
    %c0_16 = arith.constant 0 : index
    %c0_17 = arith.constant 0 : index
    %50 = vector.load %arg5[%c0_16, %c0_17] : memref<8x72xbf16, #tpu.memory_space<vmem>>, vector<8x72xbf16>
    %c0_18 = arith.constant 0 : index
    %c0_19 = arith.constant 0 : index
    %c0_20 = arith.constant 0 : index
    %51 = vector.load %arg12[%c0_18, %c0_19, %c0_20] : memref<8x10x6xbf16, #tpu.memory_space<vmem>>, vector<8x10x6xbf16>
    %52 = vector.extract_strided_slice %51 {offsets = [0, 0, 0], sizes = [8, 8, 4], strides = [1, 1, 1]} : vector<8x10x6xbf16> to vector<8x8x4xbf16>
    %53 = vector.shape_cast %52 : vector<8x8x4xbf16> to vector<8x32xbf16>
    %54 = vector.extract_strided_slice %51 {offsets = [0, 0, 1], sizes = [8, 8, 4], strides = [1, 1, 1]} : vector<8x10x6xbf16> to vector<8x8x4xbf16>
    %55 = vector.shape_cast %54 : vector<8x8x4xbf16> to vector<8x32xbf16>
    %56 = vector.extract_strided_slice %51 {offsets = [0, 0, 2], sizes = [8, 8, 4], strides = [1, 1, 1]} : vector<8x10x6xbf16> to vector<8x8x4xbf16>
    %57 = vector.shape_cast %56 : vector<8x8x4xbf16> to vector<8x32xbf16>
    %58 = vector.extract_strided_slice %51 {offsets = [0, 1, 0], sizes = [8, 8, 4], strides = [1, 1, 1]} : vector<8x10x6xbf16> to vector<8x8x4xbf16>
    %59 = vector.shape_cast %58 : vector<8x8x4xbf16> to vector<8x32xbf16>
    %60 = vector.extract_strided_slice %51 {offsets = [0, 1, 1], sizes = [8, 8, 4], strides = [1, 1, 1]} : vector<8x10x6xbf16> to vector<8x8x4xbf16>
    %61 = vector.shape_cast %60 : vector<8x8x4xbf16> to vector<8x32xbf16>
    %62 = vector.extract_strided_slice %51 {offsets = [0, 1, 2], sizes = [8, 8, 4], strides = [1, 1, 1]} : vector<8x10x6xbf16> to vector<8x8x4xbf16>
    %63 = vector.shape_cast %62 : vector<8x8x4xbf16> to vector<8x32xbf16>
    %64 = vector.extract_strided_slice %51 {offsets = [0, 2, 0], sizes = [8, 8, 4], strides = [1, 1, 1]} : vector<8x10x6xbf16> to vector<8x8x4xbf16>
    %65 = vector.shape_cast %64 : vector<8x8x4xbf16> to vector<8x32xbf16>
    %66 = vector.extract_strided_slice %51 {offsets = [0, 2, 1], sizes = [8, 8, 4], strides = [1, 1, 1]} : vector<8x10x6xbf16> to vector<8x8x4xbf16>
    %67 = vector.shape_cast %66 : vector<8x8x4xbf16> to vector<8x32xbf16>
    %68 = vector.extract_strided_slice %51 {offsets = [0, 2, 2], sizes = [8, 8, 4], strides = [1, 1, 1]} : vector<8x10x6xbf16> to vector<8x8x4xbf16>
    %69 = vector.shape_cast %68 : vector<8x8x4xbf16> to vector<8x32xbf16>
    %70 = tpu.concatenate %53, %55, %57, %59, %61, %63, %65, %67, %69 in 0 : vector<8x32xbf16>, vector<8x32xbf16>, vector<8x32xbf16>, vector<8x32xbf16>, vector<8x32xbf16>, vector<8x32xbf16>, vector<8x32xbf16>, vector<8x32xbf16>, vector<8x32xbf16> -> vector<72x32xbf16>
    %cst_21 = arith.constant dense<0.000000e+00> : vector<8x32xf32>
    %71 = tpu.matmul %50, %70, %cst_21 {dimension_numbers = #tpu.dot_dimension_numbers<[1], [0], [0], [1], [0, 0, 1, 1], [], []>} : vector<8x72xbf16>, vector<72x32xbf16>, vector<8x32xf32> -> vector<8x32xf32>
    %c0_22 = arith.constant 0 : index
    %c0_23 = arith.constant 0 : index
    %72 = vector.load %arg6[%c0_22, %c0_23] : memref<8x1xf32, #tpu.memory_space<vmem>>, vector<8x1xf32>
    %73 = vector.broadcast %72 : vector<8x1xf32> to vector<8x32xf32>
    %74 = arith.addf %71, %73 : vector<8x32xf32>
    %cst_24 = arith.constant 2.000000e-01 : f32
    %75 = vector.broadcast %cst_24 : f32 to vector<8x32xf32>
    %76 = arith.mulf %75, %74 : vector<8x32xf32>
    %77 = arith.maximumf %74, %76 : vector<8x32xf32>
    %78 = vector.shape_cast %77 : vector<8x32xf32> to vector<8x8x4xf32>
    %79 = tpu.iota {dimensions = array<i32: 1>} : vector<1x8x4xi32>
    %c2_i32 = arith.constant 2 : i32
    %80 = arith.subi %0, %c2_i32 : i32
    %81 = vector.broadcast %80 : i32 to vector<1x8x4xi32>
    %82 = arith.addi %79, %81 : vector<1x8x4xi32>
    %c0_i32_25 = arith.constant 0 : i32
    %83 = vector.broadcast %c0_i32_25 : i32 to vector<1x8x4xi32>
    %84 = arith.cmpi sge, %82, %83 : vector<1x8x4xi32>
    %c4_i32_26 = arith.constant 4 : i32
    %85 = vector.broadcast %c4_i32_26 : i32 to vector<1x8x4xi32>
    %86 = arith.cmpi slt, %82, %85 : vector<1x8x4xi32>
    %87 = arith.andi %84, %86 : vector<1x8x4xi1>
    %88 = arith.extui %87 : vector<1x8x4xi1> to vector<1x8x4xi32>
    %89 = arith.sitofp %88 : vector<1x8x4xi32> to vector<1x8x4xf32>
    %90 = vector.broadcast %89 : vector<1x8x4xf32> to vector<8x8x4xf32>
    %91 = arith.mulf %78, %90 : vector<8x8x4xf32>
    %92 = arith.truncf %91 : vector<8x8x4xf32> to vector<8x8x4xbf16>
    %c0_27 = arith.constant 0 : index
    %c0_28 = arith.constant 0 : index
    %c1_29 = arith.constant 1 : index
    %93 = vector.load %arg12[%c0_27, %c0_28, %c1_29] : memref<8x10x6xbf16, #tpu.memory_space<vmem>>, vector<8x8x4xbf16>
    tpu.vector_store %arg12[%c0_27, %c0_28, %c1_29], %92 {strides = array<i32>} : memref<8x10x6xbf16, #tpu.memory_space<vmem>>, vector<8x8x4xbf16>,
    %c0_30 = arith.constant 0 : index
    %c0_31 = arith.constant 0 : index
    %94 = vector.load %arg7[%c0_30, %c0_31] : memref<8x72xbf16, #tpu.memory_space<vmem>>, vector<8x72xbf16>
    %c0_32 = arith.constant 0 : index
    %c0_33 = arith.constant 0 : index
    %c0_34 = arith.constant 0 : index
    %95 = vector.load %arg12[%c0_32, %c0_33, %c0_34] : memref<8x10x6xbf16, #tpu.memory_space<vmem>>, vector<8x8x6xbf16>
    %96 = vector.extract_strided_slice %95 {offsets = [0, 0, 0], sizes = [8, 6, 4], strides = [1, 1, 1]} : vector<8x8x6xbf16> to vector<8x6x4xbf16>
    %97 = vector.shape_cast %96 : vector<8x6x4xbf16> to vector<8x24xbf16>
    %98 = vector.extract_strided_slice %95 {offsets = [0, 0, 1], sizes = [8, 6, 4], strides = [1, 1, 1]} : vector<8x8x6xbf16> to vector<8x6x4xbf16>
    %99 = vector.shape_cast %98 : vector<8x6x4xbf16> to vector<8x24xbf16>
    %100 = vector.extract_strided_slice %95 {offsets = [0, 0, 2], sizes = [8, 6, 4], strides = [1, 1, 1]} : vector<8x8x6xbf16> to vector<8x6x4xbf16>
    %101 = vector.shape_cast %100 : vector<8x6x4xbf16> to vector<8x24xbf16>
    %102 = vector.extract_strided_slice %95 {offsets = [0, 1, 0], sizes = [8, 6, 4], strides = [1, 1, 1]} : vector<8x8x6xbf16> to vector<8x6x4xbf16>
    %103 = vector.shape_cast %102 : vector<8x6x4xbf16> to vector<8x24xbf16>
    %104 = vector.extract_strided_slice %95 {offsets = [0, 1, 1], sizes = [8, 6, 4], strides = [1, 1, 1]} : vector<8x8x6xbf16> to vector<8x6x4xbf16>
    %105 = vector.shape_cast %104 : vector<8x6x4xbf16> to vector<8x24xbf16>
    %106 = vector.extract_strided_slice %95 {offsets = [0, 1, 2], sizes = [8, 6, 4], strides = [1, 1, 1]} : vector<8x8x6xbf16> to vector<8x6x4xbf16>
    %107 = vector.shape_cast %106 : vector<8x6x4xbf16> to vector<8x24xbf16>
    %108 = vector.extract_strided_slice %95 {offsets = [0, 2, 0], sizes = [8, 6, 4], strides = [1, 1, 1]} : vector<8x8x6xbf16> to vector<8x6x4xbf16>
    %109 = vector.shape_cast %108 : vector<8x6x4xbf16> to vector<8x24xbf16>
    %110 = vector.extract_strided_slice %95 {offsets = [0, 2, 1], sizes = [8, 6, 4], strides = [1, 1, 1]} : vector<8x8x6xbf16> to vector<8x6x4xbf16>
    %111 = vector.shape_cast %110 : vector<8x6x4xbf16> to vector<8x24xbf16>
    %112 = vector.extract_strided_slice %95 {offsets = [0, 2, 2], sizes = [8, 6, 4], strides = [1, 1, 1]} : vector<8x8x6xbf16> to vector<8x6x4xbf16>
    %113 = vector.shape_cast %112 : vector<8x6x4xbf16> to vector<8x24xbf16>
    %114 = tpu.concatenate %97, %99, %101, %103, %105, %107, %109, %111, %113 in 0 : vector<8x24xbf16>, vector<8x24xbf16>, vector<8x24xbf16>, vector<8x24xbf16>, vector<8x24xbf16>, vector<8x24xbf16>, vector<8x24xbf16>, vector<8x24xbf16>, vector<8x24xbf16> -> vector<72x24xbf16>
    %cst_35 = arith.constant dense<0.000000e+00> : vector<8x24xf32>
    %115 = tpu.matmul %94, %114, %cst_35 {dimension_numbers = #tpu.dot_dimension_numbers<[1], [0], [0], [1], [0, 0, 1, 1], [], []>} : vector<8x72xbf16>, vector<72x24xbf16>, vector<8x24xf32> -> vector<8x24xf32>
    %c0_36 = arith.constant 0 : index
    %c0_37 = arith.constant 0 : index
    %116 = vector.load %arg8[%c0_36, %c0_37] : memref<8x1xf32, #tpu.memory_space<vmem>>, vector<8x1xf32>
    %117 = vector.broadcast %116 : vector<8x1xf32> to vector<8x24xf32>
    %118 = arith.addf %115, %117 : vector<8x24xf32>
    %119 = vector.shape_cast %118 : vector<8x24xf32> to vector<8x6x4xf32>
    %120 = arith.addf %119, %46 : vector<8x6x4xf32>
    %121 = tpu.iota {dimensions = array<i32: 1>} : vector<1x6x4xi32>
    %c1_i32 = arith.constant 1 : i32
    %122 = arith.subi %0, %c1_i32 : i32
    %123 = vector.broadcast %122 : i32 to vector<1x6x4xi32>
    %124 = arith.addi %121, %123 : vector<1x6x4xi32>
    %c0_i32_38 = arith.constant 0 : i32
    %125 = vector.broadcast %c0_i32_38 : i32 to vector<1x6x4xi32>
    %126 = arith.cmpi sge, %124, %125 : vector<1x6x4xi32>
    %c4_i32_39 = arith.constant 4 : i32
    %127 = vector.broadcast %c4_i32_39 : i32 to vector<1x6x4xi32>
    %128 = arith.cmpi slt, %124, %127 : vector<1x6x4xi32>
    %129 = arith.andi %126, %128 : vector<1x6x4xi1>
    %130 = arith.extui %129 : vector<1x6x4xi1> to vector<1x6x4xi32>
    %131 = arith.sitofp %130 : vector<1x6x4xi32> to vector<1x6x4xf32>
    %132 = vector.broadcast %131 : vector<1x6x4xf32> to vector<8x6x4xf32>
    %133 = arith.mulf %120, %132 : vector<8x6x4xf32>
    %134 = arith.truncf %133 : vector<8x6x4xf32> to vector<8x6x4xbf16>
    %c0_40 = arith.constant 0 : index
    %c0_41 = arith.constant 0 : index
    %c1_42 = arith.constant 1 : index
    %135 = vector.load %arg12[%c0_40, %c0_41, %c1_42] : memref<8x10x6xbf16, #tpu.memory_space<vmem>>, vector<8x6x4xbf16>
    tpu.vector_store %arg12[%c0_40, %c0_41, %c1_42], %134 {strides = array<i32>} : memref<8x10x6xbf16, #tpu.memory_space<vmem>>, vector<8x6x4xbf16>,
    %cst_43 = arith.constant 0.000000e+00 : f32
    %136 = vector.broadcast %cst_43 : f32 to vector<4x4xf32>
    %c0_44 = arith.constant 0 : index
    %c0_45 = arith.constant 0 : index
    %137 = memref.load %arg10[%c0_44, %c0_45] : memref<1x1xf32, #tpu.memory_space<smem>>
    %138 = vector.broadcast %137 : f32 to vector<4x4xf32>
    %139 = arith.addf %136, %138 : vector<4x4xf32>
    %c0_46 = arith.constant 0 : index
    %c0_47 = arith.constant 0 : index
    %c0_48 = arith.constant 0 : index
    %140 = vector.load %arg12[%c0_46, %c0_47, %c0_48] : memref<8x10x6xbf16, #tpu.memory_space<vmem>>, vector<8x4x4xbf16>
    %141 = arith.extf %140 : vector<8x4x4xbf16> to vector<8x4x4xf32>
    %c0_49 = arith.constant 0 : index
    %c0_50 = arith.constant 0 : index
    %142 = memref.load %arg9[%c0_49, %c0_50] : memref<9x8xf32, #tpu.memory_space<smem>>
    %143 = vector.extract_strided_slice %141 {offsets = [0, 0, 0], sizes = [1, 4, 4], strides = [1, 1, 1]} : vector<8x4x4xf32> to vector<1x4x4xf32>
    %144 = vector.shape_cast %143 : vector<1x4x4xf32> to vector<4x4xf32>
    %145 = vector.broadcast %142 : f32 to vector<4x4xf32>
    %146 = arith.mulf %145, %144 : vector<4x4xf32>
    %147 = arith.addf %139, %146 : vector<4x4xf32>
    %c0_51 = arith.constant 0 : index
    %c1_52 = arith.constant 1 : index
    %148 = memref.load %arg9[%c0_51, %c1_52] : memref<9x8xf32, #tpu.memory_space<smem>>
    %149 = vector.extract_strided_slice %141 {offsets = [1, 0, 0], sizes = [1, 4, 4], strides = [1, 1, 1]} : vector<8x4x4xf32> to vector<1x4x4xf32>
    %150 = vector.shape_cast %149 : vector<1x4x4xf32> to vector<4x4xf32>
    %151 = vector.broadcast %148 : f32 to vector<4x4xf32>
    %152 = arith.mulf %151, %150 : vector<4x4xf32>
    %153 = arith.addf %147, %152 : vector<4x4xf32>
    %c0_53 = arith.constant 0 : index
    %c2 = arith.constant 2 : index
    %154 = memref.load %arg9[%c0_53, %c2] : memref<9x8xf32, #tpu.memory_space<smem>>
    %155 = vector.extract_strided_slice %141 {offsets = [2, 0, 0], sizes = [1, 4, 4], strides = [1, 1, 1]} : vector<8x4x4xf32> to vector<1x4x4xf32>
    %156 = vector.shape_cast %155 : vector<1x4x4xf32> to vector<4x4xf32>
    %157 = vector.broadcast %154 : f32 to vector<4x4xf32>
    %158 = arith.mulf %157, %156 : vector<4x4xf32>
    %159 = arith.addf %153, %158 : vector<4x4xf32>
    %c0_54 = arith.constant 0 : index
    %c3 = arith.constant 3 : index
    %160 = memref.load %arg9[%c0_54, %c3] : memref<9x8xf32, #tpu.memory_space<smem>>
    %161 = vector.extract_strided_slice %141 {offsets = [3, 0, 0], sizes = [1, 4, 4], strides = [1, 1, 1]} : vector<8x4x4xf32> to vector<1x4x4xf32>
    %162 = vector.shape_cast %161 : vector<1x4x4xf32> to vector<4x4xf32>
    %163 = vector.broadcast %160 : f32 to vector<4x4xf32>
    %164 = arith.mulf %163, %162 : vector<4x4xf32>
    %165 = arith.addf %159, %164 : vector<4x4xf32>
    %c0_55 = arith.constant 0 : index
    %c4 = arith.constant 4 : index
    %166 = memref.load %arg9[%c0_55, %c4] : memref<9x8xf32, #tpu.memory_space<smem>>
    %167 = vector.extract_strided_slice %141 {offsets = [4, 0, 0], sizes = [1, 4, 4], strides = [1, 1, 1]} : vector<8x4x4xf32> to vector<1x4x4xf32>
    %168 = vector.shape_cast %167 : vector<1x4x4xf32> to vector<4x4xf32>
    %169 = vector.broadcast %166 : f32 to vector<4x4xf32>
    %170 = arith.mulf %169, %168 : vector<4x4xf32>
    %171 = arith.addf %165, %170 : vector<4x4xf32>
    %c0_56 = arith.constant 0 : index
    %c5 = arith.constant 5 : index
    %172 = memref.load %arg9[%c0_56, %c5] : memref<9x8xf32, #tpu.memory_space<smem>>
    %173 = vector.extract_strided_slice %141 {offsets = [5, 0, 0], sizes = [1, 4, 4], strides = [1, 1, 1]} : vector<8x4x4xf32> to vector<1x4x4xf32>
    %174 = vector.shape_cast %173 : vector<1x4x4xf32> to vector<4x4xf32>
    %175 = vector.broadcast %172 : f32 to vector<4x4xf32>
    %176 = arith.mulf %175, %174 : vector<4x4xf32>
    %177 = arith.addf %171, %176 : vector<4x4xf32>
    %c0_57 = arith.constant 0 : index
    %c6 = arith.constant 6 : index
    %178 = memref.load %arg9[%c0_57, %c6] : memref<9x8xf32, #tpu.memory_space<smem>>
    %179 = vector.extract_strided_slice %141 {offsets = [6, 0, 0], sizes = [1, 4, 4], strides = [1, 1, 1]} : vector<8x4x4xf32> to vector<1x4x4xf32>
    %180 = vector.shape_cast %179 : vector<1x4x4xf32> to vector<4x4xf32>
    %181 = vector.broadcast %178 : f32 to vector<4x4xf32>
    %182 = arith.mulf %181, %180 : vector<4x4xf32>
    %183 = arith.addf %177, %182 : vector<4x4xf32>
    %c0_58 = arith.constant 0 : index
    %c7 = arith.constant 7 : index
    %184 = memref.load %arg9[%c0_58, %c7] : memref<9x8xf32, #tpu.memory_space<smem>>
    %185 = vector.extract_strided_slice %141 {offsets = [7, 0, 0], sizes = [1, 4, 4], strides = [1, 1, 1]} : vector<8x4x4xf32> to vector<1x4x4xf32>
    %186 = vector.shape_cast %185 : vector<1x4x4xf32> to vector<4x4xf32>
    %187 = vector.broadcast %184 : f32 to vector<4x4xf32>
    %188 = arith.mulf %187, %186 : vector<4x4xf32>
    %189 = arith.addf %183, %188 : vector<4x4xf32>
    %c0_59 = arith.constant 0 : index
    %c0_60 = arith.constant 0 : index
    %c1_61 = arith.constant 1 : index
    %190 = vector.load %arg12[%c0_59, %c0_60, %c1_61] : memref<8x10x6xbf16, #tpu.memory_space<vmem>>, vector<8x4x4xbf16>
    %191 = arith.extf %190 : vector<8x4x4xbf16> to vector<8x4x4xf32>
    %c1_62 = arith.constant 1 : index
    %c0_63 = arith.constant 0 : index
    %192 = memref.load %arg9[%c1_62, %c0_63] : memref<9x8xf32, #tpu.memory_space<smem>>
    %193 = vector.extract_strided_slice %191 {offsets = [0, 0, 0], sizes = [1, 4, 4], strides = [1, 1, 1]} : vector<8x4x4xf32> to vector<1x4x4xf32>
    %194 = vector.shape_cast %193 : vector<1x4x4xf32> to vector<4x4xf32>
    %195 = vector.broadcast %192 : f32 to vector<4x4xf32>
    %196 = arith.mulf %195, %194 : vector<4x4xf32>
    %197 = arith.addf %189, %196 : vector<4x4xf32>
    %c1_64 = arith.constant 1 : index
    %c1_65 = arith.constant 1 : index
    %198 = memref.load %arg9[%c1_64, %c1_65] : memref<9x8xf32, #tpu.memory_space<smem>>
    %199 = vector.extract_strided_slice %191 {offsets = [1, 0, 0], sizes = [1, 4, 4], strides = [1, 1, 1]} : vector<8x4x4xf32> to vector<1x4x4xf32>
    %200 = vector.shape_cast %199 : vector<1x4x4xf32> to vector<4x4xf32>
    %201 = vector.broadcast %198 : f32 to vector<4x4xf32>
    %202 = arith.mulf %201, %200 : vector<4x4xf32>
    %203 = arith.addf %197, %202 : vector<4x4xf32>
    %c1_66 = arith.constant 1 : index
    %c2_67 = arith.constant 2 : index
    %204 = memref.load %arg9[%c1_66, %c2_67] : memref<9x8xf32, #tpu.memory_space<smem>>
    %205 = vector.extract_strided_slice %191 {offsets = [2, 0, 0], sizes = [1, 4, 4], strides = [1, 1, 1]} : vector<8x4x4xf32> to vector<1x4x4xf32>
    %206 = vector.shape_cast %205 : vector<1x4x4xf32> to vector<4x4xf32>
    %207 = vector.broadcast %204 : f32 to vector<4x4xf32>
    %208 = arith.mulf %207, %206 : vector<4x4xf32>
    %209 = arith.addf %203, %208 : vector<4x4xf32>
    %c1_68 = arith.constant 1 : index
    %c3_69 = arith.constant 3 : index
    %210 = memref.load %arg9[%c1_68, %c3_69] : memref<9x8xf32, #tpu.memory_space<smem>>
    %211 = vector.extract_strided_slice %191 {offsets = [3, 0, 0], sizes = [1, 4, 4], strides = [1, 1, 1]} : vector<8x4x4xf32> to vector<1x4x4xf32>
    %212 = vector.shape_cast %211 : vector<1x4x4xf32> to vector<4x4xf32>
    %213 = vector.broadcast %210 : f32 to vector<4x4xf32>
    %214 = arith.mulf %213, %212 : vector<4x4xf32>
    %215 = arith.addf %209, %214 : vector<4x4xf32>
    %c1_70 = arith.constant 1 : index
    %c4_71 = arith.constant 4 : index
    %216 = memref.load %arg9[%c1_70, %c4_71] : memref<9x8xf32, #tpu.memory_space<smem>>
    %217 = vector.extract_strided_slice %191 {offsets = [4, 0, 0], sizes = [1, 4, 4], strides = [1, 1, 1]} : vector<8x4x4xf32> to vector<1x4x4xf32>
    %218 = vector.shape_cast %217 : vector<1x4x4xf32> to vector<4x4xf32>
    %219 = vector.broadcast %216 : f32 to vector<4x4xf32>
    %220 = arith.mulf %219, %218 : vector<4x4xf32>
    %221 = arith.addf %215, %220 : vector<4x4xf32>
    %c1_72 = arith.constant 1 : index
    %c5_73 = arith.constant 5 : index
    %222 = memref.load %arg9[%c1_72, %c5_73] : memref<9x8xf32, #tpu.memory_space<smem>>
    %223 = vector.extract_strided_slice %191 {offsets = [5, 0, 0], sizes = [1, 4, 4], strides = [1, 1, 1]} : vector<8x4x4xf32> to vector<1x4x4xf32>
    %224 = vector.shape_cast %223 : vector<1x4x4xf32> to vector<4x4xf32>
    %225 = vector.broadcast %222 : f32 to vector<4x4xf32>
    %226 = arith.mulf %225, %224 : vector<4x4xf32>
    %227 = arith.addf %221, %226 : vector<4x4xf32>
    %c1_74 = arith.constant 1 : index
    %c6_75 = arith.constant 6 : index
    %228 = memref.load %arg9[%c1_74, %c6_75] : memref<9x8xf32, #tpu.memory_space<smem>>
    %229 = vector.extract_strided_slice %191 {offsets = [6, 0, 0], sizes = [1, 4, 4], strides = [1, 1, 1]} : vector<8x4x4xf32> to vector<1x4x4xf32>
    %230 = vector.shape_cast %229 : vector<1x4x4xf32> to vector<4x4xf32>
    %231 = vector.broadcast %228 : f32 to vector<4x4xf32>
    %232 = arith.mulf %231, %230 : vector<4x4xf32>
    %233 = arith.addf %227, %232 : vector<4x4xf32>
    %c1_76 = arith.constant 1 : index
    %c7_77 = arith.constant 7 : index
    %234 = memref.load %arg9[%c1_76, %c7_77] : memref<9x8xf32, #tpu.memory_space<smem>>
    %235 = vector.extract_strided_slice %191 {offsets = [7, 0, 0], sizes = [1, 4, 4], strides = [1, 1, 1]} : vector<8x4x4xf32> to vector<1x4x4xf32>
    %236 = vector.shape_cast %235 : vector<1x4x4xf32> to vector<4x4xf32>
    %237 = vector.broadcast %234 : f32 to vector<4x4xf32>
    %238 = arith.mulf %237, %236 : vector<4x4xf32>
    %239 = arith.addf %233, %238 : vector<4x4xf32>
    %c0_78 = arith.constant 0 : index
    %c0_79 = arith.constant 0 : index
    %c2_80 = arith.constant 2 : index
    %240 = vector.load %arg12[%c0_78, %c0_79, %c2_80] : memref<8x10x6xbf16, #tpu.memory_space<vmem>>, vector<8x4x4xbf16>
    %241 = arith.extf %240 : vector<8x4x4xbf16> to vector<8x4x4xf32>
    %c2_81 = arith.constant 2 : index
    %c0_82 = arith.constant 0 : index
    %242 = memref.load %arg9[%c2_81, %c0_82] : memref<9x8xf32, #tpu.memory_space<smem>>
    %243 = vector.extract_strided_slice %241 {offsets = [0, 0, 0], sizes = [1, 4, 4], strides = [1, 1, 1]} : vector<8x4x4xf32> to vector<1x4x4xf32>
    %244 = vector.shape_cast %243 : vector<1x4x4xf32> to vector<4x4xf32>
    %245 = vector.broadcast %242 : f32 to vector<4x4xf32>
    %246 = arith.mulf %245, %244 : vector<4x4xf32>
    %247 = arith.addf %239, %246 : vector<4x4xf32>
    %c2_83 = arith.constant 2 : index
    %c1_84 = arith.constant 1 : index
    %248 = memref.load %arg9[%c2_83, %c1_84] : memref<9x8xf32, #tpu.memory_space<smem>>
    %249 = vector.extract_strided_slice %241 {offsets = [1, 0, 0], sizes = [1, 4, 4], strides = [1, 1, 1]} : vector<8x4x4xf32> to vector<1x4x4xf32>
    %250 = vector.shape_cast %249 : vector<1x4x4xf32> to vector<4x4xf32>
    %251 = vector.broadcast %248 : f32 to vector<4x4xf32>
    %252 = arith.mulf %251, %250 : vector<4x4xf32>
    %253 = arith.addf %247, %252 : vector<4x4xf32>
    %c2_85 = arith.constant 2 : index
    %c2_86 = arith.constant 2 : index
    %254 = memref.load %arg9[%c2_85, %c2_86] : memref<9x8xf32, #tpu.memory_space<smem>>
    %255 = vector.extract_strided_slice %241 {offsets = [2, 0, 0], sizes = [1, 4, 4], strides = [1, 1, 1]} : vector<8x4x4xf32> to vector<1x4x4xf32>
    %256 = vector.shape_cast %255 : vector<1x4x4xf32> to vector<4x4xf32>
    %257 = vector.broadcast %254 : f32 to vector<4x4xf32>
    %258 = arith.mulf %257, %256 : vector<4x4xf32>
    %259 = arith.addf %253, %258 : vector<4x4xf32>
    %c2_87 = arith.constant 2 : index
    %c3_88 = arith.constant 3 : index
    %260 = memref.load %arg9[%c2_87, %c3_88] : memref<9x8xf32, #tpu.memory_space<smem>>
    %261 = vector.extract_strided_slice %241 {offsets = [3, 0, 0], sizes = [1, 4, 4], strides = [1, 1, 1]} : vector<8x4x4xf32> to vector<1x4x4xf32>
    %262 = vector.shape_cast %261 : vector<1x4x4xf32> to vector<4x4xf32>
    %263 = vector.broadcast %260 : f32 to vector<4x4xf32>
    %264 = arith.mulf %263, %262 : vector<4x4xf32>
    %265 = arith.addf %259, %264 : vector<4x4xf32>
    %c2_89 = arith.constant 2 : index
    %c4_90 = arith.constant 4 : index
    %266 = memref.load %arg9[%c2_89, %c4_90] : memref<9x8xf32, #tpu.memory_space<smem>>
    %267 = vector.extract_strided_slice %241 {offsets = [4, 0, 0], sizes = [1, 4, 4], strides = [1, 1, 1]} : vector<8x4x4xf32> to vector<1x4x4xf32>
    %268 = vector.shape_cast %267 : vector<1x4x4xf32> to vector<4x4xf32>
    %269 = vector.broadcast %266 : f32 to vector<4x4xf32>
    %270 = arith.mulf %269, %268 : vector<4x4xf32>
    %271 = arith.addf %265, %270 : vector<4x4xf32>
    %c2_91 = arith.constant 2 : index
    %c5_92 = arith.constant 5 : index
    %272 = memref.load %arg9[%c2_91, %c5_92] : memref<9x8xf32, #tpu.memory_space<smem>>
    %273 = vector.extract_strided_slice %241 {offsets = [5, 0, 0], sizes = [1, 4, 4], strides = [1, 1, 1]} : vector<8x4x4xf32> to vector<1x4x4xf32>
    %274 = vector.shape_cast %273 : vector<1x4x4xf32> to vector<4x4xf32>
    %275 = vector.broadcast %272 : f32 to vector<4x4xf32>
    %276 = arith.mulf %275, %274 : vector<4x4xf32>
    %277 = arith.addf %271, %276 : vector<4x4xf32>
    %c2_93 = arith.constant 2 : index
    %c6_94 = arith.constant 6 : index
    %278 = memref.load %arg9[%c2_93, %c6_94] : memref<9x8xf32, #tpu.memory_space<smem>>
    %279 = vector.extract_strided_slice %241 {offsets = [6, 0, 0], sizes = [1, 4, 4], strides = [1, 1, 1]} : vector<8x4x4xf32> to vector<1x4x4xf32>
    %280 = vector.shape_cast %279 : vector<1x4x4xf32> to vector<4x4xf32>
    %281 = vector.broadcast %278 : f32 to vector<4x4xf32>
    %282 = arith.mulf %281, %280 : vector<4x4xf32>
    %283 = arith.addf %277, %282 : vector<4x4xf32>
    %c2_95 = arith.constant 2 : index
    %c7_96 = arith.constant 7 : index
    %284 = memref.load %arg9[%c2_95, %c7_96] : memref<9x8xf32, #tpu.memory_space<smem>>
    %285 = vector.extract_strided_slice %241 {offsets = [7, 0, 0], sizes = [1, 4, 4], strides = [1, 1, 1]} : vector<8x4x4xf32> to vector<1x4x4xf32>
    %286 = vector.shape_cast %285 : vector<1x4x4xf32> to vector<4x4xf32>
    %287 = vector.broadcast %284 : f32 to vector<4x4xf32>
    %288 = arith.mulf %287, %286 : vector<4x4xf32>
    %289 = arith.addf %283, %288 : vector<4x4xf32>
    %c0_97 = arith.constant 0 : index
    %c1_98 = arith.constant 1 : index
    %c0_99 = arith.constant 0 : index
    %290 = vector.load %arg12[%c0_97, %c1_98, %c0_99] : memref<8x10x6xbf16, #tpu.memory_space<vmem>>, vector<8x4x4xbf16>
    %291 = arith.extf %290 : vector<8x4x4xbf16> to vector<8x4x4xf32>
    %c3_100 = arith.constant 3 : index
    %c0_101 = arith.constant 0 : index
    %292 = memref.load %arg9[%c3_100, %c0_101] : memref<9x8xf32, #tpu.memory_space<smem>>
    %293 = vector.extract_strided_slice %291 {offsets = [0, 0, 0], sizes = [1, 4, 4], strides = [1, 1, 1]} : vector<8x4x4xf32> to vector<1x4x4xf32>
    %294 = vector.shape_cast %293 : vector<1x4x4xf32> to vector<4x4xf32>
    %295 = vector.broadcast %292 : f32 to vector<4x4xf32>
    %296 = arith.mulf %295, %294 : vector<4x4xf32>
    %297 = arith.addf %289, %296 : vector<4x4xf32>
    %c3_102 = arith.constant 3 : index
    %c1_103 = arith.constant 1 : index
    %298 = memref.load %arg9[%c3_102, %c1_103] : memref<9x8xf32, #tpu.memory_space<smem>>
    %299 = vector.extract_strided_slice %291 {offsets = [1, 0, 0], sizes = [1, 4, 4], strides = [1, 1, 1]} : vector<8x4x4xf32> to vector<1x4x4xf32>
    %300 = vector.shape_cast %299 : vector<1x4x4xf32> to vector<4x4xf32>
    %301 = vector.broadcast %298 : f32 to vector<4x4xf32>
    %302 = arith.mulf %301, %300 : vector<4x4xf32>
    %303 = arith.addf %297, %302 : vector<4x4xf32>
    %c3_104 = arith.constant 3 : index
    %c2_105 = arith.constant 2 : index
    %304 = memref.load %arg9[%c3_104, %c2_105] : memref<9x8xf32, #tpu.memory_space<smem>>
    %305 = vector.extract_strided_slice %291 {offsets = [2, 0, 0], sizes = [1, 4, 4], strides = [1, 1, 1]} : vector<8x4x4xf32> to vector<1x4x4xf32>
    %306 = vector.shape_cast %305 : vector<1x4x4xf32> to vector<4x4xf32>
    %307 = vector.broadcast %304 : f32 to vector<4x4xf32>
    %308 = arith.mulf %307, %306 : vector<4x4xf32>
    %309 = arith.addf %303, %308 : vector<4x4xf32>
    %c3_106 = arith.constant 3 : index
    %c3_107 = arith.constant 3 : index
    %310 = memref.load %arg9[%c3_106, %c3_107] : memref<9x8xf32, #tpu.memory_space<smem>>
    %311 = vector.extract_strided_slice %291 {offsets = [3, 0, 0], sizes = [1, 4, 4], strides = [1, 1, 1]} : vector<8x4x4xf32> to vector<1x4x4xf32>
    %312 = vector.shape_cast %311 : vector<1x4x4xf32> to vector<4x4xf32>
    %313 = vector.broadcast %310 : f32 to vector<4x4xf32>
    %314 = arith.mulf %313, %312 : vector<4x4xf32>
    %315 = arith.addf %309, %314 : vector<4x4xf32>
    %c3_108 = arith.constant 3 : index
    %c4_109 = arith.constant 4 : index
    %316 = memref.load %arg9[%c3_108, %c4_109] : memref<9x8xf32, #tpu.memory_space<smem>>
    %317 = vector.extract_strided_slice %291 {offsets = [4, 0, 0], sizes = [1, 4, 4], strides = [1, 1, 1]} : vector<8x4x4xf32> to vector<1x4x4xf32>
    %318 = vector.shape_cast %317 : vector<1x4x4xf32> to vector<4x4xf32>
    %319 = vector.broadcast %316 : f32 to vector<4x4xf32>
    %320 = arith.mulf %319, %318 : vector<4x4xf32>
    %321 = arith.addf %315, %320 : vector<4x4xf32>
    %c3_110 = arith.constant 3 : index
    %c5_111 = arith.constant 5 : index
    %322 = memref.load %arg9[%c3_110, %c5_111] : memref<9x8xf32, #tpu.memory_space<smem>>
    %323 = vector.extract_strided_slice %291 {offsets = [5, 0, 0], sizes = [1, 4, 4], strides = [1, 1, 1]} : vector<8x4x4xf32> to vector<1x4x4xf32>
    %324 = vector.shape_cast %323 : vector<1x4x4xf32> to vector<4x4xf32>
    %325 = vector.broadcast %322 : f32 to vector<4x4xf32>
    %326 = arith.mulf %325, %324 : vector<4x4xf32>
    %327 = arith.addf %321, %326 : vector<4x4xf32>
    %c3_112 = arith.constant 3 : index
    %c6_113 = arith.constant 6 : index
    %328 = memref.load %arg9[%c3_112, %c6_113] : memref<9x8xf32, #tpu.memory_space<smem>>
    %329 = vector.extract_strided_slice %291 {offsets = [6, 0, 0], sizes = [1, 4, 4], strides = [1, 1, 1]} : vector<8x4x4xf32> to vector<1x4x4xf32>
    %330 = vector.shape_cast %329 : vector<1x4x4xf32> to vector<4x4xf32>
    %331 = vector.broadcast %328 : f32 to vector<4x4xf32>
    %332 = arith.mulf %331, %330 : vector<4x4xf32>
    %333 = arith.addf %327, %332 : vector<4x4xf32>
    %c3_114 = arith.constant 3 : index
    %c7_115 = arith.constant 7 : index
    %334 = memref.load %arg9[%c3_114, %c7_115] : memref<9x8xf32, #tpu.memory_space<smem>>
    %335 = vector.extract_strided_slice %291 {offsets = [7, 0, 0], sizes = [1, 4, 4], strides = [1, 1, 1]} : vector<8x4x4xf32> to vector<1x4x4xf32>
    %336 = vector.shape_cast %335 : vector<1x4x4xf32> to vector<4x4xf32>
    %337 = vector.broadcast %334 : f32 to vector<4x4xf32>
    %338 = arith.mulf %337, %336 : vector<4x4xf32>
    %339 = arith.addf %333, %338 : vector<4x4xf32>
    %c0_116 = arith.constant 0 : index
    %c1_117 = arith.constant 1 : index
    %c1_118 = arith.constant 1 : index
    %340 = vector.load %arg12[%c0_116, %c1_117, %c1_118] : memref<8x10x6xbf16, #tpu.memory_space<vmem>>, vector<8x4x4xbf16>
    %341 = arith.extf %340 : vector<8x4x4xbf16> to vector<8x4x4xf32>
    %c4_119 = arith.constant 4 : index
    %c0_120 = arith.constant 0 : index
    %342 = memref.load %arg9[%c4_119, %c0_120] : memref<9x8xf32, #tpu.memory_space<smem>>
    %343 = vector.extract_strided_slice %341 {offsets = [0, 0, 0], sizes = [1, 4, 4], strides = [1, 1, 1]} : vector<8x4x4xf32> to vector<1x4x4xf32>
    %344 = vector.shape_cast %343 : vector<1x4x4xf32> to vector<4x4xf32>
    %345 = vector.broadcast %342 : f32 to vector<4x4xf32>
    %346 = arith.mulf %345, %344 : vector<4x4xf32>
    %347 = arith.addf %339, %346 : vector<4x4xf32>
    %c4_121 = arith.constant 4 : index
    %c1_122 = arith.constant 1 : index
    %348 = memref.load %arg9[%c4_121, %c1_122] : memref<9x8xf32, #tpu.memory_space<smem>>
    %349 = vector.extract_strided_slice %341 {offsets = [1, 0, 0], sizes = [1, 4, 4], strides = [1, 1, 1]} : vector<8x4x4xf32> to vector<1x4x4xf32>
    %350 = vector.shape_cast %349 : vector<1x4x4xf32> to vector<4x4xf32>
    %351 = vector.broadcast %348 : f32 to vector<4x4xf32>
    %352 = arith.mulf %351, %350 : vector<4x4xf32>
    %353 = arith.addf %347, %352 : vector<4x4xf32>
    %c4_123 = arith.constant 4 : index
    %c2_124 = arith.constant 2 : index
    %354 = memref.load %arg9[%c4_123, %c2_124] : memref<9x8xf32, #tpu.memory_space<smem>>
    %355 = vector.extract_strided_slice %341 {offsets = [2, 0, 0], sizes = [1, 4, 4], strides = [1, 1, 1]} : vector<8x4x4xf32> to vector<1x4x4xf32>
    %356 = vector.shape_cast %355 : vector<1x4x4xf32> to vector<4x4xf32>
    %357 = vector.broadcast %354 : f32 to vector<4x4xf32>
    %358 = arith.mulf %357, %356 : vector<4x4xf32>
    %359 = arith.addf %353, %358 : vector<4x4xf32>
    %c4_125 = arith.constant 4 : index
    %c3_126 = arith.constant 3 : index
    %360 = memref.load %arg9[%c4_125, %c3_126] : memref<9x8xf32, #tpu.memory_space<smem>>
    %361 = vector.extract_strided_slice %341 {offsets = [3, 0, 0], sizes = [1, 4, 4], strides = [1, 1, 1]} : vector<8x4x4xf32> to vector<1x4x4xf32>
    %362 = vector.shape_cast %361 : vector<1x4x4xf32> to vector<4x4xf32>
    %363 = vector.broadcast %360 : f32 to vector<4x4xf32>
    %364 = arith.mulf %363, %362 : vector<4x4xf32>
    %365 = arith.addf %359, %364 : vector<4x4xf32>
    %c4_127 = arith.constant 4 : index
    %c4_128 = arith.constant 4 : index
    %366 = memref.load %arg9[%c4_127, %c4_128] : memref<9x8xf32, #tpu.memory_space<smem>>
    %367 = vector.extract_strided_slice %341 {offsets = [4, 0, 0], sizes = [1, 4, 4], strides = [1, 1, 1]} : vector<8x4x4xf32> to vector<1x4x4xf32>
    %368 = vector.shape_cast %367 : vector<1x4x4xf32> to vector<4x4xf32>
    %369 = vector.broadcast %366 : f32 to vector<4x4xf32>
    %370 = arith.mulf %369, %368 : vector<4x4xf32>
    %371 = arith.addf %365, %370 : vector<4x4xf32>
    %c4_129 = arith.constant 4 : index
    %c5_130 = arith.constant 5 : index
    %372 = memref.load %arg9[%c4_129, %c5_130] : memref<9x8xf32, #tpu.memory_space<smem>>
    %373 = vector.extract_strided_slice %341 {offsets = [5, 0, 0], sizes = [1, 4, 4], strides = [1, 1, 1]} : vector<8x4x4xf32> to vector<1x4x4xf32>
    %374 = vector.shape_cast %373 : vector<1x4x4xf32> to vector<4x4xf32>
    %375 = vector.broadcast %372 : f32 to vector<4x4xf32>
    %376 = arith.mulf %375, %374 : vector<4x4xf32>
    %377 = arith.addf %371, %376 : vector<4x4xf32>
    %c4_131 = arith.constant 4 : index
    %c6_132 = arith.constant 6 : index
    %378 = memref.load %arg9[%c4_131, %c6_132] : memref<9x8xf32, #tpu.memory_space<smem>>
    %379 = vector.extract_strided_slice %341 {offsets = [6, 0, 0], sizes = [1, 4, 4], strides = [1, 1, 1]} : vector<8x4x4xf32> to vector<1x4x4xf32>
    %380 = vector.shape_cast %379 : vector<1x4x4xf32> to vector<4x4xf32>
    %381 = vector.broadcast %378 : f32 to vector<4x4xf32>
    %382 = arith.mulf %381, %380 : vector<4x4xf32>
    %383 = arith.addf %377, %382 : vector<4x4xf32>
    %c4_133 = arith.constant 4 : index
    %c7_134 = arith.constant 7 : index
    %384 = memref.load %arg9[%c4_133, %c7_134] : memref<9x8xf32, #tpu.memory_space<smem>>
    %385 = vector.extract_strided_slice %341 {offsets = [7, 0, 0], sizes = [1, 4, 4], strides = [1, 1, 1]} : vector<8x4x4xf32> to vector<1x4x4xf32>
    %386 = vector.shape_cast %385 : vector<1x4x4xf32> to vector<4x4xf32>
    %387 = vector.broadcast %384 : f32 to vector<4x4xf32>
    %388 = arith.mulf %387, %386 : vector<4x4xf32>
    %389 = arith.addf %383, %388 : vector<4x4xf32>
    %c0_135 = arith.constant 0 : index
    %c1_136 = arith.constant 1 : index
    %c2_137 = arith.constant 2 : index
    %390 = vector.load %arg12[%c0_135, %c1_136, %c2_137] : memref<8x10x6xbf16, #tpu.memory_space<vmem>>, vector<8x4x4xbf16>
    %391 = arith.extf %390 : vector<8x4x4xbf16> to vector<8x4x4xf32>
    %c5_138 = arith.constant 5 : index
    %c0_139 = arith.constant 0 : index
    %392 = memref.load %arg9[%c5_138, %c0_139] : memref<9x8xf32, #tpu.memory_space<smem>>
    %393 = vector.extract_strided_slice %391 {offsets = [0, 0, 0], sizes = [1, 4, 4], strides = [1, 1, 1]} : vector<8x4x4xf32> to vector<1x4x4xf32>
    %394 = vector.shape_cast %393 : vector<1x4x4xf32> to vector<4x4xf32>
    %395 = vector.broadcast %392 : f32 to vector<4x4xf32>
    %396 = arith.mulf %395, %394 : vector<4x4xf32>
    %397 = arith.addf %389, %396 : vector<4x4xf32>
    %c5_140 = arith.constant 5 : index
    %c1_141 = arith.constant 1 : index
    %398 = memref.load %arg9[%c5_140, %c1_141] : memref<9x8xf32, #tpu.memory_space<smem>>
    %399 = vector.extract_strided_slice %391 {offsets = [1, 0, 0], sizes = [1, 4, 4], strides = [1, 1, 1]} : vector<8x4x4xf32> to vector<1x4x4xf32>
    %400 = vector.shape_cast %399 : vector<1x4x4xf32> to vector<4x4xf32>
    %401 = vector.broadcast %398 : f32 to vector<4x4xf32>
    %402 = arith.mulf %401, %400 : vector<4x4xf32>
    %403 = arith.addf %397, %402 : vector<4x4xf32>
    %c5_142 = arith.constant 5 : index
    %c2_143 = arith.constant 2 : index
    %404 = memref.load %arg9[%c5_142, %c2_143] : memref<9x8xf32, #tpu.memory_space<smem>>
    %405 = vector.extract_strided_slice %391 {offsets = [2, 0, 0], sizes = [1, 4, 4], strides = [1, 1, 1]} : vector<8x4x4xf32> to vector<1x4x4xf32>
    %406 = vector.shape_cast %405 : vector<1x4x4xf32> to vector<4x4xf32>
    %407 = vector.broadcast %404 : f32 to vector<4x4xf32>
    %408 = arith.mulf %407, %406 : vector<4x4xf32>
    %409 = arith.addf %403, %408 : vector<4x4xf32>
    %c5_144 = arith.constant 5 : index
    %c3_145 = arith.constant 3 : index
    %410 = memref.load %arg9[%c5_144, %c3_145] : memref<9x8xf32, #tpu.memory_space<smem>>
    %411 = vector.extract_strided_slice %391 {offsets = [3, 0, 0], sizes = [1, 4, 4], strides = [1, 1, 1]} : vector<8x4x4xf32> to vector<1x4x4xf32>
    %412 = vector.shape_cast %411 : vector<1x4x4xf32> to vector<4x4xf32>
    %413 = vector.broadcast %410 : f32 to vector<4x4xf32>
    %414 = arith.mulf %413, %412 : vector<4x4xf32>
    %415 = arith.addf %409, %414 : vector<4x4xf32>
    %c5_146 = arith.constant 5 : index
    %c4_147 = arith.constant 4 : index
    %416 = memref.load %arg9[%c5_146, %c4_147] : memref<9x8xf32, #tpu.memory_space<smem>>
    %417 = vector.extract_strided_slice %391 {offsets = [4, 0, 0], sizes = [1, 4, 4], strides = [1, 1, 1]} : vector<8x4x4xf32> to vector<1x4x4xf32>
    %418 = vector.shape_cast %417 : vector<1x4x4xf32> to vector<4x4xf32>
    %419 = vector.broadcast %416 : f32 to vector<4x4xf32>
    %420 = arith.mulf %419, %418 : vector<4x4xf32>
    %421 = arith.addf %415, %420 : vector<4x4xf32>
    %c5_148 = arith.constant 5 : index
    %c5_149 = arith.constant 5 : index
    %422 = memref.load %arg9[%c5_148, %c5_149] : memref<9x8xf32, #tpu.memory_space<smem>>
    %423 = vector.extract_strided_slice %391 {offsets = [5, 0, 0], sizes = [1, 4, 4], strides = [1, 1, 1]} : vector<8x4x4xf32> to vector<1x4x4xf32>
    %424 = vector.shape_cast %423 : vector<1x4x4xf32> to vector<4x4xf32>
    %425 = vector.broadcast %422 : f32 to vector<4x4xf32>
    %426 = arith.mulf %425, %424 : vector<4x4xf32>
    %427 = arith.addf %421, %426 : vector<4x4xf32>
    %c5_150 = arith.constant 5 : index
    %c6_151 = arith.constant 6 : index
    %428 = memref.load %arg9[%c5_150, %c6_151] : memref<9x8xf32, #tpu.memory_space<smem>>
    %429 = vector.extract_strided_slice %391 {offsets = [6, 0, 0], sizes = [1, 4, 4], strides = [1, 1, 1]} : vector<8x4x4xf32> to vector<1x4x4xf32>
    %430 = vector.shape_cast %429 : vector<1x4x4xf32> to vector<4x4xf32>
    %431 = vector.broadcast %428 : f32 to vector<4x4xf32>
    %432 = arith.mulf %431, %430 : vector<4x4xf32>
    %433 = arith.addf %427, %432 : vector<4x4xf32>
    %c5_152 = arith.constant 5 : index
    %c7_153 = arith.constant 7 : index
    %434 = memref.load %arg9[%c5_152, %c7_153] : memref<9x8xf32, #tpu.memory_space<smem>>
    %435 = vector.extract_strided_slice %391 {offsets = [7, 0, 0], sizes = [1, 4, 4], strides = [1, 1, 1]} : vector<8x4x4xf32> to vector<1x4x4xf32>
    %436 = vector.shape_cast %435 : vector<1x4x4xf32> to vector<4x4xf32>
    %437 = vector.broadcast %434 : f32 to vector<4x4xf32>
    %438 = arith.mulf %437, %436 : vector<4x4xf32>
    %439 = arith.addf %433, %438 : vector<4x4xf32>
    %c0_154 = arith.constant 0 : index
    %c2_155 = arith.constant 2 : index
    %c0_156 = arith.constant 0 : index
    %440 = vector.load %arg12[%c0_154, %c2_155, %c0_156] : memref<8x10x6xbf16, #tpu.memory_space<vmem>>, vector<8x4x4xbf16>
    %441 = arith.extf %440 : vector<8x4x4xbf16> to vector<8x4x4xf32>
    %c6_157 = arith.constant 6 : index
    %c0_158 = arith.constant 0 : index
    %442 = memref.load %arg9[%c6_157, %c0_158] : memref<9x8xf32, #tpu.memory_space<smem>>
    %443 = vector.extract_strided_slice %441 {offsets = [0, 0, 0], sizes = [1, 4, 4], strides = [1, 1, 1]} : vector<8x4x4xf32> to vector<1x4x4xf32>
    %444 = vector.shape_cast %443 : vector<1x4x4xf32> to vector<4x4xf32>
    %445 = vector.broadcast %442 : f32 to vector<4x4xf32>
    %446 = arith.mulf %445, %444 : vector<4x4xf32>
    %447 = arith.addf %439, %446 : vector<4x4xf32>
    %c6_159 = arith.constant 6 : index
    %c1_160 = arith.constant 1 : index
    %448 = memref.load %arg9[%c6_159, %c1_160] : memref<9x8xf32, #tpu.memory_space<smem>>
    %449 = vector.extract_strided_slice %441 {offsets = [1, 0, 0], sizes = [1, 4, 4], strides = [1, 1, 1]} : vector<8x4x4xf32> to vector<1x4x4xf32>
    %450 = vector.shape_cast %449 : vector<1x4x4xf32> to vector<4x4xf32>
    %451 = vector.broadcast %448 : f32 to vector<4x4xf32>
    %452 = arith.mulf %451, %450 : vector<4x4xf32>
    %453 = arith.addf %447, %452 : vector<4x4xf32>
    %c6_161 = arith.constant 6 : index
    %c2_162 = arith.constant 2 : index
    %454 = memref.load %arg9[%c6_161, %c2_162] : memref<9x8xf32, #tpu.memory_space<smem>>
    %455 = vector.extract_strided_slice %441 {offsets = [2, 0, 0], sizes = [1, 4, 4], strides = [1, 1, 1]} : vector<8x4x4xf32> to vector<1x4x4xf32>
    %456 = vector.shape_cast %455 : vector<1x4x4xf32> to vector<4x4xf32>
    %457 = vector.broadcast %454 : f32 to vector<4x4xf32>
    %458 = arith.mulf %457, %456 : vector<4x4xf32>
    %459 = arith.addf %453, %458 : vector<4x4xf32>
    %c6_163 = arith.constant 6 : index
    %c3_164 = arith.constant 3 : index
    %460 = memref.load %arg9[%c6_163, %c3_164] : memref<9x8xf32, #tpu.memory_space<smem>>
    %461 = vector.extract_strided_slice %441 {offsets = [3, 0, 0], sizes = [1, 4, 4], strides = [1, 1, 1]} : vector<8x4x4xf32> to vector<1x4x4xf32>
    %462 = vector.shape_cast %461 : vector<1x4x4xf32> to vector<4x4xf32>
    %463 = vector.broadcast %460 : f32 to vector<4x4xf32>
    %464 = arith.mulf %463, %462 : vector<4x4xf32>
    %465 = arith.addf %459, %464 : vector<4x4xf32>
    %c6_165 = arith.constant 6 : index
    %c4_166 = arith.constant 4 : index
    %466 = memref.load %arg9[%c6_165, %c4_166] : memref<9x8xf32, #tpu.memory_space<smem>>
    %467 = vector.extract_strided_slice %441 {offsets = [4, 0, 0], sizes = [1, 4, 4], strides = [1, 1, 1]} : vector<8x4x4xf32> to vector<1x4x4xf32>
    %468 = vector.shape_cast %467 : vector<1x4x4xf32> to vector<4x4xf32>
    %469 = vector.broadcast %466 : f32 to vector<4x4xf32>
    %470 = arith.mulf %469, %468 : vector<4x4xf32>
    %471 = arith.addf %465, %470 : vector<4x4xf32>
    %c6_167 = arith.constant 6 : index
    %c5_168 = arith.constant 5 : index
    %472 = memref.load %arg9[%c6_167, %c5_168] : memref<9x8xf32, #tpu.memory_space<smem>>
    %473 = vector.extract_strided_slice %441 {offsets = [5, 0, 0], sizes = [1, 4, 4], strides = [1, 1, 1]} : vector<8x4x4xf32> to vector<1x4x4xf32>
    %474 = vector.shape_cast %473 : vector<1x4x4xf32> to vector<4x4xf32>
    %475 = vector.broadcast %472 : f32 to vector<4x4xf32>
    %476 = arith.mulf %475, %474 : vector<4x4xf32>
    %477 = arith.addf %471, %476 : vector<4x4xf32>
    %c6_169 = arith.constant 6 : index
    %c6_170 = arith.constant 6 : index
    %478 = memref.load %arg9[%c6_169, %c6_170] : memref<9x8xf32, #tpu.memory_space<smem>>
    %479 = vector.extract_strided_slice %441 {offsets = [6, 0, 0], sizes = [1, 4, 4], strides = [1, 1, 1]} : vector<8x4x4xf32> to vector<1x4x4xf32>
    %480 = vector.shape_cast %479 : vector<1x4x4xf32> to vector<4x4xf32>
    %481 = vector.broadcast %478 : f32 to vector<4x4xf32>
    %482 = arith.mulf %481, %480 : vector<4x4xf32>
    %483 = arith.addf %477, %482 : vector<4x4xf32>
    %c6_171 = arith.constant 6 : index
    %c7_172 = arith.constant 7 : index
    %484 = memref.load %arg9[%c6_171, %c7_172] : memref<9x8xf32, #tpu.memory_space<smem>>
    %485 = vector.extract_strided_slice %441 {offsets = [7, 0, 0], sizes = [1, 4, 4], strides = [1, 1, 1]} : vector<8x4x4xf32> to vector<1x4x4xf32>
    %486 = vector.shape_cast %485 : vector<1x4x4xf32> to vector<4x4xf32>
    %487 = vector.broadcast %484 : f32 to vector<4x4xf32>
    %488 = arith.mulf %487, %486 : vector<4x4xf32>
    %489 = arith.addf %483, %488 : vector<4x4xf32>
    %c0_173 = arith.constant 0 : index
    %c2_174 = arith.constant 2 : index
    %c1_175 = arith.constant 1 : index
    %490 = vector.load %arg12[%c0_173, %c2_174, %c1_175] : memref<8x10x6xbf16, #tpu.memory_space<vmem>>, vector<8x4x4xbf16>
    %491 = arith.extf %490 : vector<8x4x4xbf16> to vector<8x4x4xf32>
    %c7_176 = arith.constant 7 : index
    %c0_177 = arith.constant 0 : index
    %492 = memref.load %arg9[%c7_176, %c0_177] : memref<9x8xf32, #tpu.memory_space<smem>>
    %493 = vector.extract_strided_slice %491 {offsets = [0, 0, 0], sizes = [1, 4, 4], strides = [1, 1, 1]} : vector<8x4x4xf32> to vector<1x4x4xf32>
    %494 = vector.shape_cast %493 : vector<1x4x4xf32> to vector<4x4xf32>
    %495 = vector.broadcast %492 : f32 to vector<4x4xf32>
    %496 = arith.mulf %495, %494 : vector<4x4xf32>
    %497 = arith.addf %489, %496 : vector<4x4xf32>
    %c7_178 = arith.constant 7 : index
    %c1_179 = arith.constant 1 : index
    %498 = memref.load %arg9[%c7_178, %c1_179] : memref<9x8xf32, #tpu.memory_space<smem>>
    %499 = vector.extract_strided_slice %491 {offsets = [1, 0, 0], sizes = [1, 4, 4], strides = [1, 1, 1]} : vector<8x4x4xf32> to vector<1x4x4xf32>
    %500 = vector.shape_cast %499 : vector<1x4x4xf32> to vector<4x4xf32>
    %501 = vector.broadcast %498 : f32 to vector<4x4xf32>
    %502 = arith.mulf %501, %500 : vector<4x4xf32>
    %503 = arith.addf %497, %502 : vector<4x4xf32>
    %c7_180 = arith.constant 7 : index
    %c2_181 = arith.constant 2 : index
    %504 = memref.load %arg9[%c7_180, %c2_181] : memref<9x8xf32, #tpu.memory_space<smem>>
    %505 = vector.extract_strided_slice %491 {offsets = [2, 0, 0], sizes = [1, 4, 4], strides = [1, 1, 1]} : vector<8x4x4xf32> to vector<1x4x4xf32>
    %506 = vector.shape_cast %505 : vector<1x4x4xf32> to vector<4x4xf32>
    %507 = vector.broadcast %504 : f32 to vector<4x4xf32>
    %508 = arith.mulf %507, %506 : vector<4x4xf32>
    %509 = arith.addf %503, %508 : vector<4x4xf32>
    %c7_182 = arith.constant 7 : index
    %c3_183 = arith.constant 3 : index
    %510 = memref.load %arg9[%c7_182, %c3_183] : memref<9x8xf32, #tpu.memory_space<smem>>
    %511 = vector.extract_strided_slice %491 {offsets = [3, 0, 0], sizes = [1, 4, 4], strides = [1, 1, 1]} : vector<8x4x4xf32> to vector<1x4x4xf32>
    %512 = vector.shape_cast %511 : vector<1x4x4xf32> to vector<4x4xf32>
    %513 = vector.broadcast %510 : f32 to vector<4x4xf32>
    %514 = arith.mulf %513, %512 : vector<4x4xf32>
    %515 = arith.addf %509, %514 : vector<4x4xf32>
    %c7_184 = arith.constant 7 : index
    %c4_185 = arith.constant 4 : index
    %516 = memref.load %arg9[%c7_184, %c4_185] : memref<9x8xf32, #tpu.memory_space<smem>>
    %517 = vector.extract_strided_slice %491 {offsets = [4, 0, 0], sizes = [1, 4, 4], strides = [1, 1, 1]} : vector<8x4x4xf32> to vector<1x4x4xf32>
    %518 = vector.shape_cast %517 : vector<1x4x4xf32> to vector<4x4xf32>
    %519 = vector.broadcast %516 : f32 to vector<4x4xf32>
    %520 = arith.mulf %519, %518 : vector<4x4xf32>
    %521 = arith.addf %515, %520 : vector<4x4xf32>
    %c7_186 = arith.constant 7 : index
    %c5_187 = arith.constant 5 : index
    %522 = memref.load %arg9[%c7_186, %c5_187] : memref<9x8xf32, #tpu.memory_space<smem>>
    %523 = vector.extract_strided_slice %491 {offsets = [5, 0, 0], sizes = [1, 4, 4], strides = [1, 1, 1]} : vector<8x4x4xf32> to vector<1x4x4xf32>
    %524 = vector.shape_cast %523 : vector<1x4x4xf32> to vector<4x4xf32>
    %525 = vector.broadcast %522 : f32 to vector<4x4xf32>
    %526 = arith.mulf %525, %524 : vector<4x4xf32>
    %527 = arith.addf %521, %526 : vector<4x4xf32>
    %c7_188 = arith.constant 7 : index
    %c6_189 = arith.constant 6 : index
    %528 = memref.load %arg9[%c7_188, %c6_189] : memref<9x8xf32, #tpu.memory_space<smem>>
    %529 = vector.extract_strided_slice %491 {offsets = [6, 0, 0], sizes = [1, 4, 4], strides = [1, 1, 1]} : vector<8x4x4xf32> to vector<1x4x4xf32>
    %530 = vector.shape_cast %529 : vector<1x4x4xf32> to vector<4x4xf32>
    %531 = vector.broadcast %528 : f32 to vector<4x4xf32>
    %532 = arith.mulf %531, %530 : vector<4x4xf32>
    %533 = arith.addf %527, %532 : vector<4x4xf32>
    %c7_190 = arith.constant 7 : index
    %c7_191 = arith.constant 7 : index
    %534 = memref.load %arg9[%c7_190, %c7_191] : memref<9x8xf32, #tpu.memory_space<smem>>
    %535 = vector.extract_strided_slice %491 {offsets = [7, 0, 0], sizes = [1, 4, 4], strides = [1, 1, 1]} : vector<8x4x4xf32> to vector<1x4x4xf32>
    %536 = vector.shape_cast %535 : vector<1x4x4xf32> to vector<4x4xf32>
    %537 = vector.broadcast %534 : f32 to vector<4x4xf32>
    %538 = arith.mulf %537, %536 : vector<4x4xf32>
    %539 = arith.addf %533, %538 : vector<4x4xf32>
    %c0_192 = arith.constant 0 : index
    %c2_193 = arith.constant 2 : index
    %c2_194 = arith.constant 2 : index
    %540 = vector.load %arg12[%c0_192, %c2_193, %c2_194] : memref<8x10x6xbf16, #tpu.memory_space<vmem>>, vector<8x4x4xbf16>
    %541 = arith.extf %540 : vector<8x4x4xbf16> to vector<8x4x4xf32>
    %c8 = arith.constant 8 : index
    %c0_195 = arith.constant 0 : index
    %542 = memref.load %arg9[%c8, %c0_195] : memref<9x8xf32, #tpu.memory_space<smem>>
    %543 = vector.extract_strided_slice %541 {offsets = [0, 0, 0], sizes = [1, 4, 4], strides = [1, 1, 1]} : vector<8x4x4xf32> to vector<1x4x4xf32>
    %544 = vector.shape_cast %543 : vector<1x4x4xf32> to vector<4x4xf32>
    %545 = vector.broadcast %542 : f32 to vector<4x4xf32>
    %546 = arith.mulf %545, %544 : vector<4x4xf32>
    %547 = arith.addf %539, %546 : vector<4x4xf32>
    %c8_196 = arith.constant 8 : index
    %c1_197 = arith.constant 1 : index
    %548 = memref.load %arg9[%c8_196, %c1_197] : memref<9x8xf32, #tpu.memory_space<smem>>
    %549 = vector.extract_strided_slice %541 {offsets = [1, 0, 0], sizes = [1, 4, 4], strides = [1, 1, 1]} : vector<8x4x4xf32> to vector<1x4x4xf32>
    %550 = vector.shape_cast %549 : vector<1x4x4xf32> to vector<4x4xf32>
    %551 = vector.broadcast %548 : f32 to vector<4x4xf32>
    %552 = arith.mulf %551, %550 : vector<4x4xf32>
    %553 = arith.addf %547, %552 : vector<4x4xf32>
    %c8_198 = arith.constant 8 : index
    %c2_199 = arith.constant 2 : index
    %554 = memref.load %arg9[%c8_198, %c2_199] : memref<9x8xf32, #tpu.memory_space<smem>>
    %555 = vector.extract_strided_slice %541 {offsets = [2, 0, 0], sizes = [1, 4, 4], strides = [1, 1, 1]} : vector<8x4x4xf32> to vector<1x4x4xf32>
    %556 = vector.shape_cast %555 : vector<1x4x4xf32> to vector<4x4xf32>
    %557 = vector.broadcast %554 : f32 to vector<4x4xf32>
    %558 = arith.mulf %557, %556 : vector<4x4xf32>
    %559 = arith.addf %553, %558 : vector<4x4xf32>
    %c8_200 = arith.constant 8 : index
    %c3_201 = arith.constant 3 : index
    %560 = memref.load %arg9[%c8_200, %c3_201] : memref<9x8xf32, #tpu.memory_space<smem>>
    %561 = vector.extract_strided_slice %541 {offsets = [3, 0, 0], sizes = [1, 4, 4], strides = [1, 1, 1]} : vector<8x4x4xf32> to vector<1x4x4xf32>
    %562 = vector.shape_cast %561 : vector<1x4x4xf32> to vector<4x4xf32>
    %563 = vector.broadcast %560 : f32 to vector<4x4xf32>
    %564 = arith.mulf %563, %562 : vector<4x4xf32>
    %565 = arith.addf %559, %564 : vector<4x4xf32>
    %c8_202 = arith.constant 8 : index
    %c4_203 = arith.constant 4 : index
    %566 = memref.load %arg9[%c8_202, %c4_203] : memref<9x8xf32, #tpu.memory_space<smem>>
    %567 = vector.extract_strided_slice %541 {offsets = [4, 0, 0], sizes = [1, 4, 4], strides = [1, 1, 1]} : vector<8x4x4xf32> to vector<1x4x4xf32>
    %568 = vector.shape_cast %567 : vector<1x4x4xf32> to vector<4x4xf32>
    %569 = vector.broadcast %566 : f32 to vector<4x4xf32>
    %570 = arith.mulf %569, %568 : vector<4x4xf32>
    %571 = arith.addf %565, %570 : vector<4x4xf32>
    %c8_204 = arith.constant 8 : index
    %c5_205 = arith.constant 5 : index
    %572 = memref.load %arg9[%c8_204, %c5_205] : memref<9x8xf32, #tpu.memory_space<smem>>
    %573 = vector.extract_strided_slice %541 {offsets = [5, 0, 0], sizes = [1, 4, 4], strides = [1, 1, 1]} : vector<8x4x4xf32> to vector<1x4x4xf32>
    %574 = vector.shape_cast %573 : vector<1x4x4xf32> to vector<4x4xf32>
    %575 = vector.broadcast %572 : f32 to vector<4x4xf32>
    %576 = arith.mulf %575, %574 : vector<4x4xf32>
    %577 = arith.addf %571, %576 : vector<4x4xf32>
    %c8_206 = arith.constant 8 : index
    %c6_207 = arith.constant 6 : index
    %578 = memref.load %arg9[%c8_206, %c6_207] : memref<9x8xf32, #tpu.memory_space<smem>>
    %579 = vector.extract_strided_slice %541 {offsets = [6, 0, 0], sizes = [1, 4, 4], strides = [1, 1, 1]} : vector<8x4x4xf32> to vector<1x4x4xf32>
    %580 = vector.shape_cast %579 : vector<1x4x4xf32> to vector<4x4xf32>
    %581 = vector.broadcast %578 : f32 to vector<4x4xf32>
    %582 = arith.mulf %581, %580 : vector<4x4xf32>
    %583 = arith.addf %577, %582 : vector<4x4xf32>
    %c8_208 = arith.constant 8 : index
    %c7_209 = arith.constant 7 : index
    %584 = memref.load %arg9[%c8_208, %c7_209] : memref<9x8xf32, #tpu.memory_space<smem>>
    %585 = vector.extract_strided_slice %541 {offsets = [7, 0, 0], sizes = [1, 4, 4], strides = [1, 1, 1]} : vector<8x4x4xf32> to vector<1x4x4xf32>
    %586 = vector.shape_cast %585 : vector<1x4x4xf32> to vector<4x4xf32>
    %587 = vector.broadcast %584 : f32 to vector<4x4xf32>
    %588 = arith.mulf %587, %586 : vector<4x4xf32>
    %589 = arith.addf %583, %588 : vector<4x4xf32>
    %c0_210 = arith.constant 0 : index
    %c0_211 = arith.constant 0 : index
    %c0_212 = arith.constant 0 : index
    %c0_213 = arith.constant 0 : index
    %590 = vector.load %arg11[%c0_210, %c0_211, %c0_212, %c0_213] : memref<1x1x4x4xf32, #tpu.memory_space<vmem>>, vector<1x1x4x4xf32>
    %591 = vector.shape_cast %590 : vector<1x1x4x4xf32> to vector<4x4xf32>
    %592 = vector.shape_cast %589 : vector<4x4xf32> to vector<1x1x4x4xf32>
    tpu.vector_store %arg11[%c0_210, %c0_211, %c0_212, %c0_213], %592 {strides = array<i32>} : memref<1x1x4x4xf32, #tpu.memory_space<vmem>>, vector<1x1x4x4xf32>,
    return
  }
  func.func @transform_0(%arg0: i32, %arg1: i32) -> (i32, i32, i32, i32, i32) {
    %c0_i32 = arith.constant 0 : i32
    %c0_i32_0 = arith.constant 0 : i32
    %c0_i32_1 = arith.constant 0 : i32
    %c0_i32_2 = arith.constant 0 : i32
    return %arg0, %arg1, %c0_i32, %c0_i32_0, %c0_i32_1 : i32, i32, i32, i32, i32
  }
  func.func @transform_1(%arg0: i32, %arg1: i32) -> (i32, i32) {
    %c0_i32 = arith.constant 0 : i32
    %c0_i32_0 = arith.constant 0 : i32
    %c0_i32_1 = arith.constant 0 : i32
    return %c0_i32, %c0_i32_0 : i32, i32
  }
  func.func @transform_2(%arg0: i32, %arg1: i32) -> (i32, i32) {
    %c0_i32 = arith.constant 0 : i32
    %c0_i32_0 = arith.constant 0 : i32
    %c0_i32_1 = arith.constant 0 : i32
    return %c0_i32, %c0_i32_0 : i32, i32
  }
  func.func @transform_3(%arg0: i32, %arg1: i32) -> (i32, i32) {
    %c0_i32 = arith.constant 0 : i32
    %c0_i32_0 = arith.constant 0 : i32
    %c0_i32_1 = arith.constant 0 : i32
    return %c0_i32, %c0_i32_0 : i32, i32
  }
  func.func @transform_4(%arg0: i32, %arg1: i32) -> (i32, i32) {
    %c0_i32 = arith.constant 0 : i32
    %c0_i32_0 = arith.constant 0 : i32
    %c0_i32_1 = arith.constant 0 : i32
    return %c0_i32, %c0_i32_0 : i32, i32
  }
  func.func @transform_5(%arg0: i32, %arg1: i32) -> (i32, i32) {
    %c0_i32 = arith.constant 0 : i32
    %c0_i32_0 = arith.constant 0 : i32
    %c0_i32_1 = arith.constant 0 : i32
    return %c0_i32, %c0_i32_0 : i32, i32
  }
  func.func @transform_6(%arg0: i32, %arg1: i32) -> (i32, i32) {
    %c0_i32 = arith.constant 0 : i32
    %c0_i32_0 = arith.constant 0 : i32
    %c0_i32_1 = arith.constant 0 : i32
    return %c0_i32, %c0_i32_0 : i32, i32
  }
  func.func @transform_7(%arg0: i32, %arg1: i32) -> (i32, i32) {
    %c0_i32 = arith.constant 0 : i32
    %c0_i32_0 = arith.constant 0 : i32
    %c0_i32_1 = arith.constant 0 : i32
    return %c0_i32, %c0_i32_0 : i32, i32
  }
  func.func @transform_8(%arg0: i32, %arg1: i32) -> (i32, i32) {
    %c0_i32 = arith.constant 0 : i32
    %c0_i32_0 = arith.constant 0 : i32
    %c0_i32_1 = arith.constant 0 : i32
    return %c0_i32, %c0_i32_0 : i32, i32
  }
  func.func @transform_9(%arg0: i32, %arg1: i32) -> (i32, i32, i32, i32) {
    %c0_i32 = arith.constant 0 : i32
    %c0_i32_0 = arith.constant 0 : i32
    %c0_i32_1 = arith.constant 0 : i32
    return %arg0, %arg1, %c0_i32, %c0_i32_0 : i32, i32, i32, i32
  }
}

</mosaic_0001>

<llo_original>
// kernel: squeeze.1
$region0: #{squeeze.1}
  %s0 = inlined_call_operand.vmem [shape: f32[3,3,8], index: 0, kind: input, shape index: {}]
  %s1 = inlined_call_operand.vmem [shape: f32[9,8], index: 1, kind: output, shape index: {}]
  $region1: #{squeeze.1} parent=0
    #allocation0 [shape = 'u8[12288]{0}', space=vmem, size = 0x3000, scoped, tag = 'scoped mem for input reshape']
    %s3 = sshllo.u32 0, 4
    %s4 = smul.addr 4, 2
    %s5 = scalar_lea.vmem %s0, %s4
    %v6 = vld [vmem:[%s5] sm:%s3]
    %s7 = scalar_lea.vmem [#allocation0], 16
    %8 = vst [vmem:[%s7] sm:%s3] %v6
    %s9 = scalar_lea.vmem %s0, 4
    %v10 = vld [vmem:[%s9] sm:%s3]
    %s11 = scalar_lea.vmem [#allocation0], 8
    %12 = vst [vmem:[%s11] sm:%s3] %v10
    %v13 = vld [vmem:[%s0] sm:%s3]
    %14 = vst [vmem:[#allocation0] sm:%s3] %v13
    %v15 = vld [vmem:[#allocation0] sm:$0x7]
    %vm16 = vcmask 64512
    %17 = vst.msk [vmem:[%s1] sm:$0x7] %vm16, %v15
    %s18 = scalar_lea.vmem [#allocation0], 8
    %v19 = vld [vmem:[%s18] sm:$0x7]
    %vm20 = vcmask 64512
    %s21 = scalar_lea.vmem %s1, 3
    %22 = vst.msk [vmem:[%s21] sm:$0x7] %vm20, %v19
    %s23 = scalar_lea.vmem [#allocation0], 16
    %v24 = vld [vmem:[%s23] sm:$0x7]
    %vm25 = vcmask 64512
    %s26 = scalar_lea.vmem %s1, 6
    %27 = vst.msk [vmem:[%s26] sm:$0x7] %vm25, %v24

// kernel: masknet_forward.3
$region0: #{masknet_forward.3}
  #allocation0 [shape = 'u32[]', space=smem, size = 0x4, offset = 0x4, fixed_abs, tag = 'smem constant byte address 0x4 - core index']
  #allocation1 [shape = 'u32[144,128]{1,0:T(1,128)}', space=vmem, size = 0x12000, scoped, tag = 'internal scratch']
  %s0 = inlined_call_operand.vmem [shape: f32[2,4,4], index: 0, kind: input, shape index: {}]
  %s1 = inlined_call_operand.vmem [shape: f32[16,4], index: 1, kind: input, shape index: {}]
  %s2 = inlined_call_operand.vmem [shape: f32[4,16], index: 2, kind: input, shape index: {}]
  %s3 = inlined_call_operand.vmem [shape: f32[2,3,16,16], index: 3, kind: input, shape index: {}]
  %s4 = inlined_call_operand.vmem [shape: f32[2,3,16,16], index: 4, kind: input, shape index: {}]
  %s5 = inlined_call_operand.hbm [shape: f32[2,3,16,16], index: 5, kind: output, shape index: {}]
  %s6 = sld [smem:[#allocation0]]
  $region53: #{masknet_forward.3} parent=0
    _
  %s8 = ssub.s32 1, %s6
  %s9 = scalar_select 0, %s8, %s6
  $region1: #{masknet_forward.3} parent=0
    #allocation2 [shape = 'u8[49152]{0}', space=vmem, size = 0xc000, scoped, tag = 'output window, operand 0']
    #allocation3 [shape = 's32[2]{0}', space=sflag, size = 0x8, scoped, tag = 'scoped memory for masknet_forward.3']
    %10 = vsyncpa [#allocation3], 0
    %s11 = scalar_lea.sflag [#allocation3], 1
    %12 = vsyncpa %s11, 0
    loop: start=0, step=1, limit=4
    $region2: #{masknet_forward.3} parent=1 // loop_pre_header
      _
    $region3: #{masknet_forward.3} parent=1 // loop_header
      %s14 = sphi 0, %s18
      %p15 = scmp.ge.s32.totalorder %s14, 4
      %s21 = sphi 0, %s33
      %s22 = sphi 0, %s29
      %s23 = sphi 0, %s21
      %s24 = sphi 0, %s22
      %s25 = sphi 0, %s23
      %s26 = sphi 0, %s24
      %s36 = sphi 0, %s38
      %s39 = sphi 0, %s36
      %s40 = sphi 0, %s39
      %s56 = sphi 0, %s40
      %s62 = sphi 0, %s64
      %s65 = sphi 0, %s62
      %s66 = sphi 0, %s65
      %s82 = sphi 0, %s66
      %s86 = sphi 0, %s86
      %s88 = sphi 0, %s86
      %s89 = sphi 0, %s88
      %s103 = sphi 0, %s89
      %s111 = sphi 0, %s113
      %s114 = sphi 0, %s111
      %s115 = sphi 0, %s114
      %s131 = sphi 0, %s115
      %s139 = sphi 0, %s141
      %s142 = sphi 0, %s139
      %s143 = sphi 0, %s142
      %s159 = sphi 0, %s143
      %s167 = sphi 0, %s169
      %s170 = sphi 0, %s167
      %s171 = sphi 0, %s170
      %s187 = sphi 0, %s171
    $region4: #{masknet_forward.3} parent=1 // loop_header_branch
      %17 = sbr.rel (%p15) target = $region8
    $region5: #{masknet_forward.3} parent=1 // loop_body
      %s19 = ssub.s32 %s14, 1
      %s20 = ssub.s32 %s14, 2
      %s27 = sadd.s32 1, %s22
      %p28 = scmp.ge.s32.totalorder %s27, 1
      %s29 = scalar_select %p28, 0, %s27
      %s30 = sadd.s32 1, %s21
      %s31 = scalar_select %p28, %s30, %s21
      %p32 = scmp.ge.s32.totalorder %s31, 2
      %s33 = scalar_select %p32, 0, %s31
      %s34 = ssub.s32 %s21, %s33
      %p35 = scmp.eq.s32.totalorder %s34, 0
      %s37 = sadd.s32 %s36, 1
      %s38 = scalar_select %p35, %s36, %s37
      %p41 = pneg %p35
      %p42 = scmp.eq.s32.totalorder %s14, 1
      %p43 = por %p41, %p42
      %p44 = scmp.ne.s32.totalorder %s36, %s39
      %p45 = scmp.eq.s32.totalorder %s14, 0
      %p46 = por %p44, %p45
      %p47 = scmp.ne.s32.totalorder %s36, %s39
      %p48 = scmp.eq.s32.totalorder %s19, 1
      %p49 = por %p47, %p48
      %p50 = scmp.ne.s32.totalorder %s39, %s40
      %p51 = scmp.eq.s32.totalorder %s19, 0
      %p52 = por %p50, %p51
      %p53 = scmp.ne.s32.totalorder %s39, %s40
      %p54 = scmp.eq.s32.totalorder %s20, 1
      %p55 = por %p53, %p54
      %p57 = scmp.ne.s32.totalorder %s40, %s56
      %p58 = scmp.eq.s32.totalorder %s20, 0
      %p59 = por %p57, %p58
      %s60 = ssub.s32 %s22, %s29
      %p61 = scmp.eq.s32.totalorder %s60, 0
      %s63 = sadd.s32 %s62, 1
      %s64 = scalar_select %p61, %s62, %s63
      %p67 = pneg %p61
      %p68 = scmp.eq.s32.totalorder %s14, 1
      %p69 = por %p67, %p68
      %p70 = scmp.ne.s32.totalorder %s62, %s65
      %p71 = scmp.eq.s32.totalorder %s14, 0
      %p72 = por %p70, %p71
      %p73 = scmp.ne.s32.totalorder %s62, %s65
      %p74 = scmp.eq.s32.totalorder %s19, 1
      %p75 = por %p73, %p74
      %p76 = scmp.ne.s32.totalorder %s65, %s66
      %p77 = scmp.eq.s32.totalorder %s19, 0
      %p78 = por %p76, %p77
      %p79 = scmp.ne.s32.totalorder %s65, %s66
      %p80 = scmp.eq.s32.totalorder %s20, 1
      %p81 = por %p79, %p80
      %p83 = scmp.ne.s32.totalorder %s66, %s82
      %p84 = scmp.eq.s32.totalorder %s20, 0
      %p85 = por %p83, %p84
      %s87 = sadd.s32 %s86, 1
      %p90 = scmp.eq.s32.totalorder %s14, 1
      %p91 = scmp.ne.s32.totalorder %s86, %s88
      %p92 = scmp.eq.s32.totalorder %s14, 0
      %p93 = por %p91, %p92
      %p94 = scmp.ne.s32.totalorder %s86, %s88
      %p95 = scmp.eq.s32.totalorder %s19, 1
      %p96 = por %p94, %p95
      %p97 = scmp.ne.s32.totalorder %s88, %s89
      %p98 = scmp.eq.s32.totalorder %s19, 0
      %p99 = por %p97, %p98
      %p100 = scmp.ne.s32.totalorder %s88, %s89
      %p101 = scmp.eq.s32.totalorder %s20, 1
      %p102 = por %p100, %p101
      %p104 = scmp.ne.s32.totalorder %s89, %s103
      %p105 = scmp.eq.s32.totalorder %s20, 0
      %p106 = por %p104, %p105
      %s107 = ssub.s32 %s21, %s33
      %s108 = ssub.s32 %s22, %s29
      %s109 = sor.u32 %s107, %s108
      %p110 = scmp.eq.s32.totalorder %s109, 0
      %s112 = sadd.s32 %s111, 1
      %s113 = scalar_select %p110, %s111, %s112
      %p116 = pneg %p110
      %p117 = scmp.eq.s32.totalorder %s14, 1
      %p118 = por %p116, %p117
      %p119 = scmp.ne.s32.totalorder %s111, %s114
      %p120 = scmp.eq.s32.totalorder %s14, 0
      %p121 = por %p119, %p120
      %p122 = scmp.ne.s32.totalorder %s111, %s114
      %p123 = scmp.eq.s32.totalorder %s19, 1
      %p124 = por %p122, %p123
      %p125 = scmp.ne.s32.totalorder %s114, %s115
      %p126 = scmp.eq.s32.totalorder %s19, 0
      %p127 = por %p125, %p126
      %p128 = scmp.ne.s32.totalorder %s114, %s115
      %p129 = scmp.eq.s32.totalorder %s20, 1
      %p130 = por %p128, %p129
      %p132 = scmp.ne.s32.totalorder %s115, %s131
      %p133 = scmp.eq.s32.totalorder %s20, 0
      %p134 = por %p132, %p133
      %s135 = ssub.s32 %s21, %s33
      %s136 = ssub.s32 %s22, %s29
      %s137 = sor.u32 %s135, %s136
      %p138 = scmp.eq.s32.totalorder %s137, 0
      %s140 = sadd.s32 %s139, 1
      %s141 = scalar_select %p138, %s139, %s140
      %p144 = pneg %p138
      %p145 = scmp.eq.s32.totalorder %s14, 1
      %p146 = por %p144, %p145
      %p147 = scmp.ne.s32.totalorder %s139, %s142
      %p148 = scmp.eq.s32.totalorder %s14, 0
      %p149 = por %p147, %p148
      %p150 = scmp.ne.s32.totalorder %s139, %s142
      %p151 = scmp.eq.s32.totalorder %s19, 1
      %p152 = por %p150, %p151
      %p153 = scmp.ne.s32.totalorder %s142, %s143
      %p154 = scmp.eq.s32.totalorder %s19, 0
      %p155 = por %p153, %p154
      %p156 = scmp.ne.s32.totalorder %s142, %s143
      %p157 = scmp.eq.s32.totalorder %s20, 1
      %p158 = por %p156, %p157
      %p160 = scmp.ne.s32.totalorder %s143, %s159
      %p161 = scmp.eq.s32.totalorder %s20, 0
      %p162 = por %p160, %p161
      %s163 = ssub.s32 %s21, %s33
      %s164 = ssub.s32 %s22, %s29
      %s165 = sor.u32 %s163, %s164
      %p166 = scmp.eq.s32.totalorder %s165, 0
      %s168 = sadd.s32 %s167, 1
      %s169 = scalar_select %p166, %s167, %s168
      %p172 = pneg %p166
      %p173 = scmp.eq.s32.totalorder %s14, 1
      %p174 = por %p172, %p173
      %p175 = scmp.ne.s32.totalorder %s167, %s170
      %p176 = scmp.eq.s32.totalorder %s14, 0
      %p177 = por %p175, %p176
      %p178 = scmp.ne.s32.totalorder %s167, %s170
      %p179 = scmp.eq.s32.totalorder %s19, 1
      %p180 = por %p178, %p179
      %p181 = scmp.ne.s32.totalorder %s170, %s171
      %p182 = scmp.eq.s32.totalorder %s19, 0
      %p183 = por %p181, %p182
      %p184 = scmp.ne.s32.totalorder %s170, %s171
      %p185 = scmp.eq.s32.totalorder %s20, 1
      %p186 = por %p184, %p185
      %p188 = scmp.ne.s32.totalorder %s171, %s187
      %p189 = scmp.eq.s32.totalorder %s20, 0
      %p190 = por %p188, %p189
      %p191 = scmp.le.s32.totalorder 1, %s14
      %p192 = scmp.lt.s32.totalorder %s14, 3
      %p193 = pnand %p191, %p192
      %p194 = pneg %p193
      // Predicated region
      $region9: #{masknet_forward.3} parent=5 // pred_check
        _
      $region10: #{masknet_forward.3} parent=5 // pred_check_branch
        %196 = sbr.rel (%p193) target = $region12
      $region11: #{masknet_forward.3} parent=5 // pred_region
        %s197 = ssub.s32 %s14, 1
        // Predicated region
        $region13: #{masknet_forward.3} parent=11 // pred_check
          %p198 = pneg %p78
        $region14: #{masknet_forward.3} parent=11 // pred_check_branch
          %200 = sbr.rel (%p198) target = $region16
        $region15: #{masknet_forward.3} parent=11 // pred_region
          %s201 = smul.u32 2, %s24
          %p202 = scmp.lt.s32.totalorder %s201, 1
          %s203 = scalar_select %p202, %s201, 1
          %s204 = smul.addr %s203, 8
          %s205 = scalar_lea.vmem %s1, %s204
          %s206 = smul.u32 2, %s24
        $region16: #{masknet_forward.3} parent=11 // pred_fallthru
          _
        // Predicated region
        $region17: #{masknet_forward.3} parent=11 // pred_check
          %p207 = pneg %p99
        $region18: #{masknet_forward.3} parent=11 // pred_check_branch
          %209 = sbr.rel (%p207) target = $region20
        $region19: #{masknet_forward.3} parent=11 // pred_region
          _
        $region20: #{masknet_forward.3} parent=11 // pred_fallthru
          _
      $region12: #{masknet_forward.3} parent=5 // pred_fallthru
        _
      %p210 = scmp.lt.s32.totalorder %s14, 2
      // Predicated region
      $region21: #{masknet_forward.3} parent=5 // pred_check
        %p211 = pneg %p210
      $region22: #{masknet_forward.3} parent=5 // pred_check_branch
        %213 = sbr.rel (%p211) target = $region24
      $region23: #{masknet_forward.3} parent=5 // pred_region
        // Predicated region
        $region25: #{masknet_forward.3} parent=23 // pred_check
          %p214 = pneg %p46
        $region26: #{masknet_forward.3} parent=23 // pred_check_branch
          %216 = sbr.rel (%p214) target = $region28
        $region27: #{masknet_forward.3} parent=23 // pred_region
          %p217 = scmp.lt.s32.totalorder %s21, 1
          %s218 = scalar_select %p217, %s21, 1
          %s219 = smul.addr %s218, 4
          %s220 = scalar_lea.vmem %s0, %s219
        $region28: #{masknet_forward.3} parent=23 // pred_fallthru
          _
        // Predicated region
        $region29: #{masknet_forward.3} parent=23 // pred_check
          %p221 = pneg %p121
        $region30: #{masknet_forward.3} parent=23 // pred_check_branch
          %223 = sbr.rel (%p221) target = $region32
        $region31: #{masknet_forward.3} parent=23 // pred_region
          %s224 = smul.u32 2, %s22
          %p225 = scmp.lt.s32.totalorder %s21, 1
          %s226 = scalar_select %p225, %s21, 1
          %p227 = scmp.lt.s32.totalorder %s224, 1
          %s228 = scalar_select %p227, %s224, 1
          %s229 = smul.addr %s226, 6
          %s230 = sadd.s32 %s228, %s229
          %s231 = smul.addr %s230, 8
          %s232 = scalar_lea.vmem %s3, %s231
          %s233 = smul.u32 2, %s22
        $region32: #{masknet_forward.3} parent=23 // pred_fallthru
          _
        // Predicated region
        $region33: #{masknet_forward.3} parent=23 // pred_check
          %p234 = pneg %p149
        $region34: #{masknet_forward.3} parent=23 // pred_check_branch
          %236 = sbr.rel (%p234) target = $region36
        $region35: #{masknet_forward.3} parent=23 // pred_region
          %s237 = smul.u32 2, %s22
          %p238 = scmp.lt.s32.totalorder %s21, 1
          %s239 = scalar_select %p238, %s21, 1
          %p240 = scmp.lt.s32.totalorder %s237, 1
          %s241 = scalar_select %p240, %s237, 1
          %s242 = smul.addr %s239, 6
          %s243 = sadd.s32 %s241, %s242
          %s244 = smul.addr %s243, 8
          %s245 = scalar_lea.vmem %s4, %s244
          %s246 = smul.u32 2, %s22
        $region36: #{masknet_forward.3} parent=23 // pred_fallthru
          _
      $region24: #{masknet_forward.3} parent=5 // pred_fallthru
        _
      %p247 = scmp.le.s32.totalorder 1, %s14
      %p248 = scmp.lt.s32.totalorder %s14, 3
      %p249 = pnand %p247, %p248
      %p250 = pneg %p249
      // Predicated region
      $region37: #{masknet_forward.3} parent=5 // pred_check
        _
      $region38: #{masknet_forward.3} parent=5 // pred_check_branch
        %252 = sbr.rel (%p249) target = $region40
      $region39: #{masknet_forward.3} parent=5 // pred_region
        %s253 = ssub.s32 %s14, 1
        %p254 = scmp.lt.s32.totalorder %s23, 1
        %s255 = scalar_select %p254, %s23, 1
        %s256 = smul.addr %s255, 4
        %s257 = scalar_lea.vmem %s0, %s256
        %p258 = pneg %p52
        %p259 = pneg %p49
        %s260 = smul.u32 2, %s24
        %p261 = scmp.lt.s32.totalorder %s260, 1
        %s262 = scalar_select %p261, %s260, 1
        %s263 = smul.addr %s262, 8
        %s264 = scalar_lea.vmem %s1, %s263
        %p265 = pneg %p78
        %p266 = pneg %p75
        %p267 = pneg %p99
        %p268 = pneg %p96
        %s269 = smul.u32 2, %s24
        %p270 = scmp.lt.s32.totalorder %s23, 1
        %s271 = scalar_select %p270, %s23, 1
        %p272 = scmp.lt.s32.totalorder %s269, 1
        %s273 = scalar_select %p272, %s269, 1
        %s274 = smul.addr %s271, 6
        %s275 = sadd.s32 %s273, %s274
        %s276 = smul.addr %s275, 8
        %s277 = scalar_lea.vmem %s3, %s276
        %p278 = pneg %p127
        %p279 = pneg %p124
        %s280 = smul.u32 2, %s24
        %p281 = scmp.lt.s32.totalorder %s23, 1
        %s282 = scalar_select %p281, %s23, 1
        %p283 = scmp.lt.s32.totalorder %s280, 1
        %s284 = scalar_select %p283, %s280, 1
        %s285 = smul.addr %s282, 6
        %s286 = sadd.s32 %s284, %s285
        %s287 = smul.addr %s286, 8
        %s288 = scalar_lea.vmem %s4, %s287
        %p289 = pneg %p155
        %p290 = pneg %p152
        %p291 = pneg %p183
        %p292 = pneg %p180
        %s293 = sand.u32 %s170, 1
        %s294 = scalar_lea.sflag [#allocation3], %s293
        %s295 = sand.u32 %s170, 1
        %s296 = smul.addr %s295, 48
        %s297 = scalar_lea.vmem [#allocation2], %s296
        %p298 = scmp.lt.s32.totalorder %s23, 1
        %s299 = scalar_select %p298, %s23, 1
        %s300 = smul.addr %s299, 4
        %s301 = scalar_lea.vmem %s0, %s300
        %s302 = smul.u32 2, %s24
        %p303 = scmp.lt.s32.totalorder %s302, 1
        %s304 = scalar_select %p303, %s302, 1
        %s305 = smul.addr %s304, 8
        %s306 = scalar_lea.vmem %s1, %s305
        %s307 = smul.u32 2, %s24
        %s308 = smul.u32 2, %s24
        %p309 = scmp.lt.s32.totalorder %s23, 1
        %s310 = scalar_select %p309, %s23, 1
        %p311 = scmp.lt.s32.totalorder %s308, 1
        %s312 = scalar_select %p311, %s308, 1
        %s313 = smul.addr %s310, 6
        %s314 = sadd.s32 %s312, %s313
        %s315 = smul.addr %s314, 8
        %s316 = scalar_lea.vmem %s3, %s315
        %s317 = smul.u32 2, %s24
        %s318 = smul.u32 2, %s24
        %p319 = scmp.lt.s32.totalorder %s23, 1
        %s320 = scalar_select %p319, %s23, 1
        %p321 = scmp.lt.s32.totalorder %s318, 1
        %s322 = scalar_select %p321, %s318, 1
        %s323 = smul.addr %s320, 6
        %s324 = sadd.s32 %s322, %s323
        %s325 = smul.addr %s324, 8
        %s326 = scalar_lea.vmem %s4, %s325
        %s327 = smul.u32 2, %s24
        %s328 = smul.u32 2, %s24
        %v329 = vld [vmem:[%s306] sm:$0xff]
        %v330 = vld [vmem:[%s306 + $0x8] sm:$0xff]
        %v331 = vld [vmem:[%s301] sm:$0xf]
        %vm332 = vcmask 31744
        %v334 = vsel %vm332, %v329, 0
        %v337 = vsel %vm332, %v330, 0
        %vm339 = vcmask 1043456
        %v341 = vsel %vm339, %v331, 0
        %343 = vmatprep.subr.mxu0 0.0
        %344 = vmatpush1.msra.mxu0 %v341
        %345 = vmatprep.subr.mxu0 0.0
        %346 = vmatpush1.msra.mxu0 0.0
        %347 = vmatprep.subr.mxu0 0.0
        %348 = vmatpush1.msra.mxu0 0.0
        %349 = vmatprep.subr.mxu0 0.0
        %350 = vmatpush1.msra.mxu0 0.0
        %351 = vmatprep.subr.mxu0 0.0
        %352 = vmatpush1.msra.mxu0 0.0
        %353 = vmatprep.subr.mxu0 0.0
        %354 = vmatpush1.msra.mxu0 0.0
        %355 = vmatprep.subr.mxu0 0.0
        %356 = vmatpush1.msra.mxu0 0.0
        %357 = vmatprep.subr.mxu0 0.0
        %358 = vmatpush1.msra.mxu0 0.0
        %359 = vmatprep.subr.mxu0 0.0
        %360 = vmatpush1.msra.mxu0 0.0
        %361 = vmatprep.subr.mxu0 0.0
        %362 = vmatpush1.msra.mxu0 0.0
        %363 = vmatprep.subr.mxu0 0.0
        %364 = vmatpush1.msra.mxu0 0.0
        %365 = vmatprep.subr.mxu0 0.0
        %366 = vmatpush1.msra.mxu0 0.0
        %367 = vmatprep.subr.mxu0 0.0
        %368 = vmatpush1.msra.mxu0 0.0
        %369 = vmatprep.subr.mxu0 0.0
        %370 = vmatpush1.msra.mxu0 0.0
        %371 = vmatprep.subr.mxu0 0.0
        %372 = vmatpush1.msra.mxu0 0.0
        %373 = vmatprep.subr.mxu0 0.0
        %374 = vmatpush1.msra.mxu0 0.0
        %375 = vmatprep.subr.mxu0 0.0
        %376 = vmatpush1.msra.mxu0 0.0
        %377 = vmatprep.subr.mxu0 0.0
        %378 = vmatpush1.msra.mxu0 0.0
        %379 = vmatprep.subr.mxu0 0.0
        %380 = vmatpush1.msra.mxu0 0.0
        %381 = vmatprep.subr.mxu0 0.0
        %382 = vmatpush1.msra.mxu0 0.0
        %383 = vmatprep.subr.mxu0 0.0
        %384 = vmatpush1.msra.mxu0 0.0
        %385 = vmatprep.subr.mxu0 0.0
        %386 = vmatpush1.msra.mxu0 0.0
        %387 = vmatprep.subr.mxu0 0.0
        %388 = vmatpush1.msra.mxu0 0.0
        %389 = vmatprep.subr.mxu0 0.0
        %390 = vmatpush1.msra.mxu0 0.0
        %391 = vmatprep.subr.mxu0 0.0
        %392 = vmatpush1.msra.mxu0 0.0
        %393 = vmatprep.subr.mxu0 0.0
        %394 = vmatpush1.msra.mxu0 0.0
        %395 = vmatprep.subr.mxu0 0.0
        %396 = vmatpush1.msra.mxu0 0.0
        %397 = vmatprep.subr.mxu0 0.0
        %398 = vmatpush1.msra.mxu0 0.0
        %399 = vmatprep.subr.mxu0 0.0
        %400 = vmatpush1.msra.mxu0 0.0
        %401 = vmatprep.subr.mxu0 0.0
        %402 = vmatpush1.msra.mxu0 0.0
        %403 = vmatprep.subr.mxu0 0.0
        %404 = vmatpush1.msra.mxu0 0.0
        %405 = vmatprep.subr.mxu0 0.0
        %406 = vmatpush1.msra.mxu0 0.0
        %407 = vmatprep.mubr.f32.mxu0 0.0
        %408 = vmatmul.mubr.f32.gmra.mrb[0].mxu0 %v334
        %v409 = vpop.f32.mrb[0].mxu0
        %v410 = vadd.f32 0.0, %v409
        %v411 = vpop.f32.mrb[0].mxu0
        %412 = vmatprep.mubr.f32.mxu0 0.0
        %413 = vmatmul.mubr.f32.gmra.mrb[0].mxu0 %v337
        %v414 = vpop.f32.mrb[0].mxu0
        %v415 = vadd.f32 0.0, %v414
        %v416 = vpop.f32.mrb[0].mxu0
        %417 = vdwg.mxu0
        %v418 = vld [vmem:[%s2] sm:$0xf]
        %v420 = vsel %vm332, %v410, 0
        %v423 = vsel %vm332, %v415, 0
        %v426 = vsel %vm339, %v418, 0
        %428 = vmatprep.subr.mxu0 0.0
        %429 = vmatpush1.msra.mxu0 %v426
        %430 = vmatprep.subr.mxu0 0.0
        %431 = vmatpush1.msra.mxu0 0.0
        %432 = vmatprep.subr.mxu0 0.0
        %433 = vmatpush1.msra.mxu0 0.0
        %434 = vmatprep.subr.mxu0 0.0
        %435 = vmatpush1.msra.mxu0 0.0
        %436 = vmatprep.subr.mxu0 0.0
        %437 = vmatpush1.msra.mxu0 0.0
        %438 = vmatprep.subr.mxu0 0.0
        %439 = vmatpush1.msra.mxu0 0.0
        %440 = vmatprep.subr.mxu0 0.0
        %441 = vmatpush1.msra.mxu0 0.0
        %442 = vmatprep.subr.mxu0 0.0
        %443 = vmatpush1.msra.mxu0 0.0
        %444 = vmatprep.subr.mxu0 0.0
        %445 = vmatpush1.msra.mxu0 0.0
        %446 = vmatprep.subr.mxu0 0.0
        %447 = vmatpush1.msra.mxu0 0.0
        %448 = vmatprep.subr.mxu0 0.0
        %449 = vmatpush1.msra.mxu0 0.0
        %450 = vmatprep.subr.mxu0 0.0
        %451 = vmatpush1.msra.mxu0 0.0
        %452 = vmatprep.subr.mxu0 0.0
        %453 = vmatpush1.msra.mxu0 0.0
        %454 = vmatprep.subr.mxu0 0.0
        %455 = vmatpush1.msra.mxu0 0.0
        %456 = vmatprep.subr.mxu0 0.0
        %457 = vmatpush1.msra.mxu0 0.0
        %458 = vmatprep.subr.mxu0 0.0
        %459 = vmatpush1.msra.mxu0 0.0
        %460 = vmatprep.subr.mxu0 0.0
        %461 = vmatpush1.msra.mxu0 0.0
        %462 = vmatprep.subr.mxu0 0.0
        %463 = vmatpush1.msra.mxu0 0.0
        %464 = vmatprep.subr.mxu0 0.0
        %465 = vmatpush1.msra.mxu0 0.0
        %466 = vmatprep.subr.mxu0 0.0
        %467 = vmatpush1.msra.mxu0 0.0
        %468 = vmatprep.subr.mxu0 0.0
        %469 = vmatpush1.msra.mxu0 0.0
        %470 = vmatprep.subr.mxu0 0.0
        %471 = vmatpush1.msra.mxu0 0.0
        %472 = vmatprep.subr.mxu0 0.0
        %473 = vmatpush1.msra.mxu0 0.0
        %474 = vmatprep.subr.mxu0 0.0
        %475 = vmatpush1.msra.mxu0 0.0
        %476 = vmatprep.subr.mxu0 0.0
        %477 = vmatpush1.msra.mxu0 0.0
        %478 = vmatprep.subr.mxu0 0.0
        %479 = vmatpush1.msra.mxu0 0.0
        %480 = vmatprep.subr.mxu0 0.0
        %481 = vmatpush1.msra.mxu0 0.0
        %482 = vmatprep.subr.mxu0 0.0
        %483 = vmatpush1.msra.mxu0 0.0
        %484 = vmatprep.subr.mxu0 0.0
        %485 = vmatpush1.msra.mxu0 0.0
        %486 = vmatprep.subr.mxu0 0.0
        %487 = vmatpush1.msra.mxu0 0.0
        %488 = vmatprep.subr.mxu0 0.0
        %489 = vmatpush1.msra.mxu0 0.0
        %490 = vmatprep.subr.mxu0 0.0
        %491 = vmatpush1.msra.mxu0 0.0
        %492 = vmatprep.mubr.f32.mxu0 0.0
        %493 = vmatmul.mubr.f32.gmra.mrb[0].mxu0 %v420
        %v494 = vpop.f32.mrb[0].mxu0
        %v495 = vadd.f32 0.0, %v494
        %v496 = vpop.f32.mrb[0].mxu0
        %497 = vmatprep.mubr.f32.mxu0 0.0
        %498 = vmatmul.mubr.f32.gmra.mrb[0].mxu0 %v423
        %v499 = vpop.f32.mrb[0].mxu0
        %v500 = vadd.f32 0.0, %v499
        %v501 = vpop.f32.mrb[0].mxu0
        %502 = vdwg.mxu0
        %v503 = vxor.u32 %v495, 2147483648
        %v504 = vxor.u32 %v500, 2147483648
        %v505 = vmul.f32 %v503, 1.442695
        %v506 = vpow.pop %v505
        %v507 = vmul.f32 %v504, 1.442695
        %v508 = vpow.pop %v507
        %v509 = vadd.f32 %v506, 1.0
        %v510 = vadd.f32 %v508, 1.0
        %v511 = vrcp.pop %v509
        %v512 = vmul.f32 1.0, %v511
        %v513 = vrcp.pop %v510
        %v514 = vmul.f32 1.0, %v513
        %v515 = vld [vmem:[%s316] sm:$0xff]
        %v516 = vld [vmem:[%s316 + $0x8] sm:$0xff]
        %v517 = vld [vmem:[%s316 + $0x10] sm:$0xff]
        %v518 = vld [vmem:[%s316 + $0x18] sm:$0xff]
        %v519 = vld [vmem:[%s316 + $0x20] sm:$0xff]
        %v520 = vld [vmem:[%s316 + $0x28] sm:$0xff]
        %v521 = vld [vmem:[%s326] sm:$0xff]
        %v522 = vld [vmem:[%s326 + $0x8] sm:$0xff]
        %v523 = vld [vmem:[%s326 + $0x10] sm:$0xff]
        %v524 = vld [vmem:[%s326 + $0x18] sm:$0xff]
        %v525 = vld [vmem:[%s326 + $0x20] sm:$0xff]
        %v526 = vld [vmem:[%s326 + $0x28] sm:$0xff]
        %v527 = vsub.f32 %v521, %v515
        %v528 = vsub.f32 %v522, %v516
        %v529 = vsub.f32 %v523, %v517
        %v530 = vsub.f32 %v524, %v518
        %v531 = vsub.f32 %v525, %v519
        %v532 = vsub.f32 %v526, %v520
        %v533 = vmul.f32 %v512, %v527
        %v534 = vmul.f32 %v514, %v528
        %v535 = vmul.f32 %v512, %v529
        %v536 = vmul.f32 %v514, %v530
        %v537 = vmul.f32 %v512, %v531
        %v538 = vmul.f32 %v514, %v532
        %v539 = vadd.f32 %v515, %v533
        %v540 = vadd.f32 %v516, %v534
        %v541 = vadd.f32 %v517, %v535
        %v542 = vadd.f32 %v518, %v536
        %v543 = vadd.f32 %v519, %v537
        %v544 = vadd.f32 %v520, %v538
        %vm545 = vcmask 130048
        %546 = vst.msk [vmem:[%s297] sm:$0xff] %vm545, %v539
        %547 = vst.msk [vmem:[%s297 + $0x8] sm:$0xff] %vm545, %v540
        %548 = vst.msk [vmem:[%s297 + $0x10] sm:$0xff] %vm545, %v541
        %549 = vst.msk [vmem:[%s297 + $0x18] sm:$0xff] %vm545, %v542
        %550 = vst.msk [vmem:[%s297 + $0x20] sm:$0xff] %vm545, %v543
        %551 = vst.msk [vmem:[%s297 + $0x28] sm:$0xff] %vm545, %v544
        %s552 = sand.u32 %s170, 1
        %s553 = scalar_lea.sflag [#allocation3], %s552
        %s554 = sand.u32 %s170, 1
        %s555 = smul.addr %s554, 48
        %s556 = scalar_lea.vmem [#allocation2], %s555
        // Predicated region
        $region41: #{masknet_forward.3} parent=39 // pred_check
          %p557 = pneg %p180
        $region42: #{masknet_forward.3} parent=39 // pred_check_branch
          %559 = sbr.rel (%p557) target = $region44
        $region43: #{masknet_forward.3} parent=39 // pred_region
          %s560 = smul.u32 2, %s24
          %s562 = ssub.s32 768, 768
          %563 = vsyncadd %s553, %s562
          %s564 = smul.addr %s23, 6
          %s565 = sadd.s32 %s560, %s564
          %s566 = smul.addr %s565, 128
          %s567 = scalar_lea.hbm %s5, %s566
          %s568 = sshll.u32 %s556, 4
          %s569 = int_to_ptr.vmem [resolvable:$true] %s568
          %574 = dma.vmem_to_hbm [thread:$0]  %s569, 768, %s567, %s553, 128, 128, 8
        $region44: #{masknet_forward.3} parent=39 // pred_fallthru
          _
      $region40: #{masknet_forward.3} parent=5 // pred_fallthru
        _
      %p575 = scmp.le.s32.totalorder 2, %s14
      // Predicated region
      $region45: #{masknet_forward.3} parent=5 // pred_check
        %p576 = pneg %p575
      $region46: #{masknet_forward.3} parent=5 // pred_check_branch
        %578 = sbr.rel (%p576) target = $region48
      $region47: #{masknet_forward.3} parent=5 // pred_region
        %s579 = ssub.s32 %s14, 2
        // Predicated region
        $region49: #{masknet_forward.3} parent=47 // pred_check
          %p580 = pneg %p186
        $region50: #{masknet_forward.3} parent=47 // pred_check_branch
          %582 = sbr.rel (%p580) target = $region52
        $region51: #{masknet_forward.3} parent=47 // pred_region
          %s583 = sand.u32 %s171, 1
          %s584 = scalar_lea.sflag [#allocation3], %s583
          %s585 = sand.u32 %s171, 1
          %s586 = smul.addr %s585, 48
          %s587 = scalar_lea.vmem [#allocation2], %s586
          %588 = dma.done %s584, 768
        $region52: #{masknet_forward.3} parent=47 // pred_fallthru
          _
      $region48: #{masknet_forward.3} parent=5 // pred_fallthru
        _
    $region6: #{masknet_forward.3} parent=1 // loop_footer
      %s18 = sadd.s32 1, %s14
    $region7: #{masknet_forward.3} parent=1 // loop_footer_branch
      %13 = sbr.rel target = $region3
    $region8: #{masknet_forward.3} parent=1 // loop_exit
      _
    %589 = vsyncpa [#allocation3], 1
    %s590 = scalar_lea.sflag [#allocation3], 1
    %591 = vsyncpa %s590, 1

// kernel: masknet_forward.2
$region0: #{masknet_forward.2}
  #allocation0 [shape = 'u32[]', space=smem, size = 0x4, offset = 0x4, fixed_abs, tag = 'smem constant byte address 0x4 - core index']
  #allocation1 [shape = 'u32[144,128]{1,0:T(1,128)}', space=vmem, size = 0x12000, scoped, tag = 'internal scratch']
  #allocation2 [shape = 'bf16[8,10,6]{2,1,0:T(8,128)(2,1)}', space=vmem, size = 0x8000, scoped, tag = 'scratch operand']
  #allocation3 [shape = 'f32[1,1]{1,0:T(1,128)S(6)}', space=smem, size = 0x200, scoped, tag = 'scoped memory for masknet_forward.2']
  %s0 = inlined_call_operand.vmem [shape: bf16[2,1,17,12,6], index: 0, kind: input, shape index: {}]
  %s1 = inlined_call_operand.vmem [shape: bf16[16,153], index: 1, kind: input, shape index: {}]
  %s2 = inlined_call_operand.vmem [shape: f32[16,1], index: 2, kind: input, shape index: {}]
  %s3 = inlined_call_operand.vmem [shape: bf16[8,72], index: 3, kind: input, shape index: {}]
  %s4 = inlined_call_operand.vmem [shape: f32[8,1], index: 4, kind: input, shape index: {}]
  %s5 = inlined_call_operand.vmem [shape: bf16[8,72], index: 5, kind: input, shape index: {}]
  %s6 = inlined_call_operand.vmem [shape: f32[8,1], index: 6, kind: input, shape index: {}]
  %s7 = inlined_call_operand.vmem [shape: f32[9,8], index: 7, kind: input, shape index: {}]
  %s8 = inlined_call_operand.<no memory space> [shape: f32[1,1], index: 8, kind: input, shape index: {}]
  %s9 = inlined_call_operand.vmem [shape: f32[2,1,4,4], index: 9, kind: output, shape index: {}]
  %s10 = sld [smem:[#allocation0]]
  $region73: #{masknet_forward.2} parent=0
    _
  %s12 = ssub.s32 1, %s10
  %s13 = scalar_select 0, %s12, %s10
  %14 = sst [smem:[#allocation3]] %s8
  $region1: #{masknet_forward.2} parent=0
    #allocation4 [shape = 'u8[8192]{0}', space=smem, size = 0x2000, scoped, tag = 'input window, operand 7, single buffered']
    #allocation5 [shape = 's32[2]{0}', space=sflag, size = 0x8, scoped, tag = 'scoped memory for masknet_forward.2']
    %15 = vsyncpa [#allocation5], 0
    loop: start=0, step=1, limit=4
    $region2: #{masknet_forward.2} parent=1 // loop_pre_header
      _
    $region3: #{masknet_forward.2} parent=1 // loop_header
      %s17 = sphi 0, %s21
      %p18 = scmp.ge.s32.totalorder %s17, 4
      %s24 = sphi 0, %s36
      %s25 = sphi 0, %s32
      %s26 = sphi 0, %s24
      %s27 = sphi 0, %s25
      %s28 = sphi 0, %s26
      %s29 = sphi 0, %s27
      %s41 = sphi 0, %s43
      %s44 = sphi 0, %s41
      %s45 = sphi 0, %s44
      %s61 = sphi 0, %s45
      %s65 = sphi 0, %s65
      %s67 = sphi 0, %s65
      %s68 = sphi 0, %s67
      %s82 = sphi 0, %s68
      %s86 = sphi 0, %s86
      %s88 = sphi 0, %s86
      %s89 = sphi 0, %s88
      %s103 = sphi 0, %s89
      %s107 = sphi 0, %s107
      %s109 = sphi 0, %s107
      %s110 = sphi 0, %s109
      %s124 = sphi 0, %s110
      %s128 = sphi 0, %s128
      %s130 = sphi 0, %s128
      %s131 = sphi 0, %s130
      %s145 = sphi 0, %s131
      %s149 = sphi 0, %s149
      %s151 = sphi 0, %s149
      %s152 = sphi 0, %s151
      %s166 = sphi 0, %s152
      %s170 = sphi 0, %s170
      %s172 = sphi 0, %s170
      %s173 = sphi 0, %s172
      %s187 = sphi 0, %s173
      %s191 = sphi 0, %s191
      %s193 = sphi 0, %s191
      %s194 = sphi 0, %s193
      %s208 = sphi 0, %s194
      %s212 = sphi 0, %s212
      %s214 = sphi 0, %s212
      %s215 = sphi 0, %s214
      %s229 = sphi 0, %s215
      %s237 = sphi 0, %s239
      %s240 = sphi 0, %s237
      %s241 = sphi 0, %s240
      %s257 = sphi 0, %s241
    $region4: #{masknet_forward.2} parent=1 // loop_header_branch
      %20 = sbr.rel (%p18) target = $region8
    $region5: #{masknet_forward.2} parent=1 // loop_body
      %s22 = ssub.s32 %s17, 1
      %s23 = ssub.s32 %s17, 2
      %s30 = sadd.s32 1, %s25
      %p31 = scmp.ge.s32.totalorder %s30, 1
      %s32 = scalar_select %p31, 0, %s30
      %s33 = sadd.s32 1, %s24
      %s34 = scalar_select %p31, %s33, %s24
      %p35 = scmp.ge.s32.totalorder %s34, 2
      %s36 = scalar_select %p35, 0, %s34
      %s37 = ssub.s32 %s24, %s36
      %s38 = ssub.s32 %s25, %s32
      %s39 = sor.u32 %s37, %s38
      %p40 = scmp.eq.s32.totalorder %s39, 0
      %s42 = sadd.s32 %s41, 1
      %s43 = scalar_select %p40, %s41, %s42
      %p46 = pneg %p40
      %p47 = scmp.eq.s32.totalorder %s17, 1
      %p48 = por %p46, %p47
      %p49 = scmp.ne.s32.totalorder %s41, %s44
      %p50 = scmp.eq.s32.totalorder %s17, 0
      %p51 = por %p49, %p50
      %p52 = scmp.ne.s32.totalorder %s41, %s44
      %p53 = scmp.eq.s32.totalorder %s22, 1
      %p54 = por %p52, %p53
      %p55 = scmp.ne.s32.totalorder %s44, %s45
      %p56 = scmp.eq.s32.totalorder %s22, 0
      %p57 = por %p55, %p56
      %p58 = scmp.ne.s32.totalorder %s44, %s45
      %p59 = scmp.eq.s32.totalorder %s23, 1
      %p60 = por %p58, %p59
      %p62 = scmp.ne.s32.totalorder %s45, %s61
      %p63 = scmp.eq.s32.totalorder %s23, 0
      %p64 = por %p62, %p63
      %s66 = sadd.s32 %s65, 1
      %p69 = scmp.eq.s32.totalorder %s17, 1
      %p70 = scmp.ne.s32.totalorder %s65, %s67
      %p71 = scmp.eq.s32.totalorder %s17, 0
      %p72 = por %p70, %p71
      %p73 = scmp.ne.s32.totalorder %s65, %s67
      %p74 = scmp.eq.s32.totalorder %s22, 1
      %p75 = por %p73, %p74
      %p76 = scmp.ne.s32.totalorder %s67, %s68
      %p77 = scmp.eq.s32.totalorder %s22, 0
      %p78 = por %p76, %p77
      %p79 = scmp.ne.s32.totalorder %s67, %s68
      %p80 = scmp.eq.s32.totalorder %s23, 1
      %p81 = por %p79, %p80
      %p83 = scmp.ne.s32.totalorder %s68, %s82
      %p84 = scmp.eq.s32.totalorder %s23, 0
      %p85 = por %p83, %p84
      %s87 = sadd.s32 %s86, 1
      %p90 = scmp.eq.s32.totalorder %s17, 1
      %p91 = scmp.ne.s32.totalorder %s86, %s88
      %p92 = scmp.eq.s32.totalorder %s17, 0
      %p93 = por %p91, %p92
      %p94 = scmp.ne.s32.totalorder %s86, %s88
      %p95 = scmp.eq.s32.totalorder %s22, 1
      %p96 = por %p94, %p95
      %p97 = scmp.ne.s32.totalorder %s88, %s89
      %p98 = scmp.eq.s32.totalorder %s22, 0
      %p99 = por %p97, %p98
      %p100 = scmp.ne.s32.totalorder %s88, %s89
      %p101 = scmp.eq.s32.totalorder %s23, 1
      %p102 = por %p100, %p101
      %p104 = scmp.ne.s32.totalorder %s89, %s103
      %p105 = scmp.eq.s32.totalorder %s23, 0
      %p106 = por %p104, %p105
      %s108 = sadd.s32 %s107, 1
      %p111 = scmp.eq.s32.totalorder %s17, 1
      %p112 = scmp.ne.s32.totalorder %s107, %s109
      %p113 = scmp.eq.s32.totalorder %s17, 0
      %p114 = por %p112, %p113
      %p115 = scmp.ne.s32.totalorder %s107, %s109
      %p116 = scmp.eq.s32.totalorder %s22, 1
      %p117 = por %p115, %p116
      %p118 = scmp.ne.s32.totalorder %s109, %s110
      %p119 = scmp.eq.s32.totalorder %s22, 0
      %p120 = por %p118, %p119
      %p121 = scmp.ne.s32.totalorder %s109, %s110
      %p122 = scmp.eq.s32.totalorder %s23, 1
      %p123 = por %p121, %p122
      %p125 = scmp.ne.s32.totalorder %s110, %s124
      %p126 = scmp.eq.s32.totalorder %s23, 0
      %p127 = por %p125, %p126
      %s129 = sadd.s32 %s128, 1
      %p132 = scmp.eq.s32.totalorder %s17, 1
      %p133 = scmp.ne.s32.totalorder %s128, %s130
      %p134 = scmp.eq.s32.totalorder %s17, 0
      %p135 = por %p133, %p134
      %p136 = scmp.ne.s32.totalorder %s128, %s130
      %p137 = scmp.eq.s32.totalorder %s22, 1
      %p138 = por %p136, %p137
      %p139 = scmp.ne.s32.totalorder %s130, %s131
      %p140 = scmp.eq.s32.totalorder %s22, 0
      %p141 = por %p139, %p140
      %p142 = scmp.ne.s32.totalorder %s130, %s131
      %p143 = scmp.eq.s32.totalorder %s23, 1
      %p144 = por %p142, %p143
      %p146 = scmp.ne.s32.totalorder %s131, %s145
      %p147 = scmp.eq.s32.totalorder %s23, 0
      %p148 = por %p146, %p147
      %s150 = sadd.s32 %s149, 1
      %p153 = scmp.eq.s32.totalorder %s17, 1
      %p154 = scmp.ne.s32.totalorder %s149, %s151
      %p155 = scmp.eq.s32.totalorder %s17, 0
      %p156 = por %p154, %p155
      %p157 = scmp.ne.s32.totalorder %s149, %s151
      %p158 = scmp.eq.s32.totalorder %s22, 1
      %p159 = por %p157, %p158
      %p160 = scmp.ne.s32.totalorder %s151, %s152
      %p161 = scmp.eq.s32.totalorder %s22, 0
      %p162 = por %p160, %p161
      %p163 = scmp.ne.s32.totalorder %s151, %s152
      %p164 = scmp.eq.s32.totalorder %s23, 1
      %p165 = por %p163, %p164
      %p167 = scmp.ne.s32.totalorder %s152, %s166
      %p168 = scmp.eq.s32.totalorder %s23, 0
      %p169 = por %p167, %p168
      %s171 = sadd.s32 %s170, 1
      %p174 = scmp.eq.s32.totalorder %s17, 1
      %p175 = scmp.ne.s32.totalorder %s170, %s172
      %p176 = scmp.eq.s32.totalorder %s17, 0
      %p177 = por %p175, %p176
      %p178 = scmp.ne.s32.totalorder %s170, %s172
      %p179 = scmp.eq.s32.totalorder %s22, 1
      %p180 = por %p178, %p179
      %p181 = scmp.ne.s32.totalorder %s172, %s173
      %p182 = scmp.eq.s32.totalorder %s22, 0
      %p183 = por %p181, %p182
      %p184 = scmp.ne.s32.totalorder %s172, %s173
      %p185 = scmp.eq.s32.totalorder %s23, 1
      %p186 = por %p184, %p185
      %p188 = scmp.ne.s32.totalorder %s173, %s187
      %p189 = scmp.eq.s32.totalorder %s23, 0
      %p190 = por %p188, %p189
      %s192 = sadd.s32 %s191, 1
      %p195 = scmp.eq.s32.totalorder %s17, 1
      %p196 = scmp.ne.s32.totalorder %s191, %s193
      %p197 = scmp.eq.s32.totalorder %s17, 0
      %p198 = por %p196, %p197
      %p199 = scmp.ne.s32.totalorder %s191, %s193
      %p200 = scmp.eq.s32.totalorder %s22, 1
      %p201 = por %p199, %p200
      %p202 = scmp.ne.s32.totalorder %s193, %s194
      %p203 = scmp.eq.s32.totalorder %s22, 0
      %p204 = por %p202, %p203
      %p205 = scmp.ne.s32.totalorder %s193, %s194
      %p206 = scmp.eq.s32.totalorder %s23, 1
      %p207 = por %p205, %p206
      %p209 = scmp.ne.s32.totalorder %s194, %s208
      %p210 = scmp.eq.s32.totalorder %s23, 0
      %p211 = por %p209, %p210
      %s213 = sadd.s32 %s212, 1
      %p216 = scmp.eq.s32.totalorder %s17, 1
      %p217 = scmp.ne.s32.totalorder %s212, %s214
      %p218 = scmp.eq.s32.totalorder %s17, 0
      %p219 = por %p217, %p218
      %p220 = scmp.ne.s32.totalorder %s212, %s214
      %p221 = scmp.eq.s32.totalorder %s22, 1
      %p222 = por %p220, %p221
      %p223 = scmp.ne.s32.totalorder %s214, %s215
      %p224 = scmp.eq.s32.totalorder %s22, 0
      %p225 = por %p223, %p224
      %p226 = scmp.ne.s32.totalorder %s214, %s215
      %p227 = scmp.eq.s32.totalorder %s23, 1
      %p228 = por %p226, %p227
      %p230 = scmp.ne.s32.totalorder %s215, %s229
      %p231 = scmp.eq.s32.totalorder %s23, 0
      %p232 = por %p230, %p231
      %s233 = ssub.s32 %s24, %s36
      %s234 = ssub.s32 %s25, %s32
      %s235 = sor.u32 %s233, %s234
      %p236 = scmp.eq.s32.totalorder %s235, 0
      %s238 = sadd.s32 %s237, 1
      %s239 = scalar_select %p236, %s237, %s238
      %p242 = pneg %p236
      %p243 = scmp.eq.s32.totalorder %s17, 1
      %p244 = por %p242, %p243
      %p245 = scmp.ne.s32.totalorder %s237, %s240
      %p246 = scmp.eq.s32.totalorder %s17, 0
      %p247 = por %p245, %p246
      %p248 = scmp.ne.s32.totalorder %s237, %s240
      %p249 = scmp.eq.s32.totalorder %s22, 1
      %p250 = por %p248, %p249
      %p251 = scmp.ne.s32.totalorder %s240, %s241
      %p252 = scmp.eq.s32.totalorder %s22, 0
      %p253 = por %p251, %p252
      %p254 = scmp.ne.s32.totalorder %s240, %s241
      %p255 = scmp.eq.s32.totalorder %s23, 1
      %p256 = por %p254, %p255
      %p258 = scmp.ne.s32.totalorder %s241, %s257
      %p259 = scmp.eq.s32.totalorder %s23, 0
      %p260 = por %p258, %p259
      %p261 = scmp.le.s32.totalorder 1, %s17
      %p262 = scmp.lt.s32.totalorder %s17, 3
      %p263 = pnand %p261, %p262
      %p264 = pneg %p263
      // Predicated region
      $region9: #{masknet_forward.2} parent=5 // pred_check
        _
      $region10: #{masknet_forward.2} parent=5 // pred_check_branch
        %266 = sbr.rel (%p263) target = $region12
      $region11: #{masknet_forward.2} parent=5 // pred_region
        %s267 = ssub.s32 %s17, 1
        // Predicated region
        $region13: #{masknet_forward.2} parent=11 // pred_check
          %p268 = pneg %p78
        $region14: #{masknet_forward.2} parent=11 // pred_check_branch
          %270 = sbr.rel (%p268) target = $region16
        $region15: #{masknet_forward.2} parent=11 // pred_region
          _
        $region16: #{masknet_forward.2} parent=11 // pred_fallthru
          _
        // Predicated region
        $region17: #{masknet_forward.2} parent=11 // pred_check
          %p271 = pneg %p99
        $region18: #{masknet_forward.2} parent=11 // pred_check_branch
          %273 = sbr.rel (%p271) target = $region20
        $region19: #{masknet_forward.2} parent=11 // pred_region
          _
        $region20: #{masknet_forward.2} parent=11 // pred_fallthru
          _
        // Predicated region
        $region21: #{masknet_forward.2} parent=11 // pred_check
          %p274 = pneg %p120
        $region22: #{masknet_forward.2} parent=11 // pred_check_branch
          %276 = sbr.rel (%p274) target = $region24
        $region23: #{masknet_forward.2} parent=11 // pred_region
          _
        $region24: #{masknet_forward.2} parent=11 // pred_fallthru
          _
        // Predicated region
        $region25: #{masknet_forward.2} parent=11 // pred_check
          %p277 = pneg %p141
        $region26: #{masknet_forward.2} parent=11 // pred_check_branch
          %279 = sbr.rel (%p277) target = $region28
        $region27: #{masknet_forward.2} parent=11 // pred_region
          _
        $region28: #{masknet_forward.2} parent=11 // pred_fallthru
          _
        // Predicated region
        $region29: #{masknet_forward.2} parent=11 // pred_check
          %p280 = pneg %p162
        $region30: #{masknet_forward.2} parent=11 // pred_check_branch
          %282 = sbr.rel (%p280) target = $region32
        $region31: #{masknet_forward.2} parent=11 // pred_region
          _
        $region32: #{masknet_forward.2} parent=11 // pred_fallthru
          _
        // Predicated region
        $region33: #{masknet_forward.2} parent=11 // pred_check
          %p283 = pneg %p183
        $region34: #{masknet_forward.2} parent=11 // pred_check_branch
          %285 = sbr.rel (%p283) target = $region36
        $region35: #{masknet_forward.2} parent=11 // pred_region
          _
        $region36: #{masknet_forward.2} parent=11 // pred_fallthru
          _
        // Predicated region
        $region37: #{masknet_forward.2} parent=11 // pred_check
          %p286 = pneg %p204
        $region38: #{masknet_forward.2} parent=11 // pred_check_branch
          %288 = sbr.rel (%p286) target = $region40
        $region39: #{masknet_forward.2} parent=11 // pred_region
          %s290 = ssub.s32 256, 256
          %291 = vsyncadd [#allocation5], %s290
          %s292 = sshll.u32 %s7, 4
          %s293 = int_to_ptr.vmem [resolvable:$true] %s292
          %298 = dma.vmem_to_smem %s293, 256, [#allocation4], [#allocation5], 128, 128, 8
        $region40: #{masknet_forward.2} parent=11 // pred_fallthru
          _
        // Predicated region
        $region41: #{masknet_forward.2} parent=11 // pred_check
          %p299 = pneg %p225
        $region42: #{masknet_forward.2} parent=11 // pred_check_branch
          %301 = sbr.rel (%p299) target = $region44
        $region43: #{masknet_forward.2} parent=11 // pred_region
          _
        $region44: #{masknet_forward.2} parent=11 // pred_fallthru
          _
      $region12: #{masknet_forward.2} parent=5 // pred_fallthru
        _
      %p302 = scmp.lt.s32.totalorder %s17, 2
      // Predicated region
      $region45: #{masknet_forward.2} parent=5 // pred_check
        %p303 = pneg %p302
      $region46: #{masknet_forward.2} parent=5 // pred_check_branch
        %305 = sbr.rel (%p303) target = $region48
      $region47: #{masknet_forward.2} parent=5 // pred_region
        // Predicated region
        $region49: #{masknet_forward.2} parent=47 // pred_check
          %p306 = pneg %p51
        $region50: #{masknet_forward.2} parent=47 // pred_check_branch
          %308 = sbr.rel (%p306) target = $region52
        $region51: #{masknet_forward.2} parent=47 // pred_region
          %p309 = scmp.lt.s32.totalorder %s24, 1
          %s310 = scalar_select %p309, %s24, 1
          %p311 = scmp.lt.s32.totalorder %s25, 0
          %s312 = scalar_select %p311, %s25, 0
          %s313 = smul.addr %s312, 34
          %s314 = smul.addr %s310, 34
          %s315 = sadd.s32 %s313, %s314
          %s316 = smul.addr %s315, 4
          %s317 = scalar_lea.vmem %s0, %s316
        $region52: #{masknet_forward.2} parent=47 // pred_fallthru
          _
      $region48: #{masknet_forward.2} parent=5 // pred_fallthru
        _
      %p318 = scmp.le.s32.totalorder 1, %s17
      %p319 = scmp.lt.s32.totalorder %s17, 3
      %p320 = pnand %p318, %p319
      %p321 = pneg %p320
      // Predicated region
      $region53: #{masknet_forward.2} parent=5 // pred_check
        _
      $region54: #{masknet_forward.2} parent=5 // pred_check_branch
        %323 = sbr.rel (%p320) target = $region56
      $region55: #{masknet_forward.2} parent=5 // pred_region
        %s324 = ssub.s32 %s17, 1
        // Predicated region
        $region57: #{masknet_forward.2} parent=55 // pred_check
          %p325 = pneg %p204
        $region58: #{masknet_forward.2} parent=55 // pred_check_branch
          %327 = sbr.rel (%p325) target = $region60
        $region59: #{masknet_forward.2} parent=55 // pred_region
          %328 = dma.done [#allocation5], 256
        $region60: #{masknet_forward.2} parent=55 // pred_fallthru
          _
        %329 = sfence
        %p330 = scmp.lt.s32.totalorder %s26, 1
        %s331 = scalar_select %p330, %s26, 1
        %p332 = scmp.lt.s32.totalorder %s27, 0
        %s333 = scalar_select %p332, %s27, 0
        %s334 = smul.addr %s333, 34
        %s335 = smul.addr %s331, 34
        %s336 = sadd.s32 %s334, %s335
        %s337 = smul.addr %s336, 4
        %s338 = scalar_lea.vmem %s0, %s337
        %p339 = pneg %p57
        %p340 = pneg %p54
        %p341 = pneg %p78
        %p342 = pneg %p75
        %p343 = pneg %p99
        %p344 = pneg %p96
        %p345 = pneg %p120
        %p346 = pneg %p117
        %p347 = pneg %p141
        %p348 = pneg %p138
        %p349 = pneg %p162
        %p350 = pneg %p159
        %p351 = pneg %p183
        %p352 = pneg %p180
        %p353 = pneg %p204
        %p354 = pneg %p201
        %p355 = pneg %p225
        %p356 = pneg %p222
        %p357 = pneg %p253
        %p358 = pneg %p250
        %p359 = scmp.lt.s32.totalorder %s26, 1
        %s360 = scalar_select %p359, %s26, 1
        %p361 = scmp.lt.s32.totalorder %s27, 0
        %s362 = scalar_select %p361, %s27, 0
        %s363 = sadd.s32 %s362, %s360
        %s364 = smul.addr %s363, 4
        %s365 = scalar_lea.vmem %s9, %s364
        %p366 = scmp.lt.s32.totalorder %s26, 1
        %s367 = scalar_select %p366, %s26, 1
        %p368 = scmp.lt.s32.totalorder %s27, 0
        %s369 = scalar_select %p368, %s27, 0
        %s370 = smul.addr %s369, 34
        %s371 = smul.addr %s367, 34
        %s372 = sadd.s32 %s370, %s371
        %s373 = smul.addr %s372, 4
        %s374 = scalar_lea.vmem %s0, %s373
        %p375 = scmp.lt.s32.totalorder %s26, 1
        %s376 = scalar_select %p375, %s26, 1
        %p377 = scmp.lt.s32.totalorder %s27, 0
        %s378 = scalar_select %p377, %s27, 0
        %s379 = sadd.s32 %s378, %s376
        %s380 = smul.addr %s379, 4
        %s381 = scalar_lea.vmem %s9, %s380
        %s383 = smul.u32 %s27, 4
        %vm384 = vcmask 44032
        %385 = vst.msk [vmem:[#allocation2] sm:$0xf] %vm384, 0
        %vm386 = vcmask 40960
        %387 = vst.msk [vmem:[#allocation2 + $0x4] sm:$0x1] %vm386, 0
        %388 = vst.msk [vmem:[#allocation2 + $0x8] sm:$0xf] %vm384, 0
        %389 = vst.msk [vmem:[#allocation2 + $0xc] sm:$0x1] %vm386, 0
        %390 = vst.msk [vmem:[#allocation2 + $0x10] sm:$0xf] %vm384, 0
        %391 = vst.msk [vmem:[#allocation2 + $0x14] sm:$0x1] %vm386, 0
        %392 = vst.msk [vmem:[#allocation2 + $0x18] sm:$0xf] %vm384, 0
        %393 = vst.msk [vmem:[#allocation2 + $0x1c] sm:$0x1] %vm386, 0
        %394 = vst.msk [vmem:[#allocation2 + $0x20] sm:$0xf] %vm384, 0
        %395 = vst.msk [vmem:[#allocation2 + $0x24] sm:$0x1] %vm386, 0
        %396 = vst.msk [vmem:[#allocation2 + $0x28] sm:$0xf] %vm384, 0
        %397 = vst.msk [vmem:[#allocation2 + $0x2c] sm:$0x1] %vm386, 0
        %398 = vst.msk [vmem:[#allocation2 + $0x30] sm:$0xf] %vm384, 0
        %399 = vst.msk [vmem:[#allocation2 + $0x34] sm:$0x1] %vm386, 0
        %400 = vst.msk [vmem:[#allocation2 + $0x38] sm:$0xf] %vm384, 0
        %401 = vst.msk [vmem:[#allocation2 + $0x3c] sm:$0x1] %vm386, 0
        %v402 = vld [vmem:[%s374] sm:$0xf]
        %v403 = vld [vmem:[%s374 + $0x4] sm:$0x3]
        %v404 = vld [vmem:[%s374 + $0x8] sm:$0xf]
        %v405 = vld [vmem:[%s374 + $0xc] sm:$0x3]
        %v406 = vld [vmem:[%s374 + $0x10] sm:$0xf]
        %v407 = vld [vmem:[%s374 + $0x14] sm:$0x3]
        %v408 = vld [vmem:[%s374 + $0x18] sm:$0xf]
        %v409 = vld [vmem:[%s374 + $0x1c] sm:$0x3]
        %v410 = vld [vmem:[%s374 + $0x20] sm:$0xf]
        %v411 = vld [vmem:[%s374 + $0x24] sm:$0x3]
        %v412 = vld [vmem:[%s374 + $0x28] sm:$0xf]
        %v413 = vld [vmem:[%s374 + $0x2c] sm:$0x3]
        %v414 = vld [vmem:[%s374 + $0x30] sm:$0xf]
        %v415 = vld [vmem:[%s374 + $0x34] sm:$0x3]
        %v416 = vld [vmem:[%s374 + $0x38] sm:$0xf]
        %v417 = vld [vmem:[%s374 + $0x3c] sm:$0x3]
        %v418 = vld [vmem:[%s374 + $0x40] sm:$0xf]
        %v419 = vld [vmem:[%s374 + $0x44] sm:$0x3]
        %v420 = vld [vmem:[%s374 + $0x48] sm:$0xf]
        %v421 = vld [vmem:[%s374 + $0x4c] sm:$0x3]
        %v422 = vld [vmem:[%s374 + $0x50] sm:$0xf]
        %v423 = vld [vmem:[%s374 + $0x54] sm:$0x3]
        %v424 = vld [vmem:[%s374 + $0x58] sm:$0xf]
        %v425 = vld [vmem:[%s374 + $0x5c] sm:$0x3]
        %v426 = vld [vmem:[%s374 + $0x60] sm:$0xf]
        %v427 = vld [vmem:[%s374 + $0x64] sm:$0x3]
        %v428 = vld [vmem:[%s374 + $0x68] sm:$0xf]
        %v429 = vld [vmem:[%s374 + $0x6c] sm:$0x3]
        %v430 = vld [vmem:[%s374 + $0x70] sm:$0xf]
        %v431 = vld [vmem:[%s374 + $0x74] sm:$0x3]
        %v432 = vld [vmem:[%s374 + $0x78] sm:$0xf]
        %v433 = vld [vmem:[%s374 + $0x7c] sm:$0x3]
        %v434 = vld [vmem:[%s374 + $0x80] sm:$0xf]
        %v435 = vld [vmem:[%s374 + $0x84] sm:$0x3]
        %v436 = vld [vmem:[%s1] sm:$0xff]
        %v437 = vld [vmem:[%s1 + $0x8] sm:$0xff]
        %v438 = vcombine.low %v402, %v410
        %v440 = vunpack.c.l.s4 1983009808
        %v441 = vunpack.c.0.s8 %v440
        %v442 = vlaneseq
        %v443 = vshrl.u32 %v442, 7
        %v444 = vsub.s32 %v441, %v443
        %v445 = vrot.slane %v438, %v444
        %v446 = vcombine.low %v406, %v414
        %v448 = vunpack.c.l.s4 1983009808
        %v449 = vunpack.c.0.s8 %v448
        %v450 = vlaneseq
        %v451 = vshrl.u32 %v450, 7
        %v452 = vsub.s32 %v449, %v451
        %v453 = vrot.slane %v446, %v452
        %v454 = vcombine.low %v445, %v453
        %v455 = vcombine.high %v445, %v453
        %v457 = vunpack.c.l.s4 1934713408
        %v458 = vunpack.c.0.s8 %v457
        %v459 = vlaneseq
        %v460 = vshrl.u32 %v459, 7
        %v461 = vsub.s32 %v458, %v460
        %v462 = vrot.slane %v454, %v461
        %v464 = vunpack.c.l.s4 1934713408
        %v465 = vunpack.c.0.s8 %v464
        %v466 = vlaneseq
        %v467 = vshrl.u32 %v466, 7
        %v468 = vsub.s32 %v465, %v467
        %v469 = vrot.slane %v455, %v468
        %v470 = vcombine.high %v462, 0
        %v471 = vcombine.high %v469, 0
        %v472 = vcombine.low %v404, %v412
        %v474 = vunpack.c.l.s4 1983009808
        %v475 = vunpack.c.0.s8 %v474
        %v476 = vlaneseq
        %v477 = vshrl.u32 %v476, 7
        %v478 = vsub.s32 %v475, %v477
        %v479 = vrot.slane %v472, %v478
        %v480 = vcombine.low %v408, %v416
        %v482 = vunpack.c.l.s4 1983009808
        %v483 = vunpack.c.0.s8 %v482
        %v484 = vlaneseq
        %v485 = vshrl.u32 %v484, 7
        %v486 = vsub.s32 %v483, %v485
        %v487 = vrot.slane %v480, %v486
        %v488 = vcombine.low %v479, %v487
        %v489 = vcombine.high %v479, %v487
        %v491 = vunpack.c.l.s4 1934713408
        %v492 = vunpack.c.0.s8 %v491
        %v493 = vlaneseq
        %v494 = vshrl.u32 %v493, 7
        %v495 = vsub.s32 %v492, %v494
        %v496 = vrot.slane %v488, %v495
        %v498 = vunpack.c.l.s4 1934713408
        %v499 = vunpack.c.0.s8 %v498
        %v500 = vlaneseq
        %v501 = vshrl.u32 %v500, 7
        %v502 = vsub.s32 %v499, %v501
        %v503 = vrot.slane %v489, %v502
        %v504 = vcombine.high %v496, 0
        %v505 = vcombine.high %v503, 0
        %v506 = vcombine.low %v418, %v426
        %v508 = vunpack.c.l.s4 1983009808
        %v509 = vunpack.c.0.s8 %v508
        %v510 = vlaneseq
        %v511 = vshrl.u32 %v510, 7
        %v512 = vsub.s32 %v509, %v511
        %v513 = vrot.slane %v506, %v512
        %v514 = vcombine.low %v422, %v430
        %v516 = vunpack.c.l.s4 1983009808
        %v517 = vunpack.c.0.s8 %v516
        %v518 = vlaneseq
        %v519 = vshrl.u32 %v518, 7
        %v520 = vsub.s32 %v517, %v519
        %v521 = vrot.slane %v514, %v520
        %v522 = vcombine.low %v513, %v521
        %v523 = vcombine.high %v513, %v521
        %v525 = vunpack.c.l.s4 1934713408
        %v526 = vunpack.c.0.s8 %v525
        %v527 = vlaneseq
        %v528 = vshrl.u32 %v527, 7
        %v529 = vsub.s32 %v526, %v528
        %v530 = vrot.slane %v522, %v529
        %v532 = vunpack.c.l.s4 1934713408
        %v533 = vunpack.c.0.s8 %v532
        %v534 = vlaneseq
        %v535 = vshrl.u32 %v534, 7
        %v536 = vsub.s32 %v533, %v535
        %v537 = vrot.slane %v523, %v536
        %v538 = vcombine.high %v530, 0
        %v539 = vcombine.high %v537, 0
        %v540 = vcombine.low %v420, %v428
        %v542 = vunpack.c.l.s4 1983009808
        %v543 = vunpack.c.0.s8 %v542
        %v544 = vlaneseq
        %v545 = vshrl.u32 %v544, 7
        %v546 = vsub.s32 %v543, %v545
        %v547 = vrot.slane %v540, %v546
        %v548 = vcombine.low %v424, %v432
        %v550 = vunpack.c.l.s4 1983009808
        %v551 = vunpack.c.0.s8 %v550
        %v552 = vlaneseq
        %v553 = vshrl.u32 %v552, 7
        %v554 = vsub.s32 %v551, %v553
        %v555 = vrot.slane %v548, %v554
        %v556 = vcombine.low %v547, %v555
        %v557 = vcombine.high %v547, %v555
        %v559 = vunpack.c.l.s4 1934713408
        %v560 = vunpack.c.0.s8 %v559
        %v561 = vlaneseq
        %v562 = vshrl.u32 %v561, 7
        %v563 = vsub.s32 %v560, %v562
        %v564 = vrot.slane %v556, %v563
        %v566 = vunpack.c.l.s4 1934713408
        %v567 = vunpack.c.0.s8 %v566
        %v568 = vlaneseq
        %v569 = vshrl.u32 %v568, 7
        %v570 = vsub.s32 %v567, %v569
        %v571 = vrot.slane %v557, %v570
        %v572 = vcombine.high %v564, 0
        %v573 = vcombine.high %v571, 0
        %v575 = vunpack.c.l.s4 1983009808
        %v576 = vunpack.c.0.s8 %v575
        %v577 = vlaneseq
        %v578 = vshrl.u32 %v577, 7
        %v579 = vsub.s32 %v576, %v578
        %v580 = vrot.slane %v434, %v579
        %v581 = vcombine.high %v580, 0
        %v583 = vunpack.c.l.s4 1934713408
        %v584 = vunpack.c.0.s8 %v583
        %v585 = vlaneseq
        %v586 = vshrl.u32 %v585, 7
        %v587 = vsub.s32 %v584, %v586
        %v588 = vrot.slane %v580, %v587
        %v590 = vunpack.c.l.s4 1934713408
        %v591 = vunpack.c.0.s8 %v590
        %v592 = vlaneseq
        %v593 = vshrl.u32 %v592, 7
        %v594 = vsub.s32 %v591, %v593
        %v595 = vrot.slane %v581, %v594
        %v596 = vcombine.high %v588, 0
        %v597 = vcombine.high %v595, 0
        %v598 = vcombine.low %v403, %v411
        %v600 = vunpack.c.l.s4 1983009808
        %v601 = vunpack.c.0.s8 %v600
        %v602 = vlaneseq
        %v603 = vshrl.u32 %v602, 7
        %v604 = vsub.s32 %v601, %v603
        %v605 = vrot.slane %v598, %v604
        %v606 = vcombine.low %v407, %v415
        %v608 = vunpack.c.l.s4 1983009808
        %v609 = vunpack.c.0.s8 %v608
        %v610 = vlaneseq
        %v611 = vshrl.u32 %v610, 7
        %v612 = vsub.s32 %v609, %v611
        %v613 = vrot.slane %v606, %v612
        %v614 = vcombine.low %v605, %v613
        %v616 = vunpack.c.l.s4 1934713408
        %v617 = vunpack.c.0.s8 %v616
        %v618 = vlaneseq
        %v619 = vshrl.u32 %v618, 7
        %v620 = vsub.s32 %v617, %v619
        %v621 = vrot.slane %v614, %v620
        %v622 = vcombine.low %v405, %v413
        %v624 = vunpack.c.l.s4 1983009808
        %v625 = vunpack.c.0.s8 %v624
        %v626 = vlaneseq
        %v627 = vshrl.u32 %v626, 7
        %v628 = vsub.s32 %v625, %v627
        %v629 = vrot.slane %v622, %v628
        %v630 = vcombine.low %v409, %v417
        %v632 = vunpack.c.l.s4 1983009808
        %v633 = vunpack.c.0.s8 %v632
        %v634 = vlaneseq
        %v635 = vshrl.u32 %v634, 7
        %v636 = vsub.s32 %v633, %v635
        %v637 = vrot.slane %v630, %v636
        %v638 = vcombine.low %v629, %v637
        %v640 = vunpack.c.l.s4 1934713408
        %v641 = vunpack.c.0.s8 %v640
        %v642 = vlaneseq
        %v643 = vshrl.u32 %v642, 7
        %v644 = vsub.s32 %v641, %v643
        %v645 = vrot.slane %v638, %v644
        %v646 = vcombine.low %v419, %v427
        %v648 = vunpack.c.l.s4 1983009808
        %v649 = vunpack.c.0.s8 %v648
        %v650 = vlaneseq
        %v651 = vshrl.u32 %v650, 7
        %v652 = vsub.s32 %v649, %v651
        %v653 = vrot.slane %v646, %v652
        %v654 = vcombine.low %v423, %v431
        %v656 = vunpack.c.l.s4 1983009808
        %v657 = vunpack.c.0.s8 %v656
        %v658 = vlaneseq
        %v659 = vshrl.u32 %v658, 7
        %v660 = vsub.s32 %v657, %v659
        %v661 = vrot.slane %v654, %v660
        %v662 = vcombine.low %v653, %v661
        %v664 = vunpack.c.l.s4 1934713408
        %v665 = vunpack.c.0.s8 %v664
        %v666 = vlaneseq
        %v667 = vshrl.u32 %v666, 7
        %v668 = vsub.s32 %v665, %v667
        %v669 = vrot.slane %v662, %v668
        %v670 = vcombine.low %v421, %v429
        %v672 = vunpack.c.l.s4 1983009808
        %v673 = vunpack.c.0.s8 %v672
        %v674 = vlaneseq
        %v675 = vshrl.u32 %v674, 7
        %v676 = vsub.s32 %v673, %v675
        %v677 = vrot.slane %v670, %v676
        %v678 = vcombine.low %v425, %v433
        %v680 = vunpack.c.l.s4 1983009808
        %v681 = vunpack.c.0.s8 %v680
        %v682 = vlaneseq
        %v683 = vshrl.u32 %v682, 7
        %v684 = vsub.s32 %v681, %v683
        %v685 = vrot.slane %v678, %v684
        %v686 = vcombine.low %v677, %v685
        %v688 = vunpack.c.l.s4 1934713408
        %v689 = vunpack.c.0.s8 %v688
        %v690 = vlaneseq
        %v691 = vshrl.u32 %v690, 7
        %v692 = vsub.s32 %v689, %v691
        %v693 = vrot.slane %v686, %v692
        %v696 = vpack.i.b16 %v496, %v462
        %v697 = vshrl.u32 %v462, 16
        %v698 = vshrl.u32 %v496, 16
        %v699 = vpack.i.b16 %v698, %v697
        %v702 = vpack.i.b16 %v504, %v470
        %v703 = vshrl.u32 %v470, 16
        %v704 = vshrl.u32 %v504, 16
        %v705 = vpack.i.b16 %v704, %v703
        %v708 = vpack.i.b16 %v503, %v469
        %v709 = vshrl.u32 %v469, 16
        %v710 = vshrl.u32 %v503, 16
        %v711 = vpack.i.b16 %v710, %v709
        %v714 = vpack.i.b16 %v505, %v471
        %v715 = vshrl.u32 %v471, 16
        %v716 = vshrl.u32 %v505, 16
        %v717 = vpack.i.b16 %v716, %v715
        %v720 = vpack.i.b16 %v645, %v621
        %v721 = vshrl.u32 %v621, 16
        %v722 = vshrl.u32 %v645, 16
        %v723 = vpack.i.b16 %v722, %v721
        %v726 = vpack.i.b16 %v564, %v530
        %v727 = vshrl.u32 %v530, 16
        %v728 = vshrl.u32 %v564, 16
        %v729 = vpack.i.b16 %v728, %v727
        %v732 = vpack.i.b16 %v572, %v538
        %v733 = vshrl.u32 %v538, 16
        %v734 = vshrl.u32 %v572, 16
        %v735 = vpack.i.b16 %v734, %v733
        %v738 = vpack.i.b16 %v571, %v537
        %v739 = vshrl.u32 %v537, 16
        %v740 = vshrl.u32 %v571, 16
        %v741 = vpack.i.b16 %v740, %v739
        %v744 = vpack.i.b16 %v573, %v539
        %v745 = vshrl.u32 %v539, 16
        %v746 = vshrl.u32 %v573, 16
        %v747 = vpack.i.b16 %v746, %v745
        %v750 = vpack.i.b16 %v693, %v669
        %v751 = vshrl.u32 %v669, 16
        %v752 = vshrl.u32 %v693, 16
        %v753 = vpack.i.b16 %v752, %v751
        %v756 = vpack.i.b16 0, %v588
        %v757 = vshrl.u32 %v588, 16
        %v758 = vshrl.u32 0, 16
        %v759 = vpack.i.b16 %v758, %v757
        %v761 = vpack.i.b16 0, %v596
        %v762 = vshrl.u32 %v596, 16
        %v763 = vpack.i.b16 %v758, %v762
        %v765 = vpack.i.b16 0, %v595
        %v766 = vshrl.u32 %v595, 16
        %v767 = vpack.i.b16 %v758, %v766
        %v769 = vpack.i.b16 0, %v597
        %v770 = vshrl.u32 %v597, 16
        %v771 = vpack.i.b16 %v758, %v770
        %v773 = vpack.i.b16 0, %v435
        %v774 = vshrl.u32 %v435, 16
        %v775 = vpack.i.b16 %v758, %v774
        %v776 = vunpack.c.l.b16 %v696
        %v777 = vunpack.c.l.b16 %v726
        %v778 = vunpack.c.l.b16 %v756
        %v779 = vpack.c.b16 %v777, %v776
        %v780 = vpack.c.b16 %v778, %v778
        %v781 = vunpack.c.l.b16 %v699
        %v782 = vunpack.c.l.b16 %v729
        %v783 = vunpack.c.l.b16 %v759
        %v784 = vpack.c.b16 %v782, %v781
        %v785 = vpack.c.b16 %v783, %v783
        %786 = vrot.lane.b32.xlu0 %v784, 4
        %v787 = vpop.permute.xlu0 %786
        %788 = vrot.lane.b32.xlu0 %v785, 4
        %v789 = vpop.permute.xlu0 %788
        %v790 = vunpack.c.l.b16 %v702
        %v791 = vunpack.c.l.b16 %v732
        %v792 = vunpack.c.l.b16 %v761
        %v793 = vpack.c.b16 %v791, %v790
        %v794 = vpack.c.b16 %v792, %v792
        %795 = vrot.lane.b32.xlu0 %v793, 8
        %v796 = vpop.permute.xlu0 %795
        %797 = vrot.lane.b32.xlu0 %v794, 8
        %v798 = vpop.permute.xlu0 %797
        %v799 = vunpack.c.l.b16 %v705
        %v800 = vunpack.c.l.b16 %v735
        %v801 = vunpack.c.l.b16 %v763
        %v802 = vpack.c.b16 %v800, %v799
        %v803 = vpack.c.b16 %v801, %v801
        %804 = vrot.lane.b32.xlu0 %v802, 12
        %v805 = vpop.permute.xlu0 %804
        %806 = vrot.lane.b32.xlu0 %v803, 12
        %v807 = vpop.permute.xlu0 %806
        %v808 = vunpack.c.l.b16 %v708
        %v809 = vunpack.c.l.b16 %v738
        %v810 = vunpack.c.l.b16 %v765
        %v811 = vpack.c.b16 %v809, %v808
        %v812 = vpack.c.b16 %v810, %v810
        %813 = vrot.lane.b32.xlu0 %v811, 16
        %v814 = vpop.permute.xlu0 %813
        %815 = vrot.lane.b32.xlu0 %v812, 16
        %v816 = vpop.permute.xlu0 %815
        %v817 = vunpack.c.l.b16 %v711
        %v818 = vunpack.c.l.b16 %v741
        %v819 = vunpack.c.l.b16 %v767
        %v820 = vpack.c.b16 %v818, %v817
        %v821 = vpack.c.b16 %v819, %v819
        %822 = vrot.lane.b32.xlu0 %v820, 20
        %v823 = vpop.permute.xlu0 %822
        %824 = vrot.lane.b32.xlu0 %v821, 20
        %v825 = vpop.permute.xlu0 %824
        %v826 = vunpack.c.l.b16 %v714
        %v827 = vunpack.c.l.b16 %v744
        %v828 = vunpack.c.l.b16 %v769
        %v829 = vpack.c.b16 %v827, %v826
        %v830 = vpack.c.b16 %v828, %v828
        %831 = vrot.lane.b32.xlu0 %v829, 24
        %v832 = vpop.permute.xlu0 %831
        %833 = vrot.lane.b32.xlu0 %v830, 24
        %v834 = vpop.permute.xlu0 %833
        %v835 = vunpack.c.l.b16 %v717
        %v836 = vunpack.c.l.b16 %v747
        %v837 = vunpack.c.l.b16 %v771
        %v838 = vpack.c.b16 %v836, %v835
        %v839 = vpack.c.b16 %v837, %v837
        %840 = vrot.lane.b32.xlu0 %v838, 28
        %v841 = vpop.permute.xlu0 %840
        %842 = vrot.lane.b32.xlu0 %v839, 28
        %v843 = vpop.permute.xlu0 %842
        %v844 = vunpack.c.l.b16 %v720
        %v845 = vunpack.c.l.b16 %v750
        %v846 = vunpack.c.l.b16 %v773
        %v847 = vpack.c.b16 %v845, %v844
        %v848 = vpack.c.b16 %v846, %v846
        %849 = vrot.lane.b32.xlu0 %v847, 32
        %v850 = vpop.permute.xlu0 %849
        %851 = vrot.lane.b32.xlu0 %v848, 32
        %v852 = vpop.permute.xlu0 %851
        %v853 = vunpack.c.l.b16 %v723
        %v854 = vunpack.c.l.b16 %v753
        %v855 = vunpack.c.l.b16 %v775
        %v856 = vpack.c.b16 %v854, %v853
        %v857 = vpack.c.b16 %v855, %v855
        %858 = vrot.lane.b32.xlu0 %v856, 36
        %v859 = vpop.permute.xlu0 %858
        %860 = vrot.lane.b32.xlu0 %v857, 36
        %v861 = vpop.permute.xlu0 %860
        %vm862 = vcmask 31744
        %v865 = vsel %vm862, %v779, %v787
        %v868 = vsel %vm862, %v780, %v789
        %vm869 = vcmask 64512
        %v871 = vsel %vm869, %v865, %v796
        %v873 = vsel %vm869, %v868, %v798
        %vm874 = vcmask 97280
        %v876 = vsel %vm874, %v871, %v805
        %v878 = vsel %vm874, %v873, %v807
        %vm879 = vcmask 130048
        %v881 = vsel %vm879, %v876, %v814
        %v883 = vsel %vm879, %v878, %v816
        %vm884 = vcmask 162816
        %v886 = vsel %vm884, %v881, %v823
        %v888 = vsel %vm884, %v883, %v825
        %vm889 = vcmask 195584
        %v891 = vsel %vm889, %v886, %v832
        %v893 = vsel %vm889, %v888, %v834
        %vm894 = vcmask 228352
        %v896 = vsel %vm894, %v891, %v841
        %v898 = vsel %vm894, %v893, %v843
        %vm899 = vcmask 261120
        %v901 = vsel %vm899, %v896, %v850
        %v903 = vsel %vm899, %v898, %v852
        %vm904 = vcmask 293888
        %v906 = vsel %vm904, %v901, %v859
        %v909 = vsel %vm904, %v903, %v861
        %945 = vrot.lane.b32.xlu0 %v402, 127
        %v946 = vpop.permute.xlu0 %945
        %947 = vrot.lane.b32.xlu0 %v403, 127
        %v948 = vpop.permute.xlu0 %947
        %949 = vrot.lane.b32.xlu0 %v404, 127
        %v950 = vpop.permute.xlu0 %949
        %951 = vrot.lane.b32.xlu0 %v405, 127
        %v952 = vpop.permute.xlu0 %951
        %953 = vrot.lane.b32.xlu0 %v406, 127
        %v954 = vpop.permute.xlu0 %953
        %955 = vrot.lane.b32.xlu0 %v407, 127
        %v956 = vpop.permute.xlu0 %955
        %957 = vrot.lane.b32.xlu0 %v408, 127
        %v958 = vpop.permute.xlu0 %957
        %959 = vrot.lane.b32.xlu0 %v409, 127
        %v960 = vpop.permute.xlu0 %959
        %961 = vrot.lane.b32.xlu0 %v410, 127
        %v962 = vpop.permute.xlu0 %961
        %963 = vrot.lane.b32.xlu0 %v411, 127
        %v964 = vpop.permute.xlu0 %963
        %965 = vrot.lane.b32.xlu0 %v412, 127
        %v966 = vpop.permute.xlu0 %965
        %967 = vrot.lane.b32.xlu0 %v413, 127
        %v968 = vpop.permute.xlu0 %967
        %969 = vrot.lane.b32.xlu0 %v414, 127
        %v970 = vpop.permute.xlu0 %969
        %971 = vrot.lane.b32.xlu0 %v415, 127
        %v972 = vpop.permute.xlu0 %971
        %973 = vrot.lane.b32.xlu0 %v416, 127
        %v974 = vpop.permute.xlu0 %973
        %975 = vrot.lane.b32.xlu0 %v417, 127
        %v976 = vpop.permute.xlu0 %975
        %977 = vrot.lane.b32.xlu0 %v418, 127
        %v978 = vpop.permute.xlu0 %977
        %979 = vrot.lane.b32.xlu0 %v419, 127
        %v980 = vpop.permute.xlu0 %979
        %981 = vrot.lane.b32.xlu0 %v420, 127
        %v982 = vpop.permute.xlu0 %981
        %983 = vrot.lane.b32.xlu0 %v421, 127
        %v984 = vpop.permute.xlu0 %983
        %985 = vrot.lane.b32.xlu0 %v422, 127
        %v986 = vpop.permute.xlu0 %985
        %987 = vrot.lane.b32.xlu0 %v423, 127
        %v988 = vpop.permute.xlu0 %987
        %989 = vrot.lane.b32.xlu0 %v424, 127
        %v990 = vpop.permute.xlu0 %989
        %991 = vrot.lane.b32.xlu0 %v425, 127
        %v992 = vpop.permute.xlu0 %991
        %993 = vrot.lane.b32.xlu0 %v426, 127
        %v994 = vpop.permute.xlu0 %993
        %995 = vrot.lane.b32.xlu0 %v427, 127
        %v996 = vpop.permute.xlu0 %995
        %997 = vrot.lane.b32.xlu0 %v428, 127
        %v998 = vpop.permute.xlu0 %997
        %999 = vrot.lane.b32.xlu0 %v429, 127
        %v1000 = vpop.permute.xlu0 %999
        %1001 = vrot.lane.b32.xlu0 %v430, 127
        %v1002 = vpop.permute.xlu0 %1001
        %1003 = vrot.lane.b32.xlu0 %v431, 127
        %v1004 = vpop.permute.xlu0 %1003
        %1005 = vrot.lane.b32.xlu0 %v432, 127
        %v1006 = vpop.permute.xlu0 %1005
        %1007 = vrot.lane.b32.xlu0 %v433, 127
        %v1008 = vpop.permute.xlu0 %1007
        %1009 = vrot.lane.b32.xlu0 %v434, 127
        %v1010 = vpop.permute.xlu0 %1009
        %1011 = vrot.lane.b32.xlu0 %v435, 127
        %v1012 = vpop.permute.xlu0 %1011
        %v1045 = vcombine.low %v946, %v962
        %v1047 = vunpack.c.l.s4 1983009808
        %v1048 = vunpack.c.0.s8 %v1047
        %v1049 = vlaneseq
        %v1050 = vshrl.u32 %v1049, 7
        %v1051 = vsub.s32 %v1048, %v1050
        %v1052 = vrot.slane %v1045, %v1051
        %v1053 = vcombine.low %v954, %v970
        %v1055 = vunpack.c.l.s4 1983009808
        %v1056 = vunpack.c.0.s8 %v1055
        %v1057 = vlaneseq
        %v1058 = vshrl.u32 %v1057, 7
        %v1059 = vsub.s32 %v1056, %v1058
        %v1060 = vrot.slane %v1053, %v1059
        %v1061 = vcombine.low %v1052, %v1060
        %v1062 = vcombine.high %v1052, %v1060
        %v1064 = vunpack.c.l.s4 1934713408
        %v1065 = vunpack.c.0.s8 %v1064
        %v1066 = vlaneseq
        %v1067 = vshrl.u32 %v1066, 7
        %v1068 = vsub.s32 %v1065, %v1067
        %v1069 = vrot.slane %v1061, %v1068
        %v1071 = vunpack.c.l.s4 1934713408
        %v1072 = vunpack.c.0.s8 %v1071
        %v1073 = vlaneseq
        %v1074 = vshrl.u32 %v1073, 7
        %v1075 = vsub.s32 %v1072, %v1074
        %v1076 = vrot.slane %v1062, %v1075
        %v1077 = vcombine.high %v1069, 0
        %v1078 = vcombine.high %v1076, 0
        %v1079 = vcombine.low %v950, %v966
        %v1081 = vunpack.c.l.s4 1983009808
        %v1082 = vunpack.c.0.s8 %v1081
        %v1083 = vlaneseq
        %v1084 = vshrl.u32 %v1083, 7
        %v1085 = vsub.s32 %v1082, %v1084
        %v1086 = vrot.slane %v1079, %v1085
        %v1087 = vcombine.low %v958, %v974
        %v1089 = vunpack.c.l.s4 1983009808
        %v1090 = vunpack.c.0.s8 %v1089
        %v1091 = vlaneseq
        %v1092 = vshrl.u32 %v1091, 7
        %v1093 = vsub.s32 %v1090, %v1092
        %v1094 = vrot.slane %v1087, %v1093
        %v1095 = vcombine.low %v1086, %v1094
        %v1096 = vcombine.high %v1086, %v1094
        %v1098 = vunpack.c.l.s4 1934713408
        %v1099 = vunpack.c.0.s8 %v1098
        %v1100 = vlaneseq
        %v1101 = vshrl.u32 %v1100, 7
        %v1102 = vsub.s32 %v1099, %v1101
        %v1103 = vrot.slane %v1095, %v1102
        %v1105 = vunpack.c.l.s4 1934713408
        %v1106 = vunpack.c.0.s8 %v1105
        %v1107 = vlaneseq
        %v1108 = vshrl.u32 %v1107, 7
        %v1109 = vsub.s32 %v1106, %v1108
        %v1110 = vrot.slane %v1096, %v1109
        %v1111 = vcombine.high %v1103, 0
        %v1112 = vcombine.high %v1110, 0
        %v1113 = vcombine.low %v978, %v994
        %v1115 = vunpack.c.l.s4 1983009808
        %v1116 = vunpack.c.0.s8 %v1115
        %v1117 = vlaneseq
        %v1118 = vshrl.u32 %v1117, 7
        %v1119 = vsub.s32 %v1116, %v1118
        %v1120 = vrot.slane %v1113, %v1119
        %v1121 = vcombine.low %v986, %v1002
        %v1123 = vunpack.c.l.s4 1983009808
        %v1124 = vunpack.c.0.s8 %v1123
        %v1125 = vlaneseq
        %v1126 = vshrl.u32 %v1125, 7
        %v1127 = vsub.s32 %v1124, %v1126
        %v1128 = vrot.slane %v1121, %v1127
        %v1129 = vcombine.low %v1120, %v1128
        %v1130 = vcombine.high %v1120, %v1128
        %v1132 = vunpack.c.l.s4 1934713408
        %v1133 = vunpack.c.0.s8 %v1132
        %v1134 = vlaneseq
        %v1135 = vshrl.u32 %v1134, 7
        %v1136 = vsub.s32 %v1133, %v1135
        %v1137 = vrot.slane %v1129, %v1136
        %v1139 = vunpack.c.l.s4 1934713408
        %v1140 = vunpack.c.0.s8 %v1139
        %v1141 = vlaneseq
        %v1142 = vshrl.u32 %v1141, 7
        %v1143 = vsub.s32 %v1140, %v1142
        %v1144 = vrot.slane %v1130, %v1143
        %v1145 = vcombine.high %v1137, 0
        %v1146 = vcombine.high %v1144, 0
        %v1147 = vcombine.low %v982, %v998
        %v1149 = vunpack.c.l.s4 1983009808
        %v1150 = vunpack.c.0.s8 %v1149
        %v1151 = vlaneseq
        %v1152 = vshrl.u32 %v1151, 7
        %v1153 = vsub.s32 %v1150, %v1152
        %v1154 = vrot.slane %v1147, %v1153
        %v1155 = vcombine.low %v990, %v1006
        %v1157 = vunpack.c.l.s4 1983009808
        %v1158 = vunpack.c.0.s8 %v1157
        %v1159 = vlaneseq
        %v1160 = vshrl.u32 %v1159, 7
        %v1161 = vsub.s32 %v1158, %v1160
        %v1162 = vrot.slane %v1155, %v1161
        %v1163 = vcombine.low %v1154, %v1162
        %v1164 = vcombine.high %v1154, %v1162
        %v1166 = vunpack.c.l.s4 1934713408
        %v1167 = vunpack.c.0.s8 %v1166
        %v1168 = vlaneseq
        %v1169 = vshrl.u32 %v1168, 7
        %v1170 = vsub.s32 %v1167, %v1169
        %v1171 = vrot.slane %v1163, %v1170
        %v1173 = vunpack.c.l.s4 1934713408
        %v1174 = vunpack.c.0.s8 %v1173
        %v1175 = vlaneseq
        %v1176 = vshrl.u32 %v1175, 7
        %v1177 = vsub.s32 %v1174, %v1176
        %v1178 = vrot.slane %v1164, %v1177
        %v1179 = vcombine.high %v1171, 0
        %v1180 = vcombine.high %v1178, 0
        %v1183 = vunpack.c.l.s4 1983009808
        %v1184 = vunpack.c.0.s8 %v1183
        %v1185 = vlaneseq
        %v1186 = vshrl.u32 %v1185, 7
        %v1187 = vsub.s32 %v1184, %v1186
        %v1188 = vrot.slane %v1010, %v1187
        %v1189 = vcombine.high %v1188, 0
        %v1191 = vunpack.c.l.s4 1934713408
        %v1192 = vunpack.c.0.s8 %v1191
        %v1193 = vlaneseq
        %v1194 = vshrl.u32 %v1193, 7
        %v1195 = vsub.s32 %v1192, %v1194
        %v1196 = vrot.slane %v1188, %v1195
        %v1198 = vunpack.c.l.s4 1934713408
        %v1199 = vunpack.c.0.s8 %v1198
        %v1200 = vlaneseq
        %v1201 = vshrl.u32 %v1200, 7
        %v1202 = vsub.s32 %v1199, %v1201
        %v1203 = vrot.slane %v1189, %v1202
        %v1204 = vcombine.high %v1196, 0
        %v1205 = vcombine.high %v1203, 0
        %v1206 = vcombine.low %v948, %v964
        %v1208 = vunpack.c.l.s4 1983009808
        %v1209 = vunpack.c.0.s8 %v1208
        %v1210 = vlaneseq
        %v1211 = vshrl.u32 %v1210, 7
        %v1212 = vsub.s32 %v1209, %v1211
        %v1213 = vrot.slane %v1206, %v1212
        %v1214 = vcombine.low %v956, %v972
        %v1216 = vunpack.c.l.s4 1983009808
        %v1217 = vunpack.c.0.s8 %v1216
        %v1218 = vlaneseq
        %v1219 = vshrl.u32 %v1218, 7
        %v1220 = vsub.s32 %v1217, %v1219
        %v1221 = vrot.slane %v1214, %v1220
        %v1222 = vcombine.low %v1213, %v1221
        %v1224 = vunpack.c.l.s4 1934713408
        %v1225 = vunpack.c.0.s8 %v1224
        %v1226 = vlaneseq
        %v1227 = vshrl.u32 %v1226, 7
        %v1228 = vsub.s32 %v1225, %v1227
        %v1229 = vrot.slane %v1222, %v1228
        %v1230 = vcombine.low %v952, %v968
        %v1232 = vunpack.c.l.s4 1983009808
        %v1233 = vunpack.c.0.s8 %v1232
        %v1234 = vlaneseq
        %v1235 = vshrl.u32 %v1234, 7
        %v1236 = vsub.s32 %v1233, %v1235
        %v1237 = vrot.slane %v1230, %v1236
        %v1238 = vcombine.low %v960, %v976
        %v1240 = vunpack.c.l.s4 1983009808
        %v1241 = vunpack.c.0.s8 %v1240
        %v1242 = vlaneseq
        %v1243 = vshrl.u32 %v1242, 7
        %v1244 = vsub.s32 %v1241, %v1243
        %v1245 = vrot.slane %v1238, %v1244
        %v1246 = vcombine.low %v1237, %v1245
        %v1248 = vunpack.c.l.s4 1934713408
        %v1249 = vunpack.c.0.s8 %v1248
        %v1250 = vlaneseq
        %v1251 = vshrl.u32 %v1250, 7
        %v1252 = vsub.s32 %v1249, %v1251
        %v1253 = vrot.slane %v1246, %v1252
        %v1254 = vcombine.low %v980, %v996
        %v1256 = vunpack.c.l.s4 1983009808
        %v1257 = vunpack.c.0.s8 %v1256
        %v1258 = vlaneseq
        %v1259 = vshrl.u32 %v1258, 7
        %v1260 = vsub.s32 %v1257, %v1259
        %v1261 = vrot.slane %v1254, %v1260
        %v1262 = vcombine.low %v988, %v1004
        %v1264 = vunpack.c.l.s4 1983009808
        %v1265 = vunpack.c.0.s8 %v1264
        %v1266 = vlaneseq
        %v1267 = vshrl.u32 %v1266, 7
        %v1268 = vsub.s32 %v1265, %v1267
        %v1269 = vrot.slane %v1262, %v1268
        %v1270 = vcombine.low %v1261, %v1269
        %v1272 = vunpack.c.l.s4 1934713408
        %v1273 = vunpack.c.0.s8 %v1272
        %v1274 = vlaneseq
        %v1275 = vshrl.u32 %v1274, 7
        %v1276 = vsub.s32 %v1273, %v1275
        %v1277 = vrot.slane %v1270, %v1276
        %v1278 = vcombine.low %v984, %v1000
        %v1280 = vunpack.c.l.s4 1983009808
        %v1281 = vunpack.c.0.s8 %v1280
        %v1282 = vlaneseq
        %v1283 = vshrl.u32 %v1282, 7
        %v1284 = vsub.s32 %v1281, %v1283
        %v1285 = vrot.slane %v1278, %v1284
        %v1286 = vcombine.low %v992, %v1008
        %v1288 = vunpack.c.l.s4 1983009808
        %v1289 = vunpack.c.0.s8 %v1288
        %v1290 = vlaneseq
        %v1291 = vshrl.u32 %v1290, 7
        %v1292 = vsub.s32 %v1289, %v1291
        %v1293 = vrot.slane %v1286, %v1292
        %v1294 = vcombine.low %v1285, %v1293
        %v1296 = vunpack.c.l.s4 1934713408
        %v1297 = vunpack.c.0.s8 %v1296
        %v1298 = vlaneseq
        %v1299 = vshrl.u32 %v1298, 7
        %v1300 = vsub.s32 %v1297, %v1299
        %v1301 = vrot.slane %v1294, %v1300
        %v1304 = vpack.i.b16 %v1103, %v1069
        %v1305 = vshrl.u32 %v1069, 16
        %v1306 = vshrl.u32 %v1103, 16
        %v1307 = vpack.i.b16 %v1306, %v1305
        %v1310 = vpack.i.b16 %v1111, %v1077
        %v1311 = vshrl.u32 %v1077, 16
        %v1312 = vshrl.u32 %v1111, 16
        %v1313 = vpack.i.b16 %v1312, %v1311
        %v1316 = vpack.i.b16 %v1110, %v1076
        %v1317 = vshrl.u32 %v1076, 16
        %v1318 = vshrl.u32 %v1110, 16
        %v1319 = vpack.i.b16 %v1318, %v1317
        %v1322 = vpack.i.b16 %v1112, %v1078
        %v1323 = vshrl.u32 %v1078, 16
        %v1324 = vshrl.u32 %v1112, 16
        %v1325 = vpack.i.b16 %v1324, %v1323
        %v1328 = vpack.i.b16 %v1253, %v1229
        %v1329 = vshrl.u32 %v1229, 16
        %v1330 = vshrl.u32 %v1253, 16
        %v1331 = vpack.i.b16 %v1330, %v1329
        %v1334 = vpack.i.b16 %v1171, %v1137
        %v1335 = vshrl.u32 %v1137, 16
        %v1336 = vshrl.u32 %v1171, 16
        %v1337 = vpack.i.b16 %v1336, %v1335
        %v1340 = vpack.i.b16 %v1179, %v1145
        %v1341 = vshrl.u32 %v1145, 16
        %v1342 = vshrl.u32 %v1179, 16
        %v1343 = vpack.i.b16 %v1342, %v1341
        %v1346 = vpack.i.b16 %v1178, %v1144
        %v1347 = vshrl.u32 %v1144, 16
        %v1348 = vshrl.u32 %v1178, 16
        %v1349 = vpack.i.b16 %v1348, %v1347
        %v1352 = vpack.i.b16 %v1180, %v1146
        %v1353 = vshrl.u32 %v1146, 16
        %v1354 = vshrl.u32 %v1180, 16
        %v1355 = vpack.i.b16 %v1354, %v1353
        %v1358 = vpack.i.b16 %v1301, %v1277
        %v1359 = vshrl.u32 %v1277, 16
        %v1360 = vshrl.u32 %v1301, 16
        %v1361 = vpack.i.b16 %v1360, %v1359
        %v1363 = vpack.i.b16 0, %v1196
        %v1364 = vshrl.u32 %v1196, 16
        %v1365 = vpack.i.b16 %v758, %v1364
        %v1367 = vpack.i.b16 0, %v1204
        %v1368 = vshrl.u32 %v1204, 16
        %v1369 = vpack.i.b16 %v758, %v1368
        %v1371 = vpack.i.b16 0, %v1203
        %v1372 = vshrl.u32 %v1203, 16
        %v1373 = vpack.i.b16 %v758, %v1372
        %v1375 = vpack.i.b16 0, %v1205
        %v1376 = vshrl.u32 %v1205, 16
        %v1377 = vpack.i.b16 %v758, %v1376
        %v1379 = vpack.i.b16 0, %v1012
        %v1380 = vshrl.u32 %v1012, 16
        %v1381 = vpack.i.b16 %v758, %v1380
        %v1382 = vunpack.c.l.b16 %v1304
        %v1383 = vunpack.c.l.b16 %v1334
        %v1384 = vunpack.c.l.b16 %v1363
        %v1385 = vpack.c.b16 %v1383, %v1382
        %v1386 = vpack.c.b16 %v1384, %v1384
        %v1387 = vunpack.c.l.b16 %v1307
        %v1388 = vunpack.c.l.b16 %v1337
        %v1389 = vunpack.c.l.b16 %v1365
        %v1390 = vpack.c.b16 %v1388, %v1387
        %v1391 = vpack.c.b16 %v1389, %v1389
        %1392 = vrot.lane.b32.xlu0 %v1390, 4
        %v1393 = vpop.permute.xlu0 %1392
        %1394 = vrot.lane.b32.xlu0 %v1391, 4
        %v1395 = vpop.permute.xlu0 %1394
        %v1396 = vunpack.c.l.b16 %v1310
        %v1397 = vunpack.c.l.b16 %v1340
        %v1398 = vunpack.c.l.b16 %v1367
        %v1399 = vpack.c.b16 %v1397, %v1396
        %v1400 = vpack.c.b16 %v1398, %v1398
        %1401 = vrot.lane.b32.xlu0 %v1399, 8
        %v1402 = vpop.permute.xlu0 %1401
        %1403 = vrot.lane.b32.xlu0 %v1400, 8
        %v1404 = vpop.permute.xlu0 %1403
        %v1405 = vunpack.c.l.b16 %v1313
        %v1406 = vunpack.c.l.b16 %v1343
        %v1407 = vunpack.c.l.b16 %v1369
        %v1408 = vpack.c.b16 %v1406, %v1405
        %v1409 = vpack.c.b16 %v1407, %v1407
        %1410 = vrot.lane.b32.xlu0 %v1408, 12
        %v1411 = vpop.permute.xlu0 %1410
        %1412 = vrot.lane.b32.xlu0 %v1409, 12
        %v1413 = vpop.permute.xlu0 %1412
        %v1414 = vunpack.c.l.b16 %v1316
        %v1415 = vunpack.c.l.b16 %v1346
        %v1416 = vunpack.c.l.b16 %v1371
        %v1417 = vpack.c.b16 %v1415, %v1414
        %v1418 = vpack.c.b16 %v1416, %v1416
        %1419 = vrot.lane.b32.xlu0 %v1417, 16
        %v1420 = vpop.permute.xlu0 %1419
        %1421 = vrot.lane.b32.xlu0 %v1418, 16
        %v1422 = vpop.permute.xlu0 %1421
        %v1423 = vunpack.c.l.b16 %v1319
        %v1424 = vunpack.c.l.b16 %v1349
        %v1425 = vunpack.c.l.b16 %v1373
        %v1426 = vpack.c.b16 %v1424, %v1423
        %v1427 = vpack.c.b16 %v1425, %v1425
        %1428 = vrot.lane.b32.xlu0 %v1426, 20
        %v1429 = vpop.permute.xlu0 %1428
        %1430 = vrot.lane.b32.xlu0 %v1427, 20
        %v1431 = vpop.permute.xlu0 %1430
        %v1432 = vunpack.c.l.b16 %v1322
        %v1433 = vunpack.c.l.b16 %v1352
        %v1434 = vunpack.c.l.b16 %v1375
        %v1435 = vpack.c.b16 %v1433, %v1432
        %v1436 = vpack.c.b16 %v1434, %v1434
        %1437 = vrot.lane.b32.xlu0 %v1435, 24
        %v1438 = vpop.permute.xlu0 %1437
        %1439 = vrot.lane.b32.xlu0 %v1436, 24
        %v1440 = vpop.permute.xlu0 %1439
        %v1441 = vunpack.c.l.b16 %v1325
        %v1442 = vunpack.c.l.b16 %v1355
        %v1443 = vunpack.c.l.b16 %v1377
        %v1444 = vpack.c.b16 %v1442, %v1441
        %v1445 = vpack.c.b16 %v1443, %v1443
        %1446 = vrot.lane.b32.xlu0 %v1444, 28
        %v1447 = vpop.permute.xlu0 %1446
        %1448 = vrot.lane.b32.xlu0 %v1445, 28
        %v1449 = vpop.permute.xlu0 %1448
        %v1450 = vunpack.c.l.b16 %v1328
        %v1451 = vunpack.c.l.b16 %v1358
        %v1452 = vunpack.c.l.b16 %v1379
        %v1453 = vpack.c.b16 %v1451, %v1450
        %v1454 = vpack.c.b16 %v1452, %v1452
        %1455 = vrot.lane.b32.xlu0 %v1453, 32
        %v1456 = vpop.permute.xlu0 %1455
        %1457 = vrot.lane.b32.xlu0 %v1454, 32
        %v1458 = vpop.permute.xlu0 %1457
        %v1459 = vunpack.c.l.b16 %v1331
        %v1460 = vunpack.c.l.b16 %v1361
        %v1461 = vunpack.c.l.b16 %v1381
        %v1462 = vpack.c.b16 %v1460, %v1459
        %v1463 = vpack.c.b16 %v1461, %v1461
        %1464 = vrot.lane.b32.xlu0 %v1462, 36
        %v1465 = vpop.permute.xlu0 %1464
        %1466 = vrot.lane.b32.xlu0 %v1463, 36
        %v1467 = vpop.permute.xlu0 %1466
        %v1470 = vsel %vm862, %v1385, %v1393
        %v1473 = vsel %vm862, %v1386, %v1395
        %v1475 = vsel %vm869, %v1470, %v1402
        %v1477 = vsel %vm869, %v1473, %v1404
        %v1479 = vsel %vm874, %v1475, %v1411
        %v1481 = vsel %vm874, %v1477, %v1413
        %v1483 = vsel %vm879, %v1479, %v1420
        %v1485 = vsel %vm879, %v1481, %v1422
        %v1487 = vsel %vm884, %v1483, %v1429
        %v1489 = vsel %vm884, %v1485, %v1431
        %v1491 = vsel %vm889, %v1487, %v1438
        %v1493 = vsel %vm889, %v1489, %v1440
        %v1495 = vsel %vm894, %v1491, %v1447
        %v1497 = vsel %vm894, %v1493, %v1449
        %v1499 = vsel %vm899, %v1495, %v1456
        %v1501 = vsel %vm899, %v1497, %v1458
        %v1503 = vsel %vm904, %v1499, %v1465
        %v1505 = vsel %vm904, %v1501, %v1467
        %1506 = vrot.lane.b32.xlu0 %v402, 126
        %v1507 = vpop.permute.xlu0 %1506
        %1508 = vrot.lane.b32.xlu0 %v403, 126
        %v1509 = vpop.permute.xlu0 %1508
        %1510 = vrot.lane.b32.xlu0 %v404, 126
        %v1511 = vpop.permute.xlu0 %1510
        %1512 = vrot.lane.b32.xlu0 %v405, 126
        %v1513 = vpop.permute.xlu0 %1512
        %1514 = vrot.lane.b32.xlu0 %v406, 126
        %v1515 = vpop.permute.xlu0 %1514
        %1516 = vrot.lane.b32.xlu0 %v407, 126
        %v1517 = vpop.permute.xlu0 %1516
        %1518 = vrot.lane.b32.xlu0 %v408, 126
        %v1519 = vpop.permute.xlu0 %1518
        %1520 = vrot.lane.b32.xlu0 %v409, 126
        %v1521 = vpop.permute.xlu0 %1520
        %1522 = vrot.lane.b32.xlu0 %v410, 126
        %v1523 = vpop.permute.xlu0 %1522
        %1524 = vrot.lane.b32.xlu0 %v411, 126
        %v1525 = vpop.permute.xlu0 %1524
        %1526 = vrot.lane.b32.xlu0 %v412, 126
        %v1527 = vpop.permute.xlu0 %1526
        %1528 = vrot.lane.b32.xlu0 %v413, 126
        %v1529 = vpop.permute.xlu0 %1528
        %1530 = vrot.lane.b32.xlu0 %v414, 126
        %v1531 = vpop.permute.xlu0 %1530
        %1532 = vrot.lane.b32.xlu0 %v415, 126
        %v1533 = vpop.permute.xlu0 %1532
        %1534 = vrot.lane.b32.xlu0 %v416, 126
        %v1535 = vpop.permute.xlu0 %1534
        %1536 = vrot.lane.b32.xlu0 %v417, 126
        %v1537 = vpop.permute.xlu0 %1536
        %1538 = vrot.lane.b32.xlu0 %v418, 126
        %v1539 = vpop.permute.xlu0 %1538
        %1540 = vrot.lane.b32.xlu0 %v419, 126
        %v1541 = vpop.permute.xlu0 %1540
        %1542 = vrot.lane.b32.xlu0 %v420, 126
        %v1543 = vpop.permute.xlu0 %1542
        %1544 = vrot.lane.b32.xlu0 %v421, 126
        %v1545 = vpop.permute.xlu0 %1544
        %1546 = vrot.lane.b32.xlu0 %v422, 126
        %v1547 = vpop.permute.xlu0 %1546
        %1548 = vrot.lane.b32.xlu0 %v423, 126
        %v1549 = vpop.permute.xlu0 %1548
        %1550 = vrot.lane.b32.xlu0 %v424, 126
        %v1551 = vpop.permute.xlu0 %1550
        %1552 = vrot.lane.b32.xlu0 %v425, 126
        %v1553 = vpop.permute.xlu0 %1552
        %1554 = vrot.lane.b32.xlu0 %v426, 126
        %v1555 = vpop.permute.xlu0 %1554
        %1556 = vrot.lane.b32.xlu0 %v427, 126
        %v1557 = vpop.permute.xlu0 %1556
        %1558 = vrot.lane.b32.xlu0 %v428, 126
        %v1559 = vpop.permute.xlu0 %1558
        %1560 = vrot.lane.b32.xlu0 %v429, 126
        %v1561 = vpop.permute.xlu0 %1560
        %1562 = vrot.lane.b32.xlu0 %v430, 126
        %v1563 = vpop.permute.xlu0 %1562
        %1564 = vrot.lane.b32.xlu0 %v431, 126
        %v1565 = vpop.permute.xlu0 %1564
        %1566 = vrot.lane.b32.xlu0 %v432, 126
        %v1567 = vpop.permute.xlu0 %1566
        %1568 = vrot.lane.b32.xlu0 %v433, 126
        %v1569 = vpop.permute.xlu0 %1568
        %1570 = vrot.lane.b32.xlu0 %v434, 126
        %v1571 = vpop.permute.xlu0 %1570
        %1572 = vrot.lane.b32.xlu0 %v435, 126
        %v1573 = vpop.permute.xlu0 %1572
        %v1606 = vcombine.low %v1507, %v1523
        %v1608 = vunpack.c.l.s4 1983009808
        %v1609 = vunpack.c.0.s8 %v1608
        %v1610 = vlaneseq
        %v1611 = vshrl.u32 %v1610, 7
        %v1612 = vsub.s32 %v1609, %v1611
        %v1613 = vrot.slane %v1606, %v1612
        %v1614 = vcombine.low %v1515, %v1531
        %v1616 = vunpack.c.l.s4 1983009808
        %v1617 = vunpack.c.0.s8 %v1616
        %v1618 = vlaneseq
        %v1619 = vshrl.u32 %v1618, 7
        %v1620 = vsub.s32 %v1617, %v1619
        %v1621 = vrot.slane %v1614, %v1620
        %v1622 = vcombine.low %v1613, %v1621
        %v1623 = vcombine.high %v1613, %v1621
        %v1625 = vunpack.c.l.s4 1934713408
        %v1626 = vunpack.c.0.s8 %v1625
        %v1627 = vlaneseq
        %v1628 = vshrl.u32 %v1627, 7
        %v1629 = vsub.s32 %v1626, %v1628
        %v1630 = vrot.slane %v1622, %v1629
        %v1632 = vunpack.c.l.s4 1934713408
        %v1633 = vunpack.c.0.s8 %v1632
        %v1634 = vlaneseq
        %v1635 = vshrl.u32 %v1634, 7
        %v1636 = vsub.s32 %v1633, %v1635
        %v1637 = vrot.slane %v1623, %v1636
        %v1638 = vcombine.high %v1630, 0
        %v1639 = vcombine.high %v1637, 0
        %v1640 = vcombine.low %v1511, %v1527
        %v1642 = vunpack.c.l.s4 1983009808
        %v1643 = vunpack.c.0.s8 %v1642
        %v1644 = vlaneseq
        %v1645 = vshrl.u32 %v1644, 7
        %v1646 = vsub.s32 %v1643, %v1645
        %v1647 = vrot.slane %v1640, %v1646
        %v1648 = vcombine.low %v1519, %v1535
        %v1650 = vunpack.c.l.s4 1983009808
        %v1651 = vunpack.c.0.s8 %v1650
        %v1652 = vlaneseq
        %v1653 = vshrl.u32 %v1652, 7
        %v1654 = vsub.s32 %v1651, %v1653
        %v1655 = vrot.slane %v1648, %v1654
        %v1656 = vcombine.low %v1647, %v1655
        %v1657 = vcombine.high %v1647, %v1655
        %v1659 = vunpack.c.l.s4 1934713408
        %v1660 = vunpack.c.0.s8 %v1659
        %v1661 = vlaneseq
        %v1662 = vshrl.u32 %v1661, 7
        %v1663 = vsub.s32 %v1660, %v1662
        %v1664 = vrot.slane %v1656, %v1663
        %v1666 = vunpack.c.l.s4 1934713408
        %v1667 = vunpack.c.0.s8 %v1666
        %v1668 = vlaneseq
        %v1669 = vshrl.u32 %v1668, 7
        %v1670 = vsub.s32 %v1667, %v1669
        %v1671 = vrot.slane %v1657, %v1670
        %v1672 = vcombine.high %v1664, 0
        %v1673 = vcombine.high %v1671, 0
        %v1674 = vcombine.low %v1539, %v1555
        %v1676 = vunpack.c.l.s4 1983009808
        %v1677 = vunpack.c.0.s8 %v1676
        %v1678 = vlaneseq
        %v1679 = vshrl.u32 %v1678, 7
        %v1680 = vsub.s32 %v1677, %v1679
        %v1681 = vrot.slane %v1674, %v1680
        %v1682 = vcombine.low %v1547, %v1563
        %v1684 = vunpack.c.l.s4 1983009808
        %v1685 = vunpack.c.0.s8 %v1684
        %v1686 = vlaneseq
        %v1687 = vshrl.u32 %v1686, 7
        %v1688 = vsub.s32 %v1685, %v1687
        %v1689 = vrot.slane %v1682, %v1688
        %v1690 = vcombine.low %v1681, %v1689
        %v1691 = vcombine.high %v1681, %v1689
        %v1693 = vunpack.c.l.s4 1934713408
        %v1694 = vunpack.c.0.s8 %v1693
        %v1695 = vlaneseq
        %v1696 = vshrl.u32 %v1695, 7
        %v1697 = vsub.s32 %v1694, %v1696
        %v1698 = vrot.slane %v1690, %v1697
        %v1700 = vunpack.c.l.s4 1934713408
        %v1701 = vunpack.c.0.s8 %v1700
        %v1702 = vlaneseq
        %v1703 = vshrl.u32 %v1702, 7
        %v1704 = vsub.s32 %v1701, %v1703
        %v1705 = vrot.slane %v1691, %v1704
        %v1706 = vcombine.high %v1698, 0
        %v1707 = vcombine.high %v1705, 0
        %v1708 = vcombine.low %v1543, %v1559
        %v1710 = vunpack.c.l.s4 1983009808
        %v1711 = vunpack.c.0.s8 %v1710
        %v1712 = vlaneseq
        %v1713 = vshrl.u32 %v1712, 7
        %v1714 = vsub.s32 %v1711, %v1713
        %v1715 = vrot.slane %v1708, %v1714
        %v1716 = vcombine.low %v1551, %v1567
        %v1718 = vunpack.c.l.s4 1983009808
        %v1719 = vunpack.c.0.s8 %v1718
        %v1720 = vlaneseq
        %v1721 = vshrl.u32 %v1720, 7
        %v1722 = vsub.s32 %v1719, %v1721
        %v1723 = vrot.slane %v1716, %v1722
        %v1724 = vcombine.low %v1715, %v1723
        %v1725 = vcombine.high %v1715, %v1723
        %v1727 = vunpack.c.l.s4 1934713408
        %v1728 = vunpack.c.0.s8 %v1727
        %v1729 = vlaneseq
        %v1730 = vshrl.u32 %v1729, 7
        %v1731 = vsub.s32 %v1728, %v1730
        %v1732 = vrot.slane %v1724, %v1731
        %v1734 = vunpack.c.l.s4 1934713408
        %v1735 = vunpack.c.0.s8 %v1734
        %v1736 = vlaneseq
        %v1737 = vshrl.u32 %v1736, 7
        %v1738 = vsub.s32 %v1735, %v1737
        %v1739 = vrot.slane %v1725, %v1738
        %v1740 = vcombine.high %v1732, 0
        %v1741 = vcombine.high %v1739, 0
        %v1744 = vunpack.c.l.s4 1983009808
        %v1745 = vunpack.c.0.s8 %v1744
        %v1746 = vlaneseq
        %v1747 = vshrl.u32 %v1746, 7
        %v1748 = vsub.s32 %v1745, %v1747
        %v1749 = vrot.slane %v1571, %v1748
        %v1750 = vcombine.high %v1749, 0
        %v1752 = vunpack.c.l.s4 1934713408
        %v1753 = vunpack.c.0.s8 %v1752
        %v1754 = vlaneseq
        %v1755 = vshrl.u32 %v1754, 7
        %v1756 = vsub.s32 %v1753, %v1755
        %v1757 = vrot.slane %v1749, %v1756
        %v1759 = vunpack.c.l.s4 1934713408
        %v1760 = vunpack.c.0.s8 %v1759
        %v1761 = vlaneseq
        %v1762 = vshrl.u32 %v1761, 7
        %v1763 = vsub.s32 %v1760, %v1762
        %v1764 = vrot.slane %v1750, %v1763
        %v1765 = vcombine.high %v1757, 0
        %v1766 = vcombine.high %v1764, 0
        %v1767 = vcombine.low %v1509, %v1525
        %v1769 = vunpack.c.l.s4 1983009808
        %v1770 = vunpack.c.0.s8 %v1769
        %v1771 = vlaneseq
        %v1772 = vshrl.u32 %v1771, 7
        %v1773 = vsub.s32 %v1770, %v1772
        %v1774 = vrot.slane %v1767, %v1773
        %v1775 = vcombine.low %v1517, %v1533
        %v1777 = vunpack.c.l.s4 1983009808
        %v1778 = vunpack.c.0.s8 %v1777
        %v1779 = vlaneseq
        %v1780 = vshrl.u32 %v1779, 7
        %v1781 = vsub.s32 %v1778, %v1780
        %v1782 = vrot.slane %v1775, %v1781
        %v1783 = vcombine.low %v1774, %v1782
        %v1785 = vunpack.c.l.s4 1934713408
        %v1786 = vunpack.c.0.s8 %v1785
        %v1787 = vlaneseq
        %v1788 = vshrl.u32 %v1787, 7
        %v1789 = vsub.s32 %v1786, %v1788
        %v1790 = vrot.slane %v1783, %v1789
        %v1791 = vcombine.low %v1513, %v1529
        %v1793 = vunpack.c.l.s4 1983009808
        %v1794 = vunpack.c.0.s8 %v1793
        %v1795 = vlaneseq
        %v1796 = vshrl.u32 %v1795, 7
        %v1797 = vsub.s32 %v1794, %v1796
        %v1798 = vrot.slane %v1791, %v1797
        %v1799 = vcombine.low %v1521, %v1537
        %v1801 = vunpack.c.l.s4 1983009808
        %v1802 = vunpack.c.0.s8 %v1801
        %v1803 = vlaneseq
        %v1804 = vshrl.u32 %v1803, 7
        %v1805 = vsub.s32 %v1802, %v1804
        %v1806 = vrot.slane %v1799, %v1805
        %v1807 = vcombine.low %v1798, %v1806
        %v1809 = vunpack.c.l.s4 1934713408
        %v1810 = vunpack.c.0.s8 %v1809
        %v1811 = vlaneseq
        %v1812 = vshrl.u32 %v1811, 7
        %v1813 = vsub.s32 %v1810, %v1812
        %v1814 = vrot.slane %v1807, %v1813
        %v1815 = vcombine.low %v1541, %v1557
        %v1817 = vunpack.c.l.s4 1983009808
        %v1818 = vunpack.c.0.s8 %v1817
        %v1819 = vlaneseq
        %v1820 = vshrl.u32 %v1819, 7
        %v1821 = vsub.s32 %v1818, %v1820
        %v1822 = vrot.slane %v1815, %v1821
        %v1823 = vcombine.low %v1549, %v1565
        %v1825 = vunpack.c.l.s4 1983009808
        %v1826 = vunpack.c.0.s8 %v1825
        %v1827 = vlaneseq
        %v1828 = vshrl.u32 %v1827, 7
        %v1829 = vsub.s32 %v1826, %v1828
        %v1830 = vrot.slane %v1823, %v1829
        %v1831 = vcombine.low %v1822, %v1830
        %v1833 = vunpack.c.l.s4 1934713408
        %v1834 = vunpack.c.0.s8 %v1833
        %v1835 = vlaneseq
        %v1836 = vshrl.u32 %v1835, 7
        %v1837 = vsub.s32 %v1834, %v1836
        %v1838 = vrot.slane %v1831, %v1837
        %v1839 = vcombine.low %v1545, %v1561
        %v1841 = vunpack.c.l.s4 1983009808
        %v1842 = vunpack.c.0.s8 %v1841
        %v1843 = vlaneseq
        %v1844 = vshrl.u32 %v1843, 7
        %v1845 = vsub.s32 %v1842, %v1844
        %v1846 = vrot.slane %v1839, %v1845
        %v1847 = vcombine.low %v1553, %v1569
        %v1849 = vunpack.c.l.s4 1983009808
        %v1850 = vunpack.c.0.s8 %v1849
        %v1851 = vlaneseq
        %v1852 = vshrl.u32 %v1851, 7
        %v1853 = vsub.s32 %v1850, %v1852
        %v1854 = vrot.slane %v1847, %v1853
        %v1855 = vcombine.low %v1846, %v1854
        %v1857 = vunpack.c.l.s4 1934713408
        %v1858 = vunpack.c.0.s8 %v1857
        %v1859 = vlaneseq
        %v1860 = vshrl.u32 %v1859, 7
        %v1861 = vsub.s32 %v1858, %v1860
        %v1862 = vrot.slane %v1855, %v1861
        %v1865 = vpack.i.b16 %v1664, %v1630
        %v1866 = vshrl.u32 %v1630, 16
        %v1867 = vshrl.u32 %v1664, 16
        %v1868 = vpack.i.b16 %v1867, %v1866
        %v1871 = vpack.i.b16 %v1672, %v1638
        %v1872 = vshrl.u32 %v1638, 16
        %v1873 = vshrl.u32 %v1672, 16
        %v1874 = vpack.i.b16 %v1873, %v1872
        %v1877 = vpack.i.b16 %v1671, %v1637
        %v1878 = vshrl.u32 %v1637, 16
        %v1879 = vshrl.u32 %v1671, 16
        %v1880 = vpack.i.b16 %v1879, %v1878
        %v1883 = vpack.i.b16 %v1673, %v1639
        %v1884 = vshrl.u32 %v1639, 16
        %v1885 = vshrl.u32 %v1673, 16
        %v1886 = vpack.i.b16 %v1885, %v1884
        %v1889 = vpack.i.b16 %v1814, %v1790
        %v1890 = vshrl.u32 %v1790, 16
        %v1891 = vshrl.u32 %v1814, 16
        %v1892 = vpack.i.b16 %v1891, %v1890
        %v1895 = vpack.i.b16 %v1732, %v1698
        %v1896 = vshrl.u32 %v1698, 16
        %v1897 = vshrl.u32 %v1732, 16
        %v1898 = vpack.i.b16 %v1897, %v1896
        %v1901 = vpack.i.b16 %v1740, %v1706
        %v1902 = vshrl.u32 %v1706, 16
        %v1903 = vshrl.u32 %v1740, 16
        %v1904 = vpack.i.b16 %v1903, %v1902
        %v1907 = vpack.i.b16 %v1739, %v1705
        %v1908 = vshrl.u32 %v1705, 16
        %v1909 = vshrl.u32 %v1739, 16
        %v1910 = vpack.i.b16 %v1909, %v1908
        %v1913 = vpack.i.b16 %v1741, %v1707
        %v1914 = vshrl.u32 %v1707, 16
        %v1915 = vshrl.u32 %v1741, 16
        %v1916 = vpack.i.b16 %v1915, %v1914
        %v1919 = vpack.i.b16 %v1862, %v1838
        %v1920 = vshrl.u32 %v1838, 16
        %v1921 = vshrl.u32 %v1862, 16
        %v1922 = vpack.i.b16 %v1921, %v1920
        %v1924 = vpack.i.b16 0, %v1757
        %v1925 = vshrl.u32 %v1757, 16
        %v1926 = vpack.i.b16 %v758, %v1925
        %v1928 = vpack.i.b16 0, %v1765
        %v1929 = vshrl.u32 %v1765, 16
        %v1930 = vpack.i.b16 %v758, %v1929
        %v1932 = vpack.i.b16 0, %v1764
        %v1933 = vshrl.u32 %v1764, 16
        %v1934 = vpack.i.b16 %v758, %v1933
        %v1936 = vpack.i.b16 0, %v1766
        %v1937 = vshrl.u32 %v1766, 16
        %v1938 = vpack.i.b16 %v758, %v1937
        %v1940 = vpack.i.b16 0, %v1573
        %v1941 = vshrl.u32 %v1573, 16
        %v1942 = vpack.i.b16 %v758, %v1941
        %v1943 = vunpack.c.l.b16 %v1865
        %v1944 = vunpack.c.l.b16 %v1895
        %v1945 = vunpack.c.l.b16 %v1924
        %v1946 = vpack.c.b16 %v1944, %v1943
        %v1947 = vpack.c.b16 %v1945, %v1945
        %v1948 = vunpack.c.l.b16 %v1868
        %v1949 = vunpack.c.l.b16 %v1898
        %v1950 = vunpack.c.l.b16 %v1926
        %v1951 = vpack.c.b16 %v1949, %v1948
        %v1952 = vpack.c.b16 %v1950, %v1950
        %1953 = vrot.lane.b32.xlu0 %v1951, 4
        %v1954 = vpop.permute.xlu0 %1953
        %1955 = vrot.lane.b32.xlu0 %v1952, 4
        %v1956 = vpop.permute.xlu0 %1955
        %v1957 = vunpack.c.l.b16 %v1871
        %v1958 = vunpack.c.l.b16 %v1901
        %v1959 = vunpack.c.l.b16 %v1928
        %v1960 = vpack.c.b16 %v1958, %v1957
        %v1961 = vpack.c.b16 %v1959, %v1959
        %1962 = vrot.lane.b32.xlu0 %v1960, 8
        %v1963 = vpop.permute.xlu0 %1962
        %1964 = vrot.lane.b32.xlu0 %v1961, 8
        %v1965 = vpop.permute.xlu0 %1964
        %v1966 = vunpack.c.l.b16 %v1874
        %v1967 = vunpack.c.l.b16 %v1904
        %v1968 = vunpack.c.l.b16 %v1930
        %v1969 = vpack.c.b16 %v1967, %v1966
        %v1970 = vpack.c.b16 %v1968, %v1968
        %1971 = vrot.lane.b32.xlu0 %v1969, 12
        %v1972 = vpop.permute.xlu0 %1971
        %1973 = vrot.lane.b32.xlu0 %v1970, 12
        %v1974 = vpop.permute.xlu0 %1973
        %v1975 = vunpack.c.l.b16 %v1877
        %v1976 = vunpack.c.l.b16 %v1907
        %v1977 = vunpack.c.l.b16 %v1932
        %v1978 = vpack.c.b16 %v1976, %v1975
        %v1979 = vpack.c.b16 %v1977, %v1977
        %1980 = vrot.lane.b32.xlu0 %v1978, 16
        %v1981 = vpop.permute.xlu0 %1980
        %1982 = vrot.lane.b32.xlu0 %v1979, 16
        %v1983 = vpop.permute.xlu0 %1982
        %v1984 = vunpack.c.l.b16 %v1880
        %v1985 = vunpack.c.l.b16 %v1910
        %v1986 = vunpack.c.l.b16 %v1934
        %v1987 = vpack.c.b16 %v1985, %v1984
        %v1988 = vpack.c.b16 %v1986, %v1986
        %1989 = vrot.lane.b32.xlu0 %v1987, 20
        %v1990 = vpop.permute.xlu0 %1989
        %1991 = vrot.lane.b32.xlu0 %v1988, 20
        %v1992 = vpop.permute.xlu0 %1991
        %v1993 = vunpack.c.l.b16 %v1883
        %v1994 = vunpack.c.l.b16 %v1913
        %v1995 = vunpack.c.l.b16 %v1936
        %v1996 = vpack.c.b16 %v1994, %v1993
        %v1997 = vpack.c.b16 %v1995, %v1995
        %1998 = vrot.lane.b32.xlu0 %v1996, 24
        %v1999 = vpop.permute.xlu0 %1998
        %2000 = vrot.lane.b32.xlu0 %v1997, 24
        %v2001 = vpop.permute.xlu0 %2000
        %v2002 = vunpack.c.l.b16 %v1886
        %v2003 = vunpack.c.l.b16 %v1916
        %v2004 = vunpack.c.l.b16 %v1938
        %v2005 = vpack.c.b16 %v2003, %v2002
        %v2006 = vpack.c.b16 %v2004, %v2004
        %2007 = vrot.lane.b32.xlu0 %v2005, 28
        %v2008 = vpop.permute.xlu0 %2007
        %2009 = vrot.lane.b32.xlu0 %v2006, 28
        %v2010 = vpop.permute.xlu0 %2009
        %v2011 = vunpack.c.l.b16 %v1889
        %v2012 = vunpack.c.l.b16 %v1919
        %v2013 = vunpack.c.l.b16 %v1940
        %v2014 = vpack.c.b16 %v2012, %v2011
        %v2015 = vpack.c.b16 %v2013, %v2013
        %2016 = vrot.lane.b32.xlu0 %v2014, 32
        %v2017 = vpop.permute.xlu0 %2016
        %2018 = vrot.lane.b32.xlu0 %v2015, 32
        %v2019 = vpop.permute.xlu0 %2018
        %v2020 = vunpack.c.l.b16 %v1892
        %v2021 = vunpack.c.l.b16 %v1922
        %v2022 = vunpack.c.l.b16 %v1942
        %v2023 = vpack.c.b16 %v2021, %v2020
        %v2024 = vpack.c.b16 %v2022, %v2022
        %2025 = vrot.lane.b32.xlu0 %v2023, 36
        %v2026 = vpop.permute.xlu0 %2025
        %2027 = vrot.lane.b32.xlu0 %v2024, 36
        %v2028 = vpop.permute.xlu0 %2027
        %v2031 = vsel %vm862, %v1946, %v1954
        %v2034 = vsel %vm862, %v1947, %v1956
        %v2036 = vsel %vm869, %v2031, %v1963
        %v2038 = vsel %vm869, %v2034, %v1965
        %v2040 = vsel %vm874, %v2036, %v1972
        %v2042 = vsel %vm874, %v2038, %v1974
        %v2044 = vsel %vm879, %v2040, %v1981
        %v2046 = vsel %vm879, %v2042, %v1983
        %v2048 = vsel %vm884, %v2044, %v1990
        %v2050 = vsel %vm884, %v2046, %v1992
        %v2052 = vsel %vm889, %v2048, %v1999
        %v2054 = vsel %vm889, %v2050, %v2001
        %v2056 = vsel %vm894, %v2052, %v2008
        %v2058 = vsel %vm894, %v2054, %v2010
        %v2060 = vsel %vm899, %v2056, %v2017
        %v2062 = vsel %vm899, %v2058, %v2019
        %v2064 = vsel %vm904, %v2060, %v2026
        %v2066 = vsel %vm904, %v2062, %v2028
        %vm2067 = vsmask.f32 3328
        %vm2068 = vsmask.f32 7440
        %vm2069 = vmor %vm2067, %vm2068
        %v2071 = vshrl.u32 %v402, 16
        %v2073 = vrot.slane %v2071, 4
        %v2074 = vshll.u32 %v402, 16
        %v2076 = vrot.slane %v2074, 5
        %v2077 = vor.u32 %v2073, %v2076
        %v2078 = vrot.slane %v2077, 4
        %v2080 = vshll.u32 %v403, 16
        %v2082 = vrot.slane %v2080, 5
        %v2083 = vsel %vm2069, %v2078, %v2082
        %v2084 = vshrl.u32 %v403, 16
        %v2086 = vrot.slane %v2084, 4
        %v2087 = vor.u32 %v2086, %v2082
        %v2088 = vrot.slane %v2087, 4
        %v2090 = vshrl.u32 %v404, 16
        %v2092 = vrot.slane %v2090, 4
        %v2093 = vshll.u32 %v404, 16
        %v2095 = vrot.slane %v2093, 5
        %v2096 = vor.u32 %v2092, %v2095
        %v2097 = vrot.slane %v2096, 4
        %v2099 = vshll.u32 %v405, 16
        %v2101 = vrot.slane %v2099, 5
        %v2102 = vsel %vm2069, %v2097, %v2101
        %v2103 = vshrl.u32 %v405, 16
        %v2105 = vrot.slane %v2103, 4
        %v2106 = vor.u32 %v2105, %v2101
        %v2107 = vrot.slane %v2106, 4
        %v2109 = vshrl.u32 %v406, 16
        %v2111 = vrot.slane %v2109, 4
        %v2112 = vshll.u32 %v406, 16
        %v2114 = vrot.slane %v2112, 5
        %v2115 = vor.u32 %v2111, %v2114
        %v2116 = vrot.slane %v2115, 4
        %v2118 = vshll.u32 %v407, 16
        %v2120 = vrot.slane %v2118, 5
        %v2121 = vsel %vm2069, %v2116, %v2120
        %v2122 = vshrl.u32 %v407, 16
        %v2124 = vrot.slane %v2122, 4
        %v2125 = vor.u32 %v2124, %v2120
        %v2126 = vrot.slane %v2125, 4
        %v2128 = vshrl.u32 %v408, 16
        %v2130 = vrot.slane %v2128, 4
        %v2131 = vshll.u32 %v408, 16
        %v2133 = vrot.slane %v2131, 5
        %v2134 = vor.u32 %v2130, %v2133
        %v2135 = vrot.slane %v2134, 4
        %v2137 = vshll.u32 %v409, 16
        %v2139 = vrot.slane %v2137, 5
        %v2140 = vsel %vm2069, %v2135, %v2139
        %v2141 = vshrl.u32 %v409, 16
        %v2143 = vrot.slane %v2141, 4
        %v2144 = vor.u32 %v2143, %v2139
        %v2145 = vrot.slane %v2144, 4
        %v2147 = vshrl.u32 %v410, 16
        %v2149 = vrot.slane %v2147, 4
        %v2150 = vshll.u32 %v410, 16
        %v2152 = vrot.slane %v2150, 5
        %v2153 = vor.u32 %v2149, %v2152
        %v2154 = vrot.slane %v2153, 4
        %v2156 = vshll.u32 %v411, 16
        %v2158 = vrot.slane %v2156, 5
        %v2159 = vsel %vm2069, %v2154, %v2158
        %v2160 = vshrl.u32 %v411, 16
        %v2162 = vrot.slane %v2160, 4
        %v2163 = vor.u32 %v2162, %v2158
        %v2164 = vrot.slane %v2163, 4
        %v2166 = vshrl.u32 %v412, 16
        %v2168 = vrot.slane %v2166, 4
        %v2169 = vshll.u32 %v412, 16
        %v2171 = vrot.slane %v2169, 5
        %v2172 = vor.u32 %v2168, %v2171
        %v2173 = vrot.slane %v2172, 4
        %v2175 = vshll.u32 %v413, 16
        %v2177 = vrot.slane %v2175, 5
        %v2178 = vsel %vm2069, %v2173, %v2177
        %v2179 = vshrl.u32 %v413, 16
        %v2181 = vrot.slane %v2179, 4
        %v2182 = vor.u32 %v2181, %v2177
        %v2183 = vrot.slane %v2182, 4
        %v2185 = vshrl.u32 %v414, 16
        %v2187 = vrot.slane %v2185, 4
        %v2188 = vshll.u32 %v414, 16
        %v2190 = vrot.slane %v2188, 5
        %v2191 = vor.u32 %v2187, %v2190
        %v2192 = vrot.slane %v2191, 4
        %v2194 = vshll.u32 %v415, 16
        %v2196 = vrot.slane %v2194, 5
        %v2197 = vsel %vm2069, %v2192, %v2196
        %v2198 = vshrl.u32 %v415, 16
        %v2200 = vrot.slane %v2198, 4
        %v2201 = vor.u32 %v2200, %v2196
        %v2202 = vrot.slane %v2201, 4
        %v2204 = vshrl.u32 %v416, 16
        %v2206 = vrot.slane %v2204, 4
        %v2207 = vshll.u32 %v416, 16
        %v2209 = vrot.slane %v2207, 5
        %v2210 = vor.u32 %v2206, %v2209
        %v2211 = vrot.slane %v2210, 4
        %v2213 = vshll.u32 %v417, 16
        %v2215 = vrot.slane %v2213, 5
        %v2216 = vsel %vm2069, %v2211, %v2215
        %v2217 = vshrl.u32 %v417, 16
        %v2219 = vrot.slane %v2217, 4
        %v2220 = vor.u32 %v2219, %v2215
        %v2221 = vrot.slane %v2220, 4
        %v2223 = vshrl.u32 %v418, 16
        %v2225 = vrot.slane %v2223, 4
        %v2226 = vshll.u32 %v418, 16
        %v2228 = vrot.slane %v2226, 5
        %v2229 = vor.u32 %v2225, %v2228
        %v2230 = vrot.slane %v2229, 4
        %v2232 = vshll.u32 %v419, 16
        %v2234 = vrot.slane %v2232, 5
        %v2235 = vsel %vm2069, %v2230, %v2234
        %v2236 = vshrl.u32 %v419, 16
        %v2238 = vrot.slane %v2236, 4
        %v2239 = vor.u32 %v2238, %v2234
        %v2240 = vrot.slane %v2239, 4
        %v2242 = vshrl.u32 %v420, 16
        %v2244 = vrot.slane %v2242, 4
        %v2245 = vshll.u32 %v420, 16
        %v2247 = vrot.slane %v2245, 5
        %v2248 = vor.u32 %v2244, %v2247
        %v2249 = vrot.slane %v2248, 4
        %v2251 = vshll.u32 %v421, 16
        %v2253 = vrot.slane %v2251, 5
        %v2254 = vsel %vm2069, %v2249, %v2253
        %v2255 = vshrl.u32 %v421, 16
        %v2257 = vrot.slane %v2255, 4
        %v2258 = vor.u32 %v2257, %v2253
        %v2259 = vrot.slane %v2258, 4
        %v2261 = vshrl.u32 %v422, 16
        %v2263 = vrot.slane %v2261, 4
        %v2264 = vshll.u32 %v422, 16
        %v2266 = vrot.slane %v2264, 5
        %v2267 = vor.u32 %v2263, %v2266
        %v2268 = vrot.slane %v2267, 4
        %v2270 = vshll.u32 %v423, 16
        %v2272 = vrot.slane %v2270, 5
        %v2273 = vsel %vm2069, %v2268, %v2272
        %v2274 = vshrl.u32 %v423, 16
        %v2276 = vrot.slane %v2274, 4
        %v2277 = vor.u32 %v2276, %v2272
        %v2278 = vrot.slane %v2277, 4
        %v2280 = vshrl.u32 %v424, 16
        %v2282 = vrot.slane %v2280, 4
        %v2283 = vshll.u32 %v424, 16
        %v2285 = vrot.slane %v2283, 5
        %v2286 = vor.u32 %v2282, %v2285
        %v2287 = vrot.slane %v2286, 4
        %v2289 = vshll.u32 %v425, 16
        %v2291 = vrot.slane %v2289, 5
        %v2292 = vsel %vm2069, %v2287, %v2291
        %v2293 = vshrl.u32 %v425, 16
        %v2295 = vrot.slane %v2293, 4
        %v2296 = vor.u32 %v2295, %v2291
        %v2297 = vrot.slane %v2296, 4
        %v2299 = vshrl.u32 %v426, 16
        %v2301 = vrot.slane %v2299, 4
        %v2302 = vshll.u32 %v426, 16
        %v2304 = vrot.slane %v2302, 5
        %v2305 = vor.u32 %v2301, %v2304
        %v2306 = vrot.slane %v2305, 4
        %v2308 = vshll.u32 %v427, 16
        %v2310 = vrot.slane %v2308, 5
        %v2311 = vsel %vm2069, %v2306, %v2310
        %v2312 = vshrl.u32 %v427, 16
        %v2314 = vrot.slane %v2312, 4
        %v2315 = vor.u32 %v2314, %v2310
        %v2316 = vrot.slane %v2315, 4
        %v2318 = vshrl.u32 %v428, 16
        %v2320 = vrot.slane %v2318, 4
        %v2321 = vshll.u32 %v428, 16
        %v2323 = vrot.slane %v2321, 5
        %v2324 = vor.u32 %v2320, %v2323
        %v2325 = vrot.slane %v2324, 4
        %v2327 = vshll.u32 %v429, 16
        %v2329 = vrot.slane %v2327, 5
        %v2330 = vsel %vm2069, %v2325, %v2329
        %v2331 = vshrl.u32 %v429, 16
        %v2333 = vrot.slane %v2331, 4
        %v2334 = vor.u32 %v2333, %v2329
        %v2335 = vrot.slane %v2334, 4
        %v2337 = vshrl.u32 %v430, 16
        %v2339 = vrot.slane %v2337, 4
        %v2340 = vshll.u32 %v430, 16
        %v2342 = vrot.slane %v2340, 5
        %v2343 = vor.u32 %v2339, %v2342
        %v2344 = vrot.slane %v2343, 4
        %v2346 = vshll.u32 %v431, 16
        %v2348 = vrot.slane %v2346, 5
        %v2349 = vsel %vm2069, %v2344, %v2348
        %v2350 = vshrl.u32 %v431, 16
        %v2352 = vrot.slane %v2350, 4
        %v2353 = vor.u32 %v2352, %v2348
        %v2354 = vrot.slane %v2353, 4
        %v2356 = vshrl.u32 %v432, 16
        %v2358 = vrot.slane %v2356, 4
        %v2359 = vshll.u32 %v432, 16
        %v2361 = vrot.slane %v2359, 5
        %v2362 = vor.u32 %v2358, %v2361
        %v2363 = vrot.slane %v2362, 4
        %v2365 = vshll.u32 %v433, 16
        %v2367 = vrot.slane %v2365, 5
        %v2368 = vsel %vm2069, %v2363, %v2367
        %v2369 = vshrl.u32 %v433, 16
        %v2371 = vrot.slane %v2369, 4
        %v2372 = vor.u32 %v2371, %v2367
        %v2373 = vrot.slane %v2372, 4
        %v2375 = vshrl.u32 %v434, 16
        %v2377 = vrot.slane %v2375, 4
        %v2378 = vshll.u32 %v434, 16
        %v2380 = vrot.slane %v2378, 5
        %v2381 = vor.u32 %v2377, %v2380
        %v2382 = vrot.slane %v2381, 4
        %v2383 = vshll.u32 %v435, 16
        %v2385 = vrot.slane %v2383, 5
        %v2386 = vsel %vm2069, %v2382, %v2385
        %v2388 = vrot.slane %v774, 4
        %v2389 = vor.u32 %v2388, %v2385
        %v2390 = vrot.slane %v2389, 4
        %v2423 = vcombine.low %v2083, %v2159
        %v2425 = vunpack.c.l.s4 1983009808
        %v2426 = vunpack.c.0.s8 %v2425
        %v2427 = vlaneseq
        %v2428 = vshrl.u32 %v2427, 7
        %v2429 = vsub.s32 %v2426, %v2428
        %v2430 = vrot.slane %v2423, %v2429
        %v2431 = vcombine.low %v2121, %v2197
        %v2433 = vunpack.c.l.s4 1983009808
        %v2434 = vunpack.c.0.s8 %v2433
        %v2435 = vlaneseq
        %v2436 = vshrl.u32 %v2435, 7
        %v2437 = vsub.s32 %v2434, %v2436
        %v2438 = vrot.slane %v2431, %v2437
        %v2439 = vcombine.low %v2430, %v2438
        %v2440 = vcombine.high %v2430, %v2438
        %v2442 = vunpack.c.l.s4 1934713408
        %v2443 = vunpack.c.0.s8 %v2442
        %v2444 = vlaneseq
        %v2445 = vshrl.u32 %v2444, 7
        %v2446 = vsub.s32 %v2443, %v2445
        %v2447 = vrot.slane %v2439, %v2446
        %v2449 = vunpack.c.l.s4 1934713408
        %v2450 = vunpack.c.0.s8 %v2449
        %v2451 = vlaneseq
        %v2452 = vshrl.u32 %v2451, 7
        %v2453 = vsub.s32 %v2450, %v2452
        %v2454 = vrot.slane %v2440, %v2453
        %v2455 = vcombine.high %v2447, 0
        %v2456 = vcombine.high %v2454, 0
        %v2457 = vcombine.low %v2102, %v2178
        %v2459 = vunpack.c.l.s4 1983009808
        %v2460 = vunpack.c.0.s8 %v2459
        %v2461 = vlaneseq
        %v2462 = vshrl.u32 %v2461, 7
        %v2463 = vsub.s32 %v2460, %v2462
        %v2464 = vrot.slane %v2457, %v2463
        %v2465 = vcombine.low %v2140, %v2216
        %v2467 = vunpack.c.l.s4 1983009808
        %v2468 = vunpack.c.0.s8 %v2467
        %v2469 = vlaneseq
        %v2470 = vshrl.u32 %v2469, 7
        %v2471 = vsub.s32 %v2468, %v2470
        %v2472 = vrot.slane %v2465, %v2471
        %v2473 = vcombine.low %v2464, %v2472
        %v2474 = vcombine.high %v2464, %v2472
        %v2476 = vunpack.c.l.s4 1934713408
        %v2477 = vunpack.c.0.s8 %v2476
        %v2478 = vlaneseq
        %v2479 = vshrl.u32 %v2478, 7
        %v2480 = vsub.s32 %v2477, %v2479
        %v2481 = vrot.slane %v2473, %v2480
        %v2483 = vunpack.c.l.s4 1934713408
        %v2484 = vunpack.c.0.s8 %v2483
        %v2485 = vlaneseq
        %v2486 = vshrl.u32 %v2485, 7
        %v2487 = vsub.s32 %v2484, %v2486
        %v2488 = vrot.slane %v2474, %v2487
        %v2489 = vcombine.high %v2481, 0
        %v2490 = vcombine.high %v2488, 0
        %v2491 = vcombine.low %v2235, %v2311
        %v2493 = vunpack.c.l.s4 1983009808
        %v2494 = vunpack.c.0.s8 %v2493
        %v2495 = vlaneseq
        %v2496 = vshrl.u32 %v2495, 7
        %v2497 = vsub.s32 %v2494, %v2496
        %v2498 = vrot.slane %v2491, %v2497
        %v2499 = vcombine.low %v2273, %v2349
        %v2501 = vunpack.c.l.s4 1983009808
        %v2502 = vunpack.c.0.s8 %v2501
        %v2503 = vlaneseq
        %v2504 = vshrl.u32 %v2503, 7
        %v2505 = vsub.s32 %v2502, %v2504
        %v2506 = vrot.slane %v2499, %v2505
        %v2507 = vcombine.low %v2498, %v2506
        %v2508 = vcombine.high %v2498, %v2506
        %v2510 = vunpack.c.l.s4 1934713408
        %v2511 = vunpack.c.0.s8 %v2510
        %v2512 = vlaneseq
        %v2513 = vshrl.u32 %v2512, 7
        %v2514 = vsub.s32 %v2511, %v2513
        %v2515 = vrot.slane %v2507, %v2514
        %v2517 = vunpack.c.l.s4 1934713408
        %v2518 = vunpack.c.0.s8 %v2517
        %v2519 = vlaneseq
        %v2520 = vshrl.u32 %v2519, 7
        %v2521 = vsub.s32 %v2518, %v2520
        %v2522 = vrot.slane %v2508, %v2521
        %v2523 = vcombine.high %v2515, 0
        %v2524 = vcombine.high %v2522, 0
        %v2525 = vcombine.low %v2254, %v2330
        %v2527 = vunpack.c.l.s4 1983009808
        %v2528 = vunpack.c.0.s8 %v2527
        %v2529 = vlaneseq
        %v2530 = vshrl.u32 %v2529, 7
        %v2531 = vsub.s32 %v2528, %v2530
        %v2532 = vrot.slane %v2525, %v2531
        %v2533 = vcombine.low %v2292, %v2368
        %v2535 = vunpack.c.l.s4 1983009808
        %v2536 = vunpack.c.0.s8 %v2535
        %v2537 = vlaneseq
        %v2538 = vshrl.u32 %v2537, 7
        %v2539 = vsub.s32 %v2536, %v2538
        %v2540 = vrot.slane %v2533, %v2539
        %v2541 = vcombine.low %v2532, %v2540
        %v2542 = vcombine.high %v2532, %v2540
        %v2544 = vunpack.c.l.s4 1934713408
        %v2545 = vunpack.c.0.s8 %v2544
        %v2546 = vlaneseq
        %v2547 = vshrl.u32 %v2546, 7
        %v2548 = vsub.s32 %v2545, %v2547
        %v2549 = vrot.slane %v2541, %v2548
        %v2551 = vunpack.c.l.s4 1934713408
        %v2552 = vunpack.c.0.s8 %v2551
        %v2553 = vlaneseq
        %v2554 = vshrl.u32 %v2553, 7
        %v2555 = vsub.s32 %v2552, %v2554
        %v2556 = vrot.slane %v2542, %v2555
        %v2557 = vcombine.high %v2549, 0
        %v2558 = vcombine.high %v2556, 0
        %v2561 = vunpack.c.l.s4 1983009808
        %v2562 = vunpack.c.0.s8 %v2561
        %v2563 = vlaneseq
        %v2564 = vshrl.u32 %v2563, 7
        %v2565 = vsub.s32 %v2562, %v2564
        %v2566 = vrot.slane %v2386, %v2565
        %v2567 = vcombine.high %v2566, 0
        %v2569 = vunpack.c.l.s4 1934713408
        %v2570 = vunpack.c.0.s8 %v2569
        %v2571 = vlaneseq
        %v2572 = vshrl.u32 %v2571, 7
        %v2573 = vsub.s32 %v2570, %v2572
        %v2574 = vrot.slane %v2566, %v2573
        %v2576 = vunpack.c.l.s4 1934713408
        %v2577 = vunpack.c.0.s8 %v2576
        %v2578 = vlaneseq
        %v2579 = vshrl.u32 %v2578, 7
        %v2580 = vsub.s32 %v2577, %v2579
        %v2581 = vrot.slane %v2567, %v2580
        %v2582 = vcombine.high %v2574, 0
        %v2583 = vcombine.high %v2581, 0
        %v2584 = vcombine.low %v2088, %v2164
        %v2586 = vunpack.c.l.s4 1983009808
        %v2587 = vunpack.c.0.s8 %v2586
        %v2588 = vlaneseq
        %v2589 = vshrl.u32 %v2588, 7
        %v2590 = vsub.s32 %v2587, %v2589
        %v2591 = vrot.slane %v2584, %v2590
        %v2592 = vcombine.low %v2126, %v2202
        %v2594 = vunpack.c.l.s4 1983009808
        %v2595 = vunpack.c.0.s8 %v2594
        %v2596 = vlaneseq
        %v2597 = vshrl.u32 %v2596, 7
        %v2598 = vsub.s32 %v2595, %v2597
        %v2599 = vrot.slane %v2592, %v2598
        %v2600 = vcombine.low %v2591, %v2599
        %v2602 = vunpack.c.l.s4 1934713408
        %v2603 = vunpack.c.0.s8 %v2602
        %v2604 = vlaneseq
        %v2605 = vshrl.u32 %v2604, 7
        %v2606 = vsub.s32 %v2603, %v2605
        %v2607 = vrot.slane %v2600, %v2606
        %v2608 = vcombine.low %v2107, %v2183
        %v2610 = vunpack.c.l.s4 1983009808
        %v2611 = vunpack.c.0.s8 %v2610
        %v2612 = vlaneseq
        %v2613 = vshrl.u32 %v2612, 7
        %v2614 = vsub.s32 %v2611, %v2613
        %v2615 = vrot.slane %v2608, %v2614
        %v2616 = vcombine.low %v2145, %v2221
        %v2618 = vunpack.c.l.s4 1983009808
        %v2619 = vunpack.c.0.s8 %v2618
        %v2620 = vlaneseq
        %v2621 = vshrl.u32 %v2620, 7
        %v2622 = vsub.s32 %v2619, %v2621
        %v2623 = vrot.slane %v2616, %v2622
        %v2624 = vcombine.low %v2615, %v2623
        %v2626 = vunpack.c.l.s4 1934713408
        %v2627 = vunpack.c.0.s8 %v2626
        %v2628 = vlaneseq
        %v2629 = vshrl.u32 %v2628, 7
        %v2630 = vsub.s32 %v2627, %v2629
        %v2631 = vrot.slane %v2624, %v2630
        %v2632 = vcombine.low %v2240, %v2316
        %v2634 = vunpack.c.l.s4 1983009808
        %v2635 = vunpack.c.0.s8 %v2634
        %v2636 = vlaneseq
        %v2637 = vshrl.u32 %v2636, 7
        %v2638 = vsub.s32 %v2635, %v2637
        %v2639 = vrot.slane %v2632, %v2638
        %v2640 = vcombine.low %v2278, %v2354
        %v2642 = vunpack.c.l.s4 1983009808
        %v2643 = vunpack.c.0.s8 %v2642
        %v2644 = vlaneseq
        %v2645 = vshrl.u32 %v2644, 7
        %v2646 = vsub.s32 %v2643, %v2645
        %v2647 = vrot.slane %v2640, %v2646
        %v2648 = vcombine.low %v2639, %v2647
        %v2650 = vunpack.c.l.s4 1934713408
        %v2651 = vunpack.c.0.s8 %v2650
        %v2652 = vlaneseq
        %v2653 = vshrl.u32 %v2652, 7
        %v2654 = vsub.s32 %v2651, %v2653
        %v2655 = vrot.slane %v2648, %v2654
        %v2656 = vcombine.low %v2259, %v2335
        %v2658 = vunpack.c.l.s4 1983009808
        %v2659 = vunpack.c.0.s8 %v2658
        %v2660 = vlaneseq
        %v2661 = vshrl.u32 %v2660, 7
        %v2662 = vsub.s32 %v2659, %v2661
        %v2663 = vrot.slane %v2656, %v2662
        %v2664 = vcombine.low %v2297, %v2373
        %v2666 = vunpack.c.l.s4 1983009808
        %v2667 = vunpack.c.0.s8 %v2666
        %v2668 = vlaneseq
        %v2669 = vshrl.u32 %v2668, 7
        %v2670 = vsub.s32 %v2667, %v2669
        %v2671 = vrot.slane %v2664, %v2670
        %v2672 = vcombine.low %v2663, %v2671
        %v2674 = vunpack.c.l.s4 1934713408
        %v2675 = vunpack.c.0.s8 %v2674
        %v2676 = vlaneseq
        %v2677 = vshrl.u32 %v2676, 7
        %v2678 = vsub.s32 %v2675, %v2677
        %v2679 = vrot.slane %v2672, %v2678
        %v2682 = vpack.i.b16 %v2481, %v2447
        %v2683 = vshrl.u32 %v2447, 16
        %v2684 = vshrl.u32 %v2481, 16
        %v2685 = vpack.i.b16 %v2684, %v2683
        %v2688 = vpack.i.b16 %v2489, %v2455
        %v2689 = vshrl.u32 %v2455, 16
        %v2690 = vshrl.u32 %v2489, 16
        %v2691 = vpack.i.b16 %v2690, %v2689
        %v2694 = vpack.i.b16 %v2488, %v2454
        %v2695 = vshrl.u32 %v2454, 16
        %v2696 = vshrl.u32 %v2488, 16
        %v2697 = vpack.i.b16 %v2696, %v2695
        %v2700 = vpack.i.b16 %v2490, %v2456
        %v2701 = vshrl.u32 %v2456, 16
        %v2702 = vshrl.u32 %v2490, 16
        %v2703 = vpack.i.b16 %v2702, %v2701
        %v2706 = vpack.i.b16 %v2631, %v2607
        %v2707 = vshrl.u32 %v2607, 16
        %v2708 = vshrl.u32 %v2631, 16
        %v2709 = vpack.i.b16 %v2708, %v2707
        %v2712 = vpack.i.b16 %v2549, %v2515
        %v2713 = vshrl.u32 %v2515, 16
        %v2714 = vshrl.u32 %v2549, 16
        %v2715 = vpack.i.b16 %v2714, %v2713
        %v2718 = vpack.i.b16 %v2557, %v2523
        %v2719 = vshrl.u32 %v2523, 16
        %v2720 = vshrl.u32 %v2557, 16
        %v2721 = vpack.i.b16 %v2720, %v2719
        %v2724 = vpack.i.b16 %v2556, %v2522
        %v2725 = vshrl.u32 %v2522, 16
        %v2726 = vshrl.u32 %v2556, 16
        %v2727 = vpack.i.b16 %v2726, %v2725
        %v2730 = vpack.i.b16 %v2558, %v2524
        %v2731 = vshrl.u32 %v2524, 16
        %v2732 = vshrl.u32 %v2558, 16
        %v2733 = vpack.i.b16 %v2732, %v2731
        %v2736 = vpack.i.b16 %v2679, %v2655
        %v2737 = vshrl.u32 %v2655, 16
        %v2738 = vshrl.u32 %v2679, 16
        %v2739 = vpack.i.b16 %v2738, %v2737
        %v2741 = vpack.i.b16 0, %v2574
        %v2742 = vshrl.u32 %v2574, 16
        %v2743 = vpack.i.b16 %v758, %v2742
        %v2745 = vpack.i.b16 0, %v2582
        %v2746 = vshrl.u32 %v2582, 16
        %v2747 = vpack.i.b16 %v758, %v2746
        %v2749 = vpack.i.b16 0, %v2581
        %v2750 = vshrl.u32 %v2581, 16
        %v2751 = vpack.i.b16 %v758, %v2750
        %v2753 = vpack.i.b16 0, %v2583
        %v2754 = vshrl.u32 %v2583, 16
        %v2755 = vpack.i.b16 %v758, %v2754
        %v2757 = vpack.i.b16 0, %v2390
        %v2758 = vshrl.u32 %v2390, 16
        %v2759 = vpack.i.b16 %v758, %v2758
        %v2760 = vunpack.c.l.b16 %v2682
        %v2761 = vunpack.c.l.b16 %v2712
        %v2762 = vunpack.c.l.b16 %v2741
        %v2763 = vpack.c.b16 %v2761, %v2760
        %v2764 = vpack.c.b16 %v2762, %v2762
        %v2765 = vunpack.c.l.b16 %v2685
        %v2766 = vunpack.c.l.b16 %v2715
        %v2767 = vunpack.c.l.b16 %v2743
        %v2768 = vpack.c.b16 %v2766, %v2765
        %v2769 = vpack.c.b16 %v2767, %v2767
        %2770 = vrot.lane.b32.xlu0 %v2768, 4
        %v2771 = vpop.permute.xlu0 %2770
        %2772 = vrot.lane.b32.xlu0 %v2769, 4
        %v2773 = vpop.permute.xlu0 %2772
        %v2774 = vunpack.c.l.b16 %v2688
        %v2775 = vunpack.c.l.b16 %v2718
        %v2776 = vunpack.c.l.b16 %v2745
        %v2777 = vpack.c.b16 %v2775, %v2774
        %v2778 = vpack.c.b16 %v2776, %v2776
        %2779 = vrot.lane.b32.xlu0 %v2777, 8
        %v2780 = vpop.permute.xlu0 %2779
        %2781 = vrot.lane.b32.xlu0 %v2778, 8
        %v2782 = vpop.permute.xlu0 %2781
        %v2783 = vunpack.c.l.b16 %v2691
        %v2784 = vunpack.c.l.b16 %v2721
        %v2785 = vunpack.c.l.b16 %v2747
        %v2786 = vpack.c.b16 %v2784, %v2783
        %v2787 = vpack.c.b16 %v2785, %v2785
        %2788 = vrot.lane.b32.xlu0 %v2786, 12
        %v2789 = vpop.permute.xlu0 %2788
        %2790 = vrot.lane.b32.xlu0 %v2787, 12
        %v2791 = vpop.permute.xlu0 %2790
        %v2792 = vunpack.c.l.b16 %v2694
        %v2793 = vunpack.c.l.b16 %v2724
        %v2794 = vunpack.c.l.b16 %v2749
        %v2795 = vpack.c.b16 %v2793, %v2792
        %v2796 = vpack.c.b16 %v2794, %v2794
        %2797 = vrot.lane.b32.xlu0 %v2795, 16
        %v2798 = vpop.permute.xlu0 %2797
        %2799 = vrot.lane.b32.xlu0 %v2796, 16
        %v2800 = vpop.permute.xlu0 %2799
        %v2801 = vunpack.c.l.b16 %v2697
        %v2802 = vunpack.c.l.b16 %v2727
        %v2803 = vunpack.c.l.b16 %v2751
        %v2804 = vpack.c.b16 %v2802, %v2801
        %v2805 = vpack.c.b16 %v2803, %v2803
        %2806 = vrot.lane.b32.xlu0 %v2804, 20
        %v2807 = vpop.permute.xlu0 %2806
        %2808 = vrot.lane.b32.xlu0 %v2805, 20
        %v2809 = vpop.permute.xlu0 %2808
        %v2810 = vunpack.c.l.b16 %v2700
        %v2811 = vunpack.c.l.b16 %v2730
        %v2812 = vunpack.c.l.b16 %v2753
        %v2813 = vpack.c.b16 %v2811, %v2810
        %v2814 = vpack.c.b16 %v2812, %v2812
        %2815 = vrot.lane.b32.xlu0 %v2813, 24
        %v2816 = vpop.permute.xlu0 %2815
        %2817 = vrot.lane.b32.xlu0 %v2814, 24
        %v2818 = vpop.permute.xlu0 %2817
        %v2819 = vunpack.c.l.b16 %v2703
        %v2820 = vunpack.c.l.b16 %v2733
        %v2821 = vunpack.c.l.b16 %v2755
        %v2822 = vpack.c.b16 %v2820, %v2819
        %v2823 = vpack.c.b16 %v2821, %v2821
        %2824 = vrot.lane.b32.xlu0 %v2822, 28
        %v2825 = vpop.permute.xlu0 %2824
        %2826 = vrot.lane.b32.xlu0 %v2823, 28
        %v2827 = vpop.permute.xlu0 %2826
        %v2828 = vunpack.c.l.b16 %v2706
        %v2829 = vunpack.c.l.b16 %v2736
        %v2830 = vunpack.c.l.b16 %v2757
        %v2831 = vpack.c.b16 %v2829, %v2828
        %v2832 = vpack.c.b16 %v2830, %v2830
        %2833 = vrot.lane.b32.xlu0 %v2831, 32
        %v2834 = vpop.permute.xlu0 %2833
        %2835 = vrot.lane.b32.xlu0 %v2832, 32
        %v2836 = vpop.permute.xlu0 %2835
        %v2837 = vunpack.c.l.b16 %v2709
        %v2838 = vunpack.c.l.b16 %v2739
        %v2839 = vunpack.c.l.b16 %v2759
        %v2840 = vpack.c.b16 %v2838, %v2837
        %v2841 = vpack.c.b16 %v2839, %v2839
        %2842 = vrot.lane.b32.xlu0 %v2840, 36
        %v2843 = vpop.permute.xlu0 %2842
        %2844 = vrot.lane.b32.xlu0 %v2841, 36
        %v2845 = vpop.permute.xlu0 %2844
        %v2848 = vsel %vm862, %v2763, %v2771
        %v2851 = vsel %vm862, %v2764, %v2773
        %v2853 = vsel %vm869, %v2848, %v2780
        %v2855 = vsel %vm869, %v2851, %v2782
        %v2857 = vsel %vm874, %v2853, %v2789
        %v2859 = vsel %vm874, %v2855, %v2791
        %v2861 = vsel %vm879, %v2857, %v2798
        %v2863 = vsel %vm879, %v2859, %v2800
        %v2865 = vsel %vm884, %v2861, %v2807
        %v2867 = vsel %vm884, %v2863, %v2809
        %v2869 = vsel %vm889, %v2865, %v2816
        %v2871 = vsel %vm889, %v2867, %v2818
        %v2873 = vsel %vm894, %v2869, %v2825
        %v2875 = vsel %vm894, %v2871, %v2827
        %v2877 = vsel %vm899, %v2873, %v2834
        %v2879 = vsel %vm899, %v2875, %v2836
        %v2881 = vsel %vm904, %v2877, %v2843
        %v2883 = vsel %vm904, %v2879, %v2845
        %2884 = vrot.lane.b32.xlu0 %v2083, 127
        %v2885 = vpop.permute.xlu0 %2884
        %2886 = vrot.lane.b32.xlu0 %v2088, 127
        %v2887 = vpop.permute.xlu0 %2886
        %2888 = vrot.lane.b32.xlu0 %v2102, 127
        %v2889 = vpop.permute.xlu0 %2888
        %2890 = vrot.lane.b32.xlu0 %v2107, 127
        %v2891 = vpop.permute.xlu0 %2890
        %2892 = vrot.lane.b32.xlu0 %v2121, 127
        %v2893 = vpop.permute.xlu0 %2892
        %2894 = vrot.lane.b32.xlu0 %v2126, 127
        %v2895 = vpop.permute.xlu0 %2894
        %2896 = vrot.lane.b32.xlu0 %v2140, 127
        %v2897 = vpop.permute.xlu0 %2896
        %2898 = vrot.lane.b32.xlu0 %v2145, 127
        %v2899 = vpop.permute.xlu0 %2898
        %2900 = vrot.lane.b32.xlu0 %v2159, 127
        %v2901 = vpop.permute.xlu0 %2900
        %2902 = vrot.lane.b32.xlu0 %v2164, 127
        %v2903 = vpop.permute.xlu0 %2902
        %2904 = vrot.lane.b32.xlu0 %v2178, 127
        %v2905 = vpop.permute.xlu0 %2904
        %2906 = vrot.lane.b32.xlu0 %v2183, 127
        %v2907 = vpop.permute.xlu0 %2906
        %2908 = vrot.lane.b32.xlu0 %v2197, 127
        %v2909 = vpop.permute.xlu0 %2908
        %2910 = vrot.lane.b32.xlu0 %v2202, 127
        %v2911 = vpop.permute.xlu0 %2910
        %2912 = vrot.lane.b32.xlu0 %v2216, 127
        %v2913 = vpop.permute.xlu0 %2912
        %2914 = vrot.lane.b32.xlu0 %v2221, 127
        %v2915 = vpop.permute.xlu0 %2914
        %2916 = vrot.lane.b32.xlu0 %v2235, 127
        %v2917 = vpop.permute.xlu0 %2916
        %2918 = vrot.lane.b32.xlu0 %v2240, 127
        %v2919 = vpop.permute.xlu0 %2918
        %2920 = vrot.lane.b32.xlu0 %v2254, 127
        %v2921 = vpop.permute.xlu0 %2920
        %2922 = vrot.lane.b32.xlu0 %v2259, 127
        %v2923 = vpop.permute.xlu0 %2922
        %2924 = vrot.lane.b32.xlu0 %v2273, 127
        %v2925 = vpop.permute.xlu0 %2924
        %2926 = vrot.lane.b32.xlu0 %v2278, 127
        %v2927 = vpop.permute.xlu0 %2926
        %2928 = vrot.lane.b32.xlu0 %v2292, 127
        %v2929 = vpop.permute.xlu0 %2928
        %2930 = vrot.lane.b32.xlu0 %v2297, 127
        %v2931 = vpop.permute.xlu0 %2930
        %2932 = vrot.lane.b32.xlu0 %v2311, 127
        %v2933 = vpop.permute.xlu0 %2932
        %2934 = vrot.lane.b32.xlu0 %v2316, 127
        %v2935 = vpop.permute.xlu0 %2934
        %2936 = vrot.lane.b32.xlu0 %v2330, 127
        %v2937 = vpop.permute.xlu0 %2936
        %2938 = vrot.lane.b32.xlu0 %v2335, 127
        %v2939 = vpop.permute.xlu0 %2938
        %2940 = vrot.lane.b32.xlu0 %v2349, 127
        %v2941 = vpop.permute.xlu0 %2940
        %2942 = vrot.lane.b32.xlu0 %v2354, 127
        %v2943 = vpop.permute.xlu0 %2942
        %2944 = vrot.lane.b32.xlu0 %v2368, 127
        %v2945 = vpop.permute.xlu0 %2944
        %2946 = vrot.lane.b32.xlu0 %v2373, 127
        %v2947 = vpop.permute.xlu0 %2946
        %2948 = vrot.lane.b32.xlu0 %v2386, 127
        %v2949 = vpop.permute.xlu0 %2948
        %2950 = vrot.lane.b32.xlu0 %v2390, 127
        %v2951 = vpop.permute.xlu0 %2950
        %v2984 = vcombine.low %v2885, %v2901
        %v2986 = vunpack.c.l.s4 1983009808
        %v2987 = vunpack.c.0.s8 %v2986
        %v2988 = vlaneseq
        %v2989 = vshrl.u32 %v2988, 7
        %v2990 = vsub.s32 %v2987, %v2989
        %v2991 = vrot.slane %v2984, %v2990
        %v2992 = vcombine.low %v2893, %v2909
        %v2994 = vunpack.c.l.s4 1983009808
        %v2995 = vunpack.c.0.s8 %v2994
        %v2996 = vlaneseq
        %v2997 = vshrl.u32 %v2996, 7
        %v2998 = vsub.s32 %v2995, %v2997
        %v2999 = vrot.slane %v2992, %v2998
        %v3000 = vcombine.low %v2991, %v2999
        %v3001 = vcombine.high %v2991, %v2999
        %v3003 = vunpack.c.l.s4 1934713408
        %v3004 = vunpack.c.0.s8 %v3003
        %v3005 = vlaneseq
        %v3006 = vshrl.u32 %v3005, 7
        %v3007 = vsub.s32 %v3004, %v3006
        %v3008 = vrot.slane %v3000, %v3007
        %v3010 = vunpack.c.l.s4 1934713408
        %v3011 = vunpack.c.0.s8 %v3010
        %v3012 = vlaneseq
        %v3013 = vshrl.u32 %v3012, 7
        %v3014 = vsub.s32 %v3011, %v3013
        %v3015 = vrot.slane %v3001, %v3014
        %v3016 = vcombine.high %v3008, 0
        %v3017 = vcombine.high %v3015, 0
        %v3018 = vcombine.low %v2889, %v2905
        %v3020 = vunpack.c.l.s4 1983009808
        %v3021 = vunpack.c.0.s8 %v3020
        %v3022 = vlaneseq
        %v3023 = vshrl.u32 %v3022, 7
        %v3024 = vsub.s32 %v3021, %v3023
        %v3025 = vrot.slane %v3018, %v3024
        %v3026 = vcombine.low %v2897, %v2913
        %v3028 = vunpack.c.l.s4 1983009808
        %v3029 = vunpack.c.0.s8 %v3028
        %v3030 = vlaneseq
        %v3031 = vshrl.u32 %v3030, 7
        %v3032 = vsub.s32 %v3029, %v3031
        %v3033 = vrot.slane %v3026, %v3032
        %v3034 = vcombine.low %v3025, %v3033
        %v3035 = vcombine.high %v3025, %v3033
        %v3037 = vunpack.c.l.s4 1934713408
        %v3038 = vunpack.c.0.s8 %v3037
        %v3039 = vlaneseq
        %v3040 = vshrl.u32 %v3039, 7
        %v3041 = vsub.s32 %v3038, %v3040
        %v3042 = vrot.slane %v3034, %v3041
        %v3044 = vunpack.c.l.s4 1934713408
        %v3045 = vunpack.c.0.s8 %v3044
        %v3046 = vlaneseq
        %v3047 = vshrl.u32 %v3046, 7
        %v3048 = vsub.s32 %v3045, %v3047
        %v3049 = vrot.slane %v3035, %v3048
        %v3050 = vcombine.high %v3042, 0
        %v3051 = vcombine.high %v3049, 0
        %v3052 = vcombine.low %v2917, %v2933
        %v3054 = vunpack.c.l.s4 1983009808
        %v3055 = vunpack.c.0.s8 %v3054
        %v3056 = vlaneseq
        %v3057 = vshrl.u32 %v3056, 7
        %v3058 = vsub.s32 %v3055, %v3057
        %v3059 = vrot.slane %v3052, %v3058
        %v3060 = vcombine.low %v2925, %v2941
        %v3062 = vunpack.c.l.s4 1983009808
        %v3063 = vunpack.c.0.s8 %v3062
        %v3064 = vlaneseq
        %v3065 = vshrl.u32 %v3064, 7
        %v3066 = vsub.s32 %v3063, %v3065
        %v3067 = vrot.slane %v3060, %v3066
        %v3068 = vcombine.low %v3059, %v3067
        %v3069 = vcombine.high %v3059, %v3067
        %v3071 = vunpack.c.l.s4 1934713408
        %v3072 = vunpack.c.0.s8 %v3071
        %v3073 = vlaneseq
        %v3074 = vshrl.u32 %v3073, 7
        %v3075 = vsub.s32 %v3072, %v3074
        %v3076 = vrot.slane %v3068, %v3075
        %v3078 = vunpack.c.l.s4 1934713408
        %v3079 = vunpack.c.0.s8 %v3078
        %v3080 = vlaneseq
        %v3081 = vshrl.u32 %v3080, 7
        %v3082 = vsub.s32 %v3079, %v3081
        %v3083 = vrot.slane %v3069, %v3082
        %v3084 = vcombine.high %v3076, 0
        %v3085 = vcombine.high %v3083, 0
        %v3086 = vcombine.low %v2921, %v2937
        %v3088 = vunpack.c.l.s4 1983009808
        %v3089 = vunpack.c.0.s8 %v3088
        %v3090 = vlaneseq
        %v3091 = vshrl.u32 %v3090, 7
        %v3092 = vsub.s32 %v3089, %v3091
        %v3093 = vrot.slane %v3086, %v3092
        %v3094 = vcombine.low %v2929, %v2945
        %v3096 = vunpack.c.l.s4 1983009808
        %v3097 = vunpack.c.0.s8 %v3096
        %v3098 = vlaneseq
        %v3099 = vshrl.u32 %v3098, 7
        %v3100 = vsub.s32 %v3097, %v3099
        %v3101 = vrot.slane %v3094, %v3100
        %v3102 = vcombine.low %v3093, %v3101
        %v3103 = vcombine.high %v3093, %v3101
        %v3105 = vunpack.c.l.s4 1934713408
        %v3106 = vunpack.c.0.s8 %v3105
        %v3107 = vlaneseq
        %v3108 = vshrl.u32 %v3107, 7
        %v3109 = vsub.s32 %v3106, %v3108
        %v3110 = vrot.slane %v3102, %v3109
        %v3112 = vunpack.c.l.s4 1934713408
        %v3113 = vunpack.c.0.s8 %v3112
        %v3114 = vlaneseq
        %v3115 = vshrl.u32 %v3114, 7
        %v3116 = vsub.s32 %v3113, %v3115
        %v3117 = vrot.slane %v3103, %v3116
        %v3118 = vcombine.high %v3110, 0
        %v3119 = vcombine.high %v3117, 0
        %v3122 = vunpack.c.l.s4 1983009808
        %v3123 = vunpack.c.0.s8 %v3122
        %v3124 = vlaneseq
        %v3125 = vshrl.u32 %v3124, 7
        %v3126 = vsub.s32 %v3123, %v3125
        %v3127 = vrot.slane %v2949, %v3126
        %v3128 = vcombine.high %v3127, 0
        %v3130 = vunpack.c.l.s4 1934713408
        %v3131 = vunpack.c.0.s8 %v3130
        %v3132 = vlaneseq
        %v3133 = vshrl.u32 %v3132, 7
        %v3134 = vsub.s32 %v3131, %v3133
        %v3135 = vrot.slane %v3127, %v3134
        %v3137 = vunpack.c.l.s4 1934713408
        %v3138 = vunpack.c.0.s8 %v3137
        %v3139 = vlaneseq
        %v3140 = vshrl.u32 %v3139, 7
        %v3141 = vsub.s32 %v3138, %v3140
        %v3142 = vrot.slane %v3128, %v3141
        %v3143 = vcombine.high %v3135, 0
        %v3144 = vcombine.high %v3142, 0
        %v3145 = vcombine.low %v2887, %v2903
        %v3147 = vunpack.c.l.s4 1983009808
        %v3148 = vunpack.c.0.s8 %v3147
        %v3149 = vlaneseq
        %v3150 = vshrl.u32 %v3149, 7
        %v3151 = vsub.s32 %v3148, %v3150
        %v3152 = vrot.slane %v3145, %v3151
        %v3153 = vcombine.low %v2895, %v2911
        %v3155 = vunpack.c.l.s4 1983009808
        %v3156 = vunpack.c.0.s8 %v3155
        %v3157 = vlaneseq
        %v3158 = vshrl.u32 %v3157, 7
        %v3159 = vsub.s32 %v3156, %v3158
        %v3160 = vrot.slane %v3153, %v3159
        %v3161 = vcombine.low %v3152, %v3160
        %v3163 = vunpack.c.l.s4 1934713408
        %v3164 = vunpack.c.0.s8 %v3163
        %v3165 = vlaneseq
        %v3166 = vshrl.u32 %v3165, 7
        %v3167 = vsub.s32 %v3164, %v3166
        %v3168 = vrot.slane %v3161, %v3167
        %v3169 = vcombine.low %v2891, %v2907
        %v3171 = vunpack.c.l.s4 1983009808
        %v3172 = vunpack.c.0.s8 %v3171
        %v3173 = vlaneseq
        %v3174 = vshrl.u32 %v3173, 7
        %v3175 = vsub.s32 %v3172, %v3174
        %v3176 = vrot.slane %v3169, %v3175
        %v3177 = vcombine.low %v2899, %v2915
        %v3179 = vunpack.c.l.s4 1983009808
        %v3180 = vunpack.c.0.s8 %v3179
        %v3181 = vlaneseq
        %v3182 = vshrl.u32 %v3181, 7
        %v3183 = vsub.s32 %v3180, %v3182
        %v3184 = vrot.slane %v3177, %v3183
        %v3185 = vcombine.low %v3176, %v3184
        %v3187 = vunpack.c.l.s4 1934713408
        %v3188 = vunpack.c.0.s8 %v3187
        %v3189 = vlaneseq
        %v3190 = vshrl.u32 %v3189, 7
        %v3191 = vsub.s32 %v3188, %v3190
        %v3192 = vrot.slane %v3185, %v3191
        %v3193 = vcombine.low %v2919, %v2935
        %v3195 = vunpack.c.l.s4 1983009808
        %v3196 = vunpack.c.0.s8 %v3195
        %v3197 = vlaneseq
        %v3198 = vshrl.u32 %v3197, 7
        %v3199 = vsub.s32 %v3196, %v3198
        %v3200 = vrot.slane %v3193, %v3199
        %v3201 = vcombine.low %v2927, %v2943
        %v3203 = vunpack.c.l.s4 1983009808
        %v3204 = vunpack.c.0.s8 %v3203
        %v3205 = vlaneseq
        %v3206 = vshrl.u32 %v3205, 7
        %v3207 = vsub.s32 %v3204, %v3206
        %v3208 = vrot.slane %v3201, %v3207
        %v3209 = vcombine.low %v3200, %v3208
        %v3211 = vunpack.c.l.s4 1934713408
        %v3212 = vunpack.c.0.s8 %v3211
        %v3213 = vlaneseq
        %v3214 = vshrl.u32 %v3213, 7
        %v3215 = vsub.s32 %v3212, %v3214
        %v3216 = vrot.slane %v3209, %v3215
        %v3217 = vcombine.low %v2923, %v2939
        %v3219 = vunpack.c.l.s4 1983009808
        %v3220 = vunpack.c.0.s8 %v3219
        %v3221 = vlaneseq
        %v3222 = vshrl.u32 %v3221, 7
        %v3223 = vsub.s32 %v3220, %v3222
        %v3224 = vrot.slane %v3217, %v3223
        %v3225 = vcombine.low %v2931, %v2947
        %v3227 = vunpack.c.l.s4 1983009808
        %v3228 = vunpack.c.0.s8 %v3227
        %v3229 = vlaneseq
        %v3230 = vshrl.u32 %v3229, 7
        %v3231 = vsub.s32 %v3228, %v3230
        %v3232 = vrot.slane %v3225, %v3231
        %v3233 = vcombine.low %v3224, %v3232
        %v3235 = vunpack.c.l.s4 1934713408
        %v3236 = vunpack.c.0.s8 %v3235
        %v3237 = vlaneseq
        %v3238 = vshrl.u32 %v3237, 7
        %v3239 = vsub.s32 %v3236, %v3238
        %v3240 = vrot.slane %v3233, %v3239
        %v3243 = vpack.i.b16 %v3042, %v3008
        %v3244 = vshrl.u32 %v3008, 16
        %v3245 = vshrl.u32 %v3042, 16
        %v3246 = vpack.i.b16 %v3245, %v3244
        %v3249 = vpack.i.b16 %v3050, %v3016
        %v3250 = vshrl.u32 %v3016, 16
        %v3251 = vshrl.u32 %v3050, 16
        %v3252 = vpack.i.b16 %v3251, %v3250
        %v3255 = vpack.i.b16 %v3049, %v3015
        %v3256 = vshrl.u32 %v3015, 16
        %v3257 = vshrl.u32 %v3049, 16
        %v3258 = vpack.i.b16 %v3257, %v3256
        %v3261 = vpack.i.b16 %v3051, %v3017
        %v3262 = vshrl.u32 %v3017, 16
        %v3263 = vshrl.u32 %v3051, 16
        %v3264 = vpack.i.b16 %v3263, %v3262
        %v3267 = vpack.i.b16 %v3192, %v3168
        %v3268 = vshrl.u32 %v3168, 16
        %v3269 = vshrl.u32 %v3192, 16
        %v3270 = vpack.i.b16 %v3269, %v3268
        %v3273 = vpack.i.b16 %v3110, %v3076
        %v3274 = vshrl.u32 %v3076, 16
        %v3275 = vshrl.u32 %v3110, 16
        %v3276 = vpack.i.b16 %v3275, %v3274
        %v3279 = vpack.i.b16 %v3118, %v3084
        %v3280 = vshrl.u32 %v3084, 16
        %v3281 = vshrl.u32 %v3118, 16
        %v3282 = vpack.i.b16 %v3281, %v3280
        %v3285 = vpack.i.b16 %v3117, %v3083
        %v3286 = vshrl.u32 %v3083, 16
        %v3287 = vshrl.u32 %v3117, 16
        %v3288 = vpack.i.b16 %v3287, %v3286
        %v3291 = vpack.i.b16 %v3119, %v3085
        %v3292 = vshrl.u32 %v3085, 16
        %v3293 = vshrl.u32 %v3119, 16
        %v3294 = vpack.i.b16 %v3293, %v3292
        %v3297 = vpack.i.b16 %v3240, %v3216
        %v3298 = vshrl.u32 %v3216, 16
        %v3299 = vshrl.u32 %v3240, 16
        %v3300 = vpack.i.b16 %v3299, %v3298
        %v3302 = vpack.i.b16 0, %v3135
        %v3303 = vshrl.u32 %v3135, 16
        %v3304 = vpack.i.b16 %v758, %v3303
        %v3306 = vpack.i.b16 0, %v3143
        %v3307 = vshrl.u32 %v3143, 16
        %v3308 = vpack.i.b16 %v758, %v3307
        %v3310 = vpack.i.b16 0, %v3142
        %v3311 = vshrl.u32 %v3142, 16
        %v3312 = vpack.i.b16 %v758, %v3311
        %v3314 = vpack.i.b16 0, %v3144
        %v3315 = vshrl.u32 %v3144, 16
        %v3316 = vpack.i.b16 %v758, %v3315
        %v3318 = vpack.i.b16 0, %v2951
        %v3319 = vshrl.u32 %v2951, 16
        %v3320 = vpack.i.b16 %v758, %v3319
        %v3321 = vunpack.c.l.b16 %v3243
        %v3322 = vunpack.c.l.b16 %v3273
        %v3323 = vunpack.c.l.b16 %v3302
        %v3324 = vpack.c.b16 %v3322, %v3321
        %v3325 = vpack.c.b16 %v3323, %v3323
        %v3326 = vunpack.c.l.b16 %v3246
        %v3327 = vunpack.c.l.b16 %v3276
        %v3328 = vunpack.c.l.b16 %v3304
        %v3329 = vpack.c.b16 %v3327, %v3326
        %v3330 = vpack.c.b16 %v3328, %v3328
        %3331 = vrot.lane.b32.xlu0 %v3329, 4
        %v3332 = vpop.permute.xlu0 %3331
        %3333 = vrot.lane.b32.xlu0 %v3330, 4
        %v3334 = vpop.permute.xlu0 %3333
        %v3335 = vunpack.c.l.b16 %v3249
        %v3336 = vunpack.c.l.b16 %v3279
        %v3337 = vunpack.c.l.b16 %v3306
        %v3338 = vpack.c.b16 %v3336, %v3335
        %v3339 = vpack.c.b16 %v3337, %v3337
        %3340 = vrot.lane.b32.xlu0 %v3338, 8
        %v3341 = vpop.permute.xlu0 %3340
        %3342 = vrot.lane.b32.xlu0 %v3339, 8
        %v3343 = vpop.permute.xlu0 %3342
        %v3344 = vunpack.c.l.b16 %v3252
        %v3345 = vunpack.c.l.b16 %v3282
        %v3346 = vunpack.c.l.b16 %v3308
        %v3347 = vpack.c.b16 %v3345, %v3344
        %v3348 = vpack.c.b16 %v3346, %v3346
        %3349 = vrot.lane.b32.xlu0 %v3347, 12
        %v3350 = vpop.permute.xlu0 %3349
        %3351 = vrot.lane.b32.xlu0 %v3348, 12
        %v3352 = vpop.permute.xlu0 %3351
        %v3353 = vunpack.c.l.b16 %v3255
        %v3354 = vunpack.c.l.b16 %v3285
        %v3355 = vunpack.c.l.b16 %v3310
        %v3356 = vpack.c.b16 %v3354, %v3353
        %v3357 = vpack.c.b16 %v3355, %v3355
        %3358 = vrot.lane.b32.xlu0 %v3356, 16
        %v3359 = vpop.permute.xlu0 %3358
        %3360 = vrot.lane.b32.xlu0 %v3357, 16
        %v3361 = vpop.permute.xlu0 %3360
        %v3362 = vunpack.c.l.b16 %v3258
        %v3363 = vunpack.c.l.b16 %v3288
        %v3364 = vunpack.c.l.b16 %v3312
        %v3365 = vpack.c.b16 %v3363, %v3362
        %v3366 = vpack.c.b16 %v3364, %v3364
        %3367 = vrot.lane.b32.xlu0 %v3365, 20
        %v3368 = vpop.permute.xlu0 %3367
        %3369 = vrot.lane.b32.xlu0 %v3366, 20
        %v3370 = vpop.permute.xlu0 %3369
        %v3371 = vunpack.c.l.b16 %v3261
        %v3372 = vunpack.c.l.b16 %v3291
        %v3373 = vunpack.c.l.b16 %v3314
        %v3374 = vpack.c.b16 %v3372, %v3371
        %v3375 = vpack.c.b16 %v3373, %v3373
        %3376 = vrot.lane.b32.xlu0 %v3374, 24
        %v3377 = vpop.permute.xlu0 %3376
        %3378 = vrot.lane.b32.xlu0 %v3375, 24
        %v3379 = vpop.permute.xlu0 %3378
        %v3380 = vunpack.c.l.b16 %v3264
        %v3381 = vunpack.c.l.b16 %v3294
        %v3382 = vunpack.c.l.b16 %v3316
        %v3383 = vpack.c.b16 %v3381, %v3380
        %v3384 = vpack.c.b16 %v3382, %v3382
        %3385 = vrot.lane.b32.xlu0 %v3383, 28
        %v3386 = vpop.permute.xlu0 %3385
        %3387 = vrot.lane.b32.xlu0 %v3384, 28
        %v3388 = vpop.permute.xlu0 %3387
        %v3389 = vunpack.c.l.b16 %v3267
        %v3390 = vunpack.c.l.b16 %v3297
        %v3391 = vunpack.c.l.b16 %v3318
        %v3392 = vpack.c.b16 %v3390, %v3389
        %v3393 = vpack.c.b16 %v3391, %v3391
        %3394 = vrot.lane.b32.xlu0 %v3392, 32
        %v3395 = vpop.permute.xlu0 %3394
        %3396 = vrot.lane.b32.xlu0 %v3393, 32
        %v3397 = vpop.permute.xlu0 %3396
        %v3398 = vunpack.c.l.b16 %v3270
        %v3399 = vunpack.c.l.b16 %v3300
        %v3400 = vunpack.c.l.b16 %v3320
        %v3401 = vpack.c.b16 %v3399, %v3398
        %v3402 = vpack.c.b16 %v3400, %v3400
        %3403 = vrot.lane.b32.xlu0 %v3401, 36
        %v3404 = vpop.permute.xlu0 %3403
        %3405 = vrot.lane.b32.xlu0 %v3402, 36
        %v3406 = vpop.permute.xlu0 %3405
        %v3409 = vsel %vm862, %v3324, %v3332
        %v3412 = vsel %vm862, %v3325, %v3334
        %v3414 = vsel %vm869, %v3409, %v3341
        %v3416 = vsel %vm869, %v3412, %v3343
        %v3418 = vsel %vm874, %v3414, %v3350
        %v3420 = vsel %vm874, %v3416, %v3352
        %v3422 = vsel %vm879, %v3418, %v3359
        %v3424 = vsel %vm879, %v3420, %v3361
        %v3426 = vsel %vm884, %v3422, %v3368
        %v3428 = vsel %vm884, %v3424, %v3370
        %v3430 = vsel %vm889, %v3426, %v3377
        %v3432 = vsel %vm889, %v3428, %v3379
        %v3434 = vsel %vm894, %v3430, %v3386
        %v3436 = vsel %vm894, %v3432, %v3388
        %v3438 = vsel %vm899, %v3434, %v3395
        %v3440 = vsel %vm899, %v3436, %v3397
        %v3442 = vsel %vm904, %v3438, %v3404
        %v3444 = vsel %vm904, %v3440, %v3406
        %3445 = vrot.lane.b32.xlu0 %v2083, 126
        %v3446 = vpop.permute.xlu0 %3445
        %3447 = vrot.lane.b32.xlu0 %v2088, 126
        %v3448 = vpop.permute.xlu0 %3447
        %3449 = vrot.lane.b32.xlu0 %v2102, 126
        %v3450 = vpop.permute.xlu0 %3449
        %3451 = vrot.lane.b32.xlu0 %v2107, 126
        %v3452 = vpop.permute.xlu0 %3451
        %3453 = vrot.lane.b32.xlu0 %v2121, 126
        %v3454 = vpop.permute.xlu0 %3453
        %3455 = vrot.lane.b32.xlu0 %v2126, 126
        %v3456 = vpop.permute.xlu0 %3455
        %3457 = vrot.lane.b32.xlu0 %v2140, 126
        %v3458 = vpop.permute.xlu0 %3457
        %3459 = vrot.lane.b32.xlu0 %v2145, 126
        %v3460 = vpop.permute.xlu0 %3459
        %3461 = vrot.lane.b32.xlu0 %v2159, 126
        %v3462 = vpop.permute.xlu0 %3461
        %3463 = vrot.lane.b32.xlu0 %v2164, 126
        %v3464 = vpop.permute.xlu0 %3463
        %3465 = vrot.lane.b32.xlu0 %v2178, 126
        %v3466 = vpop.permute.xlu0 %3465
        %3467 = vrot.lane.b32.xlu0 %v2183, 126
        %v3468 = vpop.permute.xlu0 %3467
        %3469 = vrot.lane.b32.xlu0 %v2197, 126
        %v3470 = vpop.permute.xlu0 %3469
        %3471 = vrot.lane.b32.xlu0 %v2202, 126
        %v3472 = vpop.permute.xlu0 %3471
        %3473 = vrot.lane.b32.xlu0 %v2216, 126
        %v3474 = vpop.permute.xlu0 %3473
        %3475 = vrot.lane.b32.xlu0 %v2221, 126
        %v3476 = vpop.permute.xlu0 %3475
        %3477 = vrot.lane.b32.xlu0 %v2235, 126
        %v3478 = vpop.permute.xlu0 %3477
        %3479 = vrot.lane.b32.xlu0 %v2240, 126
        %v3480 = vpop.permute.xlu0 %3479
        %3481 = vrot.lane.b32.xlu0 %v2254, 126
        %v3482 = vpop.permute.xlu0 %3481
        %3483 = vrot.lane.b32.xlu0 %v2259, 126
        %v3484 = vpop.permute.xlu0 %3483
        %3485 = vrot.lane.b32.xlu0 %v2273, 126
        %v3486 = vpop.permute.xlu0 %3485
        %3487 = vrot.lane.b32.xlu0 %v2278, 126
        %v3488 = vpop.permute.xlu0 %3487
        %3489 = vrot.lane.b32.xlu0 %v2292, 126
        %v3490 = vpop.permute.xlu0 %3489
        %3491 = vrot.lane.b32.xlu0 %v2297, 126
        %v3492 = vpop.permute.xlu0 %3491
        %3493 = vrot.lane.b32.xlu0 %v2311, 126
        %v3494 = vpop.permute.xlu0 %3493
        %3495 = vrot.lane.b32.xlu0 %v2316, 126
        %v3496 = vpop.permute.xlu0 %3495
        %3497 = vrot.lane.b32.xlu0 %v2330, 126
        %v3498 = vpop.permute.xlu0 %3497
        %3499 = vrot.lane.b32.xlu0 %v2335, 126
        %v3500 = vpop.permute.xlu0 %3499
        %3501 = vrot.lane.b32.xlu0 %v2349, 126
        %v3502 = vpop.permute.xlu0 %3501
        %3503 = vrot.lane.b32.xlu0 %v2354, 126
        %v3504 = vpop.permute.xlu0 %3503
        %3505 = vrot.lane.b32.xlu0 %v2368, 126
        %v3506 = vpop.permute.xlu0 %3505
        %3507 = vrot.lane.b32.xlu0 %v2373, 126
        %v3508 = vpop.permute.xlu0 %3507
        %3509 = vrot.lane.b32.xlu0 %v2386, 126
        %v3510 = vpop.permute.xlu0 %3509
        %3511 = vrot.lane.b32.xlu0 %v2390, 126
        %v3512 = vpop.permute.xlu0 %3511
        %v3545 = vcombine.low %v3446, %v3462
        %v3547 = vunpack.c.l.s4 1983009808
        %v3548 = vunpack.c.0.s8 %v3547
        %v3549 = vlaneseq
        %v3550 = vshrl.u32 %v3549, 7
        %v3551 = vsub.s32 %v3548, %v3550
        %v3552 = vrot.slane %v3545, %v3551
        %v3553 = vcombine.low %v3454, %v3470
        %v3555 = vunpack.c.l.s4 1983009808
        %v3556 = vunpack.c.0.s8 %v3555
        %v3557 = vlaneseq
        %v3558 = vshrl.u32 %v3557, 7
        %v3559 = vsub.s32 %v3556, %v3558
        %v3560 = vrot.slane %v3553, %v3559
        %v3561 = vcombine.low %v3552, %v3560
        %v3562 = vcombine.high %v3552, %v3560
        %v3564 = vunpack.c.l.s4 1934713408
        %v3565 = vunpack.c.0.s8 %v3564
        %v3566 = vlaneseq
        %v3567 = vshrl.u32 %v3566, 7
        %v3568 = vsub.s32 %v3565, %v3567
        %v3569 = vrot.slane %v3561, %v3568
        %v3571 = vunpack.c.l.s4 1934713408
        %v3572 = vunpack.c.0.s8 %v3571
        %v3573 = vlaneseq
        %v3574 = vshrl.u32 %v3573, 7
        %v3575 = vsub.s32 %v3572, %v3574
        %v3576 = vrot.slane %v3562, %v3575
        %v3577 = vcombine.high %v3569, 0
        %v3578 = vcombine.high %v3576, 0
        %v3579 = vcombine.low %v3450, %v3466
        %v3581 = vunpack.c.l.s4 1983009808
        %v3582 = vunpack.c.0.s8 %v3581
        %v3583 = vlaneseq
        %v3584 = vshrl.u32 %v3583, 7
        %v3585 = vsub.s32 %v3582, %v3584
        %v3586 = vrot.slane %v3579, %v3585
        %v3587 = vcombine.low %v3458, %v3474
        %v3589 = vunpack.c.l.s4 1983009808
        %v3590 = vunpack.c.0.s8 %v3589
        %v3591 = vlaneseq
        %v3592 = vshrl.u32 %v3591, 7
        %v3593 = vsub.s32 %v3590, %v3592
        %v3594 = vrot.slane %v3587, %v3593
        %v3595 = vcombine.low %v3586, %v3594
        %v3596 = vcombine.high %v3586, %v3594
        %v3598 = vunpack.c.l.s4 1934713408
        %v3599 = vunpack.c.0.s8 %v3598
        %v3600 = vlaneseq
        %v3601 = vshrl.u32 %v3600, 7
        %v3602 = vsub.s32 %v3599, %v3601
        %v3603 = vrot.slane %v3595, %v3602
        %v3605 = vunpack.c.l.s4 1934713408
        %v3606 = vunpack.c.0.s8 %v3605
        %v3607 = vlaneseq
        %v3608 = vshrl.u32 %v3607, 7
        %v3609 = vsub.s32 %v3606, %v3608
        %v3610 = vrot.slane %v3596, %v3609
        %v3611 = vcombine.high %v3603, 0
        %v3612 = vcombine.high %v3610, 0
        %v3613 = vcombine.low %v3478, %v3494
        %v3615 = vunpack.c.l.s4 1983009808
        %v3616 = vunpack.c.0.s8 %v3615
        %v3617 = vlaneseq
        %v3618 = vshrl.u32 %v3617, 7
        %v3619 = vsub.s32 %v3616, %v3618
        %v3620 = vrot.slane %v3613, %v3619
        %v3621 = vcombine.low %v3486, %v3502
        %v3623 = vunpack.c.l.s4 1983009808
        %v3624 = vunpack.c.0.s8 %v3623
        %v3625 = vlaneseq
        %v3626 = vshrl.u32 %v3625, 7
        %v3627 = vsub.s32 %v3624, %v3626
        %v3628 = vrot.slane %v3621, %v3627
        %v3629 = vcombine.low %v3620, %v3628
        %v3630 = vcombine.high %v3620, %v3628
        %v3632 = vunpack.c.l.s4 1934713408
        %v3633 = vunpack.c.0.s8 %v3632
        %v3634 = vlaneseq
        %v3635 = vshrl.u32 %v3634, 7
        %v3636 = vsub.s32 %v3633, %v3635
        %v3637 = vrot.slane %v3629, %v3636
        %v3639 = vunpack.c.l.s4 1934713408
        %v3640 = vunpack.c.0.s8 %v3639
        %v3641 = vlaneseq
        %v3642 = vshrl.u32 %v3641, 7
        %v3643 = vsub.s32 %v3640, %v3642
        %v3644 = vrot.slane %v3630, %v3643
        %v3645 = vcombine.high %v3637, 0
        %v3646 = vcombine.high %v3644, 0
        %v3647 = vcombine.low %v3482, %v3498
        %v3649 = vunpack.c.l.s4 1983009808
        %v3650 = vunpack.c.0.s8 %v3649
        %v3651 = vlaneseq
        %v3652 = vshrl.u32 %v3651, 7
        %v3653 = vsub.s32 %v3650, %v3652
        %v3654 = vrot.slane %v3647, %v3653
        %v3655 = vcombine.low %v3490, %v3506
        %v3657 = vunpack.c.l.s4 1983009808
        %v3658 = vunpack.c.0.s8 %v3657
        %v3659 = vlaneseq
        %v3660 = vshrl.u32 %v3659, 7
        %v3661 = vsub.s32 %v3658, %v3660
        %v3662 = vrot.slane %v3655, %v3661
        %v3663 = vcombine.low %v3654, %v3662
        %v3664 = vcombine.high %v3654, %v3662
        %v3666 = vunpack.c.l.s4 1934713408
        %v3667 = vunpack.c.0.s8 %v3666
        %v3668 = vlaneseq
        %v3669 = vshrl.u32 %v3668, 7
        %v3670 = vsub.s32 %v3667, %v3669
        %v3671 = vrot.slane %v3663, %v3670
        %v3673 = vunpack.c.l.s4 1934713408
        %v3674 = vunpack.c.0.s8 %v3673
        %v3675 = vlaneseq
        %v3676 = vshrl.u32 %v3675, 7
        %v3677 = vsub.s32 %v3674, %v3676
        %v3678 = vrot.slane %v3664, %v3677
        %v3679 = vcombine.high %v3671, 0
        %v3680 = vcombine.high %v3678, 0
        %v3683 = vunpack.c.l.s4 1983009808
        %v3684 = vunpack.c.0.s8 %v3683
        %v3685 = vlaneseq
        %v3686 = vshrl.u32 %v3685, 7
        %v3687 = vsub.s32 %v3684, %v3686
        %v3688 = vrot.slane %v3510, %v3687
        %v3689 = vcombine.high %v3688, 0
        %v3691 = vunpack.c.l.s4 1934713408
        %v3692 = vunpack.c.0.s8 %v3691
        %v3693 = vlaneseq
        %v3694 = vshrl.u32 %v3693, 7
        %v3695 = vsub.s32 %v3692, %v3694
        %v3696 = vrot.slane %v3688, %v3695
        %v3698 = vunpack.c.l.s4 1934713408
        %v3699 = vunpack.c.0.s8 %v3698
        %v3700 = vlaneseq
        %v3701 = vshrl.u32 %v3700, 7
        %v3702 = vsub.s32 %v3699, %v3701
        %v3703 = vrot.slane %v3689, %v3702
        %v3704 = vcombine.high %v3696, 0
        %v3705 = vcombine.high %v3703, 0
        %v3706 = vcombine.low %v3448, %v3464
        %v3708 = vunpack.c.l.s4 1983009808
        %v3709 = vunpack.c.0.s8 %v3708
        %v3710 = vlaneseq
        %v3711 = vshrl.u32 %v3710, 7
        %v3712 = vsub.s32 %v3709, %v3711
        %v3713 = vrot.slane %v3706, %v3712
        %v3714 = vcombine.low %v3456, %v3472
        %v3716 = vunpack.c.l.s4 1983009808
        %v3717 = vunpack.c.0.s8 %v3716
        %v3718 = vlaneseq
        %v3719 = vshrl.u32 %v3718, 7
        %v3720 = vsub.s32 %v3717, %v3719
        %v3721 = vrot.slane %v3714, %v3720
        %v3722 = vcombine.low %v3713, %v3721
        %v3724 = vunpack.c.l.s4 1934713408
        %v3725 = vunpack.c.0.s8 %v3724
        %v3726 = vlaneseq
        %v3727 = vshrl.u32 %v3726, 7
        %v3728 = vsub.s32 %v3725, %v3727
        %v3729 = vrot.slane %v3722, %v3728
        %v3730 = vcombine.low %v3452, %v3468
        %v3732 = vunpack.c.l.s4 1983009808
        %v3733 = vunpack.c.0.s8 %v3732
        %v3734 = vlaneseq
        %v3735 = vshrl.u32 %v3734, 7
        %v3736 = vsub.s32 %v3733, %v3735
        %v3737 = vrot.slane %v3730, %v3736
        %v3738 = vcombine.low %v3460, %v3476
        %v3740 = vunpack.c.l.s4 1983009808
        %v3741 = vunpack.c.0.s8 %v3740
        %v3742 = vlaneseq
        %v3743 = vshrl.u32 %v3742, 7
        %v3744 = vsub.s32 %v3741, %v3743
        %v3745 = vrot.slane %v3738, %v3744
        %v3746 = vcombine.low %v3737, %v3745
        %v3748 = vunpack.c.l.s4 1934713408
        %v3749 = vunpack.c.0.s8 %v3748
        %v3750 = vlaneseq
        %v3751 = vshrl.u32 %v3750, 7
        %v3752 = vsub.s32 %v3749, %v3751
        %v3753 = vrot.slane %v3746, %v3752
        %v3754 = vcombine.low %v3480, %v3496
        %v3756 = vunpack.c.l.s4 1983009808
        %v3757 = vunpack.c.0.s8 %v3756
        %v3758 = vlaneseq
        %v3759 = vshrl.u32 %v3758, 7
        %v3760 = vsub.s32 %v3757, %v3759
        %v3761 = vrot.slane %v3754, %v3760
        %v3762 = vcombine.low %v3488, %v3504
        %v3764 = vunpack.c.l.s4 1983009808
        %v3765 = vunpack.c.0.s8 %v3764
        %v3766 = vlaneseq
        %v3767 = vshrl.u32 %v3766, 7
        %v3768 = vsub.s32 %v3765, %v3767
        %v3769 = vrot.slane %v3762, %v3768
        %v3770 = vcombine.low %v3761, %v3769
        %v3772 = vunpack.c.l.s4 1934713408
        %v3773 = vunpack.c.0.s8 %v3772
        %v3774 = vlaneseq
        %v3775 = vshrl.u32 %v3774, 7
        %v3776 = vsub.s32 %v3773, %v3775
        %v3777 = vrot.slane %v3770, %v3776
        %v3778 = vcombine.low %v3484, %v3500
        %v3780 = vunpack.c.l.s4 1983009808
        %v3781 = vunpack.c.0.s8 %v3780
        %v3782 = vlaneseq
        %v3783 = vshrl.u32 %v3782, 7
        %v3784 = vsub.s32 %v3781, %v3783
        %v3785 = vrot.slane %v3778, %v3784
        %v3786 = vcombine.low %v3492, %v3508
        %v3788 = vunpack.c.l.s4 1983009808
        %v3789 = vunpack.c.0.s8 %v3788
        %v3790 = vlaneseq
        %v3791 = vshrl.u32 %v3790, 7
        %v3792 = vsub.s32 %v3789, %v3791
        %v3793 = vrot.slane %v3786, %v3792
        %v3794 = vcombine.low %v3785, %v3793
        %v3796 = vunpack.c.l.s4 1934713408
        %v3797 = vunpack.c.0.s8 %v3796
        %v3798 = vlaneseq
        %v3799 = vshrl.u32 %v3798, 7
        %v3800 = vsub.s32 %v3797, %v3799
        %v3801 = vrot.slane %v3794, %v3800
        %v3804 = vpack.i.b16 %v3603, %v3569
        %v3805 = vshrl.u32 %v3569, 16
        %v3806 = vshrl.u32 %v3603, 16
        %v3807 = vpack.i.b16 %v3806, %v3805
        %v3810 = vpack.i.b16 %v3611, %v3577
        %v3811 = vshrl.u32 %v3577, 16
        %v3812 = vshrl.u32 %v3611, 16
        %v3813 = vpack.i.b16 %v3812, %v3811
        %v3816 = vpack.i.b16 %v3610, %v3576
        %v3817 = vshrl.u32 %v3576, 16
        %v3818 = vshrl.u32 %v3610, 16
        %v3819 = vpack.i.b16 %v3818, %v3817
        %v3822 = vpack.i.b16 %v3612, %v3578
        %v3823 = vshrl.u32 %v3578, 16
        %v3824 = vshrl.u32 %v3612, 16
        %v3825 = vpack.i.b16 %v3824, %v3823
        %v3828 = vpack.i.b16 %v3753, %v3729
        %v3829 = vshrl.u32 %v3729, 16
        %v3830 = vshrl.u32 %v3753, 16
        %v3831 = vpack.i.b16 %v3830, %v3829
        %v3834 = vpack.i.b16 %v3671, %v3637
        %v3835 = vshrl.u32 %v3637, 16
        %v3836 = vshrl.u32 %v3671, 16
        %v3837 = vpack.i.b16 %v3836, %v3835
        %v3840 = vpack.i.b16 %v3679, %v3645
        %v3841 = vshrl.u32 %v3645, 16
        %v3842 = vshrl.u32 %v3679, 16
        %v3843 = vpack.i.b16 %v3842, %v3841
        %v3846 = vpack.i.b16 %v3678, %v3644
        %v3847 = vshrl.u32 %v3644, 16
        %v3848 = vshrl.u32 %v3678, 16
        %v3849 = vpack.i.b16 %v3848, %v3847
        %v3852 = vpack.i.b16 %v3680, %v3646
        %v3853 = vshrl.u32 %v3646, 16
        %v3854 = vshrl.u32 %v3680, 16
        %v3855 = vpack.i.b16 %v3854, %v3853
        %v3858 = vpack.i.b16 %v3801, %v3777
        %v3859 = vshrl.u32 %v3777, 16
        %v3860 = vshrl.u32 %v3801, 16
        %v3861 = vpack.i.b16 %v3860, %v3859
        %v3863 = vpack.i.b16 0, %v3696
        %v3864 = vshrl.u32 %v3696, 16
        %v3865 = vpack.i.b16 %v758, %v3864
        %v3867 = vpack.i.b16 0, %v3704
        %v3868 = vshrl.u32 %v3704, 16
        %v3869 = vpack.i.b16 %v758, %v3868
        %v3871 = vpack.i.b16 0, %v3703
        %v3872 = vshrl.u32 %v3703, 16
        %v3873 = vpack.i.b16 %v758, %v3872
        %v3875 = vpack.i.b16 0, %v3705
        %v3876 = vshrl.u32 %v3705, 16
        %v3877 = vpack.i.b16 %v758, %v3876
        %v3879 = vpack.i.b16 0, %v3512
        %v3880 = vshrl.u32 %v3512, 16
        %v3881 = vpack.i.b16 %v758, %v3880
        %v3882 = vunpack.c.l.b16 %v3804
        %v3883 = vunpack.c.l.b16 %v3834
        %v3884 = vunpack.c.l.b16 %v3863
        %v3885 = vpack.c.b16 %v3883, %v3882
        %v3886 = vpack.c.b16 %v3884, %v3884
        %v3887 = vunpack.c.l.b16 %v3807
        %v3888 = vunpack.c.l.b16 %v3837
        %v3889 = vunpack.c.l.b16 %v3865
        %v3890 = vpack.c.b16 %v3888, %v3887
        %v3891 = vpack.c.b16 %v3889, %v3889
        %3892 = vrot.lane.b32.xlu0 %v3890, 4
        %v3893 = vpop.permute.xlu0 %3892
        %3894 = vrot.lane.b32.xlu0 %v3891, 4
        %v3895 = vpop.permute.xlu0 %3894
        %v3896 = vunpack.c.l.b16 %v3810
        %v3897 = vunpack.c.l.b16 %v3840
        %v3898 = vunpack.c.l.b16 %v3867
        %v3899 = vpack.c.b16 %v3897, %v3896
        %v3900 = vpack.c.b16 %v3898, %v3898
        %3901 = vrot.lane.b32.xlu0 %v3899, 8
        %v3902 = vpop.permute.xlu0 %3901
        %3903 = vrot.lane.b32.xlu0 %v3900, 8
        %v3904 = vpop.permute.xlu0 %3903
        %v3905 = vunpack.c.l.b16 %v3813
        %v3906 = vunpack.c.l.b16 %v3843
        %v3907 = vunpack.c.l.b16 %v3869
        %v3908 = vpack.c.b16 %v3906, %v3905
        %v3909 = vpack.c.b16 %v3907, %v3907
        %3910 = vrot.lane.b32.xlu0 %v3908, 12
        %v3911 = vpop.permute.xlu0 %3910
        %3912 = vrot.lane.b32.xlu0 %v3909, 12
        %v3913 = vpop.permute.xlu0 %3912
        %v3914 = vunpack.c.l.b16 %v3816
        %v3915 = vunpack.c.l.b16 %v3846
        %v3916 = vunpack.c.l.b16 %v3871
        %v3917 = vpack.c.b16 %v3915, %v3914
        %v3918 = vpack.c.b16 %v3916, %v3916
        %3919 = vrot.lane.b32.xlu0 %v3917, 16
        %v3920 = vpop.permute.xlu0 %3919
        %3921 = vrot.lane.b32.xlu0 %v3918, 16
        %v3922 = vpop.permute.xlu0 %3921
        %v3923 = vunpack.c.l.b16 %v3819
        %v3924 = vunpack.c.l.b16 %v3849
        %v3925 = vunpack.c.l.b16 %v3873
        %v3926 = vpack.c.b16 %v3924, %v3923
        %v3927 = vpack.c.b16 %v3925, %v3925
        %3928 = vrot.lane.b32.xlu0 %v3926, 20
        %v3929 = vpop.permute.xlu0 %3928
        %3930 = vrot.lane.b32.xlu0 %v3927, 20
        %v3931 = vpop.permute.xlu0 %3930
        %v3932 = vunpack.c.l.b16 %v3822
        %v3933 = vunpack.c.l.b16 %v3852
        %v3934 = vunpack.c.l.b16 %v3875
        %v3935 = vpack.c.b16 %v3933, %v3932
        %v3936 = vpack.c.b16 %v3934, %v3934
        %3937 = vrot.lane.b32.xlu0 %v3935, 24
        %v3938 = vpop.permute.xlu0 %3937
        %3939 = vrot.lane.b32.xlu0 %v3936, 24
        %v3940 = vpop.permute.xlu0 %3939
        %v3941 = vunpack.c.l.b16 %v3825
        %v3942 = vunpack.c.l.b16 %v3855
        %v3943 = vunpack.c.l.b16 %v3877
        %v3944 = vpack.c.b16 %v3942, %v3941
        %v3945 = vpack.c.b16 %v3943, %v3943
        %3946 = vrot.lane.b32.xlu0 %v3944, 28
        %v3947 = vpop.permute.xlu0 %3946
        %3948 = vrot.lane.b32.xlu0 %v3945, 28
        %v3949 = vpop.permute.xlu0 %3948
        %v3950 = vunpack.c.l.b16 %v3828
        %v3951 = vunpack.c.l.b16 %v3858
        %v3952 = vunpack.c.l.b16 %v3879
        %v3953 = vpack.c.b16 %v3951, %v3950
        %v3954 = vpack.c.b16 %v3952, %v3952
        %3955 = vrot.lane.b32.xlu0 %v3953, 32
        %v3956 = vpop.permute.xlu0 %3955
        %3957 = vrot.lane.b32.xlu0 %v3954, 32
        %v3958 = vpop.permute.xlu0 %3957
        %v3959 = vunpack.c.l.b16 %v3831
        %v3960 = vunpack.c.l.b16 %v3861
        %v3961 = vunpack.c.l.b16 %v3881
        %v3962 = vpack.c.b16 %v3960, %v3959
        %v3963 = vpack.c.b16 %v3961, %v3961
        %3964 = vrot.lane.b32.xlu0 %v3962, 36
        %v3965 = vpop.permute.xlu0 %3964
        %3966 = vrot.lane.b32.xlu0 %v3963, 36
        %v3967 = vpop.permute.xlu0 %3966
        %v3970 = vsel %vm862, %v3885, %v3893
        %v3973 = vsel %vm862, %v3886, %v3895
        %v3975 = vsel %vm869, %v3970, %v3902
        %v3977 = vsel %vm869, %v3973, %v3904
        %v3979 = vsel %vm874, %v3975, %v3911
        %v3981 = vsel %vm874, %v3977, %v3913
        %v3983 = vsel %vm879, %v3979, %v3920
        %v3985 = vsel %vm879, %v3981, %v3922
        %v3987 = vsel %vm884, %v3983, %v3929
        %v3989 = vsel %vm884, %v3985, %v3931
        %v3991 = vsel %vm889, %v3987, %v3938
        %v3993 = vsel %vm889, %v3989, %v3940
        %v3995 = vsel %vm894, %v3991, %v3947
        %v3997 = vsel %vm894, %v3993, %v3949
        %v3999 = vsel %vm899, %v3995, %v3956
        %v4001 = vsel %vm899, %v3997, %v3958
        %v4003 = vsel %vm904, %v3999, %v3965
        %v4005 = vsel %vm904, %v4001, %v3967
        %vm4006 = vcmask 1042432
        %vm4007 = vcmask 1046532
        %vm4008 = vmor %vm4006, %vm4007
        %v4009 = vrot.slane %v402, 5
        %v4010 = vrot.slane %v4009, 4
        %v4011 = vrot.slane %v403, 5
        %v4012 = vsel %vm4008, %v4010, %v4011
        %v4013 = vrot.slane %v4011, 4
        %v4014 = vrot.slane %v404, 5
        %v4015 = vrot.slane %v4014, 4
        %v4016 = vrot.slane %v405, 5
        %v4017 = vsel %vm4008, %v4015, %v4016
        %v4018 = vrot.slane %v4016, 4
        %v4019 = vrot.slane %v406, 5
        %v4020 = vrot.slane %v4019, 4
        %v4021 = vrot.slane %v407, 5
        %v4022 = vsel %vm4008, %v4020, %v4021
        %v4023 = vrot.slane %v4021, 4
        %v4024 = vrot.slane %v408, 5
        %v4025 = vrot.slane %v4024, 4
        %v4026 = vrot.slane %v409, 5
        %v4027 = vsel %vm4008, %v4025, %v4026
        %v4028 = vrot.slane %v4026, 4
        %v4029 = vrot.slane %v410, 5
        %v4030 = vrot.slane %v4029, 4
        %v4031 = vrot.slane %v411, 5
        %v4032 = vsel %vm4008, %v4030, %v4031
        %v4033 = vrot.slane %v4031, 4
        %v4034 = vrot.slane %v412, 5
        %v4035 = vrot.slane %v4034, 4
        %v4036 = vrot.slane %v413, 5
        %v4037 = vsel %vm4008, %v4035, %v4036
        %v4038 = vrot.slane %v4036, 4
        %v4039 = vrot.slane %v414, 5
        %v4040 = vrot.slane %v4039, 4
        %v4041 = vrot.slane %v415, 5
        %v4042 = vsel %vm4008, %v4040, %v4041
        %v4043 = vrot.slane %v4041, 4
        %v4044 = vrot.slane %v416, 5
        %v4045 = vrot.slane %v4044, 4
        %v4046 = vrot.slane %v417, 5
        %v4047 = vsel %vm4008, %v4045, %v4046
        %v4048 = vrot.slane %v4046, 4
        %v4049 = vrot.slane %v418, 5
        %v4050 = vrot.slane %v4049, 4
        %v4051 = vrot.slane %v419, 5
        %v4052 = vsel %vm4008, %v4050, %v4051
        %v4053 = vrot.slane %v4051, 4
        %v4054 = vrot.slane %v420, 5
        %v4055 = vrot.slane %v4054, 4
        %v4056 = vrot.slane %v421, 5
        %v4057 = vsel %vm4008, %v4055, %v4056
        %v4058 = vrot.slane %v4056, 4
        %v4059 = vrot.slane %v422, 5
        %v4060 = vrot.slane %v4059, 4
        %v4061 = vrot.slane %v423, 5
        %v4062 = vsel %vm4008, %v4060, %v4061
        %v4063 = vrot.slane %v4061, 4
        %v4064 = vrot.slane %v424, 5
        %v4065 = vrot.slane %v4064, 4
        %v4066 = vrot.slane %v425, 5
        %v4067 = vsel %vm4008, %v4065, %v4066
        %v4068 = vrot.slane %v4066, 4
        %v4069 = vrot.slane %v426, 5
        %v4070 = vrot.slane %v4069, 4
        %v4071 = vrot.slane %v427, 5
        %v4072 = vsel %vm4008, %v4070, %v4071
        %v4073 = vrot.slane %v4071, 4
        %v4074 = vrot.slane %v428, 5
        %v4075 = vrot.slane %v4074, 4
        %v4076 = vrot.slane %v429, 5
        %v4077 = vsel %vm4008, %v4075, %v4076
        %v4078 = vrot.slane %v4076, 4
        %v4079 = vrot.slane %v430, 5
        %v4080 = vrot.slane %v4079, 4
        %v4081 = vrot.slane %v431, 5
        %v4082 = vsel %vm4008, %v4080, %v4081
        %v4083 = vrot.slane %v4081, 4
        %v4084 = vrot.slane %v432, 5
        %v4085 = vrot.slane %v4084, 4
        %v4086 = vrot.slane %v433, 5
        %v4087 = vsel %vm4008, %v4085, %v4086
        %v4088 = vrot.slane %v4086, 4
        %v4089 = vrot.slane %v434, 5
        %v4090 = vrot.slane %v4089, 4
        %v4091 = vrot.slane %v435, 5
        %v4092 = vsel %vm4008, %v4090, %v4091
        %v4093 = vrot.slane %v4091, 4
        %v4126 = vcombine.low %v4012, %v4032
        %v4128 = vunpack.c.l.s4 1983009808
        %v4129 = vunpack.c.0.s8 %v4128
        %v4130 = vlaneseq
        %v4131 = vshrl.u32 %v4130, 7
        %v4132 = vsub.s32 %v4129, %v4131
        %v4133 = vrot.slane %v4126, %v4132
        %v4134 = vcombine.low %v4022, %v4042
        %v4136 = vunpack.c.l.s4 1983009808
        %v4137 = vunpack.c.0.s8 %v4136
        %v4138 = vlaneseq
        %v4139 = vshrl.u32 %v4138, 7
        %v4140 = vsub.s32 %v4137, %v4139
        %v4141 = vrot.slane %v4134, %v4140
        %v4142 = vcombine.low %v4133, %v4141
        %v4143 = vcombine.high %v4133, %v4141
        %v4145 = vunpack.c.l.s4 1934713408
        %v4146 = vunpack.c.0.s8 %v4145
        %v4147 = vlaneseq
        %v4148 = vshrl.u32 %v4147, 7
        %v4149 = vsub.s32 %v4146, %v4148
        %v4150 = vrot.slane %v4142, %v4149
        %v4152 = vunpack.c.l.s4 1934713408
        %v4153 = vunpack.c.0.s8 %v4152
        %v4154 = vlaneseq
        %v4155 = vshrl.u32 %v4154, 7
        %v4156 = vsub.s32 %v4153, %v4155
        %v4157 = vrot.slane %v4143, %v4156
        %v4158 = vcombine.high %v4150, 0
        %v4159 = vcombine.high %v4157, 0
        %v4160 = vcombine.low %v4017, %v4037
        %v4162 = vunpack.c.l.s4 1983009808
        %v4163 = vunpack.c.0.s8 %v4162
        %v4164 = vlaneseq
        %v4165 = vshrl.u32 %v4164, 7
        %v4166 = vsub.s32 %v4163, %v4165
        %v4167 = vrot.slane %v4160, %v4166
        %v4168 = vcombine.low %v4027, %v4047
        %v4170 = vunpack.c.l.s4 1983009808
        %v4171 = vunpack.c.0.s8 %v4170
        %v4172 = vlaneseq
        %v4173 = vshrl.u32 %v4172, 7
        %v4174 = vsub.s32 %v4171, %v4173
        %v4175 = vrot.slane %v4168, %v4174
        %v4176 = vcombine.low %v4167, %v4175
        %v4177 = vcombine.high %v4167, %v4175
        %v4179 = vunpack.c.l.s4 1934713408
        %v4180 = vunpack.c.0.s8 %v4179
        %v4181 = vlaneseq
        %v4182 = vshrl.u32 %v4181, 7
        %v4183 = vsub.s32 %v4180, %v4182
        %v4184 = vrot.slane %v4176, %v4183
        %v4186 = vunpack.c.l.s4 1934713408
        %v4187 = vunpack.c.0.s8 %v4186
        %v4188 = vlaneseq
        %v4189 = vshrl.u32 %v4188, 7
        %v4190 = vsub.s32 %v4187, %v4189
        %v4191 = vrot.slane %v4177, %v4190
        %v4192 = vcombine.high %v4184, 0
        %v4193 = vcombine.high %v4191, 0
        %v4194 = vcombine.low %v4052, %v4072
        %v4196 = vunpack.c.l.s4 1983009808
        %v4197 = vunpack.c.0.s8 %v4196
        %v4198 = vlaneseq
        %v4199 = vshrl.u32 %v4198, 7
        %v4200 = vsub.s32 %v4197, %v4199
        %v4201 = vrot.slane %v4194, %v4200
        %v4202 = vcombine.low %v4062, %v4082
        %v4204 = vunpack.c.l.s4 1983009808
        %v4205 = vunpack.c.0.s8 %v4204
        %v4206 = vlaneseq
        %v4207 = vshrl.u32 %v4206, 7
        %v4208 = vsub.s32 %v4205, %v4207
        %v4209 = vrot.slane %v4202, %v4208
        %v4210 = vcombine.low %v4201, %v4209
        %v4211 = vcombine.high %v4201, %v4209
        %v4213 = vunpack.c.l.s4 1934713408
        %v4214 = vunpack.c.0.s8 %v4213
        %v4215 = vlaneseq
        %v4216 = vshrl.u32 %v4215, 7
        %v4217 = vsub.s32 %v4214, %v4216
        %v4218 = vrot.slane %v4210, %v4217
        %v4220 = vunpack.c.l.s4 1934713408
        %v4221 = vunpack.c.0.s8 %v4220
        %v4222 = vlaneseq
        %v4223 = vshrl.u32 %v4222, 7
        %v4224 = vsub.s32 %v4221, %v4223
        %v4225 = vrot.slane %v4211, %v4224
        %v4226 = vcombine.high %v4218, 0
        %v4227 = vcombine.high %v4225, 0
        %v4228 = vcombine.low %v4057, %v4077
        %v4230 = vunpack.c.l.s4 1983009808
        %v4231 = vunpack.c.0.s8 %v4230
        %v4232 = vlaneseq
        %v4233 = vshrl.u32 %v4232, 7
        %v4234 = vsub.s32 %v4231, %v4233
        %v4235 = vrot.slane %v4228, %v4234
        %v4236 = vcombine.low %v4067, %v4087
        %v4238 = vunpack.c.l.s4 1983009808
        %v4239 = vunpack.c.0.s8 %v4238
        %v4240 = vlaneseq
        %v4241 = vshrl.u32 %v4240, 7
        %v4242 = vsub.s32 %v4239, %v4241
        %v4243 = vrot.slane %v4236, %v4242
        %v4244 = vcombine.low %v4235, %v4243
        %v4245 = vcombine.high %v4235, %v4243
        %v4247 = vunpack.c.l.s4 1934713408
        %v4248 = vunpack.c.0.s8 %v4247
        %v4249 = vlaneseq
        %v4250 = vshrl.u32 %v4249, 7
        %v4251 = vsub.s32 %v4248, %v4250
        %v4252 = vrot.slane %v4244, %v4251
        %v4254 = vunpack.c.l.s4 1934713408
        %v4255 = vunpack.c.0.s8 %v4254
        %v4256 = vlaneseq
        %v4257 = vshrl.u32 %v4256, 7
        %v4258 = vsub.s32 %v4255, %v4257
        %v4259 = vrot.slane %v4245, %v4258
        %v4260 = vcombine.high %v4252, 0
        %v4261 = vcombine.high %v4259, 0
        %v4264 = vunpack.c.l.s4 1983009808
        %v4265 = vunpack.c.0.s8 %v4264
        %v4266 = vlaneseq
        %v4267 = vshrl.u32 %v4266, 7
        %v4268 = vsub.s32 %v4265, %v4267
        %v4269 = vrot.slane %v4092, %v4268
        %v4270 = vcombine.high %v4269, 0
        %v4272 = vunpack.c.l.s4 1934713408
        %v4273 = vunpack.c.0.s8 %v4272
        %v4274 = vlaneseq
        %v4275 = vshrl.u32 %v4274, 7
        %v4276 = vsub.s32 %v4273, %v4275
        %v4277 = vrot.slane %v4269, %v4276
        %v4279 = vunpack.c.l.s4 1934713408
        %v4280 = vunpack.c.0.s8 %v4279
        %v4281 = vlaneseq
        %v4282 = vshrl.u32 %v4281, 7
        %v4283 = vsub.s32 %v4280, %v4282
        %v4284 = vrot.slane %v4270, %v4283
        %v4285 = vcombine.high %v4277, 0
        %v4286 = vcombine.high %v4284, 0
        %v4287 = vcombine.low %v4013, %v4033
        %v4289 = vunpack.c.l.s4 1983009808
        %v4290 = vunpack.c.0.s8 %v4289
        %v4291 = vlaneseq
        %v4292 = vshrl.u32 %v4291, 7
        %v4293 = vsub.s32 %v4290, %v4292
        %v4294 = vrot.slane %v4287, %v4293
        %v4295 = vcombine.low %v4023, %v4043
        %v4297 = vunpack.c.l.s4 1983009808
        %v4298 = vunpack.c.0.s8 %v4297
        %v4299 = vlaneseq
        %v4300 = vshrl.u32 %v4299, 7
        %v4301 = vsub.s32 %v4298, %v4300
        %v4302 = vrot.slane %v4295, %v4301
        %v4303 = vcombine.low %v4294, %v4302
        %v4305 = vunpack.c.l.s4 1934713408
        %v4306 = vunpack.c.0.s8 %v4305
        %v4307 = vlaneseq
        %v4308 = vshrl.u32 %v4307, 7
        %v4309 = vsub.s32 %v4306, %v4308
        %v4310 = vrot.slane %v4303, %v4309
        %v4311 = vcombine.low %v4018, %v4038
        %v4313 = vunpack.c.l.s4 1983009808
        %v4314 = vunpack.c.0.s8 %v4313
        %v4315 = vlaneseq
        %v4316 = vshrl.u32 %v4315, 7
        %v4317 = vsub.s32 %v4314, %v4316
        %v4318 = vrot.slane %v4311, %v4317
        %v4319 = vcombine.low %v4028, %v4048
        %v4321 = vunpack.c.l.s4 1983009808
        %v4322 = vunpack.c.0.s8 %v4321
        %v4323 = vlaneseq
        %v4324 = vshrl.u32 %v4323, 7
        %v4325 = vsub.s32 %v4322, %v4324
        %v4326 = vrot.slane %v4319, %v4325
        %v4327 = vcombine.low %v4318, %v4326
        %v4329 = vunpack.c.l.s4 1934713408
        %v4330 = vunpack.c.0.s8 %v4329
        %v4331 = vlaneseq
        %v4332 = vshrl.u32 %v4331, 7
        %v4333 = vsub.s32 %v4330, %v4332
        %v4334 = vrot.slane %v4327, %v4333
        %v4335 = vcombine.low %v4053, %v4073
        %v4337 = vunpack.c.l.s4 1983009808
        %v4338 = vunpack.c.0.s8 %v4337
        %v4339 = vlaneseq
        %v4340 = vshrl.u32 %v4339, 7
        %v4341 = vsub.s32 %v4338, %v4340
        %v4342 = vrot.slane %v4335, %v4341
        %v4343 = vcombine.low %v4063, %v4083
        %v4345 = vunpack.c.l.s4 1983009808
        %v4346 = vunpack.c.0.s8 %v4345
        %v4347 = vlaneseq
        %v4348 = vshrl.u32 %v4347, 7
        %v4349 = vsub.s32 %v4346, %v4348
        %v4350 = vrot.slane %v4343, %v4349
        %v4351 = vcombine.low %v4342, %v4350
        %v4353 = vunpack.c.l.s4 1934713408
        %v4354 = vunpack.c.0.s8 %v4353
        %v4355 = vlaneseq
        %v4356 = vshrl.u32 %v4355, 7
        %v4357 = vsub.s32 %v4354, %v4356
        %v4358 = vrot.slane %v4351, %v4357
        %v4359 = vcombine.low %v4058, %v4078
        %v4361 = vunpack.c.l.s4 1983009808
        %v4362 = vunpack.c.0.s8 %v4361
        %v4363 = vlaneseq
        %v4364 = vshrl.u32 %v4363, 7
        %v4365 = vsub.s32 %v4362, %v4364
        %v4366 = vrot.slane %v4359, %v4365
        %v4367 = vcombine.low %v4068, %v4088
        %v4369 = vunpack.c.l.s4 1983009808
        %v4370 = vunpack.c.0.s8 %v4369
        %v4371 = vlaneseq
        %v4372 = vshrl.u32 %v4371, 7
        %v4373 = vsub.s32 %v4370, %v4372
        %v4374 = vrot.slane %v4367, %v4373
        %v4375 = vcombine.low %v4366, %v4374
        %v4377 = vunpack.c.l.s4 1934713408
        %v4378 = vunpack.c.0.s8 %v4377
        %v4379 = vlaneseq
        %v4380 = vshrl.u32 %v4379, 7
        %v4381 = vsub.s32 %v4378, %v4380
        %v4382 = vrot.slane %v4375, %v4381
        %v4385 = vpack.i.b16 %v4184, %v4150
        %v4386 = vshrl.u32 %v4150, 16
        %v4387 = vshrl.u32 %v4184, 16
        %v4388 = vpack.i.b16 %v4387, %v4386
        %v4391 = vpack.i.b16 %v4192, %v4158
        %v4392 = vshrl.u32 %v4158, 16
        %v4393 = vshrl.u32 %v4192, 16
        %v4394 = vpack.i.b16 %v4393, %v4392
        %v4397 = vpack.i.b16 %v4191, %v4157
        %v4398 = vshrl.u32 %v4157, 16
        %v4399 = vshrl.u32 %v4191, 16
        %v4400 = vpack.i.b16 %v4399, %v4398
        %v4403 = vpack.i.b16 %v4193, %v4159
        %v4404 = vshrl.u32 %v4159, 16
        %v4405 = vshrl.u32 %v4193, 16
        %v4406 = vpack.i.b16 %v4405, %v4404
        %v4409 = vpack.i.b16 %v4334, %v4310
        %v4410 = vshrl.u32 %v4310, 16
        %v4411 = vshrl.u32 %v4334, 16
        %v4412 = vpack.i.b16 %v4411, %v4410
        %v4415 = vpack.i.b16 %v4252, %v4218
        %v4416 = vshrl.u32 %v4218, 16
        %v4417 = vshrl.u32 %v4252, 16
        %v4418 = vpack.i.b16 %v4417, %v4416
        %v4421 = vpack.i.b16 %v4260, %v4226
        %v4422 = vshrl.u32 %v4226, 16
        %v4423 = vshrl.u32 %v4260, 16
        %v4424 = vpack.i.b16 %v4423, %v4422
        %v4427 = vpack.i.b16 %v4259, %v4225
        %v4428 = vshrl.u32 %v4225, 16
        %v4429 = vshrl.u32 %v4259, 16
        %v4430 = vpack.i.b16 %v4429, %v4428
        %v4433 = vpack.i.b16 %v4261, %v4227
        %v4434 = vshrl.u32 %v4227, 16
        %v4435 = vshrl.u32 %v4261, 16
        %v4436 = vpack.i.b16 %v4435, %v4434
        %v4439 = vpack.i.b16 %v4382, %v4358
        %v4440 = vshrl.u32 %v4358, 16
        %v4441 = vshrl.u32 %v4382, 16
        %v4442 = vpack.i.b16 %v4441, %v4440
        %v4444 = vpack.i.b16 0, %v4277
        %v4445 = vshrl.u32 %v4277, 16
        %v4446 = vpack.i.b16 %v758, %v4445
        %v4448 = vpack.i.b16 0, %v4285
        %v4449 = vshrl.u32 %v4285, 16
        %v4450 = vpack.i.b16 %v758, %v4449
        %v4452 = vpack.i.b16 0, %v4284
        %v4453 = vshrl.u32 %v4284, 16
        %v4454 = vpack.i.b16 %v758, %v4453
        %v4456 = vpack.i.b16 0, %v4286
        %v4457 = vshrl.u32 %v4286, 16
        %v4458 = vpack.i.b16 %v758, %v4457
        %v4460 = vpack.i.b16 0, %v4093
        %v4461 = vshrl.u32 %v4093, 16
        %v4462 = vpack.i.b16 %v758, %v4461
        %v4463 = vunpack.c.l.b16 %v4385
        %v4464 = vunpack.c.l.b16 %v4415
        %v4465 = vunpack.c.l.b16 %v4444
        %v4466 = vpack.c.b16 %v4464, %v4463
        %v4467 = vpack.c.b16 %v4465, %v4465
        %v4468 = vunpack.c.l.b16 %v4388
        %v4469 = vunpack.c.l.b16 %v4418
        %v4470 = vunpack.c.l.b16 %v4446
        %v4471 = vpack.c.b16 %v4469, %v4468
        %v4472 = vpack.c.b16 %v4470, %v4470
        %4473 = vrot.lane.b32.xlu0 %v4471, 4
        %v4474 = vpop.permute.xlu0 %4473
        %4475 = vrot.lane.b32.xlu0 %v4472, 4
        %v4476 = vpop.permute.xlu0 %4475
        %v4477 = vunpack.c.l.b16 %v4391
        %v4478 = vunpack.c.l.b16 %v4421
        %v4479 = vunpack.c.l.b16 %v4448
        %v4480 = vpack.c.b16 %v4478, %v4477
        %v4481 = vpack.c.b16 %v4479, %v4479
        %4482 = vrot.lane.b32.xlu0 %v4480, 8
        %v4483 = vpop.permute.xlu0 %4482
        %4484 = vrot.lane.b32.xlu0 %v4481, 8
        %v4485 = vpop.permute.xlu0 %4484
        %v4486 = vunpack.c.l.b16 %v4394
        %v4487 = vunpack.c.l.b16 %v4424
        %v4488 = vunpack.c.l.b16 %v4450
        %v4489 = vpack.c.b16 %v4487, %v4486
        %v4490 = vpack.c.b16 %v4488, %v4488
        %4491 = vrot.lane.b32.xlu0 %v4489, 12
        %v4492 = vpop.permute.xlu0 %4491
        %4493 = vrot.lane.b32.xlu0 %v4490, 12
        %v4494 = vpop.permute.xlu0 %4493
        %v4495 = vunpack.c.l.b16 %v4397
        %v4496 = vunpack.c.l.b16 %v4427
        %v4497 = vunpack.c.l.b16 %v4452
        %v4498 = vpack.c.b16 %v4496, %v4495
        %v4499 = vpack.c.b16 %v4497, %v4497
        %4500 = vrot.lane.b32.xlu0 %v4498, 16
        %v4501 = vpop.permute.xlu0 %4500
        %4502 = vrot.lane.b32.xlu0 %v4499, 16
        %v4503 = vpop.permute.xlu0 %4502
        %v4504 = vunpack.c.l.b16 %v4400
        %v4505 = vunpack.c.l.b16 %v4430
        %v4506 = vunpack.c.l.b16 %v4454
        %v4507 = vpack.c.b16 %v4505, %v4504
        %v4508 = vpack.c.b16 %v4506, %v4506
        %4509 = vrot.lane.b32.xlu0 %v4507, 20
        %v4510 = vpop.permute.xlu0 %4509
        %4511 = vrot.lane.b32.xlu0 %v4508, 20
        %v4512 = vpop.permute.xlu0 %4511
        %v4513 = vunpack.c.l.b16 %v4403
        %v4514 = vunpack.c.l.b16 %v4433
        %v4515 = vunpack.c.l.b16 %v4456
        %v4516 = vpack.c.b16 %v4514, %v4513
        %v4517 = vpack.c.b16 %v4515, %v4515
        %4518 = vrot.lane.b32.xlu0 %v4516, 24
        %v4519 = vpop.permute.xlu0 %4518
        %4520 = vrot.lane.b32.xlu0 %v4517, 24
        %v4521 = vpop.permute.xlu0 %4520
        %v4522 = vunpack.c.l.b16 %v4406
        %v4523 = vunpack.c.l.b16 %v4436
        %v4524 = vunpack.c.l.b16 %v4458
        %v4525 = vpack.c.b16 %v4523, %v4522
        %v4526 = vpack.c.b16 %v4524, %v4524
        %4527 = vrot.lane.b32.xlu0 %v4525, 28
        %v4528 = vpop.permute.xlu0 %4527
        %4529 = vrot.lane.b32.xlu0 %v4526, 28
        %v4530 = vpop.permute.xlu0 %4529
        %v4531 = vunpack.c.l.b16 %v4409
        %v4532 = vunpack.c.l.b16 %v4439
        %v4533 = vunpack.c.l.b16 %v4460
        %v4534 = vpack.c.b16 %v4532, %v4531
        %v4535 = vpack.c.b16 %v4533, %v4533
        %4536 = vrot.lane.b32.xlu0 %v4534, 32
        %v4537 = vpop.permute.xlu0 %4536
        %4538 = vrot.lane.b32.xlu0 %v4535, 32
        %v4539 = vpop.permute.xlu0 %4538
        %v4540 = vunpack.c.l.b16 %v4412
        %v4541 = vunpack.c.l.b16 %v4442
        %v4542 = vunpack.c.l.b16 %v4462
        %v4543 = vpack.c.b16 %v4541, %v4540
        %v4544 = vpack.c.b16 %v4542, %v4542
        %4545 = vrot.lane.b32.xlu0 %v4543, 36
        %v4546 = vpop.permute.xlu0 %4545
        %4547 = vrot.lane.b32.xlu0 %v4544, 36
        %v4548 = vpop.permute.xlu0 %4547
        %v4551 = vsel %vm862, %v4466, %v4474
        %v4554 = vsel %vm862, %v4467, %v4476
        %v4556 = vsel %vm869, %v4551, %v4483
        %v4558 = vsel %vm869, %v4554, %v4485
        %v4560 = vsel %vm874, %v4556, %v4492
        %v4562 = vsel %vm874, %v4558, %v4494
        %v4564 = vsel %vm879, %v4560, %v4501
        %v4566 = vsel %vm879, %v4562, %v4503
        %v4568 = vsel %vm884, %v4564, %v4510
        %v4570 = vsel %vm884, %v4566, %v4512
        %v4572 = vsel %vm889, %v4568, %v4519
        %v4574 = vsel %vm889, %v4570, %v4521
        %v4576 = vsel %vm894, %v4572, %v4528
        %v4578 = vsel %vm894, %v4574, %v4530
        %v4580 = vsel %vm899, %v4576, %v4537
        %v4582 = vsel %vm899, %v4578, %v4539
        %v4584 = vsel %vm904, %v4580, %v4546
        %v4586 = vsel %vm904, %v4582, %v4548
        %4587 = vrot.lane.b32.xlu0 %v4012, 127
        %v4588 = vpop.permute.xlu0 %4587
        %4589 = vrot.lane.b32.xlu0 %v4013, 127
        %v4590 = vpop.permute.xlu0 %4589
        %4591 = vrot.lane.b32.xlu0 %v4017, 127
        %v4592 = vpop.permute.xlu0 %4591
        %4593 = vrot.lane.b32.xlu0 %v4018, 127
        %v4594 = vpop.permute.xlu0 %4593
        %4595 = vrot.lane.b32.xlu0 %v4022, 127
        %v4596 = vpop.permute.xlu0 %4595
        %4597 = vrot.lane.b32.xlu0 %v4023, 127
        %v4598 = vpop.permute.xlu0 %4597
        %4599 = vrot.lane.b32.xlu0 %v4027, 127
        %v4600 = vpop.permute.xlu0 %4599
        %4601 = vrot.lane.b32.xlu0 %v4028, 127
        %v4602 = vpop.permute.xlu0 %4601
        %4603 = vrot.lane.b32.xlu0 %v4032, 127
        %v4604 = vpop.permute.xlu0 %4603
        %4605 = vrot.lane.b32.xlu0 %v4033, 127
        %v4606 = vpop.permute.xlu0 %4605
        %4607 = vrot.lane.b32.xlu0 %v4037, 127
        %v4608 = vpop.permute.xlu0 %4607
        %4609 = vrot.lane.b32.xlu0 %v4038, 127
        %v4610 = vpop.permute.xlu0 %4609
        %4611 = vrot.lane.b32.xlu0 %v4042, 127
        %v4612 = vpop.permute.xlu0 %4611
        %4613 = vrot.lane.b32.xlu0 %v4043, 127
        %v4614 = vpop.permute.xlu0 %4613
        %4615 = vrot.lane.b32.xlu0 %v4047, 127
        %v4616 = vpop.permute.xlu0 %4615
        %4617 = vrot.lane.b32.xlu0 %v4048, 127
        %v4618 = vpop.permute.xlu0 %4617
        %4619 = vrot.lane.b32.xlu0 %v4052, 127
        %v4620 = vpop.permute.xlu0 %4619
        %4621 = vrot.lane.b32.xlu0 %v4053, 127
        %v4622 = vpop.permute.xlu0 %4621
        %4623 = vrot.lane.b32.xlu0 %v4057, 127
        %v4624 = vpop.permute.xlu0 %4623
        %4625 = vrot.lane.b32.xlu0 %v4058, 127
        %v4626 = vpop.permute.xlu0 %4625
        %4627 = vrot.lane.b32.xlu0 %v4062, 127
        %v4628 = vpop.permute.xlu0 %4627
        %4629 = vrot.lane.b32.xlu0 %v4063, 127
        %v4630 = vpop.permute.xlu0 %4629
        %4631 = vrot.lane.b32.xlu0 %v4067, 127
        %v4632 = vpop.permute.xlu0 %4631
        %4633 = vrot.lane.b32.xlu0 %v4068, 127
        %v4634 = vpop.permute.xlu0 %4633
        %4635 = vrot.lane.b32.xlu0 %v4072, 127
        %v4636 = vpop.permute.xlu0 %4635
        %4637 = vrot.lane.b32.xlu0 %v4073, 127
        %v4638 = vpop.permute.xlu0 %4637
        %4639 = vrot.lane.b32.xlu0 %v4077, 127
        %v4640 = vpop.permute.xlu0 %4639
        %4641 = vrot.lane.b32.xlu0 %v4078, 127
        %v4642 = vpop.permute.xlu0 %4641
        %4643 = vrot.lane.b32.xlu0 %v4082, 127
        %v4644 = vpop.permute.xlu0 %4643
        %4645 = vrot.lane.b32.xlu0 %v4083, 127
        %v4646 = vpop.permute.xlu0 %4645
        %4647 = vrot.lane.b32.xlu0 %v4087, 127
        %v4648 = vpop.permute.xlu0 %4647
        %4649 = vrot.lane.b32.xlu0 %v4088, 127
        %v4650 = vpop.permute.xlu0 %4649
        %4651 = vrot.lane.b32.xlu0 %v4092, 127
        %v4652 = vpop.permute.xlu0 %4651
        %4653 = vrot.lane.b32.xlu0 %v4093, 127
        %v4654 = vpop.permute.xlu0 %4653
        %v4687 = vcombine.low %v4588, %v4604
        %v4689 = vunpack.c.l.s4 1983009808
        %v4690 = vunpack.c.0.s8 %v4689
        %v4691 = vlaneseq
        %v4692 = vshrl.u32 %v4691, 7
        %v4693 = vsub.s32 %v4690, %v4692
        %v4694 = vrot.slane %v4687, %v4693
        %v4695 = vcombine.low %v4596, %v4612
        %v4697 = vunpack.c.l.s4 1983009808
        %v4698 = vunpack.c.0.s8 %v4697
        %v4699 = vlaneseq
        %v4700 = vshrl.u32 %v4699, 7
        %v4701 = vsub.s32 %v4698, %v4700
        %v4702 = vrot.slane %v4695, %v4701
        %v4703 = vcombine.low %v4694, %v4702
        %v4704 = vcombine.high %v4694, %v4702
        %v4706 = vunpack.c.l.s4 1934713408
        %v4707 = vunpack.c.0.s8 %v4706
        %v4708 = vlaneseq
        %v4709 = vshrl.u32 %v4708, 7
        %v4710 = vsub.s32 %v4707, %v4709
        %v4711 = vrot.slane %v4703, %v4710
        %v4713 = vunpack.c.l.s4 1934713408
        %v4714 = vunpack.c.0.s8 %v4713
        %v4715 = vlaneseq
        %v4716 = vshrl.u32 %v4715, 7
        %v4717 = vsub.s32 %v4714, %v4716
        %v4718 = vrot.slane %v4704, %v4717
        %v4719 = vcombine.high %v4711, 0
        %v4720 = vcombine.high %v4718, 0
        %v4721 = vcombine.low %v4592, %v4608
        %v4723 = vunpack.c.l.s4 1983009808
        %v4724 = vunpack.c.0.s8 %v4723
        %v4725 = vlaneseq
        %v4726 = vshrl.u32 %v4725, 7
        %v4727 = vsub.s32 %v4724, %v4726
        %v4728 = vrot.slane %v4721, %v4727
        %v4729 = vcombine.low %v4600, %v4616
        %v4731 = vunpack.c.l.s4 1983009808
        %v4732 = vunpack.c.0.s8 %v4731
        %v4733 = vlaneseq
        %v4734 = vshrl.u32 %v4733, 7
        %v4735 = vsub.s32 %v4732, %v4734
        %v4736 = vrot.slane %v4729, %v4735
        %v4737 = vcombine.low %v4728, %v4736
        %v4738 = vcombine.high %v4728, %v4736
        %v4740 = vunpack.c.l.s4 1934713408
        %v4741 = vunpack.c.0.s8 %v4740
        %v4742 = vlaneseq
        %v4743 = vshrl.u32 %v4742, 7
        %v4744 = vsub.s32 %v4741, %v4743
        %v4745 = vrot.slane %v4737, %v4744
        %v4747 = vunpack.c.l.s4 1934713408
        %v4748 = vunpack.c.0.s8 %v4747
        %v4749 = vlaneseq
        %v4750 = vshrl.u32 %v4749, 7
        %v4751 = vsub.s32 %v4748, %v4750
        %v4752 = vrot.slane %v4738, %v4751
        %v4753 = vcombine.high %v4745, 0
        %v4754 = vcombine.high %v4752, 0
        %v4755 = vcombine.low %v4620, %v4636
        %v4757 = vunpack.c.l.s4 1983009808
        %v4758 = vunpack.c.0.s8 %v4757
        %v4759 = vlaneseq
        %v4760 = vshrl.u32 %v4759, 7
        %v4761 = vsub.s32 %v4758, %v4760
        %v4762 = vrot.slane %v4755, %v4761
        %v4763 = vcombine.low %v4628, %v4644
        %v4765 = vunpack.c.l.s4 1983009808
        %v4766 = vunpack.c.0.s8 %v4765
        %v4767 = vlaneseq
        %v4768 = vshrl.u32 %v4767, 7
        %v4769 = vsub.s32 %v4766, %v4768
        %v4770 = vrot.slane %v4763, %v4769
        %v4771 = vcombine.low %v4762, %v4770
        %v4772 = vcombine.high %v4762, %v4770
        %v4774 = vunpack.c.l.s4 1934713408
        %v4775 = vunpack.c.0.s8 %v4774
        %v4776 = vlaneseq
        %v4777 = vshrl.u32 %v4776, 7
        %v4778 = vsub.s32 %v4775, %v4777
        %v4779 = vrot.slane %v4771, %v4778
        %v4781 = vunpack.c.l.s4 1934713408
        %v4782 = vunpack.c.0.s8 %v4781
        %v4783 = vlaneseq
        %v4784 = vshrl.u32 %v4783, 7
        %v4785 = vsub.s32 %v4782, %v4784
        %v4786 = vrot.slane %v4772, %v4785
        %v4787 = vcombine.high %v4779, 0
        %v4788 = vcombine.high %v4786, 0
        %v4789 = vcombine.low %v4624, %v4640
        %v4791 = vunpack.c.l.s4 1983009808
        %v4792 = vunpack.c.0.s8 %v4791
        %v4793 = vlaneseq
        %v4794 = vshrl.u32 %v4793, 7
        %v4795 = vsub.s32 %v4792, %v4794
        %v4796 = vrot.slane %v4789, %v4795
        %v4797 = vcombine.low %v4632, %v4648
        %v4799 = vunpack.c.l.s4 1983009808
        %v4800 = vunpack.c.0.s8 %v4799
        %v4801 = vlaneseq
        %v4802 = vshrl.u32 %v4801, 7
        %v4803 = vsub.s32 %v4800, %v4802
        %v4804 = vrot.slane %v4797, %v4803
        %v4805 = vcombine.low %v4796, %v4804
        %v4806 = vcombine.high %v4796, %v4804
        %v4808 = vunpack.c.l.s4 1934713408
        %v4809 = vunpack.c.0.s8 %v4808
        %v4810 = vlaneseq
        %v4811 = vshrl.u32 %v4810, 7
        %v4812 = vsub.s32 %v4809, %v4811
        %v4813 = vrot.slane %v4805, %v4812
        %v4815 = vunpack.c.l.s4 1934713408
        %v4816 = vunpack.c.0.s8 %v4815
        %v4817 = vlaneseq
        %v4818 = vshrl.u32 %v4817, 7
        %v4819 = vsub.s32 %v4816, %v4818
        %v4820 = vrot.slane %v4806, %v4819
        %v4821 = vcombine.high %v4813, 0
        %v4822 = vcombine.high %v4820, 0
        %v4825 = vunpack.c.l.s4 1983009808
        %v4826 = vunpack.c.0.s8 %v4825
        %v4827 = vlaneseq
        %v4828 = vshrl.u32 %v4827, 7
        %v4829 = vsub.s32 %v4826, %v4828
        %v4830 = vrot.slane %v4652, %v4829
        %v4831 = vcombine.high %v4830, 0
        %v4833 = vunpack.c.l.s4 1934713408
        %v4834 = vunpack.c.0.s8 %v4833
        %v4835 = vlaneseq
        %v4836 = vshrl.u32 %v4835, 7
        %v4837 = vsub.s32 %v4834, %v4836
        %v4838 = vrot.slane %v4830, %v4837
        %v4840 = vunpack.c.l.s4 1934713408
        %v4841 = vunpack.c.0.s8 %v4840
        %v4842 = vlaneseq
        %v4843 = vshrl.u32 %v4842, 7
        %v4844 = vsub.s32 %v4841, %v4843
        %v4845 = vrot.slane %v4831, %v4844
        %v4846 = vcombine.high %v4838, 0
        %v4847 = vcombine.high %v4845, 0
        %v4848 = vcombine.low %v4590, %v4606
        %v4850 = vunpack.c.l.s4 1983009808
        %v4851 = vunpack.c.0.s8 %v4850
        %v4852 = vlaneseq
        %v4853 = vshrl.u32 %v4852, 7
        %v4854 = vsub.s32 %v4851, %v4853
        %v4855 = vrot.slane %v4848, %v4854
        %v4856 = vcombine.low %v4598, %v4614
        %v4858 = vunpack.c.l.s4 1983009808
        %v4859 = vunpack.c.0.s8 %v4858
        %v4860 = vlaneseq
        %v4861 = vshrl.u32 %v4860, 7
        %v4862 = vsub.s32 %v4859, %v4861
        %v4863 = vrot.slane %v4856, %v4862
        %v4864 = vcombine.low %v4855, %v4863
        %v4866 = vunpack.c.l.s4 1934713408
        %v4867 = vunpack.c.0.s8 %v4866
        %v4868 = vlaneseq
        %v4869 = vshrl.u32 %v4868, 7
        %v4870 = vsub.s32 %v4867, %v4869
        %v4871 = vrot.slane %v4864, %v4870
        %v4872 = vcombine.low %v4594, %v4610
        %v4874 = vunpack.c.l.s4 1983009808
        %v4875 = vunpack.c.0.s8 %v4874
        %v4876 = vlaneseq
        %v4877 = vshrl.u32 %v4876, 7
        %v4878 = vsub.s32 %v4875, %v4877
        %v4879 = vrot.slane %v4872, %v4878
        %v4880 = vcombine.low %v4602, %v4618
        %v4882 = vunpack.c.l.s4 1983009808
        %v4883 = vunpack.c.0.s8 %v4882
        %v4884 = vlaneseq
        %v4885 = vshrl.u32 %v4884, 7
        %v4886 = vsub.s32 %v4883, %v4885
        %v4887 = vrot.slane %v4880, %v4886
        %v4888 = vcombine.low %v4879, %v4887
        %v4890 = vunpack.c.l.s4 1934713408
        %v4891 = vunpack.c.0.s8 %v4890
        %v4892 = vlaneseq
        %v4893 = vshrl.u32 %v4892, 7
        %v4894 = vsub.s32 %v4891, %v4893
        %v4895 = vrot.slane %v4888, %v4894
        %v4896 = vcombine.low %v4622, %v4638
        %v4898 = vunpack.c.l.s4 1983009808
        %v4899 = vunpack.c.0.s8 %v4898
        %v4900 = vlaneseq
        %v4901 = vshrl.u32 %v4900, 7
        %v4902 = vsub.s32 %v4899, %v4901
        %v4903 = vrot.slane %v4896, %v4902
        %v4904 = vcombine.low %v4630, %v4646
        %v4906 = vunpack.c.l.s4 1983009808
        %v4907 = vunpack.c.0.s8 %v4906
        %v4908 = vlaneseq
        %v4909 = vshrl.u32 %v4908, 7
        %v4910 = vsub.s32 %v4907, %v4909
        %v4911 = vrot.slane %v4904, %v4910
        %v4912 = vcombine.low %v4903, %v4911
        %v4914 = vunpack.c.l.s4 1934713408
        %v4915 = vunpack.c.0.s8 %v4914
        %v4916 = vlaneseq
        %v4917 = vshrl.u32 %v4916, 7
        %v4918 = vsub.s32 %v4915, %v4917
        %v4919 = vrot.slane %v4912, %v4918
        %v4920 = vcombine.low %v4626, %v4642
        %v4922 = vunpack.c.l.s4 1983009808
        %v4923 = vunpack.c.0.s8 %v4922
        %v4924 = vlaneseq
        %v4925 = vshrl.u32 %v4924, 7
        %v4926 = vsub.s32 %v4923, %v4925
        %v4927 = vrot.slane %v4920, %v4926
        %v4928 = vcombine.low %v4634, %v4650
        %v4930 = vunpack.c.l.s4 1983009808
        %v4931 = vunpack.c.0.s8 %v4930
        %v4932 = vlaneseq
        %v4933 = vshrl.u32 %v4932, 7
        %v4934 = vsub.s32 %v4931, %v4933
        %v4935 = vrot.slane %v4928, %v4934
        %v4936 = vcombine.low %v4927, %v4935
        %v4938 = vunpack.c.l.s4 1934713408
        %v4939 = vunpack.c.0.s8 %v4938
        %v4940 = vlaneseq
        %v4941 = vshrl.u32 %v4940, 7
        %v4942 = vsub.s32 %v4939, %v4941
        %v4943 = vrot.slane %v4936, %v4942
        %v4946 = vpack.i.b16 %v4745, %v4711
        %v4947 = vshrl.u32 %v4711, 16
        %v4948 = vshrl.u32 %v4745, 16
        %v4949 = vpack.i.b16 %v4948, %v4947
        %v4952 = vpack.i.b16 %v4753, %v4719
        %v4953 = vshrl.u32 %v4719, 16
        %v4954 = vshrl.u32 %v4753, 16
        %v4955 = vpack.i.b16 %v4954, %v4953
        %v4958 = vpack.i.b16 %v4752, %v4718
        %v4959 = vshrl.u32 %v4718, 16
        %v4960 = vshrl.u32 %v4752, 16
        %v4961 = vpack.i.b16 %v4960, %v4959
        %v4964 = vpack.i.b16 %v4754, %v4720
        %v4965 = vshrl.u32 %v4720, 16
        %v4966 = vshrl.u32 %v4754, 16
        %v4967 = vpack.i.b16 %v4966, %v4965
        %v4970 = vpack.i.b16 %v4895, %v4871
        %v4971 = vshrl.u32 %v4871, 16
        %v4972 = vshrl.u32 %v4895, 16
        %v4973 = vpack.i.b16 %v4972, %v4971
        %v4976 = vpack.i.b16 %v4813, %v4779
        %v4977 = vshrl.u32 %v4779, 16
        %v4978 = vshrl.u32 %v4813, 16
        %v4979 = vpack.i.b16 %v4978, %v4977
        %v4982 = vpack.i.b16 %v4821, %v4787
        %v4983 = vshrl.u32 %v4787, 16
        %v4984 = vshrl.u32 %v4821, 16
        %v4985 = vpack.i.b16 %v4984, %v4983
        %v4988 = vpack.i.b16 %v4820, %v4786
        %v4989 = vshrl.u32 %v4786, 16
        %v4990 = vshrl.u32 %v4820, 16
        %v4991 = vpack.i.b16 %v4990, %v4989
        %v4994 = vpack.i.b16 %v4822, %v4788
        %v4995 = vshrl.u32 %v4788, 16
        %v4996 = vshrl.u32 %v4822, 16
        %v4997 = vpack.i.b16 %v4996, %v4995
        %v5000 = vpack.i.b16 %v4943, %v4919
        %v5001 = vshrl.u32 %v4919, 16
        %v5002 = vshrl.u32 %v4943, 16
        %v5003 = vpack.i.b16 %v5002, %v5001
        %v5005 = vpack.i.b16 0, %v4838
        %v5006 = vshrl.u32 %v4838, 16
        %v5007 = vpack.i.b16 %v758, %v5006
        %v5009 = vpack.i.b16 0, %v4846
        %v5010 = vshrl.u32 %v4846, 16
        %v5011 = vpack.i.b16 %v758, %v5010
        %v5013 = vpack.i.b16 0, %v4845
        %v5014 = vshrl.u32 %v4845, 16
        %v5015 = vpack.i.b16 %v758, %v5014
        %v5017 = vpack.i.b16 0, %v4847
        %v5018 = vshrl.u32 %v4847, 16
        %v5019 = vpack.i.b16 %v758, %v5018
        %v5021 = vpack.i.b16 0, %v4654
        %v5022 = vshrl.u32 %v4654, 16
        %v5023 = vpack.i.b16 %v758, %v5022
        %v5024 = vunpack.c.l.b16 %v4946
        %v5025 = vunpack.c.l.b16 %v4976
        %v5026 = vunpack.c.l.b16 %v5005
        %v5027 = vpack.c.b16 %v5025, %v5024
        %v5028 = vpack.c.b16 %v5026, %v5026
        %v5029 = vunpack.c.l.b16 %v4949
        %v5030 = vunpack.c.l.b16 %v4979
        %v5031 = vunpack.c.l.b16 %v5007
        %v5032 = vpack.c.b16 %v5030, %v5029
        %v5033 = vpack.c.b16 %v5031, %v5031
        %5034 = vrot.lane.b32.xlu0 %v5032, 4
        %v5035 = vpop.permute.xlu0 %5034
        %5036 = vrot.lane.b32.xlu0 %v5033, 4
        %v5037 = vpop.permute.xlu0 %5036
        %v5038 = vunpack.c.l.b16 %v4952
        %v5039 = vunpack.c.l.b16 %v4982
        %v5040 = vunpack.c.l.b16 %v5009
        %v5041 = vpack.c.b16 %v5039, %v5038
        %v5042 = vpack.c.b16 %v5040, %v5040
        %5043 = vrot.lane.b32.xlu0 %v5041, 8
        %v5044 = vpop.permute.xlu0 %5043
        %5045 = vrot.lane.b32.xlu0 %v5042, 8
        %v5046 = vpop.permute.xlu0 %5045
        %v5047 = vunpack.c.l.b16 %v4955
        %v5048 = vunpack.c.l.b16 %v4985
        %v5049 = vunpack.c.l.b16 %v5011
        %v5050 = vpack.c.b16 %v5048, %v5047
        %v5051 = vpack.c.b16 %v5049, %v5049
        %5052 = vrot.lane.b32.xlu0 %v5050, 12
        %v5053 = vpop.permute.xlu0 %5052
        %5054 = vrot.lane.b32.xlu0 %v5051, 12
        %v5055 = vpop.permute.xlu0 %5054
        %v5056 = vunpack.c.l.b16 %v4958
        %v5057 = vunpack.c.l.b16 %v4988
        %v5058 = vunpack.c.l.b16 %v5013
        %v5059 = vpack.c.b16 %v5057, %v5056
        %v5060 = vpack.c.b16 %v5058, %v5058
        %5061 = vrot.lane.b32.xlu0 %v5059, 16
        %v5062 = vpop.permute.xlu0 %5061
        %5063 = vrot.lane.b32.xlu0 %v5060, 16
        %v5064 = vpop.permute.xlu0 %5063
        %v5065 = vunpack.c.l.b16 %v4961
        %v5066 = vunpack.c.l.b16 %v4991
        %v5067 = vunpack.c.l.b16 %v5015
        %v5068 = vpack.c.b16 %v5066, %v5065
        %v5069 = vpack.c.b16 %v5067, %v5067
        %5070 = vrot.lane.b32.xlu0 %v5068, 20
        %v5071 = vpop.permute.xlu0 %5070
        %5072 = vrot.lane.b32.xlu0 %v5069, 20
        %v5073 = vpop.permute.xlu0 %5072
        %v5074 = vunpack.c.l.b16 %v4964
        %v5075 = vunpack.c.l.b16 %v4994
        %v5076 = vunpack.c.l.b16 %v5017
        %v5077 = vpack.c.b16 %v5075, %v5074
        %v5078 = vpack.c.b16 %v5076, %v5076
        %5079 = vrot.lane.b32.xlu0 %v5077, 24
        %v5080 = vpop.permute.xlu0 %5079
        %5081 = vrot.lane.b32.xlu0 %v5078, 24
        %v5082 = vpop.permute.xlu0 %5081
        %v5083 = vunpack.c.l.b16 %v4967
        %v5084 = vunpack.c.l.b16 %v4997
        %v5085 = vunpack.c.l.b16 %v5019
        %v5086 = vpack.c.b16 %v5084, %v5083
        %v5087 = vpack.c.b16 %v5085, %v5085
        %5088 = vrot.lane.b32.xlu0 %v5086, 28
        %v5089 = vpop.permute.xlu0 %5088
        %5090 = vrot.lane.b32.xlu0 %v5087, 28
        %v5091 = vpop.permute.xlu0 %5090
        %v5092 = vunpack.c.l.b16 %v4970
        %v5093 = vunpack.c.l.b16 %v5000
        %v5094 = vunpack.c.l.b16 %v5021
        %v5095 = vpack.c.b16 %v5093, %v5092
        %v5096 = vpack.c.b16 %v5094, %v5094
        %5097 = vrot.lane.b32.xlu0 %v5095, 32
        %v5098 = vpop.permute.xlu0 %5097
        %5099 = vrot.lane.b32.xlu0 %v5096, 32
        %v5100 = vpop.permute.xlu0 %5099
        %v5101 = vunpack.c.l.b16 %v4973
        %v5102 = vunpack.c.l.b16 %v5003
        %v5103 = vunpack.c.l.b16 %v5023
        %v5104 = vpack.c.b16 %v5102, %v5101
        %v5105 = vpack.c.b16 %v5103, %v5103
        %5106 = vrot.lane.b32.xlu0 %v5104, 36
        %v5107 = vpop.permute.xlu0 %5106
        %5108 = vrot.lane.b32.xlu0 %v5105, 36
        %v5109 = vpop.permute.xlu0 %5108
        %v5112 = vsel %vm862, %v5027, %v5035
        %v5115 = vsel %vm862, %v5028, %v5037
        %v5117 = vsel %vm869, %v5112, %v5044
        %v5119 = vsel %vm869, %v5115, %v5046
        %v5121 = vsel %vm874, %v5117, %v5053
        %v5123 = vsel %vm874, %v5119, %v5055
        %v5125 = vsel %vm879, %v5121, %v5062
        %v5127 = vsel %vm879, %v5123, %v5064
        %v5129 = vsel %vm884, %v5125, %v5071
        %v5131 = vsel %vm884, %v5127, %v5073
        %v5133 = vsel %vm889, %v5129, %v5080
        %v5135 = vsel %vm889, %v5131, %v5082
        %v5137 = vsel %vm894, %v5133, %v5089
        %v5139 = vsel %vm894, %v5135, %v5091
        %v5141 = vsel %vm899, %v5137, %v5098
        %v5143 = vsel %vm899, %v5139, %v5100
        %v5145 = vsel %vm904, %v5141, %v5107
        %v5147 = vsel %vm904, %v5143, %v5109
        %5148 = vrot.lane.b32.xlu0 %v4012, 126
        %v5149 = vpop.permute.xlu0 %5148
        %5150 = vrot.lane.b32.xlu0 %v4013, 126
        %v5151 = vpop.permute.xlu0 %5150
        %5152 = vrot.lane.b32.xlu0 %v4017, 126
        %v5153 = vpop.permute.xlu0 %5152
        %5154 = vrot.lane.b32.xlu0 %v4018, 126
        %v5155 = vpop.permute.xlu0 %5154
        %5156 = vrot.lane.b32.xlu0 %v4022, 126
        %v5157 = vpop.permute.xlu0 %5156
        %5158 = vrot.lane.b32.xlu0 %v4023, 126
        %v5159 = vpop.permute.xlu0 %5158
        %5160 = vrot.lane.b32.xlu0 %v4027, 126
        %v5161 = vpop.permute.xlu0 %5160
        %5162 = vrot.lane.b32.xlu0 %v4028, 126
        %v5163 = vpop.permute.xlu0 %5162
        %5164 = vrot.lane.b32.xlu0 %v4032, 126
        %v5165 = vpop.permute.xlu0 %5164
        %5166 = vrot.lane.b32.xlu0 %v4033, 126
        %v5167 = vpop.permute.xlu0 %5166
        %5168 = vrot.lane.b32.xlu0 %v4037, 126
        %v5169 = vpop.permute.xlu0 %5168
        %5170 = vrot.lane.b32.xlu0 %v4038, 126
        %v5171 = vpop.permute.xlu0 %5170
        %5172 = vrot.lane.b32.xlu0 %v4042, 126
        %v5173 = vpop.permute.xlu0 %5172
        %5174 = vrot.lane.b32.xlu0 %v4043, 126
        %v5175 = vpop.permute.xlu0 %5174
        %5176 = vrot.lane.b32.xlu0 %v4047, 126
        %v5177 = vpop.permute.xlu0 %5176
        %5178 = vrot.lane.b32.xlu0 %v4048, 126
        %v5179 = vpop.permute.xlu0 %5178
        %5180 = vrot.lane.b32.xlu0 %v4052, 126
        %v5181 = vpop.permute.xlu0 %5180
        %5182 = vrot.lane.b32.xlu0 %v4053, 126
        %v5183 = vpop.permute.xlu0 %5182
        %5184 = vrot.lane.b32.xlu0 %v4057, 126
        %v5185 = vpop.permute.xlu0 %5184
        %5186 = vrot.lane.b32.xlu0 %v4058, 126
        %v5187 = vpop.permute.xlu0 %5186
        %5188 = vrot.lane.b32.xlu0 %v4062, 126
        %v5189 = vpop.permute.xlu0 %5188
        %5190 = vrot.lane.b32.xlu0 %v4063, 126
        %v5191 = vpop.permute.xlu0 %5190
        %5192 = vrot.lane.b32.xlu0 %v4067, 126
        %v5193 = vpop.permute.xlu0 %5192
        %5194 = vrot.lane.b32.xlu0 %v4068, 126
        %v5195 = vpop.permute.xlu0 %5194
        %5196 = vrot.lane.b32.xlu0 %v4072, 126
        %v5197 = vpop.permute.xlu0 %5196
        %5198 = vrot.lane.b32.xlu0 %v4073, 126
        %v5199 = vpop.permute.xlu0 %5198
        %5200 = vrot.lane.b32.xlu0 %v4077, 126
        %v5201 = vpop.permute.xlu0 %5200
        %5202 = vrot.lane.b32.xlu0 %v4078, 126
        %v5203 = vpop.permute.xlu0 %5202
        %5204 = vrot.lane.b32.xlu0 %v4082, 126
        %v5205 = vpop.permute.xlu0 %5204
        %5206 = vrot.lane.b32.xlu0 %v4083, 126
        %v5207 = vpop.permute.xlu0 %5206
        %5208 = vrot.lane.b32.xlu0 %v4087, 126
        %v5209 = vpop.permute.xlu0 %5208
        %5210 = vrot.lane.b32.xlu0 %v4088, 126
        %v5211 = vpop.permute.xlu0 %5210
        %5212 = vrot.lane.b32.xlu0 %v4092, 126
        %v5213 = vpop.permute.xlu0 %5212
        %5214 = vrot.lane.b32.xlu0 %v4093, 126
        %v5215 = vpop.permute.xlu0 %5214
        %v5248 = vcombine.low %v5149, %v5165
        %v5250 = vunpack.c.l.s4 1983009808
        %v5251 = vunpack.c.0.s8 %v5250
        %v5252 = vlaneseq
        %v5253 = vshrl.u32 %v5252, 7
        %v5254 = vsub.s32 %v5251, %v5253
        %v5255 = vrot.slane %v5248, %v5254
        %v5256 = vcombine.low %v5157, %v5173
        %v5258 = vunpack.c.l.s4 1983009808
        %v5259 = vunpack.c.0.s8 %v5258
        %v5260 = vlaneseq
        %v5261 = vshrl.u32 %v5260, 7
        %v5262 = vsub.s32 %v5259, %v5261
        %v5263 = vrot.slane %v5256, %v5262
        %v5264 = vcombine.low %v5255, %v5263
        %v5265 = vcombine.high %v5255, %v5263
        %v5267 = vunpack.c.l.s4 1934713408
        %v5268 = vunpack.c.0.s8 %v5267
        %v5269 = vlaneseq
        %v5270 = vshrl.u32 %v5269, 7
        %v5271 = vsub.s32 %v5268, %v5270
        %v5272 = vrot.slane %v5264, %v5271
        %v5274 = vunpack.c.l.s4 1934713408
        %v5275 = vunpack.c.0.s8 %v5274
        %v5276 = vlaneseq
        %v5277 = vshrl.u32 %v5276, 7
        %v5278 = vsub.s32 %v5275, %v5277
        %v5279 = vrot.slane %v5265, %v5278
        %v5280 = vcombine.high %v5272, 0
        %v5281 = vcombine.high %v5279, 0
        %v5282 = vcombine.low %v5153, %v5169
        %v5284 = vunpack.c.l.s4 1983009808
        %v5285 = vunpack.c.0.s8 %v5284
        %v5286 = vlaneseq
        %v5287 = vshrl.u32 %v5286, 7
        %v5288 = vsub.s32 %v5285, %v5287
        %v5289 = vrot.slane %v5282, %v5288
        %v5290 = vcombine.low %v5161, %v5177
        %v5292 = vunpack.c.l.s4 1983009808
        %v5293 = vunpack.c.0.s8 %v5292
        %v5294 = vlaneseq
        %v5295 = vshrl.u32 %v5294, 7
        %v5296 = vsub.s32 %v5293, %v5295
        %v5297 = vrot.slane %v5290, %v5296
        %v5298 = vcombine.low %v5289, %v5297
        %v5299 = vcombine.high %v5289, %v5297
        %v5301 = vunpack.c.l.s4 1934713408
        %v5302 = vunpack.c.0.s8 %v5301
        %v5303 = vlaneseq
        %v5304 = vshrl.u32 %v5303, 7
        %v5305 = vsub.s32 %v5302, %v5304
        %v5306 = vrot.slane %v5298, %v5305
        %v5308 = vunpack.c.l.s4 1934713408
        %v5309 = vunpack.c.0.s8 %v5308
        %v5310 = vlaneseq
        %v5311 = vshrl.u32 %v5310, 7
        %v5312 = vsub.s32 %v5309, %v5311
        %v5313 = vrot.slane %v5299, %v5312
        %v5314 = vcombine.high %v5306, 0
        %v5315 = vcombine.high %v5313, 0
        %v5316 = vcombine.low %v5181, %v5197
        %v5318 = vunpack.c.l.s4 1983009808
        %v5319 = vunpack.c.0.s8 %v5318
        %v5320 = vlaneseq
        %v5321 = vshrl.u32 %v5320, 7
        %v5322 = vsub.s32 %v5319, %v5321
        %v5323 = vrot.slane %v5316, %v5322
        %v5324 = vcombine.low %v5189, %v5205
        %v5326 = vunpack.c.l.s4 1983009808
        %v5327 = vunpack.c.0.s8 %v5326
        %v5328 = vlaneseq
        %v5329 = vshrl.u32 %v5328, 7
        %v5330 = vsub.s32 %v5327, %v5329
        %v5331 = vrot.slane %v5324, %v5330
        %v5332 = vcombine.low %v5323, %v5331
        %v5333 = vcombine.high %v5323, %v5331
        %v5335 = vunpack.c.l.s4 1934713408
        %v5336 = vunpack.c.0.s8 %v5335
        %v5337 = vlaneseq
        %v5338 = vshrl.u32 %v5337, 7
        %v5339 = vsub.s32 %v5336, %v5338
        %v5340 = vrot.slane %v5332, %v5339
        %v5342 = vunpack.c.l.s4 1934713408
        %v5343 = vunpack.c.0.s8 %v5342
        %v5344 = vlaneseq
        %v5345 = vshrl.u32 %v5344, 7
        %v5346 = vsub.s32 %v5343, %v5345
        %v5347 = vrot.slane %v5333, %v5346
        %v5348 = vcombine.high %v5340, 0
        %v5349 = vcombine.high %v5347, 0
        %v5350 = vcombine.low %v5185, %v5201
        %v5352 = vunpack.c.l.s4 1983009808
        %v5353 = vunpack.c.0.s8 %v5352
        %v5354 = vlaneseq
        %v5355 = vshrl.u32 %v5354, 7
        %v5356 = vsub.s32 %v5353, %v5355
        %v5357 = vrot.slane %v5350, %v5356
        %v5358 = vcombine.low %v5193, %v5209
        %v5360 = vunpack.c.l.s4 1983009808
        %v5361 = vunpack.c.0.s8 %v5360
        %v5362 = vlaneseq
        %v5363 = vshrl.u32 %v5362, 7
        %v5364 = vsub.s32 %v5361, %v5363
        %v5365 = vrot.slane %v5358, %v5364
        %v5366 = vcombine.low %v5357, %v5365
        %v5367 = vcombine.high %v5357, %v5365
        %v5369 = vunpack.c.l.s4 1934713408
        %v5370 = vunpack.c.0.s8 %v5369
        %v5371 = vlaneseq
        %v5372 = vshrl.u32 %v5371, 7
        %v5373 = vsub.s32 %v5370, %v5372
        %v5374 = vrot.slane %v5366, %v5373
        %v5376 = vunpack.c.l.s4 1934713408
        %v5377 = vunpack.c.0.s8 %v5376
        %v5378 = vlaneseq
        %v5379 = vshrl.u32 %v5378, 7
        %v5380 = vsub.s32 %v5377, %v5379
        %v5381 = vrot.slane %v5367, %v5380
        %v5382 = vcombine.high %v5374, 0
        %v5383 = vcombine.high %v5381, 0
        %v5386 = vunpack.c.l.s4 1983009808
        %v5387 = vunpack.c.0.s8 %v5386
        %v5388 = vlaneseq
        %v5389 = vshrl.u32 %v5388, 7
        %v5390 = vsub.s32 %v5387, %v5389
        %v5391 = vrot.slane %v5213, %v5390
        %v5392 = vcombine.high %v5391, 0
        %v5394 = vunpack.c.l.s4 1934713408
        %v5395 = vunpack.c.0.s8 %v5394
        %v5396 = vlaneseq
        %v5397 = vshrl.u32 %v5396, 7
        %v5398 = vsub.s32 %v5395, %v5397
        %v5399 = vrot.slane %v5391, %v5398
        %v5401 = vunpack.c.l.s4 1934713408
        %v5402 = vunpack.c.0.s8 %v5401
        %v5403 = vlaneseq
        %v5404 = vshrl.u32 %v5403, 7
        %v5405 = vsub.s32 %v5402, %v5404
        %v5406 = vrot.slane %v5392, %v5405
        %v5407 = vcombine.high %v5399, 0
        %v5408 = vcombine.high %v5406, 0
        %v5409 = vcombine.low %v5151, %v5167
        %v5411 = vunpack.c.l.s4 1983009808
        %v5412 = vunpack.c.0.s8 %v5411
        %v5413 = vlaneseq
        %v5414 = vshrl.u32 %v5413, 7
        %v5415 = vsub.s32 %v5412, %v5414
        %v5416 = vrot.slane %v5409, %v5415
        %v5417 = vcombine.low %v5159, %v5175
        %v5419 = vunpack.c.l.s4 1983009808
        %v5420 = vunpack.c.0.s8 %v5419
        %v5421 = vlaneseq
        %v5422 = vshrl.u32 %v5421, 7
        %v5423 = vsub.s32 %v5420, %v5422
        %v5424 = vrot.slane %v5417, %v5423
        %v5425 = vcombine.low %v5416, %v5424
        %v5427 = vunpack.c.l.s4 1934713408
        %v5428 = vunpack.c.0.s8 %v5427
        %v5429 = vlaneseq
        %v5430 = vshrl.u32 %v5429, 7
        %v5431 = vsub.s32 %v5428, %v5430
        %v5432 = vrot.slane %v5425, %v5431
        %v5433 = vcombine.low %v5155, %v5171
        %v5435 = vunpack.c.l.s4 1983009808
        %v5436 = vunpack.c.0.s8 %v5435
        %v5437 = vlaneseq
        %v5438 = vshrl.u32 %v5437, 7
        %v5439 = vsub.s32 %v5436, %v5438
        %v5440 = vrot.slane %v5433, %v5439
        %v5441 = vcombine.low %v5163, %v5179
        %v5443 = vunpack.c.l.s4 1983009808
        %v5444 = vunpack.c.0.s8 %v5443
        %v5445 = vlaneseq
        %v5446 = vshrl.u32 %v5445, 7
        %v5447 = vsub.s32 %v5444, %v5446
        %v5448 = vrot.slane %v5441, %v5447
        %v5449 = vcombine.low %v5440, %v5448
        %v5451 = vunpack.c.l.s4 1934713408
        %v5452 = vunpack.c.0.s8 %v5451
        %v5453 = vlaneseq
        %v5454 = vshrl.u32 %v5453, 7
        %v5455 = vsub.s32 %v5452, %v5454
        %v5456 = vrot.slane %v5449, %v5455
        %v5457 = vcombine.low %v5183, %v5199
        %v5459 = vunpack.c.l.s4 1983009808
        %v5460 = vunpack.c.0.s8 %v5459
        %v5461 = vlaneseq
        %v5462 = vshrl.u32 %v5461, 7
        %v5463 = vsub.s32 %v5460, %v5462
        %v5464 = vrot.slane %v5457, %v5463
        %v5465 = vcombine.low %v5191, %v5207
        %v5467 = vunpack.c.l.s4 1983009808
        %v5468 = vunpack.c.0.s8 %v5467
        %v5469 = vlaneseq
        %v5470 = vshrl.u32 %v5469, 7
        %v5471 = vsub.s32 %v5468, %v5470
        %v5472 = vrot.slane %v5465, %v5471
        %v5473 = vcombine.low %v5464, %v5472
        %v5475 = vunpack.c.l.s4 1934713408
        %v5476 = vunpack.c.0.s8 %v5475
        %v5477 = vlaneseq
        %v5478 = vshrl.u32 %v5477, 7
        %v5479 = vsub.s32 %v5476, %v5478
        %v5480 = vrot.slane %v5473, %v5479
        %v5481 = vcombine.low %v5187, %v5203
        %v5483 = vunpack.c.l.s4 1983009808
        %v5484 = vunpack.c.0.s8 %v5483
        %v5485 = vlaneseq
        %v5486 = vshrl.u32 %v5485, 7
        %v5487 = vsub.s32 %v5484, %v5486
        %v5488 = vrot.slane %v5481, %v5487
        %v5489 = vcombine.low %v5195, %v5211
        %v5491 = vunpack.c.l.s4 1983009808
        %v5492 = vunpack.c.0.s8 %v5491
        %v5493 = vlaneseq
        %v5494 = vshrl.u32 %v5493, 7
        %v5495 = vsub.s32 %v5492, %v5494
        %v5496 = vrot.slane %v5489, %v5495
        %v5497 = vcombine.low %v5488, %v5496
        %v5499 = vunpack.c.l.s4 1934713408
        %v5500 = vunpack.c.0.s8 %v5499
        %v5501 = vlaneseq
        %v5502 = vshrl.u32 %v5501, 7
        %v5503 = vsub.s32 %v5500, %v5502
        %v5504 = vrot.slane %v5497, %v5503
        %v5507 = vpack.i.b16 %v5306, %v5272
        %v5508 = vshrl.u32 %v5272, 16
        %v5509 = vshrl.u32 %v5306, 16
        %v5510 = vpack.i.b16 %v5509, %v5508
        %v5513 = vpack.i.b16 %v5314, %v5280
        %v5514 = vshrl.u32 %v5280, 16
        %v5515 = vshrl.u32 %v5314, 16
        %v5516 = vpack.i.b16 %v5515, %v5514
        %v5519 = vpack.i.b16 %v5313, %v5279
        %v5520 = vshrl.u32 %v5279, 16
        %v5521 = vshrl.u32 %v5313, 16
        %v5522 = vpack.i.b16 %v5521, %v5520
        %v5525 = vpack.i.b16 %v5315, %v5281
        %v5526 = vshrl.u32 %v5281, 16
        %v5527 = vshrl.u32 %v5315, 16
        %v5528 = vpack.i.b16 %v5527, %v5526
        %v5531 = vpack.i.b16 %v5456, %v5432
        %v5532 = vshrl.u32 %v5432, 16
        %v5533 = vshrl.u32 %v5456, 16
        %v5534 = vpack.i.b16 %v5533, %v5532
        %v5537 = vpack.i.b16 %v5374, %v5340
        %v5538 = vshrl.u32 %v5340, 16
        %v5539 = vshrl.u32 %v5374, 16
        %v5540 = vpack.i.b16 %v5539, %v5538
        %v5543 = vpack.i.b16 %v5382, %v5348
        %v5544 = vshrl.u32 %v5348, 16
        %v5545 = vshrl.u32 %v5382, 16
        %v5546 = vpack.i.b16 %v5545, %v5544
        %v5549 = vpack.i.b16 %v5381, %v5347
        %v5550 = vshrl.u32 %v5347, 16
        %v5551 = vshrl.u32 %v5381, 16
        %v5552 = vpack.i.b16 %v5551, %v5550
        %v5555 = vpack.i.b16 %v5383, %v5349
        %v5556 = vshrl.u32 %v5349, 16
        %v5557 = vshrl.u32 %v5383, 16
        %v5558 = vpack.i.b16 %v5557, %v5556
        %v5561 = vpack.i.b16 %v5504, %v5480
        %v5562 = vshrl.u32 %v5480, 16
        %v5563 = vshrl.u32 %v5504, 16
        %v5564 = vpack.i.b16 %v5563, %v5562
        %v5566 = vpack.i.b16 0, %v5399
        %v5567 = vshrl.u32 %v5399, 16
        %v5568 = vpack.i.b16 %v758, %v5567
        %v5570 = vpack.i.b16 0, %v5407
        %v5571 = vshrl.u32 %v5407, 16
        %v5572 = vpack.i.b16 %v758, %v5571
        %v5574 = vpack.i.b16 0, %v5406
        %v5575 = vshrl.u32 %v5406, 16
        %v5576 = vpack.i.b16 %v758, %v5575
        %v5578 = vpack.i.b16 0, %v5408
        %v5579 = vshrl.u32 %v5408, 16
        %v5580 = vpack.i.b16 %v758, %v5579
        %v5582 = vpack.i.b16 0, %v5215
        %v5583 = vshrl.u32 %v5215, 16
        %v5584 = vpack.i.b16 %v758, %v5583
        %v5585 = vunpack.c.l.b16 %v5507
        %v5586 = vunpack.c.l.b16 %v5537
        %v5587 = vunpack.c.l.b16 %v5566
        %v5588 = vpack.c.b16 %v5586, %v5585
        %v5589 = vpack.c.b16 %v5587, %v5587
        %v5590 = vunpack.c.l.b16 %v5510
        %v5591 = vunpack.c.l.b16 %v5540
        %v5592 = vunpack.c.l.b16 %v5568
        %v5593 = vpack.c.b16 %v5591, %v5590
        %v5594 = vpack.c.b16 %v5592, %v5592
        %5595 = vrot.lane.b32.xlu0 %v5593, 4
        %v5596 = vpop.permute.xlu0 %5595
        %5597 = vrot.lane.b32.xlu0 %v5594, 4
        %v5598 = vpop.permute.xlu0 %5597
        %v5599 = vunpack.c.l.b16 %v5513
        %v5600 = vunpack.c.l.b16 %v5543
        %v5601 = vunpack.c.l.b16 %v5570
        %v5602 = vpack.c.b16 %v5600, %v5599
        %v5603 = vpack.c.b16 %v5601, %v5601
        %5604 = vrot.lane.b32.xlu0 %v5602, 8
        %v5605 = vpop.permute.xlu0 %5604
        %5606 = vrot.lane.b32.xlu0 %v5603, 8
        %v5607 = vpop.permute.xlu0 %5606
        %v5608 = vunpack.c.l.b16 %v5516
        %v5609 = vunpack.c.l.b16 %v5546
        %v5610 = vunpack.c.l.b16 %v5572
        %v5611 = vpack.c.b16 %v5609, %v5608
        %v5612 = vpack.c.b16 %v5610, %v5610
        %5613 = vrot.lane.b32.xlu0 %v5611, 12
        %v5614 = vpop.permute.xlu0 %5613
        %5615 = vrot.lane.b32.xlu0 %v5612, 12
        %v5616 = vpop.permute.xlu0 %5615
        %v5617 = vunpack.c.l.b16 %v5519
        %v5618 = vunpack.c.l.b16 %v5549
        %v5619 = vunpack.c.l.b16 %v5574
        %v5620 = vpack.c.b16 %v5618, %v5617
        %v5621 = vpack.c.b16 %v5619, %v5619
        %5622 = vrot.lane.b32.xlu0 %v5620, 16
        %v5623 = vpop.permute.xlu0 %5622
        %5624 = vrot.lane.b32.xlu0 %v5621, 16
        %v5625 = vpop.permute.xlu0 %5624
        %v5626 = vunpack.c.l.b16 %v5522
        %v5627 = vunpack.c.l.b16 %v5552
        %v5628 = vunpack.c.l.b16 %v5576
        %v5629 = vpack.c.b16 %v5627, %v5626
        %v5630 = vpack.c.b16 %v5628, %v5628
        %5631 = vrot.lane.b32.xlu0 %v5629, 20
        %v5632 = vpop.permute.xlu0 %5631
        %5633 = vrot.lane.b32.xlu0 %v5630, 20
        %v5634 = vpop.permute.xlu0 %5633
        %v5635 = vunpack.c.l.b16 %v5525
        %v5636 = vunpack.c.l.b16 %v5555
        %v5637 = vunpack.c.l.b16 %v5578
        %v5638 = vpack.c.b16 %v5636, %v5635
        %v5639 = vpack.c.b16 %v5637, %v5637
        %5640 = vrot.lane.b32.xlu0 %v5638, 24
        %v5641 = vpop.permute.xlu0 %5640
        %5642 = vrot.lane.b32.xlu0 %v5639, 24
        %v5643 = vpop.permute.xlu0 %5642
        %v5644 = vunpack.c.l.b16 %v5528
        %v5645 = vunpack.c.l.b16 %v5558
        %v5646 = vunpack.c.l.b16 %v5580
        %v5647 = vpack.c.b16 %v5645, %v5644
        %v5648 = vpack.c.b16 %v5646, %v5646
        %5649 = vrot.lane.b32.xlu0 %v5647, 28
        %v5650 = vpop.permute.xlu0 %5649
        %5651 = vrot.lane.b32.xlu0 %v5648, 28
        %v5652 = vpop.permute.xlu0 %5651
        %v5653 = vunpack.c.l.b16 %v5531
        %v5654 = vunpack.c.l.b16 %v5561
        %v5655 = vunpack.c.l.b16 %v5582
        %v5656 = vpack.c.b16 %v5654, %v5653
        %v5657 = vpack.c.b16 %v5655, %v5655
        %5658 = vrot.lane.b32.xlu0 %v5656, 32
        %v5659 = vpop.permute.xlu0 %5658
        %5660 = vrot.lane.b32.xlu0 %v5657, 32
        %v5661 = vpop.permute.xlu0 %5660
        %v5662 = vunpack.c.l.b16 %v5534
        %v5663 = vunpack.c.l.b16 %v5564
        %v5664 = vunpack.c.l.b16 %v5584
        %v5665 = vpack.c.b16 %v5663, %v5662
        %v5666 = vpack.c.b16 %v5664, %v5664
        %5667 = vrot.lane.b32.xlu0 %v5665, 36
        %v5668 = vpop.permute.xlu0 %5667
        %5669 = vrot.lane.b32.xlu0 %v5666, 36
        %v5670 = vpop.permute.xlu0 %5669
        %v5673 = vsel %vm862, %v5588, %v5596
        %v5676 = vsel %vm862, %v5589, %v5598
        %v5678 = vsel %vm869, %v5673, %v5605
        %v5680 = vsel %vm869, %v5676, %v5607
        %v5682 = vsel %vm874, %v5678, %v5614
        %v5684 = vsel %vm874, %v5680, %v5616
        %v5686 = vsel %vm879, %v5682, %v5623
        %v5688 = vsel %vm879, %v5684, %v5625
        %v5690 = vsel %vm884, %v5686, %v5632
        %v5692 = vsel %vm884, %v5688, %v5634
        %v5694 = vsel %vm889, %v5690, %v5641
        %v5696 = vsel %vm889, %v5692, %v5643
        %v5698 = vsel %vm894, %v5694, %v5650
        %v5700 = vsel %vm894, %v5696, %v5652
        %v5702 = vsel %vm899, %v5698, %v5659
        %v5704 = vsel %vm899, %v5700, %v5661
        %v5706 = vsel %vm904, %v5702, %v5668
        %v5708 = vsel %vm904, %v5704, %v5670
        %vm5709 = vsmask.f32 256
        %v5710 = vshrl.u32 %v1503, 16
        %v5712 = vrot.slane %v5710, 7
        %v5713 = vshll.u32 %v1503, 16
        %v5715 = vor.u32 %v5712, %v5713
        %v5716 = vshll.u32 %v1505, 16
        %v5718 = vsel %vm5709, %v5712, %v5716
        %vm5722 = vcmask 1040384
        %v5723 = vrot.slane %v2064, 7
        %v5724 = vrot.slane %v2066, 7
        %v5725 = vsel %vm5722, %v5723, %v5724
        %vm5727 = vsmask.f32 1280
        %v5728 = vshrl.u32 %v2881, 16
        %v5730 = vrot.slane %v5728, 6
        %v5731 = vshll.u32 %v2881, 16
        %v5733 = vrot.slane %v5731, 7
        %v5734 = vor.u32 %v5730, %v5733
        %v5735 = vshll.u32 %v2883, 16
        %v5737 = vrot.slane %v5735, 7
        %v5738 = vsel %vm5727, %v5734, %v5737
        %vm5742 = vcmask 1041408
        %v5743 = vrot.slane %v3442, 6
        %v5744 = vrot.slane %v3444, 6
        %v5745 = vsel %vm5742, %v5743, %v5744
        %vm5747 = vsmask.f32 2304
        %v5748 = vshrl.u32 %v4003, 16
        %v5750 = vrot.slane %v5748, 5
        %v5751 = vshll.u32 %v4003, 16
        %v5753 = vrot.slane %v5751, 6
        %v5754 = vor.u32 %v5750, %v5753
        %v5755 = vshll.u32 %v4005, 16
        %v5757 = vrot.slane %v5755, 6
        %v5758 = vsel %vm5747, %v5754, %v5757
        %v5762 = vrot.slane %v4584, 5
        %v5763 = vrot.slane %v4586, 5
        %v5764 = vsel %vm4006, %v5762, %v5763
        %v5766 = vshrl.u32 %v5145, 16
        %v5768 = vrot.slane %v5766, 4
        %v5769 = vshll.u32 %v5145, 16
        %v5771 = vrot.slane %v5769, 5
        %v5772 = vor.u32 %v5768, %v5771
        %v5773 = vshll.u32 %v5147, 16
        %v5775 = vrot.slane %v5773, 5
        %v5776 = vsel %vm2067, %v5772, %v5775
        %vm5780 = vcmask 1043456
        %v5781 = vrot.slane %v5706, 4
        %v5782 = vrot.slane %v5708, 4
        %v5783 = vsel %vm5780, %v5781, %v5782
        %vm5784 = vmand %vm5722, %vm5709
        %v5785 = vsel %vm5784, %v909, %v5715
        %vm5786 = vcmask 1040384
        %v5789 = vsel %vm5786, %v5718, %v5723
        %vm5791 = vmand %vm5742, %vm5727
        %v5792 = vsel %vm5791, %v5725, %v5734
        %vm5793 = vcmask 1041408
        %v5796 = vsel %vm5793, %v5738, %v5743
        %vm5798 = vmand %vm4006, %vm5747
        %v5799 = vsel %vm5798, %v5745, %v5754
        %vm5800 = vcmask 1042432
        %v5803 = vsel %vm5800, %v5758, %v5762
        %vm5805 = vmand %vm5780, %vm2067
        %v5806 = vsel %vm5805, %v5764, %v5772
        %vm5807 = vcmask 1043456
        %v5810 = vsel %vm5807, %v5776, %v5781
        %v5812 = vld [vmem:[%s2] sm:$0xff]
        %v5813 = vld [vmem:[%s2 + $0x8] sm:$0xff]
        %5815 = vset.pattern.permute.xlu0 0
        %5816 = vperm.xlu0 %5815, %v5812
        %v5817 = vpop.permute.xlu0 %5816
        %5820 = vset.pattern.permute.xlu0 0
        %5821 = vperm.xlu0 %5820, %v5813
        %v5822 = vpop.permute.xlu0 %5821
        %v5826 = vunpack.c.l.b16 %v436
        %v5827 = vunpack.c.h.b16 %v436
        %v5828 = vunpack.c.l.b16 %v437
        %v5829 = vunpack.c.h.b16 %v437
        %v5830 = vpack.c.b16 %v5828, %v5826
        %v5831 = vpack.c.b16 %v5829, %v5827
        %vm5833 = vcmask 203776
        %v5835 = vsel %vm5833, %v5831, 0
        %vm5837 = vcmask 1044480
        %v5838 = vsel %vm5807, 4294967295, 65535
        %v5839 = vsel %vm5837, %v5838, 0
        %v5841 = vand.u32 %v5783, %v5839
        %5843 = vmatprep.subr.bf16.mxu0 0
        %5844 = vmatpush1.bf16.msra.mxu0 %v906
        %5845 = vmatprep.subr.bf16.mxu0 0
        %5846 = vmatpush1.bf16.msra.mxu0 %v5785
        %5847 = vmatprep.subr.bf16.mxu0 0
        %5848 = vmatpush1.bf16.msra.mxu0 %v5789
        %5849 = vmatprep.subr.bf16.mxu0 0
        %5850 = vmatpush1.bf16.msra.mxu0 %v5792
        %5851 = vmatprep.subr.bf16.mxu0 0
        %5852 = vmatpush1.bf16.msra.mxu0 %v5796
        %5853 = vmatprep.subr.bf16.mxu0 0
        %5854 = vmatpush1.bf16.msra.mxu0 %v5799
        %5855 = vmatprep.subr.bf16.mxu0 0
        %5856 = vmatpush1.bf16.msra.mxu0 %v5803
        %5857 = vmatprep.subr.bf16.mxu0 0
        %5858 = vmatpush1.bf16.msra.mxu0 %v5806
        %5859 = vmatprep.subr.bf16.mxu0 0
        %5860 = vmatpush1.bf16.msra.mxu0 %v5810
        %5861 = vmatprep.subr.bf16.mxu0 0
        %5862 = vmatpush1.bf16.msra.mxu0 %v5841
        %5863 = vmatprep.subr.bf16.mxu0 0
        %5864 = vmatpush1.bf16.msra.mxu0 0
        %5865 = vmatprep.subr.bf16.mxu0 0
        %5866 = vmatpush1.bf16.msra.mxu0 0
        %5867 = vmatprep.subr.bf16.mxu0 0
        %5868 = vmatpush1.bf16.msra.mxu0 0
        %5869 = vmatprep.subr.bf16.mxu0 0
        %5870 = vmatpush1.bf16.msra.mxu0 0
        %5871 = vmatprep.subr.bf16.mxu0 0
        %5872 = vmatpush1.bf16.msra.mxu0 0
        %5873 = vmatprep.subr.bf16.mxu0 0
        %5874 = vmatpush1.bf16.msra.mxu0 0
        %5875 = vmatprep.mubr.bf16.mxu0 %v5835
        %5876 = vmatmul.mubr.bf16.gmra.mrb[0].mxu0 %v5830
        %v5877 = vpop.f32.mrb[0].mxu0
        %v5878 = vadd.f32 %v5817, %v5877
        %v5879 = vpop.f32.mrb[0].mxu0
        %v5880 = vpop.f32.mrb[0].mxu0
        %v5881 = vadd.f32 %v5822, %v5880
        %v5882 = vpop.f32.mrb[0].mxu0
        %5883 = vdwg.mxu0
        %v5884 = vmul.f32 %v5878, 0.2
        %v5885 = vmul.f32 %v5881, 0.2
        %v5886 = vmax.f32 %v5878, %v5884
        %v5887 = vmax.f32 %v5881, %v5885
        %5890 = vrot.lane.b32.xlu0 %v5886, 124
        %v5891 = vpop.permute.xlu0 %5890
        %5892 = vrot.lane.b32.xlu0 %v5887, 124
        %v5893 = vpop.permute.xlu0 %5892
        %5896 = vrot.lane.b32.xlu0 %v5886, 120
        %v5897 = vpop.permute.xlu0 %5896
        %5898 = vrot.lane.b32.xlu0 %v5887, 120
        %v5899 = vpop.permute.xlu0 %5898
        %5902 = vrot.lane.b32.xlu0 %v5886, 116
        %v5903 = vpop.permute.xlu0 %5902
        %5904 = vrot.lane.b32.xlu0 %v5887, 116
        %v5905 = vpop.permute.xlu0 %5904
        %5908 = vrot.lane.b32.xlu0 %v5886, 112
        %v5909 = vpop.permute.xlu0 %5908
        %5910 = vrot.lane.b32.xlu0 %v5887, 112
        %v5911 = vpop.permute.xlu0 %5910
        %5914 = vrot.lane.b32.xlu0 %v5886, 108
        %v5915 = vpop.permute.xlu0 %5914
        %5916 = vrot.lane.b32.xlu0 %v5887, 108
        %v5917 = vpop.permute.xlu0 %5916
        %5920 = vrot.lane.b32.xlu0 %v5886, 104
        %v5921 = vpop.permute.xlu0 %5920
        %5922 = vrot.lane.b32.xlu0 %v5887, 104
        %v5923 = vpop.permute.xlu0 %5922
        %5926 = vrot.lane.b32.xlu0 %v5886, 100
        %v5927 = vpop.permute.xlu0 %5926
        %5928 = vrot.lane.b32.xlu0 %v5887, 100
        %v5929 = vpop.permute.xlu0 %5928
        %5932 = vrot.lane.b32.xlu0 %v5887, 96
        %v5933 = vpop.permute.xlu0 %5932
        %5935 = vrot.lane.b32.xlu0 %v5887, 92
        %v5936 = vpop.permute.xlu0 %5935
        %v5938 = vcombine.low %v5886, %v5897
        %v5939 = vcombine.high %v5886, %v5897
        %v5941 = vunpack.c.l.s4 1983009808
        %v5942 = vunpack.c.0.s8 %v5941
        %v5943 = vlaneseq
        %v5944 = vshrl.u32 %v5943, 7
        %v5945 = vsub.s32 %v5942, %v5944
        %v5946 = vrot.slane %v5938, %v5945
        %v5948 = vunpack.c.l.s4 1983009808
        %v5949 = vunpack.c.0.s8 %v5948
        %v5950 = vlaneseq
        %v5951 = vshrl.u32 %v5950, 7
        %v5952 = vsub.s32 %v5949, %v5951
        %v5953 = vrot.slane %v5939, %v5952
        %v5954 = vcombine.low %v5891, %v5903
        %v5955 = vcombine.high %v5891, %v5903
        %v5957 = vunpack.c.l.s4 1983009808
        %v5958 = vunpack.c.0.s8 %v5957
        %v5959 = vlaneseq
        %v5960 = vshrl.u32 %v5959, 7
        %v5961 = vsub.s32 %v5958, %v5960
        %v5962 = vrot.slane %v5954, %v5961
        %v5964 = vunpack.c.l.s4 1983009808
        %v5965 = vunpack.c.0.s8 %v5964
        %v5966 = vlaneseq
        %v5967 = vshrl.u32 %v5966, 7
        %v5968 = vsub.s32 %v5965, %v5967
        %v5969 = vrot.slane %v5955, %v5968
        %v5970 = vcombine.low %v5909, %v5921
        %v5971 = vcombine.high %v5909, %v5921
        %v5973 = vunpack.c.l.s4 1983009808
        %v5974 = vunpack.c.0.s8 %v5973
        %v5975 = vlaneseq
        %v5976 = vshrl.u32 %v5975, 7
        %v5977 = vsub.s32 %v5974, %v5976
        %v5978 = vrot.slane %v5970, %v5977
        %v5980 = vunpack.c.l.s4 1983009808
        %v5981 = vunpack.c.0.s8 %v5980
        %v5982 = vlaneseq
        %v5983 = vshrl.u32 %v5982, 7
        %v5984 = vsub.s32 %v5981, %v5983
        %v5985 = vrot.slane %v5971, %v5984
        %v5986 = vcombine.low %v5915, %v5927
        %v5987 = vcombine.high %v5915, %v5927
        %v5989 = vunpack.c.l.s4 1983009808
        %v5990 = vunpack.c.0.s8 %v5989
        %v5991 = vlaneseq
        %v5992 = vshrl.u32 %v5991, 7
        %v5993 = vsub.s32 %v5990, %v5992
        %v5994 = vrot.slane %v5986, %v5993
        %v5996 = vunpack.c.l.s4 1983009808
        %v5997 = vunpack.c.0.s8 %v5996
        %v5998 = vlaneseq
        %v5999 = vshrl.u32 %v5998, 7
        %v6000 = vsub.s32 %v5997, %v5999
        %v6001 = vrot.slane %v5987, %v6000
        %v6002 = vcombine.low %v5946, %v5962
        %v6003 = vcombine.high %v5946, %v5962
        %v6005 = vunpack.c.l.s4 1934713408
        %v6006 = vunpack.c.0.s8 %v6005
        %v6007 = vlaneseq
        %v6008 = vshrl.u32 %v6007, 7
        %v6009 = vsub.s32 %v6006, %v6008
        %v6010 = vrot.slane %v6002, %v6009
        %v6012 = vunpack.c.l.s4 1934713408
        %v6013 = vunpack.c.0.s8 %v6012
        %v6014 = vlaneseq
        %v6015 = vshrl.u32 %v6014, 7
        %v6016 = vsub.s32 %v6013, %v6015
        %v6017 = vrot.slane %v6003, %v6016
        %v6018 = vcombine.low %v5953, %v5969
        %v6019 = vcombine.high %v5953, %v5969
        %v6021 = vunpack.c.l.s4 1934713408
        %v6022 = vunpack.c.0.s8 %v6021
        %v6023 = vlaneseq
        %v6024 = vshrl.u32 %v6023, 7
        %v6025 = vsub.s32 %v6022, %v6024
        %v6026 = vrot.slane %v6018, %v6025
        %v6028 = vunpack.c.l.s4 1934713408
        %v6029 = vunpack.c.0.s8 %v6028
        %v6030 = vlaneseq
        %v6031 = vshrl.u32 %v6030, 7
        %v6032 = vsub.s32 %v6029, %v6031
        %v6033 = vrot.slane %v6019, %v6032
        %v6034 = vcombine.low %v5978, %v5994
        %v6035 = vcombine.high %v5978, %v5994
        %v6037 = vunpack.c.l.s4 1934713408
        %v6038 = vunpack.c.0.s8 %v6037
        %v6039 = vlaneseq
        %v6040 = vshrl.u32 %v6039, 7
        %v6041 = vsub.s32 %v6038, %v6040
        %v6042 = vrot.slane %v6034, %v6041
        %v6044 = vunpack.c.l.s4 1934713408
        %v6045 = vunpack.c.0.s8 %v6044
        %v6046 = vlaneseq
        %v6047 = vshrl.u32 %v6046, 7
        %v6048 = vsub.s32 %v6045, %v6047
        %v6049 = vrot.slane %v6035, %v6048
        %v6050 = vcombine.low %v5985, %v6001
        %v6051 = vcombine.high %v5985, %v6001
        %v6053 = vunpack.c.l.s4 1934713408
        %v6054 = vunpack.c.0.s8 %v6053
        %v6055 = vlaneseq
        %v6056 = vshrl.u32 %v6055, 7
        %v6057 = vsub.s32 %v6054, %v6056
        %v6058 = vrot.slane %v6050, %v6057
        %v6060 = vunpack.c.l.s4 1934713408
        %v6061 = vunpack.c.0.s8 %v6060
        %v6062 = vlaneseq
        %v6063 = vshrl.u32 %v6062, 7
        %v6064 = vsub.s32 %v6061, %v6063
        %v6065 = vrot.slane %v6051, %v6064
        %v6066 = vcombine.low %v6010, %v6042
        %v6067 = vcombine.high %v6010, %v6042
        %v6068 = vcombine.low %v6017, %v6049
        %v6069 = vcombine.high %v6017, %v6049
        %v6070 = vcombine.low %v6026, %v6058
        %v6071 = vcombine.high %v6026, %v6058
        %v6072 = vcombine.low %v6033, %v6065
        %v6073 = vcombine.high %v6033, %v6065
        %v6074 = vcombine.low %v5887, %v5899
        %v6075 = vcombine.high %v5887, %v5899
        %v6077 = vunpack.c.l.s4 1983009808
        %v6078 = vunpack.c.0.s8 %v6077
        %v6079 = vlaneseq
        %v6080 = vshrl.u32 %v6079, 7
        %v6081 = vsub.s32 %v6078, %v6080
        %v6082 = vrot.slane %v6074, %v6081
        %v6084 = vunpack.c.l.s4 1983009808
        %v6085 = vunpack.c.0.s8 %v6084
        %v6086 = vlaneseq
        %v6087 = vshrl.u32 %v6086, 7
        %v6088 = vsub.s32 %v6085, %v6087
        %v6089 = vrot.slane %v6075, %v6088
        %v6090 = vcombine.low %v5893, %v5905
        %v6091 = vcombine.high %v5893, %v5905
        %v6093 = vunpack.c.l.s4 1983009808
        %v6094 = vunpack.c.0.s8 %v6093
        %v6095 = vlaneseq
        %v6096 = vshrl.u32 %v6095, 7
        %v6097 = vsub.s32 %v6094, %v6096
        %v6098 = vrot.slane %v6090, %v6097
        %v6100 = vunpack.c.l.s4 1983009808
        %v6101 = vunpack.c.0.s8 %v6100
        %v6102 = vlaneseq
        %v6103 = vshrl.u32 %v6102, 7
        %v6104 = vsub.s32 %v6101, %v6103
        %v6105 = vrot.slane %v6091, %v6104
        %v6106 = vcombine.low %v5911, %v5923
        %v6107 = vcombine.high %v5911, %v5923
        %v6109 = vunpack.c.l.s4 1983009808
        %v6110 = vunpack.c.0.s8 %v6109
        %v6111 = vlaneseq
        %v6112 = vshrl.u32 %v6111, 7
        %v6113 = vsub.s32 %v6110, %v6112
        %v6114 = vrot.slane %v6106, %v6113
        %v6116 = vunpack.c.l.s4 1983009808
        %v6117 = vunpack.c.0.s8 %v6116
        %v6118 = vlaneseq
        %v6119 = vshrl.u32 %v6118, 7
        %v6120 = vsub.s32 %v6117, %v6119
        %v6121 = vrot.slane %v6107, %v6120
        %v6122 = vcombine.low %v5917, %v5929
        %v6123 = vcombine.high %v5917, %v5929
        %v6125 = vunpack.c.l.s4 1983009808
        %v6126 = vunpack.c.0.s8 %v6125
        %v6127 = vlaneseq
        %v6128 = vshrl.u32 %v6127, 7
        %v6129 = vsub.s32 %v6126, %v6128
        %v6130 = vrot.slane %v6122, %v6129
        %v6132 = vunpack.c.l.s4 1983009808
        %v6133 = vunpack.c.0.s8 %v6132
        %v6134 = vlaneseq
        %v6135 = vshrl.u32 %v6134, 7
        %v6136 = vsub.s32 %v6133, %v6135
        %v6137 = vrot.slane %v6123, %v6136
        %v6138 = vcombine.low %v6082, %v6098
        %v6139 = vcombine.high %v6082, %v6098
        %v6141 = vunpack.c.l.s4 1934713408
        %v6142 = vunpack.c.0.s8 %v6141
        %v6143 = vlaneseq
        %v6144 = vshrl.u32 %v6143, 7
        %v6145 = vsub.s32 %v6142, %v6144
        %v6146 = vrot.slane %v6138, %v6145
        %v6148 = vunpack.c.l.s4 1934713408
        %v6149 = vunpack.c.0.s8 %v6148
        %v6150 = vlaneseq
        %v6151 = vshrl.u32 %v6150, 7
        %v6152 = vsub.s32 %v6149, %v6151
        %v6153 = vrot.slane %v6139, %v6152
        %v6154 = vcombine.low %v6089, %v6105
        %v6155 = vcombine.high %v6089, %v6105
        %v6157 = vunpack.c.l.s4 1934713408
        %v6158 = vunpack.c.0.s8 %v6157
        %v6159 = vlaneseq
        %v6160 = vshrl.u32 %v6159, 7
        %v6161 = vsub.s32 %v6158, %v6160
        %v6162 = vrot.slane %v6154, %v6161
        %v6164 = vunpack.c.l.s4 1934713408
        %v6165 = vunpack.c.0.s8 %v6164
        %v6166 = vlaneseq
        %v6167 = vshrl.u32 %v6166, 7
        %v6168 = vsub.s32 %v6165, %v6167
        %v6169 = vrot.slane %v6155, %v6168
        %v6170 = vcombine.low %v6114, %v6130
        %v6171 = vcombine.high %v6114, %v6130
        %v6173 = vunpack.c.l.s4 1934713408
        %v6174 = vunpack.c.0.s8 %v6173
        %v6175 = vlaneseq
        %v6176 = vshrl.u32 %v6175, 7
        %v6177 = vsub.s32 %v6174, %v6176
        %v6178 = vrot.slane %v6170, %v6177
        %v6180 = vunpack.c.l.s4 1934713408
        %v6181 = vunpack.c.0.s8 %v6180
        %v6182 = vlaneseq
        %v6183 = vshrl.u32 %v6182, 7
        %v6184 = vsub.s32 %v6181, %v6183
        %v6185 = vrot.slane %v6171, %v6184
        %v6186 = vcombine.low %v6121, %v6137
        %v6187 = vcombine.high %v6121, %v6137
        %v6189 = vunpack.c.l.s4 1934713408
        %v6190 = vunpack.c.0.s8 %v6189
        %v6191 = vlaneseq
        %v6192 = vshrl.u32 %v6191, 7
        %v6193 = vsub.s32 %v6190, %v6192
        %v6194 = vrot.slane %v6186, %v6193
        %v6196 = vunpack.c.l.s4 1934713408
        %v6197 = vunpack.c.0.s8 %v6196
        %v6198 = vlaneseq
        %v6199 = vshrl.u32 %v6198, 7
        %v6200 = vsub.s32 %v6197, %v6199
        %v6201 = vrot.slane %v6187, %v6200
        %v6202 = vcombine.low %v6146, %v6178
        %v6203 = vcombine.high %v6146, %v6178
        %v6204 = vcombine.low %v6153, %v6185
        %v6205 = vcombine.high %v6153, %v6185
        %v6206 = vcombine.low %v6162, %v6194
        %v6207 = vcombine.high %v6162, %v6194
        %v6208 = vcombine.low %v6169, %v6201
        %v6209 = vcombine.high %v6169, %v6201
        %v6210 = vcombine.high %v5933, 0.0
        %v6212 = vunpack.c.l.s4 1983009808
        %v6213 = vunpack.c.0.s8 %v6212
        %v6214 = vlaneseq
        %v6215 = vshrl.u32 %v6214, 7
        %v6216 = vsub.s32 %v6213, %v6215
        %v6217 = vrot.slane %v5933, %v6216
        %v6219 = vunpack.c.l.s4 1983009808
        %v6220 = vunpack.c.0.s8 %v6219
        %v6221 = vlaneseq
        %v6222 = vshrl.u32 %v6221, 7
        %v6223 = vsub.s32 %v6220, %v6222
        %v6224 = vrot.slane %v6210, %v6223
        %v6225 = vcombine.high %v5936, 0.0
        %v6227 = vunpack.c.l.s4 1983009808
        %v6228 = vunpack.c.0.s8 %v6227
        %v6229 = vlaneseq
        %v6230 = vshrl.u32 %v6229, 7
        %v6231 = vsub.s32 %v6228, %v6230
        %v6232 = vrot.slane %v5936, %v6231
        %v6234 = vunpack.c.l.s4 1983009808
        %v6235 = vunpack.c.0.s8 %v6234
        %v6236 = vlaneseq
        %v6237 = vshrl.u32 %v6236, 7
        %v6238 = vsub.s32 %v6235, %v6237
        %v6239 = vrot.slane %v6225, %v6238
        %v6240 = vcombine.low %v6217, %v6232
        %v6241 = vcombine.high %v6217, %v6232
        %v6243 = vunpack.c.l.s4 1934713408
        %v6244 = vunpack.c.0.s8 %v6243
        %v6245 = vlaneseq
        %v6246 = vshrl.u32 %v6245, 7
        %v6247 = vsub.s32 %v6244, %v6246
        %v6248 = vrot.slane %v6240, %v6247
        %v6250 = vunpack.c.l.s4 1934713408
        %v6251 = vunpack.c.0.s8 %v6250
        %v6252 = vlaneseq
        %v6253 = vshrl.u32 %v6252, 7
        %v6254 = vsub.s32 %v6251, %v6253
        %v6255 = vrot.slane %v6241, %v6254
        %v6256 = vcombine.low %v6224, %v6239
        %v6257 = vcombine.high %v6224, %v6239
        %v6259 = vunpack.c.l.s4 1934713408
        %v6260 = vunpack.c.0.s8 %v6259
        %v6261 = vlaneseq
        %v6262 = vshrl.u32 %v6261, 7
        %v6263 = vsub.s32 %v6260, %v6262
        %v6264 = vrot.slane %v6256, %v6263
        %v6266 = vunpack.c.l.s4 1934713408
        %v6267 = vunpack.c.0.s8 %v6266
        %v6268 = vlaneseq
        %v6269 = vshrl.u32 %v6268, 7
        %v6270 = vsub.s32 %v6267, %v6269
        %v6271 = vrot.slane %v6257, %v6270
        %v6272 = vcombine.high %v6248, 0.0
        %v6273 = vcombine.high %v6255, 0.0
        %v6274 = vcombine.high %v6264, 0.0
        %v6275 = vcombine.high %v6271, 0.0
        %v6276 = vlaneseq
        %v6277 = vshrl.u32 %v6276, 7
        %v6278 = vadd.s32 %v6277, 8
        %s6279 = ssub.s32 %s383, 3
        %v6280 = vstv %s6279
        %v6281 = vadd.s32 %v6277, %v6280
        %v6282 = vadd.s32 %v6278, %v6280
        %vm6283 = vcmp.ge.s32.totalorder %v6281, 0
        %vm6284 = vcmp.ge.s32.totalorder %v6282, 0
        %vm6285 = vcmp.lt.s32.totalorder %v6281, 4
        %vm6286 = vcmp.lt.s32.totalorder %v6282, 4
        %vm6287 = vmand %vm6283, %vm6285
        %vm6288 = vmand %vm6284, %vm6286
        %v6289 = vsel %vm6287, 1, 0
        %v6290 = vsel %vm6288, 1, 0
        %v6291 = vcvt.s32.f32 %v6289
        %v6292 = vcvt.s32.f32 %v6290
        %v6293 = vmul.f32 %v6066, %v6291
        %v6294 = vmul.f32 %v6067, %v6291
        %v6295 = vmul.f32 %v6068, %v6291
        %v6296 = vmul.f32 %v6069, %v6291
        %v6297 = vmul.f32 %v6070, %v6291
        %v6298 = vmul.f32 %v6071, %v6291
        %v6299 = vmul.f32 %v6072, %v6291
        %v6300 = vmul.f32 %v6073, %v6291
        %v6301 = vmul.f32 %v6202, %v6291
        %v6302 = vmul.f32 %v6248, %v6292
        %v6303 = vmul.f32 %v6203, %v6291
        %v6304 = vmul.f32 %v6272, %v6292
        %v6305 = vmul.f32 %v6204, %v6291
        %v6306 = vmul.f32 %v6255, %v6292
        %v6307 = vmul.f32 %v6205, %v6291
        %v6308 = vmul.f32 %v6273, %v6292
        %v6309 = vmul.f32 %v6206, %v6291
        %v6310 = vmul.f32 %v6264, %v6292
        %v6311 = vmul.f32 %v6207, %v6291
        %v6312 = vmul.f32 %v6274, %v6292
        %v6313 = vmul.f32 %v6208, %v6291
        %v6314 = vmul.f32 %v6271, %v6292
        %v6315 = vmul.f32 %v6209, %v6291
        %v6316 = vmul.f32 %v6275, %v6292
        %v6317 = vpack.c.bf16 %v6302, %v6301
        %v6318 = vpack.c.bf16 %v6304, %v6303
        %v6319 = vpack.c.bf16 %v6306, %v6305
        %v6320 = vpack.c.bf16 %v6308, %v6307
        %v6321 = vpack.c.bf16 %v6310, %v6309
        %v6322 = vpack.c.bf16 %v6312, %v6311
        %v6323 = vpack.c.bf16 %v6314, %v6313
        %v6324 = vpack.c.bf16 %v6316, %v6315
        %v6333 = vunpack.c.l.b16 %v6317
        %v6334 = vunpack.c.h.b16 %v6317
        %v6335 = vunpack.c.l.b16 %v6318
        %v6336 = vunpack.c.h.b16 %v6318
        %v6337 = vunpack.c.l.b16 %v6319
        %v6338 = vunpack.c.h.b16 %v6319
        %v6339 = vunpack.c.l.b16 %v6320
        %v6340 = vunpack.c.h.b16 %v6320
        %v6341 = vunpack.c.l.b16 %v6321
        %v6342 = vunpack.c.h.b16 %v6321
        %v6343 = vunpack.c.l.b16 %v6322
        %v6344 = vunpack.c.h.b16 %v6322
        %v6345 = vunpack.c.l.b16 %v6323
        %v6346 = vunpack.c.h.b16 %v6323
        %v6347 = vunpack.c.l.b16 %v6324
        %v6348 = vunpack.c.h.b16 %v6324
        %v6349 = vpack.c.b16 %v6333, %v6333
        %v6350 = vpack.c.b16 %v6334, %v6334
        %v6351 = vpack.c.b16 %v6335, %v6335
        %v6352 = vpack.c.b16 %v6336, %v6336
        %v6353 = vpack.c.b16 %v6337, %v6337
        %v6354 = vpack.c.b16 %v6338, %v6338
        %v6355 = vpack.c.b16 %v6339, %v6339
        %v6356 = vpack.c.b16 %v6340, %v6340
        %v6357 = vpack.c.b16 %v6341, %v6341
        %v6358 = vpack.c.b16 %v6342, %v6342
        %v6359 = vpack.c.b16 %v6343, %v6343
        %v6360 = vpack.c.b16 %v6344, %v6344
        %v6361 = vpack.c.b16 %v6345, %v6345
        %v6362 = vpack.c.b16 %v6346, %v6346
        %v6363 = vpack.c.b16 %v6347, %v6347
        %v6364 = vpack.c.b16 %v6348, %v6348
        %6365 = vrot.lane.b32.xlu0 %v6349, 1
        %v6366 = vpop.permute.xlu0 %6365
        %6367 = vrot.lane.b32.xlu0 %v6350, 1
        %v6368 = vpop.permute.xlu0 %6367
        %6369 = vrot.lane.b32.xlu0 %v6351, 1
        %v6370 = vpop.permute.xlu0 %6369
        %6371 = vrot.lane.b32.xlu0 %v6352, 1
        %v6372 = vpop.permute.xlu0 %6371
        %6373 = vrot.lane.b32.xlu0 %v6353, 1
        %v6374 = vpop.permute.xlu0 %6373
        %6375 = vrot.lane.b32.xlu0 %v6354, 1
        %v6376 = vpop.permute.xlu0 %6375
        %6377 = vrot.lane.b32.xlu0 %v6355, 1
        %v6378 = vpop.permute.xlu0 %6377
        %6379 = vrot.lane.b32.xlu0 %v6356, 1
        %v6380 = vpop.permute.xlu0 %6379
        %6381 = vrot.lane.b32.xlu0 %v6357, 1
        %v6382 = vpop.permute.xlu0 %6381
        %6383 = vrot.lane.b32.xlu0 %v6358, 1
        %v6384 = vpop.permute.xlu0 %6383
        %6385 = vrot.lane.b32.xlu0 %v6359, 1
        %v6386 = vpop.permute.xlu0 %6385
        %6387 = vrot.lane.b32.xlu0 %v6360, 1
        %v6388 = vpop.permute.xlu0 %6387
        %6389 = vrot.lane.b32.xlu0 %v6361, 1
        %v6390 = vpop.permute.xlu0 %6389
        %6391 = vrot.lane.b32.xlu0 %v6362, 1
        %v6392 = vpop.permute.xlu0 %6391
        %6393 = vrot.lane.b32.xlu0 %v6363, 1
        %v6394 = vpop.permute.xlu0 %6393
        %6395 = vrot.lane.b32.xlu0 %v6364, 1
        %v6396 = vpop.permute.xlu0 %6395
        %vm6413 = vcmask 35848
        %6414 = vst.msk [vmem:[#allocation2] sm:$0xf] %vm6413, %v6366
        %vm6415 = vcmask 32776
        %6416 = vst.msk [vmem:[#allocation2 + $0x4] sm:$0x1] %vm6415, %v6368
        %6417 = vst.msk [vmem:[#allocation2 + $0x8] sm:$0xf] %vm6413, %v6370
        %6418 = vst.msk [vmem:[#allocation2 + $0xc] sm:$0x1] %vm6415, %v6372
        %6419 = vst.msk [vmem:[#allocation2 + $0x10] sm:$0xf] %vm6413, %v6374
        %6420 = vst.msk [vmem:[#allocation2 + $0x14] sm:$0x1] %vm6415, %v6376
        %6421 = vst.msk [vmem:[#allocation2 + $0x18] sm:$0xf] %vm6413, %v6378
        %6422 = vst.msk [vmem:[#allocation2 + $0x1c] sm:$0x1] %vm6415, %v6380
        %6423 = vst.msk [vmem:[#allocation2 + $0x20] sm:$0xf] %vm6413, %v6382
        %6424 = vst.msk [vmem:[#allocation2 + $0x24] sm:$0x1] %vm6415, %v6384
        %6425 = vst.msk [vmem:[#allocation2 + $0x28] sm:$0xf] %vm6413, %v6386
        %6426 = vst.msk [vmem:[#allocation2 + $0x2c] sm:$0x1] %vm6415, %v6388
        %6427 = vst.msk [vmem:[#allocation2 + $0x30] sm:$0xf] %vm6413, %v6390
        %6428 = vst.msk [vmem:[#allocation2 + $0x34] sm:$0x1] %vm6415, %v6392
        %6429 = vst.msk [vmem:[#allocation2 + $0x38] sm:$0xf] %vm6413, %v6394
        %6430 = vst.msk [vmem:[#allocation2 + $0x3c] sm:$0x1] %vm6415, %v6396
        %v6431 = vld [vmem:[%s3] sm:$0xf]
        %v6432 = vld [vmem:[#allocation2] sm:$0xf]
        %v6433 = vld [vmem:[#allocation2 + $0x4] sm:$0x1]
        %v6434 = vld [vmem:[#allocation2 + $0x8] sm:$0xf]
        %v6435 = vld [vmem:[#allocation2 + $0xc] sm:$0x1]
        %v6436 = vld [vmem:[#allocation2 + $0x10] sm:$0xf]
        %v6437 = vld [vmem:[#allocation2 + $0x14] sm:$0x1]
        %v6438 = vld [vmem:[#allocation2 + $0x18] sm:$0xf]
        %v6439 = vld [vmem:[#allocation2 + $0x1c] sm:$0x1]
        %v6440 = vld [vmem:[#allocation2 + $0x20] sm:$0xf]
        %v6441 = vld [vmem:[#allocation2 + $0x24] sm:$0x1]
        %v6442 = vld [vmem:[#allocation2 + $0x28] sm:$0xf]
        %v6443 = vld [vmem:[#allocation2 + $0x2c] sm:$0x1]
        %v6444 = vld [vmem:[#allocation2 + $0x30] sm:$0xf]
        %v6445 = vld [vmem:[#allocation2 + $0x34] sm:$0x1]
        %v6446 = vld [vmem:[#allocation2 + $0x38] sm:$0xf]
        %v6447 = vld [vmem:[#allocation2 + $0x3c] sm:$0x1]
        %v6448 = vcombine.low %v6432, %v6440
        %v6450 = vunpack.c.l.s4 1983009808
        %v6451 = vunpack.c.0.s8 %v6450
        %v6452 = vlaneseq
        %v6453 = vshrl.u32 %v6452, 7
        %v6454 = vsub.s32 %v6451, %v6453
        %v6455 = vrot.slane %v6448, %v6454
        %v6456 = vcombine.low %v6436, %v6444
        %v6458 = vunpack.c.l.s4 1983009808
        %v6459 = vunpack.c.0.s8 %v6458
        %v6460 = vlaneseq
        %v6461 = vshrl.u32 %v6460, 7
        %v6462 = vsub.s32 %v6459, %v6461
        %v6463 = vrot.slane %v6456, %v6462
        %v6464 = vcombine.low %v6455, %v6463
        %v6465 = vcombine.high %v6455, %v6463
        %v6467 = vunpack.c.l.s4 1934713408
        %v6468 = vunpack.c.0.s8 %v6467
        %v6469 = vlaneseq
        %v6470 = vshrl.u32 %v6469, 7
        %v6471 = vsub.s32 %v6468, %v6470
        %v6472 = vrot.slane %v6464, %v6471
        %v6474 = vunpack.c.l.s4 1934713408
        %v6475 = vunpack.c.0.s8 %v6474
        %v6476 = vlaneseq
        %v6477 = vshrl.u32 %v6476, 7
        %v6478 = vsub.s32 %v6475, %v6477
        %v6479 = vrot.slane %v6465, %v6478
        %v6480 = vcombine.high %v6472, 0
        %v6481 = vcombine.high %v6479, 0
        %v6482 = vcombine.low %v6434, %v6442
        %v6484 = vunpack.c.l.s4 1983009808
        %v6485 = vunpack.c.0.s8 %v6484
        %v6486 = vlaneseq
        %v6487 = vshrl.u32 %v6486, 7
        %v6488 = vsub.s32 %v6485, %v6487
        %v6489 = vrot.slane %v6482, %v6488
        %v6490 = vcombine.low %v6438, %v6446
        %v6492 = vunpack.c.l.s4 1983009808
        %v6493 = vunpack.c.0.s8 %v6492
        %v6494 = vlaneseq
        %v6495 = vshrl.u32 %v6494, 7
        %v6496 = vsub.s32 %v6493, %v6495
        %v6497 = vrot.slane %v6490, %v6496
        %v6498 = vcombine.low %v6489, %v6497
        %v6499 = vcombine.high %v6489, %v6497
        %v6501 = vunpack.c.l.s4 1934713408
        %v6502 = vunpack.c.0.s8 %v6501
        %v6503 = vlaneseq
        %v6504 = vshrl.u32 %v6503, 7
        %v6505 = vsub.s32 %v6502, %v6504
        %v6506 = vrot.slane %v6498, %v6505
        %v6508 = vunpack.c.l.s4 1934713408
        %v6509 = vunpack.c.0.s8 %v6508
        %v6510 = vlaneseq
        %v6511 = vshrl.u32 %v6510, 7
        %v6512 = vsub.s32 %v6509, %v6511
        %v6513 = vrot.slane %v6499, %v6512
        %v6514 = vcombine.high %v6506, 0
        %v6515 = vcombine.high %v6513, 0
        %v6518 = vpack.i.b16 %v6506, %v6472
        %v6519 = vshrl.u32 %v6472, 16
        %v6520 = vshrl.u32 %v6506, 16
        %v6521 = vpack.i.b16 %v6520, %v6519
        %v6524 = vpack.i.b16 %v6514, %v6480
        %v6525 = vshrl.u32 %v6480, 16
        %v6526 = vshrl.u32 %v6514, 16
        %v6527 = vpack.i.b16 %v6526, %v6525
        %v6530 = vpack.i.b16 %v6513, %v6479
        %v6531 = vshrl.u32 %v6479, 16
        %v6532 = vshrl.u32 %v6513, 16
        %v6533 = vpack.i.b16 %v6532, %v6531
        %v6536 = vpack.i.b16 %v6515, %v6481
        %v6537 = vshrl.u32 %v6481, 16
        %v6538 = vshrl.u32 %v6515, 16
        %v6539 = vpack.i.b16 %v6538, %v6537
        %v6540 = vunpack.c.l.b16 %v6521
        %v6541 = vpack.c.b16 %v6540, %v6540
        %6542 = vrot.lane.b32.xlu0 %v6541, 4
        %v6543 = vpop.permute.xlu0 %6542
        %v6544 = vunpack.c.l.b16 %v6524
        %v6545 = vpack.c.b16 %v6544, %v6544
        %6546 = vrot.lane.b32.xlu0 %v6545, 8
        %v6547 = vpop.permute.xlu0 %6546
        %v6548 = vunpack.c.l.b16 %v6527
        %v6549 = vpack.c.b16 %v6548, %v6548
        %6550 = vrot.lane.b32.xlu0 %v6549, 12
        %v6551 = vpop.permute.xlu0 %6550
        %v6552 = vunpack.c.l.b16 %v6530
        %v6553 = vpack.c.b16 %v6552, %v6552
        %6554 = vrot.lane.b32.xlu0 %v6553, 16
        %v6555 = vpop.permute.xlu0 %6554
        %v6556 = vunpack.c.l.b16 %v6533
        %v6557 = vpack.c.b16 %v6556, %v6556
        %6558 = vrot.lane.b32.xlu0 %v6557, 20
        %v6559 = vpop.permute.xlu0 %6558
        %v6560 = vunpack.c.l.b16 %v6536
        %v6561 = vpack.c.b16 %v6560, %v6560
        %6562 = vrot.lane.b32.xlu0 %v6561, 24
        %v6563 = vpop.permute.xlu0 %6562
        %v6564 = vunpack.c.l.b16 %v6539
        %v6565 = vpack.c.b16 %v6564, %v6564
        %6566 = vrot.lane.b32.xlu0 %v6565, 28
        %v6567 = vpop.permute.xlu0 %6566
        %v6570 = vsel %vm862, %v6518, %v6543
        %v6572 = vsel %vm869, %v6570, %v6547
        %v6574 = vsel %vm874, %v6572, %v6551
        %v6576 = vsel %vm879, %v6574, %v6555
        %v6578 = vsel %vm884, %v6576, %v6559
        %v6580 = vsel %vm889, %v6578, %v6563
        %v6582 = vsel %vm894, %v6580, %v6567
        %6591 = vrot.lane.b32.xlu0 %v6432, 127
        %v6592 = vpop.permute.xlu0 %6591
        %6593 = vrot.lane.b32.xlu0 %v6434, 127
        %v6594 = vpop.permute.xlu0 %6593
        %6595 = vrot.lane.b32.xlu0 %v6436, 127
        %v6596 = vpop.permute.xlu0 %6595
        %6597 = vrot.lane.b32.xlu0 %v6438, 127
        %v6598 = vpop.permute.xlu0 %6597
        %6599 = vrot.lane.b32.xlu0 %v6440, 127
        %v6600 = vpop.permute.xlu0 %6599
        %6601 = vrot.lane.b32.xlu0 %v6442, 127
        %v6602 = vpop.permute.xlu0 %6601
        %6603 = vrot.lane.b32.xlu0 %v6444, 127
        %v6604 = vpop.permute.xlu0 %6603
        %6605 = vrot.lane.b32.xlu0 %v6446, 127
        %v6606 = vpop.permute.xlu0 %6605
        %v6615 = vcombine.low %v6592, %v6600
        %v6617 = vunpack.c.l.s4 1983009808
        %v6618 = vunpack.c.0.s8 %v6617
        %v6619 = vlaneseq
        %v6620 = vshrl.u32 %v6619, 7
        %v6621 = vsub.s32 %v6618, %v6620
        %v6622 = vrot.slane %v6615, %v6621
        %v6623 = vcombine.low %v6596, %v6604
        %v6625 = vunpack.c.l.s4 1983009808
        %v6626 = vunpack.c.0.s8 %v6625
        %v6627 = vlaneseq
        %v6628 = vshrl.u32 %v6627, 7
        %v6629 = vsub.s32 %v6626, %v6628
        %v6630 = vrot.slane %v6623, %v6629
        %v6631 = vcombine.low %v6622, %v6630
        %v6632 = vcombine.high %v6622, %v6630
        %v6634 = vunpack.c.l.s4 1934713408
        %v6635 = vunpack.c.0.s8 %v6634
        %v6636 = vlaneseq
        %v6637 = vshrl.u32 %v6636, 7
        %v6638 = vsub.s32 %v6635, %v6637
        %v6639 = vrot.slane %v6631, %v6638
        %v6641 = vunpack.c.l.s4 1934713408
        %v6642 = vunpack.c.0.s8 %v6641
        %v6643 = vlaneseq
        %v6644 = vshrl.u32 %v6643, 7
        %v6645 = vsub.s32 %v6642, %v6644
        %v6646 = vrot.slane %v6632, %v6645
        %v6647 = vcombine.high %v6639, 0
        %v6648 = vcombine.high %v6646, 0
        %v6649 = vcombine.low %v6594, %v6602
        %v6651 = vunpack.c.l.s4 1983009808
        %v6652 = vunpack.c.0.s8 %v6651
        %v6653 = vlaneseq
        %v6654 = vshrl.u32 %v6653, 7
        %v6655 = vsub.s32 %v6652, %v6654
        %v6656 = vrot.slane %v6649, %v6655
        %v6657 = vcombine.low %v6598, %v6606
        %v6659 = vunpack.c.l.s4 1983009808
        %v6660 = vunpack.c.0.s8 %v6659
        %v6661 = vlaneseq
        %v6662 = vshrl.u32 %v6661, 7
        %v6663 = vsub.s32 %v6660, %v6662
        %v6664 = vrot.slane %v6657, %v6663
        %v6665 = vcombine.low %v6656, %v6664
        %v6666 = vcombine.high %v6656, %v6664
        %v6668 = vunpack.c.l.s4 1934713408
        %v6669 = vunpack.c.0.s8 %v6668
        %v6670 = vlaneseq
        %v6671 = vshrl.u32 %v6670, 7
        %v6672 = vsub.s32 %v6669, %v6671
        %v6673 = vrot.slane %v6665, %v6672
        %v6675 = vunpack.c.l.s4 1934713408
        %v6676 = vunpack.c.0.s8 %v6675
        %v6677 = vlaneseq
        %v6678 = vshrl.u32 %v6677, 7
        %v6679 = vsub.s32 %v6676, %v6678
        %v6680 = vrot.slane %v6666, %v6679
        %v6681 = vcombine.high %v6673, 0
        %v6682 = vcombine.high %v6680, 0
        %v6685 = vpack.i.b16 %v6673, %v6639
        %v6686 = vshrl.u32 %v6639, 16
        %v6687 = vshrl.u32 %v6673, 16
        %v6688 = vpack.i.b16 %v6687, %v6686
        %v6691 = vpack.i.b16 %v6681, %v6647
        %v6692 = vshrl.u32 %v6647, 16
        %v6693 = vshrl.u32 %v6681, 16
        %v6694 = vpack.i.b16 %v6693, %v6692
        %v6697 = vpack.i.b16 %v6680, %v6646
        %v6698 = vshrl.u32 %v6646, 16
        %v6699 = vshrl.u32 %v6680, 16
        %v6700 = vpack.i.b16 %v6699, %v6698
        %v6703 = vpack.i.b16 %v6682, %v6648
        %v6704 = vshrl.u32 %v6648, 16
        %v6705 = vshrl.u32 %v6682, 16
        %v6706 = vpack.i.b16 %v6705, %v6704
        %v6707 = vunpack.c.l.b16 %v6688
        %v6708 = vpack.c.b16 %v6707, %v6707
        %6709 = vrot.lane.b32.xlu0 %v6708, 4
        %v6710 = vpop.permute.xlu0 %6709
        %v6711 = vunpack.c.l.b16 %v6691
        %v6712 = vpack.c.b16 %v6711, %v6711
        %6713 = vrot.lane.b32.xlu0 %v6712, 8
        %v6714 = vpop.permute.xlu0 %6713
        %v6715 = vunpack.c.l.b16 %v6694
        %v6716 = vpack.c.b16 %v6715, %v6715
        %6717 = vrot.lane.b32.xlu0 %v6716, 12
        %v6718 = vpop.permute.xlu0 %6717
        %v6719 = vunpack.c.l.b16 %v6697
        %v6720 = vpack.c.b16 %v6719, %v6719
        %6721 = vrot.lane.b32.xlu0 %v6720, 16
        %v6722 = vpop.permute.xlu0 %6721
        %v6723 = vunpack.c.l.b16 %v6700
        %v6724 = vpack.c.b16 %v6723, %v6723
        %6725 = vrot.lane.b32.xlu0 %v6724, 20
        %v6726 = vpop.permute.xlu0 %6725
        %v6727 = vunpack.c.l.b16 %v6703
        %v6728 = vpack.c.b16 %v6727, %v6727
        %6729 = vrot.lane.b32.xlu0 %v6728, 24
        %v6730 = vpop.permute.xlu0 %6729
        %v6731 = vunpack.c.l.b16 %v6706
        %v6732 = vpack.c.b16 %v6731, %v6731
        %6733 = vrot.lane.b32.xlu0 %v6732, 28
        %v6734 = vpop.permute.xlu0 %6733
        %v6737 = vsel %vm862, %v6685, %v6710
        %v6739 = vsel %vm869, %v6737, %v6714
        %v6741 = vsel %vm874, %v6739, %v6718
        %v6743 = vsel %vm879, %v6741, %v6722
        %v6745 = vsel %vm884, %v6743, %v6726
        %v6747 = vsel %vm889, %v6745, %v6730
        %v6749 = vsel %vm894, %v6747, %v6734
        %6750 = vrot.lane.b32.xlu0 %v6432, 126
        %v6751 = vpop.permute.xlu0 %6750
        %6752 = vrot.lane.b32.xlu0 %v6434, 126
        %v6753 = vpop.permute.xlu0 %6752
        %6754 = vrot.lane.b32.xlu0 %v6436, 126
        %v6755 = vpop.permute.xlu0 %6754
        %6756 = vrot.lane.b32.xlu0 %v6438, 126
        %v6757 = vpop.permute.xlu0 %6756
        %6758 = vrot.lane.b32.xlu0 %v6440, 126
        %v6759 = vpop.permute.xlu0 %6758
        %6760 = vrot.lane.b32.xlu0 %v6442, 126
        %v6761 = vpop.permute.xlu0 %6760
        %6762 = vrot.lane.b32.xlu0 %v6444, 126
        %v6763 = vpop.permute.xlu0 %6762
        %6764 = vrot.lane.b32.xlu0 %v6446, 126
        %v6765 = vpop.permute.xlu0 %6764
        %v6774 = vcombine.low %v6751, %v6759
        %v6776 = vunpack.c.l.s4 1983009808
        %v6777 = vunpack.c.0.s8 %v6776
        %v6778 = vlaneseq
        %v6779 = vshrl.u32 %v6778, 7
        %v6780 = vsub.s32 %v6777, %v6779
        %v6781 = vrot.slane %v6774, %v6780
        %v6782 = vcombine.low %v6755, %v6763
        %v6784 = vunpack.c.l.s4 1983009808
        %v6785 = vunpack.c.0.s8 %v6784
        %v6786 = vlaneseq
        %v6787 = vshrl.u32 %v6786, 7
        %v6788 = vsub.s32 %v6785, %v6787
        %v6789 = vrot.slane %v6782, %v6788
        %v6790 = vcombine.low %v6781, %v6789
        %v6791 = vcombine.high %v6781, %v6789
        %v6793 = vunpack.c.l.s4 1934713408
        %v6794 = vunpack.c.0.s8 %v6793
        %v6795 = vlaneseq
        %v6796 = vshrl.u32 %v6795, 7
        %v6797 = vsub.s32 %v6794, %v6796
        %v6798 = vrot.slane %v6790, %v6797
        %v6800 = vunpack.c.l.s4 1934713408
        %v6801 = vunpack.c.0.s8 %v6800
        %v6802 = vlaneseq
        %v6803 = vshrl.u32 %v6802, 7
        %v6804 = vsub.s32 %v6801, %v6803
        %v6805 = vrot.slane %v6791, %v6804
        %v6806 = vcombine.high %v6798, 0
        %v6807 = vcombine.high %v6805, 0
        %v6808 = vcombine.low %v6753, %v6761
        %v6810 = vunpack.c.l.s4 1983009808
        %v6811 = vunpack.c.0.s8 %v6810
        %v6812 = vlaneseq
        %v6813 = vshrl.u32 %v6812, 7
        %v6814 = vsub.s32 %v6811, %v6813
        %v6815 = vrot.slane %v6808, %v6814
        %v6816 = vcombine.low %v6757, %v6765
        %v6818 = vunpack.c.l.s4 1983009808
        %v6819 = vunpack.c.0.s8 %v6818
        %v6820 = vlaneseq
        %v6821 = vshrl.u32 %v6820, 7
        %v6822 = vsub.s32 %v6819, %v6821
        %v6823 = vrot.slane %v6816, %v6822
        %v6824 = vcombine.low %v6815, %v6823
        %v6825 = vcombine.high %v6815, %v6823
        %v6827 = vunpack.c.l.s4 1934713408
        %v6828 = vunpack.c.0.s8 %v6827
        %v6829 = vlaneseq
        %v6830 = vshrl.u32 %v6829, 7
        %v6831 = vsub.s32 %v6828, %v6830
        %v6832 = vrot.slane %v6824, %v6831
        %v6834 = vunpack.c.l.s4 1934713408
        %v6835 = vunpack.c.0.s8 %v6834
        %v6836 = vlaneseq
        %v6837 = vshrl.u32 %v6836, 7
        %v6838 = vsub.s32 %v6835, %v6837
        %v6839 = vrot.slane %v6825, %v6838
        %v6840 = vcombine.high %v6832, 0
        %v6841 = vcombine.high %v6839, 0
        %v6844 = vpack.i.b16 %v6832, %v6798
        %v6845 = vshrl.u32 %v6798, 16
        %v6846 = vshrl.u32 %v6832, 16
        %v6847 = vpack.i.b16 %v6846, %v6845
        %v6850 = vpack.i.b16 %v6840, %v6806
        %v6851 = vshrl.u32 %v6806, 16
        %v6852 = vshrl.u32 %v6840, 16
        %v6853 = vpack.i.b16 %v6852, %v6851
        %v6856 = vpack.i.b16 %v6839, %v6805
        %v6857 = vshrl.u32 %v6805, 16
        %v6858 = vshrl.u32 %v6839, 16
        %v6859 = vpack.i.b16 %v6858, %v6857
        %v6862 = vpack.i.b16 %v6841, %v6807
        %v6863 = vshrl.u32 %v6807, 16
        %v6864 = vshrl.u32 %v6841, 16
        %v6865 = vpack.i.b16 %v6864, %v6863
        %v6866 = vunpack.c.l.b16 %v6847
        %v6867 = vpack.c.b16 %v6866, %v6866
        %6868 = vrot.lane.b32.xlu0 %v6867, 4
        %v6869 = vpop.permute.xlu0 %6868
        %v6870 = vunpack.c.l.b16 %v6850
        %v6871 = vpack.c.b16 %v6870, %v6870
        %6872 = vrot.lane.b32.xlu0 %v6871, 8
        %v6873 = vpop.permute.xlu0 %6872
        %v6874 = vunpack.c.l.b16 %v6853
        %v6875 = vpack.c.b16 %v6874, %v6874
        %6876 = vrot.lane.b32.xlu0 %v6875, 12
        %v6877 = vpop.permute.xlu0 %6876
        %v6878 = vunpack.c.l.b16 %v6856
        %v6879 = vpack.c.b16 %v6878, %v6878
        %6880 = vrot.lane.b32.xlu0 %v6879, 16
        %v6881 = vpop.permute.xlu0 %6880
        %v6882 = vunpack.c.l.b16 %v6859
        %v6883 = vpack.c.b16 %v6882, %v6882
        %6884 = vrot.lane.b32.xlu0 %v6883, 20
        %v6885 = vpop.permute.xlu0 %6884
        %v6886 = vunpack.c.l.b16 %v6862
        %v6887 = vpack.c.b16 %v6886, %v6886
        %6888 = vrot.lane.b32.xlu0 %v6887, 24
        %v6889 = vpop.permute.xlu0 %6888
        %v6890 = vunpack.c.l.b16 %v6865
        %v6891 = vpack.c.b16 %v6890, %v6890
        %6892 = vrot.lane.b32.xlu0 %v6891, 28
        %v6893 = vpop.permute.xlu0 %6892
        %v6896 = vsel %vm862, %v6844, %v6869
        %v6898 = vsel %vm869, %v6896, %v6873
        %v6900 = vsel %vm874, %v6898, %v6877
        %v6902 = vsel %vm879, %v6900, %v6881
        %v6904 = vsel %vm884, %v6902, %v6885
        %v6906 = vsel %vm889, %v6904, %v6889
        %v6908 = vsel %vm894, %v6906, %v6893
        %v6910 = vshrl.u32 %v6432, 16
        %v6912 = vrot.slane %v6910, 4
        %v6913 = vshll.u32 %v6432, 16
        %v6915 = vrot.slane %v6913, 5
        %v6916 = vor.u32 %v6912, %v6915
        %v6917 = vrot.slane %v6916, 4
        %v6919 = vshll.u32 %v6433, 16
        %v6921 = vrot.slane %v6919, 5
        %v6922 = vsel %vm2069, %v6917, %v6921
        %v6924 = vshrl.u32 %v6434, 16
        %v6926 = vrot.slane %v6924, 4
        %v6927 = vshll.u32 %v6434, 16
        %v6929 = vrot.slane %v6927, 5
        %v6930 = vor.u32 %v6926, %v6929
        %v6931 = vrot.slane %v6930, 4
        %v6933 = vshll.u32 %v6435, 16
        %v6935 = vrot.slane %v6933, 5
        %v6936 = vsel %vm2069, %v6931, %v6935
        %v6938 = vshrl.u32 %v6436, 16
        %v6940 = vrot.slane %v6938, 4
        %v6941 = vshll.u32 %v6436, 16
        %v6943 = vrot.slane %v6941, 5
        %v6944 = vor.u32 %v6940, %v6943
        %v6945 = vrot.slane %v6944, 4
        %v6947 = vshll.u32 %v6437, 16
        %v6949 = vrot.slane %v6947, 5
        %v6950 = vsel %vm2069, %v6945, %v6949
        %v6952 = vshrl.u32 %v6438, 16
        %v6954 = vrot.slane %v6952, 4
        %v6955 = vshll.u32 %v6438, 16
        %v6957 = vrot.slane %v6955, 5
        %v6958 = vor.u32 %v6954, %v6957
        %v6959 = vrot.slane %v6958, 4
        %v6961 = vshll.u32 %v6439, 16
        %v6963 = vrot.slane %v6961, 5
        %v6964 = vsel %vm2069, %v6959, %v6963
        %v6966 = vshrl.u32 %v6440, 16
        %v6968 = vrot.slane %v6966, 4
        %v6969 = vshll.u32 %v6440, 16
        %v6971 = vrot.slane %v6969, 5
        %v6972 = vor.u32 %v6968, %v6971
        %v6973 = vrot.slane %v6972, 4
        %v6975 = vshll.u32 %v6441, 16
        %v6977 = vrot.slane %v6975, 5
        %v6978 = vsel %vm2069, %v6973, %v6977
        %v6980 = vshrl.u32 %v6442, 16
        %v6982 = vrot.slane %v6980, 4
        %v6983 = vshll.u32 %v6442, 16
        %v6985 = vrot.slane %v6983, 5
        %v6986 = vor.u32 %v6982, %v6985
        %v6987 = vrot.slane %v6986, 4
        %v6989 = vshll.u32 %v6443, 16
        %v6991 = vrot.slane %v6989, 5
        %v6992 = vsel %vm2069, %v6987, %v6991
        %v6994 = vshrl.u32 %v6444, 16
        %v6996 = vrot.slane %v6994, 4
        %v6997 = vshll.u32 %v6444, 16
        %v6999 = vrot.slane %v6997, 5
        %v7000 = vor.u32 %v6996, %v6999
        %v7001 = vrot.slane %v7000, 4
        %v7003 = vshll.u32 %v6445, 16
        %v7005 = vrot.slane %v7003, 5
        %v7006 = vsel %vm2069, %v7001, %v7005
        %v7008 = vshrl.u32 %v6446, 16
        %v7010 = vrot.slane %v7008, 4
        %v7011 = vshll.u32 %v6446, 16
        %v7013 = vrot.slane %v7011, 5
        %v7014 = vor.u32 %v7010, %v7013
        %v7015 = vrot.slane %v7014, 4
        %v7017 = vshll.u32 %v6447, 16
        %v7019 = vrot.slane %v7017, 5
        %v7020 = vsel %vm2069, %v7015, %v7019
        %v7029 = vcombine.low %v6922, %v6978
        %v7031 = vunpack.c.l.s4 1983009808
        %v7032 = vunpack.c.0.s8 %v7031
        %v7033 = vlaneseq
        %v7034 = vshrl.u32 %v7033, 7
        %v7035 = vsub.s32 %v7032, %v7034
        %v7036 = vrot.slane %v7029, %v7035
        %v7037 = vcombine.low %v6950, %v7006
        %v7039 = vunpack.c.l.s4 1983009808
        %v7040 = vunpack.c.0.s8 %v7039
        %v7041 = vlaneseq
        %v7042 = vshrl.u32 %v7041, 7
        %v7043 = vsub.s32 %v7040, %v7042
        %v7044 = vrot.slane %v7037, %v7043
        %v7045 = vcombine.low %v7036, %v7044
        %v7046 = vcombine.high %v7036, %v7044
        %v7048 = vunpack.c.l.s4 1934713408
        %v7049 = vunpack.c.0.s8 %v7048
        %v7050 = vlaneseq
        %v7051 = vshrl.u32 %v7050, 7
        %v7052 = vsub.s32 %v7049, %v7051
        %v7053 = vrot.slane %v7045, %v7052
        %v7055 = vunpack.c.l.s4 1934713408
        %v7056 = vunpack.c.0.s8 %v7055
        %v7057 = vlaneseq
        %v7058 = vshrl.u32 %v7057, 7
        %v7059 = vsub.s32 %v7056, %v7058
        %v7060 = vrot.slane %v7046, %v7059
        %v7061 = vcombine.high %v7053, 0
        %v7062 = vcombine.high %v7060, 0
        %v7063 = vcombine.low %v6936, %v6992
        %v7065 = vunpack.c.l.s4 1983009808
        %v7066 = vunpack.c.0.s8 %v7065
        %v7067 = vlaneseq
        %v7068 = vshrl.u32 %v7067, 7
        %v7069 = vsub.s32 %v7066, %v7068
        %v7070 = vrot.slane %v7063, %v7069
        %v7071 = vcombine.low %v6964, %v7020
        %v7073 = vunpack.c.l.s4 1983009808
        %v7074 = vunpack.c.0.s8 %v7073
        %v7075 = vlaneseq
        %v7076 = vshrl.u32 %v7075, 7
        %v7077 = vsub.s32 %v7074, %v7076
        %v7078 = vrot.slane %v7071, %v7077
        %v7079 = vcombine.low %v7070, %v7078
        %v7080 = vcombine.high %v7070, %v7078
        %v7082 = vunpack.c.l.s4 1934713408
        %v7083 = vunpack.c.0.s8 %v7082
        %v7084 = vlaneseq
        %v7085 = vshrl.u32 %v7084, 7
        %v7086 = vsub.s32 %v7083, %v7085
        %v7087 = vrot.slane %v7079, %v7086
        %v7089 = vunpack.c.l.s4 1934713408
        %v7090 = vunpack.c.0.s8 %v7089
        %v7091 = vlaneseq
        %v7092 = vshrl.u32 %v7091, 7
        %v7093 = vsub.s32 %v7090, %v7092
        %v7094 = vrot.slane %v7080, %v7093
        %v7095 = vcombine.high %v7087, 0
        %v7096 = vcombine.high %v7094, 0
        %v7099 = vpack.i.b16 %v7087, %v7053
        %v7100 = vshrl.u32 %v7053, 16
        %v7101 = vshrl.u32 %v7087, 16
        %v7102 = vpack.i.b16 %v7101, %v7100
        %v7105 = vpack.i.b16 %v7095, %v7061
        %v7106 = vshrl.u32 %v7061, 16
        %v7107 = vshrl.u32 %v7095, 16
        %v7108 = vpack.i.b16 %v7107, %v7106
        %v7111 = vpack.i.b16 %v7094, %v7060
        %v7112 = vshrl.u32 %v7060, 16
        %v7113 = vshrl.u32 %v7094, 16
        %v7114 = vpack.i.b16 %v7113, %v7112
        %v7117 = vpack.i.b16 %v7096, %v7062
        %v7118 = vshrl.u32 %v7062, 16
        %v7119 = vshrl.u32 %v7096, 16
        %v7120 = vpack.i.b16 %v7119, %v7118
        %v7121 = vunpack.c.l.b16 %v7102
        %v7122 = vpack.c.b16 %v7121, %v7121
        %7123 = vrot.lane.b32.xlu0 %v7122, 4
        %v7124 = vpop.permute.xlu0 %7123
        %v7125 = vunpack.c.l.b16 %v7105
        %v7126 = vpack.c.b16 %v7125, %v7125
        %7127 = vrot.lane.b32.xlu0 %v7126, 8
        %v7128 = vpop.permute.xlu0 %7127
        %v7129 = vunpack.c.l.b16 %v7108
        %v7130 = vpack.c.b16 %v7129, %v7129
        %7131 = vrot.lane.b32.xlu0 %v7130, 12
        %v7132 = vpop.permute.xlu0 %7131
        %v7133 = vunpack.c.l.b16 %v7111
        %v7134 = vpack.c.b16 %v7133, %v7133
        %7135 = vrot.lane.b32.xlu0 %v7134, 16
        %v7136 = vpop.permute.xlu0 %7135
        %v7137 = vunpack.c.l.b16 %v7114
        %v7138 = vpack.c.b16 %v7137, %v7137
        %7139 = vrot.lane.b32.xlu0 %v7138, 20
        %v7140 = vpop.permute.xlu0 %7139
        %v7141 = vunpack.c.l.b16 %v7117
        %v7142 = vpack.c.b16 %v7141, %v7141
        %7143 = vrot.lane.b32.xlu0 %v7142, 24
        %v7144 = vpop.permute.xlu0 %7143
        %v7145 = vunpack.c.l.b16 %v7120
        %v7146 = vpack.c.b16 %v7145, %v7145
        %7147 = vrot.lane.b32.xlu0 %v7146, 28
        %v7148 = vpop.permute.xlu0 %7147
        %v7151 = vsel %vm862, %v7099, %v7124
        %v7153 = vsel %vm869, %v7151, %v7128
        %v7155 = vsel %vm874, %v7153, %v7132
        %v7157 = vsel %vm879, %v7155, %v7136
        %v7159 = vsel %vm884, %v7157, %v7140
        %v7161 = vsel %vm889, %v7159, %v7144
        %v7163 = vsel %vm894, %v7161, %v7148
        %7164 = vrot.lane.b32.xlu0 %v6922, 127
        %v7165 = vpop.permute.xlu0 %7164
        %7166 = vrot.lane.b32.xlu0 %v6936, 127
        %v7167 = vpop.permute.xlu0 %7166
        %7168 = vrot.lane.b32.xlu0 %v6950, 127
        %v7169 = vpop.permute.xlu0 %7168
        %7170 = vrot.lane.b32.xlu0 %v6964, 127
        %v7171 = vpop.permute.xlu0 %7170
        %7172 = vrot.lane.b32.xlu0 %v6978, 127
        %v7173 = vpop.permute.xlu0 %7172
        %7174 = vrot.lane.b32.xlu0 %v6992, 127
        %v7175 = vpop.permute.xlu0 %7174
        %7176 = vrot.lane.b32.xlu0 %v7006, 127
        %v7177 = vpop.permute.xlu0 %7176
        %7178 = vrot.lane.b32.xlu0 %v7020, 127
        %v7179 = vpop.permute.xlu0 %7178
        %v7188 = vcombine.low %v7165, %v7173
        %v7190 = vunpack.c.l.s4 1983009808
        %v7191 = vunpack.c.0.s8 %v7190
        %v7192 = vlaneseq
        %v7193 = vshrl.u32 %v7192, 7
        %v7194 = vsub.s32 %v7191, %v7193
        %v7195 = vrot.slane %v7188, %v7194
        %v7196 = vcombine.low %v7169, %v7177
        %v7198 = vunpack.c.l.s4 1983009808
        %v7199 = vunpack.c.0.s8 %v7198
        %v7200 = vlaneseq
        %v7201 = vshrl.u32 %v7200, 7
        %v7202 = vsub.s32 %v7199, %v7201
        %v7203 = vrot.slane %v7196, %v7202
        %v7204 = vcombine.low %v7195, %v7203
        %v7205 = vcombine.high %v7195, %v7203
        %v7207 = vunpack.c.l.s4 1934713408
        %v7208 = vunpack.c.0.s8 %v7207
        %v7209 = vlaneseq
        %v7210 = vshrl.u32 %v7209, 7
        %v7211 = vsub.s32 %v7208, %v7210
        %v7212 = vrot.slane %v7204, %v7211
        %v7214 = vunpack.c.l.s4 1934713408
        %v7215 = vunpack.c.0.s8 %v7214
        %v7216 = vlaneseq
        %v7217 = vshrl.u32 %v7216, 7
        %v7218 = vsub.s32 %v7215, %v7217
        %v7219 = vrot.slane %v7205, %v7218
        %v7220 = vcombine.high %v7212, 0
        %v7221 = vcombine.high %v7219, 0
        %v7222 = vcombine.low %v7167, %v7175
        %v7224 = vunpack.c.l.s4 1983009808
        %v7225 = vunpack.c.0.s8 %v7224
        %v7226 = vlaneseq
        %v7227 = vshrl.u32 %v7226, 7
        %v7228 = vsub.s32 %v7225, %v7227
        %v7229 = vrot.slane %v7222, %v7228
        %v7230 = vcombine.low %v7171, %v7179
        %v7232 = vunpack.c.l.s4 1983009808
        %v7233 = vunpack.c.0.s8 %v7232
        %v7234 = vlaneseq
        %v7235 = vshrl.u32 %v7234, 7
        %v7236 = vsub.s32 %v7233, %v7235
        %v7237 = vrot.slane %v7230, %v7236
        %v7238 = vcombine.low %v7229, %v7237
        %v7239 = vcombine.high %v7229, %v7237
        %v7241 = vunpack.c.l.s4 1934713408
        %v7242 = vunpack.c.0.s8 %v7241
        %v7243 = vlaneseq
        %v7244 = vshrl.u32 %v7243, 7
        %v7245 = vsub.s32 %v7242, %v7244
        %v7246 = vrot.slane %v7238, %v7245
        %v7248 = vunpack.c.l.s4 1934713408
        %v7249 = vunpack.c.0.s8 %v7248
        %v7250 = vlaneseq
        %v7251 = vshrl.u32 %v7250, 7
        %v7252 = vsub.s32 %v7249, %v7251
        %v7253 = vrot.slane %v7239, %v7252
        %v7254 = vcombine.high %v7246, 0
        %v7255 = vcombine.high %v7253, 0
        %v7258 = vpack.i.b16 %v7246, %v7212
        %v7259 = vshrl.u32 %v7212, 16
        %v7260 = vshrl.u32 %v7246, 16
        %v7261 = vpack.i.b16 %v7260, %v7259
        %v7264 = vpack.i.b16 %v7254, %v7220
        %v7265 = vshrl.u32 %v7220, 16
        %v7266 = vshrl.u32 %v7254, 16
        %v7267 = vpack.i.b16 %v7266, %v7265
        %v7270 = vpack.i.b16 %v7253, %v7219
        %v7271 = vshrl.u32 %v7219, 16
        %v7272 = vshrl.u32 %v7253, 16
        %v7273 = vpack.i.b16 %v7272, %v7271
        %v7276 = vpack.i.b16 %v7255, %v7221
        %v7277 = vshrl.u32 %v7221, 16
        %v7278 = vshrl.u32 %v7255, 16
        %v7279 = vpack.i.b16 %v7278, %v7277
        %v7280 = vunpack.c.l.b16 %v7261
        %v7281 = vpack.c.b16 %v7280, %v7280
        %7282 = vrot.lane.b32.xlu0 %v7281, 4
        %v7283 = vpop.permute.xlu0 %7282
        %v7284 = vunpack.c.l.b16 %v7264
        %v7285 = vpack.c.b16 %v7284, %v7284
        %7286 = vrot.lane.b32.xlu0 %v7285, 8
        %v7287 = vpop.permute.xlu0 %7286
        %v7288 = vunpack.c.l.b16 %v7267
        %v7289 = vpack.c.b16 %v7288, %v7288
        %7290 = vrot.lane.b32.xlu0 %v7289, 12
        %v7291 = vpop.permute.xlu0 %7290
        %v7292 = vunpack.c.l.b16 %v7270
        %v7293 = vpack.c.b16 %v7292, %v7292
        %7294 = vrot.lane.b32.xlu0 %v7293, 16
        %v7295 = vpop.permute.xlu0 %7294
        %v7296 = vunpack.c.l.b16 %v7273
        %v7297 = vpack.c.b16 %v7296, %v7296
        %7298 = vrot.lane.b32.xlu0 %v7297, 20
        %v7299 = vpop.permute.xlu0 %7298
        %v7300 = vunpack.c.l.b16 %v7276
        %v7301 = vpack.c.b16 %v7300, %v7300
        %7302 = vrot.lane.b32.xlu0 %v7301, 24
        %v7303 = vpop.permute.xlu0 %7302
        %v7304 = vunpack.c.l.b16 %v7279
        %v7305 = vpack.c.b16 %v7304, %v7304
        %7306 = vrot.lane.b32.xlu0 %v7305, 28
        %v7307 = vpop.permute.xlu0 %7306
        %v7310 = vsel %vm862, %v7258, %v7283
        %v7312 = vsel %vm869, %v7310, %v7287
        %v7314 = vsel %vm874, %v7312, %v7291
        %v7316 = vsel %vm879, %v7314, %v7295
        %v7318 = vsel %vm884, %v7316, %v7299
        %v7320 = vsel %vm889, %v7318, %v7303
        %v7322 = vsel %vm894, %v7320, %v7307
        %7323 = vrot.lane.b32.xlu0 %v6922, 126
        %v7324 = vpop.permute.xlu0 %7323
        %7325 = vrot.lane.b32.xlu0 %v6936, 126
        %v7326 = vpop.permute.xlu0 %7325
        %7327 = vrot.lane.b32.xlu0 %v6950, 126
        %v7328 = vpop.permute.xlu0 %7327
        %7329 = vrot.lane.b32.xlu0 %v6964, 126
        %v7330 = vpop.permute.xlu0 %7329
        %7331 = vrot.lane.b32.xlu0 %v6978, 126
        %v7332 = vpop.permute.xlu0 %7331
        %7333 = vrot.lane.b32.xlu0 %v6992, 126
        %v7334 = vpop.permute.xlu0 %7333
        %7335 = vrot.lane.b32.xlu0 %v7006, 126
        %v7336 = vpop.permute.xlu0 %7335
        %7337 = vrot.lane.b32.xlu0 %v7020, 126
        %v7338 = vpop.permute.xlu0 %7337
        %v7347 = vcombine.low %v7324, %v7332
        %v7349 = vunpack.c.l.s4 1983009808
        %v7350 = vunpack.c.0.s8 %v7349
        %v7351 = vlaneseq
        %v7352 = vshrl.u32 %v7351, 7
        %v7353 = vsub.s32 %v7350, %v7352
        %v7354 = vrot.slane %v7347, %v7353
        %v7355 = vcombine.low %v7328, %v7336
        %v7357 = vunpack.c.l.s4 1983009808
        %v7358 = vunpack.c.0.s8 %v7357
        %v7359 = vlaneseq
        %v7360 = vshrl.u32 %v7359, 7
        %v7361 = vsub.s32 %v7358, %v7360
        %v7362 = vrot.slane %v7355, %v7361
        %v7363 = vcombine.low %v7354, %v7362
        %v7364 = vcombine.high %v7354, %v7362
        %v7366 = vunpack.c.l.s4 1934713408
        %v7367 = vunpack.c.0.s8 %v7366
        %v7368 = vlaneseq
        %v7369 = vshrl.u32 %v7368, 7
        %v7370 = vsub.s32 %v7367, %v7369
        %v7371 = vrot.slane %v7363, %v7370
        %v7373 = vunpack.c.l.s4 1934713408
        %v7374 = vunpack.c.0.s8 %v7373
        %v7375 = vlaneseq
        %v7376 = vshrl.u32 %v7375, 7
        %v7377 = vsub.s32 %v7374, %v7376
        %v7378 = vrot.slane %v7364, %v7377
        %v7379 = vcombine.high %v7371, 0
        %v7380 = vcombine.high %v7378, 0
        %v7381 = vcombine.low %v7326, %v7334
        %v7383 = vunpack.c.l.s4 1983009808
        %v7384 = vunpack.c.0.s8 %v7383
        %v7385 = vlaneseq
        %v7386 = vshrl.u32 %v7385, 7
        %v7387 = vsub.s32 %v7384, %v7386
        %v7388 = vrot.slane %v7381, %v7387
        %v7389 = vcombine.low %v7330, %v7338
        %v7391 = vunpack.c.l.s4 1983009808
        %v7392 = vunpack.c.0.s8 %v7391
        %v7393 = vlaneseq
        %v7394 = vshrl.u32 %v7393, 7
        %v7395 = vsub.s32 %v7392, %v7394
        %v7396 = vrot.slane %v7389, %v7395
        %v7397 = vcombine.low %v7388, %v7396
        %v7398 = vcombine.high %v7388, %v7396
        %v7400 = vunpack.c.l.s4 1934713408
        %v7401 = vunpack.c.0.s8 %v7400
        %v7402 = vlaneseq
        %v7403 = vshrl.u32 %v7402, 7
        %v7404 = vsub.s32 %v7401, %v7403
        %v7405 = vrot.slane %v7397, %v7404
        %v7407 = vunpack.c.l.s4 1934713408
        %v7408 = vunpack.c.0.s8 %v7407
        %v7409 = vlaneseq
        %v7410 = vshrl.u32 %v7409, 7
        %v7411 = vsub.s32 %v7408, %v7410
        %v7412 = vrot.slane %v7398, %v7411
        %v7413 = vcombine.high %v7405, 0
        %v7414 = vcombine.high %v7412, 0
        %v7417 = vpack.i.b16 %v7405, %v7371
        %v7418 = vshrl.u32 %v7371, 16
        %v7419 = vshrl.u32 %v7405, 16
        %v7420 = vpack.i.b16 %v7419, %v7418
        %v7423 = vpack.i.b16 %v7413, %v7379
        %v7424 = vshrl.u32 %v7379, 16
        %v7425 = vshrl.u32 %v7413, 16
        %v7426 = vpack.i.b16 %v7425, %v7424
        %v7429 = vpack.i.b16 %v7412, %v7378
        %v7430 = vshrl.u32 %v7378, 16
        %v7431 = vshrl.u32 %v7412, 16
        %v7432 = vpack.i.b16 %v7431, %v7430
        %v7435 = vpack.i.b16 %v7414, %v7380
        %v7436 = vshrl.u32 %v7380, 16
        %v7437 = vshrl.u32 %v7414, 16
        %v7438 = vpack.i.b16 %v7437, %v7436
        %v7439 = vunpack.c.l.b16 %v7420
        %v7440 = vpack.c.b16 %v7439, %v7439
        %7441 = vrot.lane.b32.xlu0 %v7440, 4
        %v7442 = vpop.permute.xlu0 %7441
        %v7443 = vunpack.c.l.b16 %v7423
        %v7444 = vpack.c.b16 %v7443, %v7443
        %7445 = vrot.lane.b32.xlu0 %v7444, 8
        %v7446 = vpop.permute.xlu0 %7445
        %v7447 = vunpack.c.l.b16 %v7426
        %v7448 = vpack.c.b16 %v7447, %v7447
        %7449 = vrot.lane.b32.xlu0 %v7448, 12
        %v7450 = vpop.permute.xlu0 %7449
        %v7451 = vunpack.c.l.b16 %v7429
        %v7452 = vpack.c.b16 %v7451, %v7451
        %7453 = vrot.lane.b32.xlu0 %v7452, 16
        %v7454 = vpop.permute.xlu0 %7453
        %v7455 = vunpack.c.l.b16 %v7432
        %v7456 = vpack.c.b16 %v7455, %v7455
        %7457 = vrot.lane.b32.xlu0 %v7456, 20
        %v7458 = vpop.permute.xlu0 %7457
        %v7459 = vunpack.c.l.b16 %v7435
        %v7460 = vpack.c.b16 %v7459, %v7459
        %7461 = vrot.lane.b32.xlu0 %v7460, 24
        %v7462 = vpop.permute.xlu0 %7461
        %v7463 = vunpack.c.l.b16 %v7438
        %v7464 = vpack.c.b16 %v7463, %v7463
        %7465 = vrot.lane.b32.xlu0 %v7464, 28
        %v7466 = vpop.permute.xlu0 %7465
        %v7469 = vsel %vm862, %v7417, %v7442
        %v7471 = vsel %vm869, %v7469, %v7446
        %v7473 = vsel %vm874, %v7471, %v7450
        %v7475 = vsel %vm879, %v7473, %v7454
        %v7477 = vsel %vm884, %v7475, %v7458
        %v7479 = vsel %vm889, %v7477, %v7462
        %v7481 = vsel %vm894, %v7479, %v7466
        %v7490 = vrot.slane %v6432, 5
        %v7491 = vrot.slane %v7490, 4
        %v7492 = vrot.slane %v6433, 5
        %v7493 = vsel %vm4008, %v7491, %v7492
        %v7494 = vrot.slane %v6434, 5
        %v7495 = vrot.slane %v7494, 4
        %v7496 = vrot.slane %v6435, 5
        %v7497 = vsel %vm4008, %v7495, %v7496
        %v7498 = vrot.slane %v6436, 5
        %v7499 = vrot.slane %v7498, 4
        %v7500 = vrot.slane %v6437, 5
        %v7501 = vsel %vm4008, %v7499, %v7500
        %v7502 = vrot.slane %v6438, 5
        %v7503 = vrot.slane %v7502, 4
        %v7504 = vrot.slane %v6439, 5
        %v7505 = vsel %vm4008, %v7503, %v7504
        %v7506 = vrot.slane %v6440, 5
        %v7507 = vrot.slane %v7506, 4
        %v7508 = vrot.slane %v6441, 5
        %v7509 = vsel %vm4008, %v7507, %v7508
        %v7510 = vrot.slane %v6442, 5
        %v7511 = vrot.slane %v7510, 4
        %v7512 = vrot.slane %v6443, 5
        %v7513 = vsel %vm4008, %v7511, %v7512
        %v7514 = vrot.slane %v6444, 5
        %v7515 = vrot.slane %v7514, 4
        %v7516 = vrot.slane %v6445, 5
        %v7517 = vsel %vm4008, %v7515, %v7516
        %v7518 = vrot.slane %v6446, 5
        %v7519 = vrot.slane %v7518, 4
        %v7520 = vrot.slane %v6447, 5
        %v7521 = vsel %vm4008, %v7519, %v7520
        %v7530 = vcombine.low %v7493, %v7509
        %v7532 = vunpack.c.l.s4 1983009808
        %v7533 = vunpack.c.0.s8 %v7532
        %v7534 = vlaneseq
        %v7535 = vshrl.u32 %v7534, 7
        %v7536 = vsub.s32 %v7533, %v7535
        %v7537 = vrot.slane %v7530, %v7536
        %v7538 = vcombine.low %v7501, %v7517
        %v7540 = vunpack.c.l.s4 1983009808
        %v7541 = vunpack.c.0.s8 %v7540
        %v7542 = vlaneseq
        %v7543 = vshrl.u32 %v7542, 7
        %v7544 = vsub.s32 %v7541, %v7543
        %v7545 = vrot.slane %v7538, %v7544
        %v7546 = vcombine.low %v7537, %v7545
        %v7547 = vcombine.high %v7537, %v7545
        %v7549 = vunpack.c.l.s4 1934713408
        %v7550 = vunpack.c.0.s8 %v7549
        %v7551 = vlaneseq
        %v7552 = vshrl.u32 %v7551, 7
        %v7553 = vsub.s32 %v7550, %v7552
        %v7554 = vrot.slane %v7546, %v7553
        %v7556 = vunpack.c.l.s4 1934713408
        %v7557 = vunpack.c.0.s8 %v7556
        %v7558 = vlaneseq
        %v7559 = vshrl.u32 %v7558, 7
        %v7560 = vsub.s32 %v7557, %v7559
        %v7561 = vrot.slane %v7547, %v7560
        %v7562 = vcombine.high %v7554, 0
        %v7563 = vcombine.high %v7561, 0
        %v7564 = vcombine.low %v7497, %v7513
        %v7566 = vunpack.c.l.s4 1983009808
        %v7567 = vunpack.c.0.s8 %v7566
        %v7568 = vlaneseq
        %v7569 = vshrl.u32 %v7568, 7
        %v7570 = vsub.s32 %v7567, %v7569
        %v7571 = vrot.slane %v7564, %v7570
        %v7572 = vcombine.low %v7505, %v7521
        %v7574 = vunpack.c.l.s4 1983009808
        %v7575 = vunpack.c.0.s8 %v7574
        %v7576 = vlaneseq
        %v7577 = vshrl.u32 %v7576, 7
        %v7578 = vsub.s32 %v7575, %v7577
        %v7579 = vrot.slane %v7572, %v7578
        %v7580 = vcombine.low %v7571, %v7579
        %v7581 = vcombine.high %v7571, %v7579
        %v7583 = vunpack.c.l.s4 1934713408
        %v7584 = vunpack.c.0.s8 %v7583
        %v7585 = vlaneseq
        %v7586 = vshrl.u32 %v7585, 7
        %v7587 = vsub.s32 %v7584, %v7586
        %v7588 = vrot.slane %v7580, %v7587
        %v7590 = vunpack.c.l.s4 1934713408
        %v7591 = vunpack.c.0.s8 %v7590
        %v7592 = vlaneseq
        %v7593 = vshrl.u32 %v7592, 7
        %v7594 = vsub.s32 %v7591, %v7593
        %v7595 = vrot.slane %v7581, %v7594
        %v7596 = vcombine.high %v7588, 0
        %v7597 = vcombine.high %v7595, 0
        %v7600 = vpack.i.b16 %v7588, %v7554
        %v7601 = vshrl.u32 %v7554, 16
        %v7602 = vshrl.u32 %v7588, 16
        %v7603 = vpack.i.b16 %v7602, %v7601
        %v7606 = vpack.i.b16 %v7596, %v7562
        %v7607 = vshrl.u32 %v7562, 16
        %v7608 = vshrl.u32 %v7596, 16
        %v7609 = vpack.i.b16 %v7608, %v7607
        %v7612 = vpack.i.b16 %v7595, %v7561
        %v7613 = vshrl.u32 %v7561, 16
        %v7614 = vshrl.u32 %v7595, 16
        %v7615 = vpack.i.b16 %v7614, %v7613
        %v7618 = vpack.i.b16 %v7597, %v7563
        %v7619 = vshrl.u32 %v7563, 16
        %v7620 = vshrl.u32 %v7597, 16
        %v7621 = vpack.i.b16 %v7620, %v7619
        %v7622 = vunpack.c.l.b16 %v7603
        %v7623 = vpack.c.b16 %v7622, %v7622
        %7624 = vrot.lane.b32.xlu0 %v7623, 4
        %v7625 = vpop.permute.xlu0 %7624
        %v7626 = vunpack.c.l.b16 %v7606
        %v7627 = vpack.c.b16 %v7626, %v7626
        %7628 = vrot.lane.b32.xlu0 %v7627, 8
        %v7629 = vpop.permute.xlu0 %7628
        %v7630 = vunpack.c.l.b16 %v7609
        %v7631 = vpack.c.b16 %v7630, %v7630
        %7632 = vrot.lane.b32.xlu0 %v7631, 12
        %v7633 = vpop.permute.xlu0 %7632
        %v7634 = vunpack.c.l.b16 %v7612
        %v7635 = vpack.c.b16 %v7634, %v7634
        %7636 = vrot.lane.b32.xlu0 %v7635, 16
        %v7637 = vpop.permute.xlu0 %7636
        %v7638 = vunpack.c.l.b16 %v7615
        %v7639 = vpack.c.b16 %v7638, %v7638
        %7640 = vrot.lane.b32.xlu0 %v7639, 20
        %v7641 = vpop.permute.xlu0 %7640
        %v7642 = vunpack.c.l.b16 %v7618
        %v7643 = vpack.c.b16 %v7642, %v7642
        %7644 = vrot.lane.b32.xlu0 %v7643, 24
        %v7645 = vpop.permute.xlu0 %7644
        %v7646 = vunpack.c.l.b16 %v7621
        %v7647 = vpack.c.b16 %v7646, %v7646
        %7648 = vrot.lane.b32.xlu0 %v7647, 28
        %v7649 = vpop.permute.xlu0 %7648
        %v7652 = vsel %vm862, %v7600, %v7625
        %v7654 = vsel %vm869, %v7652, %v7629
        %v7656 = vsel %vm874, %v7654, %v7633
        %v7658 = vsel %vm879, %v7656, %v7637
        %v7660 = vsel %vm884, %v7658, %v7641
        %v7662 = vsel %vm889, %v7660, %v7645
        %v7664 = vsel %vm894, %v7662, %v7649
        %7665 = vrot.lane.b32.xlu0 %v7493, 127
        %v7666 = vpop.permute.xlu0 %7665
        %7667 = vrot.lane.b32.xlu0 %v7497, 127
        %v7668 = vpop.permute.xlu0 %7667
        %7669 = vrot.lane.b32.xlu0 %v7501, 127
        %v7670 = vpop.permute.xlu0 %7669
        %7671 = vrot.lane.b32.xlu0 %v7505, 127
        %v7672 = vpop.permute.xlu0 %7671
        %7673 = vrot.lane.b32.xlu0 %v7509, 127
        %v7674 = vpop.permute.xlu0 %7673
        %7675 = vrot.lane.b32.xlu0 %v7513, 127
        %v7676 = vpop.permute.xlu0 %7675
        %7677 = vrot.lane.b32.xlu0 %v7517, 127
        %v7678 = vpop.permute.xlu0 %7677
        %7679 = vrot.lane.b32.xlu0 %v7521, 127
        %v7680 = vpop.permute.xlu0 %7679
        %v7689 = vcombine.low %v7666, %v7674
        %v7691 = vunpack.c.l.s4 1983009808
        %v7692 = vunpack.c.0.s8 %v7691
        %v7693 = vlaneseq
        %v7694 = vshrl.u32 %v7693, 7
        %v7695 = vsub.s32 %v7692, %v7694
        %v7696 = vrot.slane %v7689, %v7695
        %v7697 = vcombine.low %v7670, %v7678
        %v7699 = vunpack.c.l.s4 1983009808
        %v7700 = vunpack.c.0.s8 %v7699
        %v7701 = vlaneseq
        %v7702 = vshrl.u32 %v7701, 7
        %v7703 = vsub.s32 %v7700, %v7702
        %v7704 = vrot.slane %v7697, %v7703
        %v7705 = vcombine.low %v7696, %v7704
        %v7706 = vcombine.high %v7696, %v7704
        %v7708 = vunpack.c.l.s4 1934713408
        %v7709 = vunpack.c.0.s8 %v7708
        %v7710 = vlaneseq
        %v7711 = vshrl.u32 %v7710, 7
        %v7712 = vsub.s32 %v7709, %v7711
        %v7713 = vrot.slane %v7705, %v7712
        %v7715 = vunpack.c.l.s4 1934713408
        %v7716 = vunpack.c.0.s8 %v7715
        %v7717 = vlaneseq
        %v7718 = vshrl.u32 %v7717, 7
        %v7719 = vsub.s32 %v7716, %v7718
        %v7720 = vrot.slane %v7706, %v7719
        %v7721 = vcombine.high %v7713, 0
        %v7722 = vcombine.high %v7720, 0
        %v7723 = vcombine.low %v7668, %v7676
        %v7725 = vunpack.c.l.s4 1983009808
        %v7726 = vunpack.c.0.s8 %v7725
        %v7727 = vlaneseq
        %v7728 = vshrl.u32 %v7727, 7
        %v7729 = vsub.s32 %v7726, %v7728
        %v7730 = vrot.slane %v7723, %v7729
        %v7731 = vcombine.low %v7672, %v7680
        %v7733 = vunpack.c.l.s4 1983009808
        %v7734 = vunpack.c.0.s8 %v7733
        %v7735 = vlaneseq
        %v7736 = vshrl.u32 %v7735, 7
        %v7737 = vsub.s32 %v7734, %v7736
        %v7738 = vrot.slane %v7731, %v7737
        %v7739 = vcombine.low %v7730, %v7738
        %v7740 = vcombine.high %v7730, %v7738
        %v7742 = vunpack.c.l.s4 1934713408
        %v7743 = vunpack.c.0.s8 %v7742
        %v7744 = vlaneseq
        %v7745 = vshrl.u32 %v7744, 7
        %v7746 = vsub.s32 %v7743, %v7745
        %v7747 = vrot.slane %v7739, %v7746
        %v7749 = vunpack.c.l.s4 1934713408
        %v7750 = vunpack.c.0.s8 %v7749
        %v7751 = vlaneseq
        %v7752 = vshrl.u32 %v7751, 7
        %v7753 = vsub.s32 %v7750, %v7752
        %v7754 = vrot.slane %v7740, %v7753
        %v7755 = vcombine.high %v7747, 0
        %v7756 = vcombine.high %v7754, 0
        %v7759 = vpack.i.b16 %v7747, %v7713
        %v7760 = vshrl.u32 %v7713, 16
        %v7761 = vshrl.u32 %v7747, 16
        %v7762 = vpack.i.b16 %v7761, %v7760
        %v7765 = vpack.i.b16 %v7755, %v7721
        %v7766 = vshrl.u32 %v7721, 16
        %v7767 = vshrl.u32 %v7755, 16
        %v7768 = vpack.i.b16 %v7767, %v7766
        %v7771 = vpack.i.b16 %v7754, %v7720
        %v7772 = vshrl.u32 %v7720, 16
        %v7773 = vshrl.u32 %v7754, 16
        %v7774 = vpack.i.b16 %v7773, %v7772
        %v7777 = vpack.i.b16 %v7756, %v7722
        %v7778 = vshrl.u32 %v7722, 16
        %v7779 = vshrl.u32 %v7756, 16
        %v7780 = vpack.i.b16 %v7779, %v7778
        %v7781 = vunpack.c.l.b16 %v7762
        %v7782 = vpack.c.b16 %v7781, %v7781
        %7783 = vrot.lane.b32.xlu0 %v7782, 4
        %v7784 = vpop.permute.xlu0 %7783
        %v7785 = vunpack.c.l.b16 %v7765
        %v7786 = vpack.c.b16 %v7785, %v7785
        %7787 = vrot.lane.b32.xlu0 %v7786, 8
        %v7788 = vpop.permute.xlu0 %7787
        %v7789 = vunpack.c.l.b16 %v7768
        %v7790 = vpack.c.b16 %v7789, %v7789
        %7791 = vrot.lane.b32.xlu0 %v7790, 12
        %v7792 = vpop.permute.xlu0 %7791
        %v7793 = vunpack.c.l.b16 %v7771
        %v7794 = vpack.c.b16 %v7793, %v7793
        %7795 = vrot.lane.b32.xlu0 %v7794, 16
        %v7796 = vpop.permute.xlu0 %7795
        %v7797 = vunpack.c.l.b16 %v7774
        %v7798 = vpack.c.b16 %v7797, %v7797
        %7799 = vrot.lane.b32.xlu0 %v7798, 20
        %v7800 = vpop.permute.xlu0 %7799
        %v7801 = vunpack.c.l.b16 %v7777
        %v7802 = vpack.c.b16 %v7801, %v7801
        %7803 = vrot.lane.b32.xlu0 %v7802, 24
        %v7804 = vpop.permute.xlu0 %7803
        %v7805 = vunpack.c.l.b16 %v7780
        %v7806 = vpack.c.b16 %v7805, %v7805
        %7807 = vrot.lane.b32.xlu0 %v7806, 28
        %v7808 = vpop.permute.xlu0 %7807
        %v7811 = vsel %vm862, %v7759, %v7784
        %v7813 = vsel %vm869, %v7811, %v7788
        %v7815 = vsel %vm874, %v7813, %v7792
        %v7817 = vsel %vm879, %v7815, %v7796
        %v7819 = vsel %vm884, %v7817, %v7800
        %v7821 = vsel %vm889, %v7819, %v7804
        %v7823 = vsel %vm894, %v7821, %v7808
        %7824 = vrot.lane.b32.xlu0 %v7493, 126
        %v7825 = vpop.permute.xlu0 %7824
        %7826 = vrot.lane.b32.xlu0 %v7497, 126
        %v7827 = vpop.permute.xlu0 %7826
        %7828 = vrot.lane.b32.xlu0 %v7501, 126
        %v7829 = vpop.permute.xlu0 %7828
        %7830 = vrot.lane.b32.xlu0 %v7505, 126
        %v7831 = vpop.permute.xlu0 %7830
        %7832 = vrot.lane.b32.xlu0 %v7509, 126
        %v7833 = vpop.permute.xlu0 %7832
        %7834 = vrot.lane.b32.xlu0 %v7513, 126
        %v7835 = vpop.permute.xlu0 %7834
        %7836 = vrot.lane.b32.xlu0 %v7517, 126
        %v7837 = vpop.permute.xlu0 %7836
        %7838 = vrot.lane.b32.xlu0 %v7521, 126
        %v7839 = vpop.permute.xlu0 %7838
        %v7848 = vcombine.low %v7825, %v7833
        %v7850 = vunpack.c.l.s4 1983009808
        %v7851 = vunpack.c.0.s8 %v7850
        %v7852 = vlaneseq
        %v7853 = vshrl.u32 %v7852, 7
        %v7854 = vsub.s32 %v7851, %v7853
        %v7855 = vrot.slane %v7848, %v7854
        %v7856 = vcombine.low %v7829, %v7837
        %v7858 = vunpack.c.l.s4 1983009808
        %v7859 = vunpack.c.0.s8 %v7858
        %v7860 = vlaneseq
        %v7861 = vshrl.u32 %v7860, 7
        %v7862 = vsub.s32 %v7859, %v7861
        %v7863 = vrot.slane %v7856, %v7862
        %v7864 = vcombine.low %v7855, %v7863
        %v7865 = vcombine.high %v7855, %v7863
        %v7867 = vunpack.c.l.s4 1934713408
        %v7868 = vunpack.c.0.s8 %v7867
        %v7869 = vlaneseq
        %v7870 = vshrl.u32 %v7869, 7
        %v7871 = vsub.s32 %v7868, %v7870
        %v7872 = vrot.slane %v7864, %v7871
        %v7874 = vunpack.c.l.s4 1934713408
        %v7875 = vunpack.c.0.s8 %v7874
        %v7876 = vlaneseq
        %v7877 = vshrl.u32 %v7876, 7
        %v7878 = vsub.s32 %v7875, %v7877
        %v7879 = vrot.slane %v7865, %v7878
        %v7880 = vcombine.high %v7872, 0
        %v7881 = vcombine.high %v7879, 0
        %v7882 = vcombine.low %v7827, %v7835
        %v7884 = vunpack.c.l.s4 1983009808
        %v7885 = vunpack.c.0.s8 %v7884
        %v7886 = vlaneseq
        %v7887 = vshrl.u32 %v7886, 7
        %v7888 = vsub.s32 %v7885, %v7887
        %v7889 = vrot.slane %v7882, %v7888
        %v7890 = vcombine.low %v7831, %v7839
        %v7892 = vunpack.c.l.s4 1983009808
        %v7893 = vunpack.c.0.s8 %v7892
        %v7894 = vlaneseq
        %v7895 = vshrl.u32 %v7894, 7
        %v7896 = vsub.s32 %v7893, %v7895
        %v7897 = vrot.slane %v7890, %v7896
        %v7898 = vcombine.low %v7889, %v7897
        %v7899 = vcombine.high %v7889, %v7897
        %v7901 = vunpack.c.l.s4 1934713408
        %v7902 = vunpack.c.0.s8 %v7901
        %v7903 = vlaneseq
        %v7904 = vshrl.u32 %v7903, 7
        %v7905 = vsub.s32 %v7902, %v7904
        %v7906 = vrot.slane %v7898, %v7905
        %v7908 = vunpack.c.l.s4 1934713408
        %v7909 = vunpack.c.0.s8 %v7908
        %v7910 = vlaneseq
        %v7911 = vshrl.u32 %v7910, 7
        %v7912 = vsub.s32 %v7909, %v7911
        %v7913 = vrot.slane %v7899, %v7912
        %v7914 = vcombine.high %v7906, 0
        %v7915 = vcombine.high %v7913, 0
        %v7918 = vpack.i.b16 %v7906, %v7872
        %v7919 = vshrl.u32 %v7872, 16
        %v7920 = vshrl.u32 %v7906, 16
        %v7921 = vpack.i.b16 %v7920, %v7919
        %v7924 = vpack.i.b16 %v7914, %v7880
        %v7925 = vshrl.u32 %v7880, 16
        %v7926 = vshrl.u32 %v7914, 16
        %v7927 = vpack.i.b16 %v7926, %v7925
        %v7930 = vpack.i.b16 %v7913, %v7879
        %v7931 = vshrl.u32 %v7879, 16
        %v7932 = vshrl.u32 %v7913, 16
        %v7933 = vpack.i.b16 %v7932, %v7931
        %v7936 = vpack.i.b16 %v7915, %v7881
        %v7937 = vshrl.u32 %v7881, 16
        %v7938 = vshrl.u32 %v7915, 16
        %v7939 = vpack.i.b16 %v7938, %v7937
        %v7940 = vunpack.c.l.b16 %v7921
        %v7941 = vpack.c.b16 %v7940, %v7940
        %7942 = vrot.lane.b32.xlu0 %v7941, 4
        %v7943 = vpop.permute.xlu0 %7942
        %v7944 = vunpack.c.l.b16 %v7924
        %v7945 = vpack.c.b16 %v7944, %v7944
        %7946 = vrot.lane.b32.xlu0 %v7945, 8
        %v7947 = vpop.permute.xlu0 %7946
        %v7948 = vunpack.c.l.b16 %v7927
        %v7949 = vpack.c.b16 %v7948, %v7948
        %7950 = vrot.lane.b32.xlu0 %v7949, 12
        %v7951 = vpop.permute.xlu0 %7950
        %v7952 = vunpack.c.l.b16 %v7930
        %v7953 = vpack.c.b16 %v7952, %v7952
        %7954 = vrot.lane.b32.xlu0 %v7953, 16
        %v7955 = vpop.permute.xlu0 %7954
        %v7956 = vunpack.c.l.b16 %v7933
        %v7957 = vpack.c.b16 %v7956, %v7956
        %7958 = vrot.lane.b32.xlu0 %v7957, 20
        %v7959 = vpop.permute.xlu0 %7958
        %v7960 = vunpack.c.l.b16 %v7936
        %v7961 = vpack.c.b16 %v7960, %v7960
        %7962 = vrot.lane.b32.xlu0 %v7961, 24
        %v7963 = vpop.permute.xlu0 %7962
        %v7964 = vunpack.c.l.b16 %v7939
        %v7965 = vpack.c.b16 %v7964, %v7964
        %7966 = vrot.lane.b32.xlu0 %v7965, 28
        %v7967 = vpop.permute.xlu0 %7966
        %v7970 = vsel %vm862, %v7918, %v7943
        %v7972 = vsel %vm869, %v7970, %v7947
        %v7974 = vsel %vm874, %v7972, %v7951
        %v7976 = vsel %vm879, %v7974, %v7955
        %v7978 = vsel %vm884, %v7976, %v7959
        %v7980 = vsel %vm889, %v7978, %v7963
        %v7982 = vsel %vm894, %v7980, %v7967
        %v7984 = vrot.slane %v6749, 4
        %v7986 = vrot.slane %v7163, 4
        %v7988 = vrot.slane %v7481, 4
        %v7990 = vrot.slane %v7823, 4
        %v7992 = vsel %vm5807, %v6582, %v7984
        %v7995 = vsel %vm5807, %v6908, %v7986
        %v7998 = vsel %vm5807, %v7322, %v7988
        %v8001 = vsel %vm5807, %v7664, %v7990
        %v8003 = vld [vmem:[%s4] sm:$0xff]
        %8005 = vset.pattern.permute.xlu0 0
        %8006 = vperm.xlu0 %8005, %v8003
        %v8007 = vpop.permute.xlu0 %8006
        %vm8009 = vcmask 588800
        %v8011 = vsel %vm8009, %v6431, 0
        %v8013 = vsel %vm5807, %v7982, 0
        %8015 = vmatprep.subr.bf16.mxu0 0
        %8016 = vmatpush1.bf16.msra.mxu0 %v7992
        %8017 = vmatprep.subr.bf16.mxu0 0
        %8018 = vmatpush1.bf16.msra.mxu0 %v7995
        %8019 = vmatprep.subr.bf16.mxu0 0
        %8020 = vmatpush1.bf16.msra.mxu0 %v7998
        %8021 = vmatprep.subr.bf16.mxu0 0
        %8022 = vmatpush1.bf16.msra.mxu0 %v8001
        %8023 = vmatprep.subr.bf16.mxu0 0
        %8024 = vmatpush1.bf16.msra.mxu0 %v8013
        %8025 = vmatprep.subr.bf16.mxu0 0
        %8026 = vmatpush1.bf16.msra.mxu0 0
        %8027 = vmatprep.subr.bf16.mxu0 0
        %8028 = vmatpush1.bf16.msra.mxu0 0
        %8029 = vmatprep.subr.bf16.mxu0 0
        %8030 = vmatpush1.bf16.msra.mxu0 0
        %8031 = vmatprep.subr.bf16.mxu0 0
        %8032 = vmatpush1.bf16.msra.mxu0 0
        %8033 = vmatprep.subr.bf16.mxu0 0
        %8034 = vmatpush1.bf16.msra.mxu0 0
        %8035 = vmatprep.subr.bf16.mxu0 0
        %8036 = vmatpush1.bf16.msra.mxu0 0
        %8037 = vmatprep.subr.bf16.mxu0 0
        %8038 = vmatpush1.bf16.msra.mxu0 0
        %8039 = vmatprep.subr.bf16.mxu0 0
        %8040 = vmatpush1.bf16.msra.mxu0 0
        %8041 = vmatprep.subr.bf16.mxu0 0
        %8042 = vmatpush1.bf16.msra.mxu0 0
        %8043 = vmatprep.subr.bf16.mxu0 0
        %8044 = vmatpush1.bf16.msra.mxu0 0
        %8045 = vmatprep.subr.bf16.mxu0 0
        %8046 = vmatpush1.bf16.msra.mxu0 0
        %8047 = vmatprep.mubr.bf16.mxu0 0
        %8048 = vmatmul.mubr.bf16.gmra.mrb[0].mxu0 %v8011
        %v8049 = vpop.f32.mrb[0].mxu0
        %v8050 = vadd.f32 %v8007, %v8049
        %v8051 = vpop.f32.mrb[0].mxu0
        %v8052 = vpop.f32.mrb[0].mxu0
        %v8053 = vpop.f32.mrb[0].mxu0
        %8054 = vdwg.mxu0
        %v8055 = vmul.f32 %v8050, 0.2
        %v8056 = vmax.f32 %v8050, %v8055
        %8058 = vrot.lane.b32.xlu0 %v8056, 124
        %v8059 = vpop.permute.xlu0 %8058
        %8061 = vrot.lane.b32.xlu0 %v8056, 120
        %v8062 = vpop.permute.xlu0 %8061
        %8064 = vrot.lane.b32.xlu0 %v8056, 116
        %v8065 = vpop.permute.xlu0 %8064
        %8067 = vrot.lane.b32.xlu0 %v8056, 112
        %v8068 = vpop.permute.xlu0 %8067
        %8070 = vrot.lane.b32.xlu0 %v8056, 108
        %v8071 = vpop.permute.xlu0 %8070
        %8073 = vrot.lane.b32.xlu0 %v8056, 104
        %v8074 = vpop.permute.xlu0 %8073
        %8076 = vrot.lane.b32.xlu0 %v8056, 100
        %v8077 = vpop.permute.xlu0 %8076
        %v8079 = vcombine.low %v8056, %v8062
        %v8080 = vcombine.high %v8056, %v8062
        %v8082 = vunpack.c.l.s4 1983009808
        %v8083 = vunpack.c.0.s8 %v8082
        %v8084 = vlaneseq
        %v8085 = vshrl.u32 %v8084, 7
        %v8086 = vsub.s32 %v8083, %v8085
        %v8087 = vrot.slane %v8079, %v8086
        %v8089 = vunpack.c.l.s4 1983009808
        %v8090 = vunpack.c.0.s8 %v8089
        %v8091 = vlaneseq
        %v8092 = vshrl.u32 %v8091, 7
        %v8093 = vsub.s32 %v8090, %v8092
        %v8094 = vrot.slane %v8080, %v8093
        %v8095 = vcombine.low %v8059, %v8065
        %v8096 = vcombine.high %v8059, %v8065
        %v8098 = vunpack.c.l.s4 1983009808
        %v8099 = vunpack.c.0.s8 %v8098
        %v8100 = vlaneseq
        %v8101 = vshrl.u32 %v8100, 7
        %v8102 = vsub.s32 %v8099, %v8101
        %v8103 = vrot.slane %v8095, %v8102
        %v8105 = vunpack.c.l.s4 1983009808
        %v8106 = vunpack.c.0.s8 %v8105
        %v8107 = vlaneseq
        %v8108 = vshrl.u32 %v8107, 7
        %v8109 = vsub.s32 %v8106, %v8108
        %v8110 = vrot.slane %v8096, %v8109
        %v8111 = vcombine.low %v8068, %v8074
        %v8112 = vcombine.high %v8068, %v8074
        %v8114 = vunpack.c.l.s4 1983009808
        %v8115 = vunpack.c.0.s8 %v8114
        %v8116 = vlaneseq
        %v8117 = vshrl.u32 %v8116, 7
        %v8118 = vsub.s32 %v8115, %v8117
        %v8119 = vrot.slane %v8111, %v8118
        %v8121 = vunpack.c.l.s4 1983009808
        %v8122 = vunpack.c.0.s8 %v8121
        %v8123 = vlaneseq
        %v8124 = vshrl.u32 %v8123, 7
        %v8125 = vsub.s32 %v8122, %v8124
        %v8126 = vrot.slane %v8112, %v8125
        %v8127 = vcombine.low %v8071, %v8077
        %v8128 = vcombine.high %v8071, %v8077
        %v8130 = vunpack.c.l.s4 1983009808
        %v8131 = vunpack.c.0.s8 %v8130
        %v8132 = vlaneseq
        %v8133 = vshrl.u32 %v8132, 7
        %v8134 = vsub.s32 %v8131, %v8133
        %v8135 = vrot.slane %v8127, %v8134
        %v8137 = vunpack.c.l.s4 1983009808
        %v8138 = vunpack.c.0.s8 %v8137
        %v8139 = vlaneseq
        %v8140 = vshrl.u32 %v8139, 7
        %v8141 = vsub.s32 %v8138, %v8140
        %v8142 = vrot.slane %v8128, %v8141
        %v8143 = vcombine.low %v8087, %v8103
        %v8144 = vcombine.high %v8087, %v8103
        %v8146 = vunpack.c.l.s4 1934713408
        %v8147 = vunpack.c.0.s8 %v8146
        %v8148 = vlaneseq
        %v8149 = vshrl.u32 %v8148, 7
        %v8150 = vsub.s32 %v8147, %v8149
        %v8151 = vrot.slane %v8143, %v8150
        %v8153 = vunpack.c.l.s4 1934713408
        %v8154 = vunpack.c.0.s8 %v8153
        %v8155 = vlaneseq
        %v8156 = vshrl.u32 %v8155, 7
        %v8157 = vsub.s32 %v8154, %v8156
        %v8158 = vrot.slane %v8144, %v8157
        %v8159 = vcombine.low %v8094, %v8110
        %v8160 = vcombine.high %v8094, %v8110
        %v8162 = vunpack.c.l.s4 1934713408
        %v8163 = vunpack.c.0.s8 %v8162
        %v8164 = vlaneseq
        %v8165 = vshrl.u32 %v8164, 7
        %v8166 = vsub.s32 %v8163, %v8165
        %v8167 = vrot.slane %v8159, %v8166
        %v8169 = vunpack.c.l.s4 1934713408
        %v8170 = vunpack.c.0.s8 %v8169
        %v8171 = vlaneseq
        %v8172 = vshrl.u32 %v8171, 7
        %v8173 = vsub.s32 %v8170, %v8172
        %v8174 = vrot.slane %v8160, %v8173
        %v8175 = vcombine.low %v8119, %v8135
        %v8176 = vcombine.high %v8119, %v8135
        %v8178 = vunpack.c.l.s4 1934713408
        %v8179 = vunpack.c.0.s8 %v8178
        %v8180 = vlaneseq
        %v8181 = vshrl.u32 %v8180, 7
        %v8182 = vsub.s32 %v8179, %v8181
        %v8183 = vrot.slane %v8175, %v8182
        %v8185 = vunpack.c.l.s4 1934713408
        %v8186 = vunpack.c.0.s8 %v8185
        %v8187 = vlaneseq
        %v8188 = vshrl.u32 %v8187, 7
        %v8189 = vsub.s32 %v8186, %v8188
        %v8190 = vrot.slane %v8176, %v8189
        %v8191 = vcombine.low %v8126, %v8142
        %v8192 = vcombine.high %v8126, %v8142
        %v8194 = vunpack.c.l.s4 1934713408
        %v8195 = vunpack.c.0.s8 %v8194
        %v8196 = vlaneseq
        %v8197 = vshrl.u32 %v8196, 7
        %v8198 = vsub.s32 %v8195, %v8197
        %v8199 = vrot.slane %v8191, %v8198
        %v8201 = vunpack.c.l.s4 1934713408
        %v8202 = vunpack.c.0.s8 %v8201
        %v8203 = vlaneseq
        %v8204 = vshrl.u32 %v8203, 7
        %v8205 = vsub.s32 %v8202, %v8204
        %v8206 = vrot.slane %v8192, %v8205
        %v8207 = vcombine.low %v8151, %v8183
        %v8208 = vcombine.high %v8151, %v8183
        %v8209 = vcombine.low %v8158, %v8190
        %v8210 = vcombine.high %v8158, %v8190
        %v8211 = vcombine.low %v8167, %v8199
        %v8212 = vcombine.high %v8167, %v8199
        %v8213 = vcombine.low %v8174, %v8206
        %v8214 = vcombine.high %v8174, %v8206
        %s8215 = ssub.s32 %s383, 2
        %v8216 = vstv %s8215
        %v8217 = vadd.s32 %v6277, %v8216
        %vm8218 = vcmp.ge.s32.totalorder %v8217, 0
        %vm8219 = vcmp.lt.s32.totalorder %v8217, 4
        %vm8220 = vmand %vm8218, %vm8219
        %v8221 = vsel %vm8220, 1, 0
        %v8222 = vcvt.s32.f32 %v8221
        %v8223 = vmul.f32 %v8207, %v8222
        %v8224 = vmul.f32 %v8208, %v8222
        %v8225 = vmul.f32 %v8209, %v8222
        %v8226 = vmul.f32 %v8210, %v8222
        %v8227 = vmul.f32 %v8211, %v8222
        %v8228 = vmul.f32 %v8212, %v8222
        %v8229 = vmul.f32 %v8213, %v8222
        %v8230 = vmul.f32 %v8214, %v8222
        %v8231 = vpack.c.bf16 %v8223, %v8223
        %v8232 = vpack.c.bf16 %v8224, %v8224
        %v8233 = vpack.c.bf16 %v8225, %v8225
        %v8234 = vpack.c.bf16 %v8226, %v8226
        %v8235 = vpack.c.bf16 %v8227, %v8227
        %v8236 = vpack.c.bf16 %v8228, %v8228
        %v8237 = vpack.c.bf16 %v8229, %v8229
        %v8238 = vpack.c.bf16 %v8230, %v8230
        %v8247 = vunpack.c.l.b16 %v8231
        %v8248 = vunpack.c.l.b16 %v8232
        %v8249 = vunpack.c.l.b16 %v8233
        %v8250 = vunpack.c.l.b16 %v8234
        %v8251 = vunpack.c.l.b16 %v8235
        %v8252 = vunpack.c.l.b16 %v8236
        %v8253 = vunpack.c.l.b16 %v8237
        %v8254 = vunpack.c.l.b16 %v8238
        %v8255 = vpack.c.b16 %v8247, %v8247
        %v8256 = vpack.c.b16 %v8248, %v8248
        %v8257 = vpack.c.b16 %v8249, %v8249
        %v8258 = vpack.c.b16 %v8250, %v8250
        %v8259 = vpack.c.b16 %v8251, %v8251
        %v8260 = vpack.c.b16 %v8252, %v8252
        %v8261 = vpack.c.b16 %v8253, %v8253
        %v8262 = vpack.c.b16 %v8254, %v8254
        %8263 = vrot.lane.b32.xlu0 %v8255, 1
        %v8264 = vpop.permute.xlu0 %8263
        %8265 = vrot.lane.b32.xlu0 %v8256, 1
        %v8266 = vpop.permute.xlu0 %8265
        %8267 = vrot.lane.b32.xlu0 %v8257, 1
        %v8268 = vpop.permute.xlu0 %8267
        %8269 = vrot.lane.b32.xlu0 %v8258, 1
        %v8270 = vpop.permute.xlu0 %8269
        %8271 = vrot.lane.b32.xlu0 %v8259, 1
        %v8272 = vpop.permute.xlu0 %8271
        %8273 = vrot.lane.b32.xlu0 %v8260, 1
        %v8274 = vpop.permute.xlu0 %8273
        %8275 = vrot.lane.b32.xlu0 %v8261, 1
        %v8276 = vpop.permute.xlu0 %8275
        %8277 = vrot.lane.b32.xlu0 %v8262, 1
        %v8278 = vpop.permute.xlu0 %8277
        %8287 = vst.msk [vmem:[#allocation2] sm:$0xf] %vm6413, %v8264
        %8288 = vst.msk [vmem:[#allocation2 + $0x8] sm:$0xf] %vm6413, %v8266
        %8289 = vst.msk [vmem:[#allocation2 + $0x10] sm:$0xf] %vm6413, %v8268
        %8290 = vst.msk [vmem:[#allocation2 + $0x18] sm:$0xf] %vm6413, %v8270
        %8291 = vst.msk [vmem:[#allocation2 + $0x20] sm:$0xf] %vm6413, %v8272
        %8292 = vst.msk [vmem:[#allocation2 + $0x28] sm:$0xf] %vm6413, %v8274
        %8293 = vst.msk [vmem:[#allocation2 + $0x30] sm:$0xf] %vm6413, %v8276
        %8294 = vst.msk [vmem:[#allocation2 + $0x38] sm:$0xf] %vm6413, %v8278
        %v8295 = vld [vmem:[%s5] sm:$0xf]
        %v8296 = vld [vmem:[#allocation2] sm:$0xf]
        %v8297 = vld [vmem:[#allocation2 + $0x8] sm:$0xf]
        %v8298 = vld [vmem:[#allocation2 + $0x10] sm:$0xf]
        %v8299 = vld [vmem:[#allocation2 + $0x18] sm:$0xf]
        %v8300 = vld [vmem:[#allocation2 + $0x20] sm:$0xf]
        %v8301 = vld [vmem:[#allocation2 + $0x28] sm:$0xf]
        %v8302 = vld [vmem:[#allocation2 + $0x30] sm:$0xf]
        %v8303 = vld [vmem:[#allocation2 + $0x38] sm:$0xf]
        %v8304 = vcombine.low %v8296, %v8300
        %v8306 = vunpack.c.l.s4 1983009808
        %v8307 = vunpack.c.0.s8 %v8306
        %v8308 = vlaneseq
        %v8309 = vshrl.u32 %v8308, 7
        %v8310 = vsub.s32 %v8307, %v8309
        %v8311 = vrot.slane %v8304, %v8310
        %v8312 = vcombine.low %v8298, %v8302
        %v8314 = vunpack.c.l.s4 1983009808
        %v8315 = vunpack.c.0.s8 %v8314
        %v8316 = vlaneseq
        %v8317 = vshrl.u32 %v8316, 7
        %v8318 = vsub.s32 %v8315, %v8317
        %v8319 = vrot.slane %v8312, %v8318
        %v8320 = vcombine.low %v8311, %v8319
        %v8321 = vcombine.high %v8311, %v8319
        %v8323 = vunpack.c.l.s4 1934713408
        %v8324 = vunpack.c.0.s8 %v8323
        %v8325 = vlaneseq
        %v8326 = vshrl.u32 %v8325, 7
        %v8327 = vsub.s32 %v8324, %v8326
        %v8328 = vrot.slane %v8320, %v8327
        %v8329 = vcombine.high %v8328, 0
        %v8331 = vunpack.c.l.s4 1934713408
        %v8332 = vunpack.c.0.s8 %v8331
        %v8333 = vlaneseq
        %v8334 = vshrl.u32 %v8333, 7
        %v8335 = vsub.s32 %v8332, %v8334
        %v8336 = vrot.slane %v8321, %v8335
        %v8337 = vcombine.low %v8297, %v8301
        %v8339 = vunpack.c.l.s4 1983009808
        %v8340 = vunpack.c.0.s8 %v8339
        %v8341 = vlaneseq
        %v8342 = vshrl.u32 %v8341, 7
        %v8343 = vsub.s32 %v8340, %v8342
        %v8344 = vrot.slane %v8337, %v8343
        %v8345 = vcombine.low %v8299, %v8303
        %v8347 = vunpack.c.l.s4 1983009808
        %v8348 = vunpack.c.0.s8 %v8347
        %v8349 = vlaneseq
        %v8350 = vshrl.u32 %v8349, 7
        %v8351 = vsub.s32 %v8348, %v8350
        %v8352 = vrot.slane %v8345, %v8351
        %v8353 = vcombine.low %v8344, %v8352
        %v8354 = vcombine.high %v8344, %v8352
        %v8356 = vunpack.c.l.s4 1934713408
        %v8357 = vunpack.c.0.s8 %v8356
        %v8358 = vlaneseq
        %v8359 = vshrl.u32 %v8358, 7
        %v8360 = vsub.s32 %v8357, %v8359
        %v8361 = vrot.slane %v8353, %v8360
        %v8362 = vcombine.high %v8361, 0
        %v8364 = vunpack.c.l.s4 1934713408
        %v8365 = vunpack.c.0.s8 %v8364
        %v8366 = vlaneseq
        %v8367 = vshrl.u32 %v8366, 7
        %v8368 = vsub.s32 %v8365, %v8367
        %v8369 = vrot.slane %v8354, %v8368
        %v8372 = vpack.i.b16 %v8361, %v8328
        %v8373 = vshrl.u32 %v8328, 16
        %v8374 = vshrl.u32 %v8361, 16
        %v8375 = vpack.i.b16 %v8374, %v8373
        %v8378 = vpack.i.b16 %v8362, %v8329
        %v8379 = vshrl.u32 %v8329, 16
        %v8380 = vshrl.u32 %v8362, 16
        %v8381 = vpack.i.b16 %v8380, %v8379
        %v8384 = vpack.i.b16 %v8369, %v8336
        %v8385 = vshrl.u32 %v8336, 16
        %v8386 = vshrl.u32 %v8369, 16
        %v8387 = vpack.i.b16 %v8386, %v8385
        %v8388 = vunpack.c.l.b16 %v8375
        %v8389 = vpack.c.b16 %v8388, %v8388
        %8390 = vrot.lane.b32.xlu0 %v8389, 4
        %v8391 = vpop.permute.xlu0 %8390
        %v8392 = vunpack.c.l.b16 %v8378
        %v8393 = vpack.c.b16 %v8392, %v8392
        %8394 = vrot.lane.b32.xlu0 %v8393, 8
        %v8395 = vpop.permute.xlu0 %8394
        %v8396 = vunpack.c.l.b16 %v8381
        %v8397 = vpack.c.b16 %v8396, %v8396
        %8398 = vrot.lane.b32.xlu0 %v8397, 12
        %v8399 = vpop.permute.xlu0 %8398
        %v8400 = vunpack.c.l.b16 %v8384
        %v8401 = vpack.c.b16 %v8400, %v8400
        %8402 = vrot.lane.b32.xlu0 %v8401, 16
        %v8403 = vpop.permute.xlu0 %8402
        %v8404 = vunpack.c.l.b16 %v8387
        %v8405 = vpack.c.b16 %v8404, %v8404
        %8406 = vrot.lane.b32.xlu0 %v8405, 20
        %v8407 = vpop.permute.xlu0 %8406
        %v8410 = vsel %vm862, %v8372, %v8391
        %v8412 = vsel %vm869, %v8410, %v8395
        %v8414 = vsel %vm874, %v8412, %v8399
        %v8416 = vsel %vm879, %v8414, %v8403
        %v8418 = vsel %vm884, %v8416, %v8407
        %8427 = vrot.lane.b32.xlu0 %v8296, 127
        %v8428 = vpop.permute.xlu0 %8427
        %8429 = vrot.lane.b32.xlu0 %v8297, 127
        %v8430 = vpop.permute.xlu0 %8429
        %8431 = vrot.lane.b32.xlu0 %v8298, 127
        %v8432 = vpop.permute.xlu0 %8431
        %8433 = vrot.lane.b32.xlu0 %v8299, 127
        %v8434 = vpop.permute.xlu0 %8433
        %8435 = vrot.lane.b32.xlu0 %v8300, 127
        %v8436 = vpop.permute.xlu0 %8435
        %8437 = vrot.lane.b32.xlu0 %v8301, 127
        %v8438 = vpop.permute.xlu0 %8437
        %8439 = vrot.lane.b32.xlu0 %v8302, 127
        %v8440 = vpop.permute.xlu0 %8439
        %8441 = vrot.lane.b32.xlu0 %v8303, 127
        %v8442 = vpop.permute.xlu0 %8441
        %v8451 = vcombine.low %v8428, %v8436
        %v8453 = vunpack.c.l.s4 1983009808
        %v8454 = vunpack.c.0.s8 %v8453
        %v8455 = vlaneseq
        %v8456 = vshrl.u32 %v8455, 7
        %v8457 = vsub.s32 %v8454, %v8456
        %v8458 = vrot.slane %v8451, %v8457
        %v8459 = vcombine.low %v8432, %v8440
        %v8461 = vunpack.c.l.s4 1983009808
        %v8462 = vunpack.c.0.s8 %v8461
        %v8463 = vlaneseq
        %v8464 = vshrl.u32 %v8463, 7
        %v8465 = vsub.s32 %v8462, %v8464
        %v8466 = vrot.slane %v8459, %v8465
        %v8467 = vcombine.low %v8458, %v8466
        %v8468 = vcombine.high %v8458, %v8466
        %v8470 = vunpack.c.l.s4 1934713408
        %v8471 = vunpack.c.0.s8 %v8470
        %v8472 = vlaneseq
        %v8473 = vshrl.u32 %v8472, 7
        %v8474 = vsub.s32 %v8471, %v8473
        %v8475 = vrot.slane %v8467, %v8474
        %v8476 = vcombine.high %v8475, 0
        %v8478 = vunpack.c.l.s4 1934713408
        %v8479 = vunpack.c.0.s8 %v8478
        %v8480 = vlaneseq
        %v8481 = vshrl.u32 %v8480, 7
        %v8482 = vsub.s32 %v8479, %v8481
        %v8483 = vrot.slane %v8468, %v8482
        %v8484 = vcombine.low %v8430, %v8438
        %v8486 = vunpack.c.l.s4 1983009808
        %v8487 = vunpack.c.0.s8 %v8486
        %v8488 = vlaneseq
        %v8489 = vshrl.u32 %v8488, 7
        %v8490 = vsub.s32 %v8487, %v8489
        %v8491 = vrot.slane %v8484, %v8490
        %v8492 = vcombine.low %v8434, %v8442
        %v8494 = vunpack.c.l.s4 1983009808
        %v8495 = vunpack.c.0.s8 %v8494
        %v8496 = vlaneseq
        %v8497 = vshrl.u32 %v8496, 7
        %v8498 = vsub.s32 %v8495, %v8497
        %v8499 = vrot.slane %v8492, %v8498
        %v8500 = vcombine.low %v8491, %v8499
        %v8501 = vcombine.high %v8491, %v8499
        %v8503 = vunpack.c.l.s4 1934713408
        %v8504 = vunpack.c.0.s8 %v8503
        %v8505 = vlaneseq
        %v8506 = vshrl.u32 %v8505, 7
        %v8507 = vsub.s32 %v8504, %v8506
        %v8508 = vrot.slane %v8500, %v8507
        %v8509 = vcombine.high %v8508, 0
        %v8511 = vunpack.c.l.s4 1934713408
        %v8512 = vunpack.c.0.s8 %v8511
        %v8513 = vlaneseq
        %v8514 = vshrl.u32 %v8513, 7
        %v8515 = vsub.s32 %v8512, %v8514
        %v8516 = vrot.slane %v8501, %v8515
        %v8519 = vpack.i.b16 %v8508, %v8475
        %v8520 = vshrl.u32 %v8475, 16
        %v8521 = vshrl.u32 %v8508, 16
        %v8522 = vpack.i.b16 %v8521, %v8520
        %v8525 = vpack.i.b16 %v8509, %v8476
        %v8526 = vshrl.u32 %v8476, 16
        %v8527 = vshrl.u32 %v8509, 16
        %v8528 = vpack.i.b16 %v8527, %v8526
        %v8531 = vpack.i.b16 %v8516, %v8483
        %v8532 = vshrl.u32 %v8483, 16
        %v8533 = vshrl.u32 %v8516, 16
        %v8534 = vpack.i.b16 %v8533, %v8532
        %v8535 = vunpack.c.l.b16 %v8522
        %v8536 = vpack.c.b16 %v8535, %v8535
        %8537 = vrot.lane.b32.xlu0 %v8536, 4
        %v8538 = vpop.permute.xlu0 %8537
        %v8539 = vunpack.c.l.b16 %v8525
        %v8540 = vpack.c.b16 %v8539, %v8539
        %8541 = vrot.lane.b32.xlu0 %v8540, 8
        %v8542 = vpop.permute.xlu0 %8541
        %v8543 = vunpack.c.l.b16 %v8528
        %v8544 = vpack.c.b16 %v8543, %v8543
        %8545 = vrot.lane.b32.xlu0 %v8544, 12
        %v8546 = vpop.permute.xlu0 %8545
        %v8547 = vunpack.c.l.b16 %v8531
        %v8548 = vpack.c.b16 %v8547, %v8547
        %8549 = vrot.lane.b32.xlu0 %v8548, 16
        %v8550 = vpop.permute.xlu0 %8549
        %v8551 = vunpack.c.l.b16 %v8534
        %v8552 = vpack.c.b16 %v8551, %v8551
        %8553 = vrot.lane.b32.xlu0 %v8552, 20
        %v8554 = vpop.permute.xlu0 %8553
        %v8557 = vsel %vm862, %v8519, %v8538
        %v8559 = vsel %vm869, %v8557, %v8542
        %v8561 = vsel %vm874, %v8559, %v8546
        %v8563 = vsel %vm879, %v8561, %v8550
        %v8565 = vsel %vm884, %v8563, %v8554
        %8566 = vrot.lane.b32.xlu0 %v8296, 126
        %v8567 = vpop.permute.xlu0 %8566
        %8568 = vrot.lane.b32.xlu0 %v8297, 126
        %v8569 = vpop.permute.xlu0 %8568
        %8570 = vrot.lane.b32.xlu0 %v8298, 126
        %v8571 = vpop.permute.xlu0 %8570
        %8572 = vrot.lane.b32.xlu0 %v8299, 126
        %v8573 = vpop.permute.xlu0 %8572
        %8574 = vrot.lane.b32.xlu0 %v8300, 126
        %v8575 = vpop.permute.xlu0 %8574
        %8576 = vrot.lane.b32.xlu0 %v8301, 126
        %v8577 = vpop.permute.xlu0 %8576
        %8578 = vrot.lane.b32.xlu0 %v8302, 126
        %v8579 = vpop.permute.xlu0 %8578
        %8580 = vrot.lane.b32.xlu0 %v8303, 126
        %v8581 = vpop.permute.xlu0 %8580
        %v8590 = vcombine.low %v8567, %v8575
        %v8592 = vunpack.c.l.s4 1983009808
        %v8593 = vunpack.c.0.s8 %v8592
        %v8594 = vlaneseq
        %v8595 = vshrl.u32 %v8594, 7
        %v8596 = vsub.s32 %v8593, %v8595
        %v8597 = vrot.slane %v8590, %v8596
        %v8598 = vcombine.low %v8571, %v8579
        %v8600 = vunpack.c.l.s4 1983009808
        %v8601 = vunpack.c.0.s8 %v8600
        %v8602 = vlaneseq
        %v8603 = vshrl.u32 %v8602, 7
        %v8604 = vsub.s32 %v8601, %v8603
        %v8605 = vrot.slane %v8598, %v8604
        %v8606 = vcombine.low %v8597, %v8605
        %v8607 = vcombine.high %v8597, %v8605
        %v8609 = vunpack.c.l.s4 1934713408
        %v8610 = vunpack.c.0.s8 %v8609
        %v8611 = vlaneseq
        %v8612 = vshrl.u32 %v8611, 7
        %v8613 = vsub.s32 %v8610, %v8612
        %v8614 = vrot.slane %v8606, %v8613
        %v8615 = vcombine.high %v8614, 0
        %v8617 = vunpack.c.l.s4 1934713408
        %v8618 = vunpack.c.0.s8 %v8617
        %v8619 = vlaneseq
        %v8620 = vshrl.u32 %v8619, 7
        %v8621 = vsub.s32 %v8618, %v8620
        %v8622 = vrot.slane %v8607, %v8621
        %v8623 = vcombine.low %v8569, %v8577
        %v8625 = vunpack.c.l.s4 1983009808
        %v8626 = vunpack.c.0.s8 %v8625
        %v8627 = vlaneseq
        %v8628 = vshrl.u32 %v8627, 7
        %v8629 = vsub.s32 %v8626, %v8628
        %v8630 = vrot.slane %v8623, %v8629
        %v8631 = vcombine.low %v8573, %v8581
        %v8633 = vunpack.c.l.s4 1983009808
        %v8634 = vunpack.c.0.s8 %v8633
        %v8635 = vlaneseq
        %v8636 = vshrl.u32 %v8635, 7
        %v8637 = vsub.s32 %v8634, %v8636
        %v8638 = vrot.slane %v8631, %v8637
        %v8639 = vcombine.low %v8630, %v8638
        %v8640 = vcombine.high %v8630, %v8638
        %v8642 = vunpack.c.l.s4 1934713408
        %v8643 = vunpack.c.0.s8 %v8642
        %v8644 = vlaneseq
        %v8645 = vshrl.u32 %v8644, 7
        %v8646 = vsub.s32 %v8643, %v8645
        %v8647 = vrot.slane %v8639, %v8646
        %v8648 = vcombine.high %v8647, 0
        %v8650 = vunpack.c.l.s4 1934713408
        %v8651 = vunpack.c.0.s8 %v8650
        %v8652 = vlaneseq
        %v8653 = vshrl.u32 %v8652, 7
        %v8654 = vsub.s32 %v8651, %v8653
        %v8655 = vrot.slane %v8640, %v8654
        %v8658 = vpack.i.b16 %v8647, %v8614
        %v8659 = vshrl.u32 %v8614, 16
        %v8660 = vshrl.u32 %v8647, 16
        %v8661 = vpack.i.b16 %v8660, %v8659
        %v8664 = vpack.i.b16 %v8648, %v8615
        %v8665 = vshrl.u32 %v8615, 16
        %v8666 = vshrl.u32 %v8648, 16
        %v8667 = vpack.i.b16 %v8666, %v8665
        %v8670 = vpack.i.b16 %v8655, %v8622
        %v8671 = vshrl.u32 %v8622, 16
        %v8672 = vshrl.u32 %v8655, 16
        %v8673 = vpack.i.b16 %v8672, %v8671
        %v8674 = vunpack.c.l.b16 %v8661
        %v8675 = vpack.c.b16 %v8674, %v8674
        %8676 = vrot.lane.b32.xlu0 %v8675, 4
        %v8677 = vpop.permute.xlu0 %8676
        %v8678 = vunpack.c.l.b16 %v8664
        %v8679 = vpack.c.b16 %v8678, %v8678
        %8680 = vrot.lane.b32.xlu0 %v8679, 8
        %v8681 = vpop.permute.xlu0 %8680
        %v8682 = vunpack.c.l.b16 %v8667
        %v8683 = vpack.c.b16 %v8682, %v8682
        %8684 = vrot.lane.b32.xlu0 %v8683, 12
        %v8685 = vpop.permute.xlu0 %8684
        %v8686 = vunpack.c.l.b16 %v8670
        %v8687 = vpack.c.b16 %v8686, %v8686
        %8688 = vrot.lane.b32.xlu0 %v8687, 16
        %v8689 = vpop.permute.xlu0 %8688
        %v8690 = vunpack.c.l.b16 %v8673
        %v8691 = vpack.c.b16 %v8690, %v8690
        %8692 = vrot.lane.b32.xlu0 %v8691, 20
        %v8693 = vpop.permute.xlu0 %8692
        %v8696 = vsel %vm862, %v8658, %v8677
        %v8698 = vsel %vm869, %v8696, %v8681
        %v8700 = vsel %vm874, %v8698, %v8685
        %v8702 = vsel %vm879, %v8700, %v8689
        %v8704 = vsel %vm884, %v8702, %v8693
        %v8706 = vshrl.u32 %v8296, 16
        %v8708 = vrot.slane %v8706, 4
        %v8709 = vshll.u32 %v8296, 16
        %v8711 = vrot.slane %v8709, 5
        %v8712 = vor.u32 %v8708, %v8711
        %v8713 = vrot.slane %v8712, 4
        %v8715 = vshrl.u32 %v8297, 16
        %v8717 = vrot.slane %v8715, 4
        %v8718 = vshll.u32 %v8297, 16
        %v8720 = vrot.slane %v8718, 5
        %v8721 = vor.u32 %v8717, %v8720
        %v8722 = vrot.slane %v8721, 4
        %v8724 = vshrl.u32 %v8298, 16
        %v8726 = vrot.slane %v8724, 4
        %v8727 = vshll.u32 %v8298, 16
        %v8729 = vrot.slane %v8727, 5
        %v8730 = vor.u32 %v8726, %v8729
        %v8731 = vrot.slane %v8730, 4
        %v8733 = vshrl.u32 %v8299, 16
        %v8735 = vrot.slane %v8733, 4
        %v8736 = vshll.u32 %v8299, 16
        %v8738 = vrot.slane %v8736, 5
        %v8739 = vor.u32 %v8735, %v8738
        %v8740 = vrot.slane %v8739, 4
        %v8742 = vshrl.u32 %v8300, 16
        %v8744 = vrot.slane %v8742, 4
        %v8745 = vshll.u32 %v8300, 16
        %v8747 = vrot.slane %v8745, 5
        %v8748 = vor.u32 %v8744, %v8747
        %v8749 = vrot.slane %v8748, 4
        %v8751 = vshrl.u32 %v8301, 16
        %v8753 = vrot.slane %v8751, 4
        %v8754 = vshll.u32 %v8301, 16
        %v8756 = vrot.slane %v8754, 5
        %v8757 = vor.u32 %v8753, %v8756
        %v8758 = vrot.slane %v8757, 4
        %v8760 = vshrl.u32 %v8302, 16
        %v8762 = vrot.slane %v8760, 4
        %v8763 = vshll.u32 %v8302, 16
        %v8765 = vrot.slane %v8763, 5
        %v8766 = vor.u32 %v8762, %v8765
        %v8767 = vrot.slane %v8766, 4
        %v8769 = vshrl.u32 %v8303, 16
        %v8771 = vrot.slane %v8769, 4
        %v8772 = vshll.u32 %v8303, 16
        %v8774 = vrot.slane %v8772, 5
        %v8775 = vor.u32 %v8771, %v8774
        %v8776 = vrot.slane %v8775, 4
        %v8785 = vcombine.low %v8713, %v8749
        %v8787 = vunpack.c.l.s4 1983009808
        %v8788 = vunpack.c.0.s8 %v8787
        %v8789 = vlaneseq
        %v8790 = vshrl.u32 %v8789, 7
        %v8791 = vsub.s32 %v8788, %v8790
        %v8792 = vrot.slane %v8785, %v8791
        %v8793 = vcombine.low %v8731, %v8767
        %v8795 = vunpack.c.l.s4 1983009808
        %v8796 = vunpack.c.0.s8 %v8795
        %v8797 = vlaneseq
        %v8798 = vshrl.u32 %v8797, 7
        %v8799 = vsub.s32 %v8796, %v8798
        %v8800 = vrot.slane %v8793, %v8799
        %v8801 = vcombine.low %v8792, %v8800
        %v8802 = vcombine.high %v8792, %v8800
        %v8804 = vunpack.c.l.s4 1934713408
        %v8805 = vunpack.c.0.s8 %v8804
        %v8806 = vlaneseq
        %v8807 = vshrl.u32 %v8806, 7
        %v8808 = vsub.s32 %v8805, %v8807
        %v8809 = vrot.slane %v8801, %v8808
        %v8810 = vcombine.high %v8809, 0
        %v8812 = vunpack.c.l.s4 1934713408
        %v8813 = vunpack.c.0.s8 %v8812
        %v8814 = vlaneseq
        %v8815 = vshrl.u32 %v8814, 7
        %v8816 = vsub.s32 %v8813, %v8815
        %v8817 = vrot.slane %v8802, %v8816
        %v8818 = vcombine.low %v8722, %v8758
        %v8820 = vunpack.c.l.s4 1983009808
        %v8821 = vunpack.c.0.s8 %v8820
        %v8822 = vlaneseq
        %v8823 = vshrl.u32 %v8822, 7
        %v8824 = vsub.s32 %v8821, %v8823
        %v8825 = vrot.slane %v8818, %v8824
        %v8826 = vcombine.low %v8740, %v8776
        %v8828 = vunpack.c.l.s4 1983009808
        %v8829 = vunpack.c.0.s8 %v8828
        %v8830 = vlaneseq
        %v8831 = vshrl.u32 %v8830, 7
        %v8832 = vsub.s32 %v8829, %v8831
        %v8833 = vrot.slane %v8826, %v8832
        %v8834 = vcombine.low %v8825, %v8833
        %v8835 = vcombine.high %v8825, %v8833
        %v8837 = vunpack.c.l.s4 1934713408
        %v8838 = vunpack.c.0.s8 %v8837
        %v8839 = vlaneseq
        %v8840 = vshrl.u32 %v8839, 7
        %v8841 = vsub.s32 %v8838, %v8840
        %v8842 = vrot.slane %v8834, %v8841
        %v8843 = vcombine.high %v8842, 0
        %v8845 = vunpack.c.l.s4 1934713408
        %v8846 = vunpack.c.0.s8 %v8845
        %v8847 = vlaneseq
        %v8848 = vshrl.u32 %v8847, 7
        %v8849 = vsub.s32 %v8846, %v8848
        %v8850 = vrot.slane %v8835, %v8849
        %v8853 = vpack.i.b16 %v8842, %v8809
        %v8854 = vshrl.u32 %v8809, 16
        %v8855 = vshrl.u32 %v8842, 16
        %v8856 = vpack.i.b16 %v8855, %v8854
        %v8859 = vpack.i.b16 %v8843, %v8810
        %v8860 = vshrl.u32 %v8810, 16
        %v8861 = vshrl.u32 %v8843, 16
        %v8862 = vpack.i.b16 %v8861, %v8860
        %v8865 = vpack.i.b16 %v8850, %v8817
        %v8866 = vshrl.u32 %v8817, 16
        %v8867 = vshrl.u32 %v8850, 16
        %v8868 = vpack.i.b16 %v8867, %v8866
        %v8869 = vunpack.c.l.b16 %v8856
        %v8870 = vpack.c.b16 %v8869, %v8869
        %8871 = vrot.lane.b32.xlu0 %v8870, 4
        %v8872 = vpop.permute.xlu0 %8871
        %v8873 = vunpack.c.l.b16 %v8859
        %v8874 = vpack.c.b16 %v8873, %v8873
        %8875 = vrot.lane.b32.xlu0 %v8874, 8
        %v8876 = vpop.permute.xlu0 %8875
        %v8877 = vunpack.c.l.b16 %v8862
        %v8878 = vpack.c.b16 %v8877, %v8877
        %8879 = vrot.lane.b32.xlu0 %v8878, 12
        %v8880 = vpop.permute.xlu0 %8879
        %v8881 = vunpack.c.l.b16 %v8865
        %v8882 = vpack.c.b16 %v8881, %v8881
        %8883 = vrot.lane.b32.xlu0 %v8882, 16
        %v8884 = vpop.permute.xlu0 %8883
        %v8885 = vunpack.c.l.b16 %v8868
        %v8886 = vpack.c.b16 %v8885, %v8885
        %8887 = vrot.lane.b32.xlu0 %v8886, 20
        %v8888 = vpop.permute.xlu0 %8887
        %v8891 = vsel %vm862, %v8853, %v8872
        %v8893 = vsel %vm869, %v8891, %v8876
        %v8895 = vsel %vm874, %v8893, %v8880
        %v8897 = vsel %vm879, %v8895, %v8884
        %v8899 = vsel %vm884, %v8897, %v8888
        %8900 = vrot.lane.b32.xlu0 %v8713, 127
        %v8901 = vpop.permute.xlu0 %8900
        %8902 = vrot.lane.b32.xlu0 %v8722, 127
        %v8903 = vpop.permute.xlu0 %8902
        %8904 = vrot.lane.b32.xlu0 %v8731, 127
        %v8905 = vpop.permute.xlu0 %8904
        %8906 = vrot.lane.b32.xlu0 %v8740, 127
        %v8907 = vpop.permute.xlu0 %8906
        %8908 = vrot.lane.b32.xlu0 %v8749, 127
        %v8909 = vpop.permute.xlu0 %8908
        %8910 = vrot.lane.b32.xlu0 %v8758, 127
        %v8911 = vpop.permute.xlu0 %8910
        %8912 = vrot.lane.b32.xlu0 %v8767, 127
        %v8913 = vpop.permute.xlu0 %8912
        %8914 = vrot.lane.b32.xlu0 %v8776, 127
        %v8915 = vpop.permute.xlu0 %8914
        %v8924 = vcombine.low %v8901, %v8909
        %v8926 = vunpack.c.l.s4 1983009808
        %v8927 = vunpack.c.0.s8 %v8926
        %v8928 = vlaneseq
        %v8929 = vshrl.u32 %v8928, 7
        %v8930 = vsub.s32 %v8927, %v8929
        %v8931 = vrot.slane %v8924, %v8930
        %v8932 = vcombine.low %v8905, %v8913
        %v8934 = vunpack.c.l.s4 1983009808
        %v8935 = vunpack.c.0.s8 %v8934
        %v8936 = vlaneseq
        %v8937 = vshrl.u32 %v8936, 7
        %v8938 = vsub.s32 %v8935, %v8937
        %v8939 = vrot.slane %v8932, %v8938
        %v8940 = vcombine.low %v8931, %v8939
        %v8941 = vcombine.high %v8931, %v8939
        %v8943 = vunpack.c.l.s4 1934713408
        %v8944 = vunpack.c.0.s8 %v8943
        %v8945 = vlaneseq
        %v8946 = vshrl.u32 %v8945, 7
        %v8947 = vsub.s32 %v8944, %v8946
        %v8948 = vrot.slane %v8940, %v8947
        %v8949 = vcombine.high %v8948, 0
        %v8951 = vunpack.c.l.s4 1934713408
        %v8952 = vunpack.c.0.s8 %v8951
        %v8953 = vlaneseq
        %v8954 = vshrl.u32 %v8953, 7
        %v8955 = vsub.s32 %v8952, %v8954
        %v8956 = vrot.slane %v8941, %v8955
        %v8957 = vcombine.low %v8903, %v8911
        %v8959 = vunpack.c.l.s4 1983009808
        %v8960 = vunpack.c.0.s8 %v8959
        %v8961 = vlaneseq
        %v8962 = vshrl.u32 %v8961, 7
        %v8963 = vsub.s32 %v8960, %v8962
        %v8964 = vrot.slane %v8957, %v8963
        %v8965 = vcombine.low %v8907, %v8915
        %v8967 = vunpack.c.l.s4 1983009808
        %v8968 = vunpack.c.0.s8 %v8967
        %v8969 = vlaneseq
        %v8970 = vshrl.u32 %v8969, 7
        %v8971 = vsub.s32 %v8968, %v8970
        %v8972 = vrot.slane %v8965, %v8971
        %v8973 = vcombine.low %v8964, %v8972
        %v8974 = vcombine.high %v8964, %v8972
        %v8976 = vunpack.c.l.s4 1934713408
        %v8977 = vunpack.c.0.s8 %v8976
        %v8978 = vlaneseq
        %v8979 = vshrl.u32 %v8978, 7
        %v8980 = vsub.s32 %v8977, %v8979
        %v8981 = vrot.slane %v8973, %v8980
        %v8982 = vcombine.high %v8981, 0
        %v8984 = vunpack.c.l.s4 1934713408
        %v8985 = vunpack.c.0.s8 %v8984
        %v8986 = vlaneseq
        %v8987 = vshrl.u32 %v8986, 7
        %v8988 = vsub.s32 %v8985, %v8987
        %v8989 = vrot.slane %v8974, %v8988
        %v8992 = vpack.i.b16 %v8981, %v8948
        %v8993 = vshrl.u32 %v8948, 16
        %v8994 = vshrl.u32 %v8981, 16
        %v8995 = vpack.i.b16 %v8994, %v8993
        %v8998 = vpack.i.b16 %v8982, %v8949
        %v8999 = vshrl.u32 %v8949, 16
        %v9000 = vshrl.u32 %v8982, 16
        %v9001 = vpack.i.b16 %v9000, %v8999
        %v9004 = vpack.i.b16 %v8989, %v8956
        %v9005 = vshrl.u32 %v8956, 16
        %v9006 = vshrl.u32 %v8989, 16
        %v9007 = vpack.i.b16 %v9006, %v9005
        %v9008 = vunpack.c.l.b16 %v8995
        %v9009 = vpack.c.b16 %v9008, %v9008
        %9010 = vrot.lane.b32.xlu0 %v9009, 4
        %v9011 = vpop.permute.xlu0 %9010
        %v9012 = vunpack.c.l.b16 %v8998
        %v9013 = vpack.c.b16 %v9012, %v9012
        %9014 = vrot.lane.b32.xlu0 %v9013, 8
        %v9015 = vpop.permute.xlu0 %9014
        %v9016 = vunpack.c.l.b16 %v9001
        %v9017 = vpack.c.b16 %v9016, %v9016
        %9018 = vrot.lane.b32.xlu0 %v9017, 12
        %v9019 = vpop.permute.xlu0 %9018
        %v9020 = vunpack.c.l.b16 %v9004
        %v9021 = vpack.c.b16 %v9020, %v9020
        %9022 = vrot.lane.b32.xlu0 %v9021, 16
        %v9023 = vpop.permute.xlu0 %9022
        %v9024 = vunpack.c.l.b16 %v9007
        %v9025 = vpack.c.b16 %v9024, %v9024
        %9026 = vrot.lane.b32.xlu0 %v9025, 20
        %v9027 = vpop.permute.xlu0 %9026
        %v9030 = vsel %vm862, %v8992, %v9011
        %v9032 = vsel %vm869, %v9030, %v9015
        %v9034 = vsel %vm874, %v9032, %v9019
        %v9036 = vsel %vm879, %v9034, %v9023
        %v9038 = vsel %vm884, %v9036, %v9027
        %9039 = vrot.lane.b32.xlu0 %v8713, 126
        %v9040 = vpop.permute.xlu0 %9039
        %9041 = vrot.lane.b32.xlu0 %v8722, 126
        %v9042 = vpop.permute.xlu0 %9041
        %9043 = vrot.lane.b32.xlu0 %v8731, 126
        %v9044 = vpop.permute.xlu0 %9043
        %9045 = vrot.lane.b32.xlu0 %v8740, 126
        %v9046 = vpop.permute.xlu0 %9045
        %9047 = vrot.lane.b32.xlu0 %v8749, 126
        %v9048 = vpop.permute.xlu0 %9047
        %9049 = vrot.lane.b32.xlu0 %v8758, 126
        %v9050 = vpop.permute.xlu0 %9049
        %9051 = vrot.lane.b32.xlu0 %v8767, 126
        %v9052 = vpop.permute.xlu0 %9051
        %9053 = vrot.lane.b32.xlu0 %v8776, 126
        %v9054 = vpop.permute.xlu0 %9053
        %v9063 = vcombine.low %v9040, %v9048
        %v9065 = vunpack.c.l.s4 1983009808
        %v9066 = vunpack.c.0.s8 %v9065
        %v9067 = vlaneseq
        %v9068 = vshrl.u32 %v9067, 7
        %v9069 = vsub.s32 %v9066, %v9068
        %v9070 = vrot.slane %v9063, %v9069
        %v9071 = vcombine.low %v9044, %v9052
        %v9073 = vunpack.c.l.s4 1983009808
        %v9074 = vunpack.c.0.s8 %v9073
        %v9075 = vlaneseq
        %v9076 = vshrl.u32 %v9075, 7
        %v9077 = vsub.s32 %v9074, %v9076
        %v9078 = vrot.slane %v9071, %v9077
        %v9079 = vcombine.low %v9070, %v9078
        %v9080 = vcombine.high %v9070, %v9078
        %v9082 = vunpack.c.l.s4 1934713408
        %v9083 = vunpack.c.0.s8 %v9082
        %v9084 = vlaneseq
        %v9085 = vshrl.u32 %v9084, 7
        %v9086 = vsub.s32 %v9083, %v9085
        %v9087 = vrot.slane %v9079, %v9086
        %v9088 = vcombine.high %v9087, 0
        %v9090 = vunpack.c.l.s4 1934713408
        %v9091 = vunpack.c.0.s8 %v9090
        %v9092 = vlaneseq
        %v9093 = vshrl.u32 %v9092, 7
        %v9094 = vsub.s32 %v9091, %v9093
        %v9095 = vrot.slane %v9080, %v9094
        %v9096 = vcombine.low %v9042, %v9050
        %v9098 = vunpack.c.l.s4 1983009808
        %v9099 = vunpack.c.0.s8 %v9098
        %v9100 = vlaneseq
        %v9101 = vshrl.u32 %v9100, 7
        %v9102 = vsub.s32 %v9099, %v9101
        %v9103 = vrot.slane %v9096, %v9102
        %v9104 = vcombine.low %v9046, %v9054
        %v9106 = vunpack.c.l.s4 1983009808
        %v9107 = vunpack.c.0.s8 %v9106
        %v9108 = vlaneseq
        %v9109 = vshrl.u32 %v9108, 7
        %v9110 = vsub.s32 %v9107, %v9109
        %v9111 = vrot.slane %v9104, %v9110
        %v9112 = vcombine.low %v9103, %v9111
        %v9113 = vcombine.high %v9103, %v9111
        %v9115 = vunpack.c.l.s4 1934713408
        %v9116 = vunpack.c.0.s8 %v9115
        %v9117 = vlaneseq
        %v9118 = vshrl.u32 %v9117, 7
        %v9119 = vsub.s32 %v9116, %v9118
        %v9120 = vrot.slane %v9112, %v9119
        %v9121 = vcombine.high %v9120, 0
        %v9123 = vunpack.c.l.s4 1934713408
        %v9124 = vunpack.c.0.s8 %v9123
        %v9125 = vlaneseq
        %v9126 = vshrl.u32 %v9125, 7
        %v9127 = vsub.s32 %v9124, %v9126
        %v9128 = vrot.slane %v9113, %v9127
        %v9131 = vpack.i.b16 %v9120, %v9087
        %v9132 = vshrl.u32 %v9087, 16
        %v9133 = vshrl.u32 %v9120, 16
        %v9134 = vpack.i.b16 %v9133, %v9132
        %v9137 = vpack.i.b16 %v9121, %v9088
        %v9138 = vshrl.u32 %v9088, 16
        %v9139 = vshrl.u32 %v9121, 16
        %v9140 = vpack.i.b16 %v9139, %v9138
        %v9143 = vpack.i.b16 %v9128, %v9095
        %v9144 = vshrl.u32 %v9095, 16
        %v9145 = vshrl.u32 %v9128, 16
        %v9146 = vpack.i.b16 %v9145, %v9144
        %v9147 = vunpack.c.l.b16 %v9134
        %v9148 = vpack.c.b16 %v9147, %v9147
        %9149 = vrot.lane.b32.xlu0 %v9148, 4
        %v9150 = vpop.permute.xlu0 %9149
        %v9151 = vunpack.c.l.b16 %v9137
        %v9152 = vpack.c.b16 %v9151, %v9151
        %9153 = vrot.lane.b32.xlu0 %v9152, 8
        %v9154 = vpop.permute.xlu0 %9153
        %v9155 = vunpack.c.l.b16 %v9140
        %v9156 = vpack.c.b16 %v9155, %v9155
        %9157 = vrot.lane.b32.xlu0 %v9156, 12
        %v9158 = vpop.permute.xlu0 %9157
        %v9159 = vunpack.c.l.b16 %v9143
        %v9160 = vpack.c.b16 %v9159, %v9159
        %9161 = vrot.lane.b32.xlu0 %v9160, 16
        %v9162 = vpop.permute.xlu0 %9161
        %v9163 = vunpack.c.l.b16 %v9146
        %v9164 = vpack.c.b16 %v9163, %v9163
        %9165 = vrot.lane.b32.xlu0 %v9164, 20
        %v9166 = vpop.permute.xlu0 %9165
        %v9169 = vsel %vm862, %v9131, %v9150
        %v9171 = vsel %vm869, %v9169, %v9154
        %v9173 = vsel %vm874, %v9171, %v9158
        %v9175 = vsel %vm879, %v9173, %v9162
        %v9177 = vsel %vm884, %v9175, %v9166
        %v9178 = vrot.slane %v8296, 5
        %v9179 = vrot.slane %v9178, 4
        %v9180 = vrot.slane %v8297, 5
        %v9181 = vrot.slane %v9180, 4
        %v9182 = vrot.slane %v8298, 5
        %v9183 = vrot.slane %v9182, 4
        %v9184 = vrot.slane %v8299, 5
        %v9185 = vrot.slane %v9184, 4
        %v9186 = vrot.slane %v8300, 5
        %v9187 = vrot.slane %v9186, 4
        %v9188 = vrot.slane %v8301, 5
        %v9189 = vrot.slane %v9188, 4
        %v9190 = vrot.slane %v8302, 5
        %v9191 = vrot.slane %v9190, 4
        %v9192 = vrot.slane %v8303, 5
        %v9193 = vrot.slane %v9192, 4
        %v9202 = vcombine.low %v9179, %v9187
        %v9204 = vunpack.c.l.s4 1983009808
        %v9205 = vunpack.c.0.s8 %v9204
        %v9206 = vlaneseq
        %v9207 = vshrl.u32 %v9206, 7
        %v9208 = vsub.s32 %v9205, %v9207
        %v9209 = vrot.slane %v9202, %v9208
        %v9210 = vcombine.low %v9183, %v9191
        %v9212 = vunpack.c.l.s4 1983009808
        %v9213 = vunpack.c.0.s8 %v9212
        %v9214 = vlaneseq
        %v9215 = vshrl.u32 %v9214, 7
        %v9216 = vsub.s32 %v9213, %v9215
        %v9217 = vrot.slane %v9210, %v9216
        %v9218 = vcombine.low %v9209, %v9217
        %v9219 = vcombine.high %v9209, %v9217
        %v9221 = vunpack.c.l.s4 1934713408
        %v9222 = vunpack.c.0.s8 %v9221
        %v9223 = vlaneseq
        %v9224 = vshrl.u32 %v9223, 7
        %v9225 = vsub.s32 %v9222, %v9224
        %v9226 = vrot.slane %v9218, %v9225
        %v9227 = vcombine.high %v9226, 0
        %v9229 = vunpack.c.l.s4 1934713408
        %v9230 = vunpack.c.0.s8 %v9229
        %v9231 = vlaneseq
        %v9232 = vshrl.u32 %v9231, 7
        %v9233 = vsub.s32 %v9230, %v9232
        %v9234 = vrot.slane %v9219, %v9233
        %v9235 = vcombine.low %v9181, %v9189
        %v9237 = vunpack.c.l.s4 1983009808
        %v9238 = vunpack.c.0.s8 %v9237
        %v9239 = vlaneseq
        %v9240 = vshrl.u32 %v9239, 7
        %v9241 = vsub.s32 %v9238, %v9240
        %v9242 = vrot.slane %v9235, %v9241
        %v9243 = vcombine.low %v9185, %v9193
        %v9245 = vunpack.c.l.s4 1983009808
        %v9246 = vunpack.c.0.s8 %v9245
        %v9247 = vlaneseq
        %v9248 = vshrl.u32 %v9247, 7
        %v9249 = vsub.s32 %v9246, %v9248
        %v9250 = vrot.slane %v9243, %v9249
        %v9251 = vcombine.low %v9242, %v9250
        %v9252 = vcombine.high %v9242, %v9250
        %v9254 = vunpack.c.l.s4 1934713408
        %v9255 = vunpack.c.0.s8 %v9254
        %v9256 = vlaneseq
        %v9257 = vshrl.u32 %v9256, 7
        %v9258 = vsub.s32 %v9255, %v9257
        %v9259 = vrot.slane %v9251, %v9258
        %v9260 = vcombine.high %v9259, 0
        %v9262 = vunpack.c.l.s4 1934713408
        %v9263 = vunpack.c.0.s8 %v9262
        %v9264 = vlaneseq
        %v9265 = vshrl.u32 %v9264, 7
        %v9266 = vsub.s32 %v9263, %v9265
        %v9267 = vrot.slane %v9252, %v9266
        %v9270 = vpack.i.b16 %v9259, %v9226
        %v9271 = vshrl.u32 %v9226, 16
        %v9272 = vshrl.u32 %v9259, 16
        %v9273 = vpack.i.b16 %v9272, %v9271
        %v9276 = vpack.i.b16 %v9260, %v9227
        %v9277 = vshrl.u32 %v9227, 16
        %v9278 = vshrl.u32 %v9260, 16
        %v9279 = vpack.i.b16 %v9278, %v9277
        %v9282 = vpack.i.b16 %v9267, %v9234
        %v9283 = vshrl.u32 %v9234, 16
        %v9284 = vshrl.u32 %v9267, 16
        %v9285 = vpack.i.b16 %v9284, %v9283
        %v9286 = vunpack.c.l.b16 %v9273
        %v9287 = vpack.c.b16 %v9286, %v9286
        %9288 = vrot.lane.b32.xlu0 %v9287, 4
        %v9289 = vpop.permute.xlu0 %9288
        %v9290 = vunpack.c.l.b16 %v9276
        %v9291 = vpack.c.b16 %v9290, %v9290
        %9292 = vrot.lane.b32.xlu0 %v9291, 8
        %v9293 = vpop.permute.xlu0 %9292
        %v9294 = vunpack.c.l.b16 %v9279
        %v9295 = vpack.c.b16 %v9294, %v9294
        %9296 = vrot.lane.b32.xlu0 %v9295, 12
        %v9297 = vpop.permute.xlu0 %9296
        %v9298 = vunpack.c.l.b16 %v9282
        %v9299 = vpack.c.b16 %v9298, %v9298
        %9300 = vrot.lane.b32.xlu0 %v9299, 16
        %v9301 = vpop.permute.xlu0 %9300
        %v9302 = vunpack.c.l.b16 %v9285
        %v9303 = vpack.c.b16 %v9302, %v9302
        %9304 = vrot.lane.b32.xlu0 %v9303, 20
        %v9305 = vpop.permute.xlu0 %9304
        %v9308 = vsel %vm862, %v9270, %v9289
        %v9310 = vsel %vm869, %v9308, %v9293
        %v9312 = vsel %vm874, %v9310, %v9297
        %v9314 = vsel %vm879, %v9312, %v9301
        %v9316 = vsel %vm884, %v9314, %v9305
        %9317 = vrot.lane.b32.xlu0 %v9179, 127
        %v9318 = vpop.permute.xlu0 %9317
        %9319 = vrot.lane.b32.xlu0 %v9181, 127
        %v9320 = vpop.permute.xlu0 %9319
        %9321 = vrot.lane.b32.xlu0 %v9183, 127
        %v9322 = vpop.permute.xlu0 %9321
        %9323 = vrot.lane.b32.xlu0 %v9185, 127
        %v9324 = vpop.permute.xlu0 %9323
        %9325 = vrot.lane.b32.xlu0 %v9187, 127
        %v9326 = vpop.permute.xlu0 %9325
        %9327 = vrot.lane.b32.xlu0 %v9189, 127
        %v9328 = vpop.permute.xlu0 %9327
        %9329 = vrot.lane.b32.xlu0 %v9191, 127
        %v9330 = vpop.permute.xlu0 %9329
        %9331 = vrot.lane.b32.xlu0 %v9193, 127
        %v9332 = vpop.permute.xlu0 %9331
        %v9341 = vcombine.low %v9318, %v9326
        %v9343 = vunpack.c.l.s4 1983009808
        %v9344 = vunpack.c.0.s8 %v9343
        %v9345 = vlaneseq
        %v9346 = vshrl.u32 %v9345, 7
        %v9347 = vsub.s32 %v9344, %v9346
        %v9348 = vrot.slane %v9341, %v9347
        %v9349 = vcombine.low %v9322, %v9330
        %v9351 = vunpack.c.l.s4 1983009808
        %v9352 = vunpack.c.0.s8 %v9351
        %v9353 = vlaneseq
        %v9354 = vshrl.u32 %v9353, 7
        %v9355 = vsub.s32 %v9352, %v9354
        %v9356 = vrot.slane %v9349, %v9355
        %v9357 = vcombine.low %v9348, %v9356
        %v9358 = vcombine.high %v9348, %v9356
        %v9360 = vunpack.c.l.s4 1934713408
        %v9361 = vunpack.c.0.s8 %v9360
        %v9362 = vlaneseq
        %v9363 = vshrl.u32 %v9362, 7
        %v9364 = vsub.s32 %v9361, %v9363
        %v9365 = vrot.slane %v9357, %v9364
        %v9366 = vcombine.high %v9365, 0
        %v9368 = vunpack.c.l.s4 1934713408
        %v9369 = vunpack.c.0.s8 %v9368
        %v9370 = vlaneseq
        %v9371 = vshrl.u32 %v9370, 7
        %v9372 = vsub.s32 %v9369, %v9371
        %v9373 = vrot.slane %v9358, %v9372
        %v9374 = vcombine.low %v9320, %v9328
        %v9376 = vunpack.c.l.s4 1983009808
        %v9377 = vunpack.c.0.s8 %v9376
        %v9378 = vlaneseq
        %v9379 = vshrl.u32 %v9378, 7
        %v9380 = vsub.s32 %v9377, %v9379
        %v9381 = vrot.slane %v9374, %v9380
        %v9382 = vcombine.low %v9324, %v9332
        %v9384 = vunpack.c.l.s4 1983009808
        %v9385 = vunpack.c.0.s8 %v9384
        %v9386 = vlaneseq
        %v9387 = vshrl.u32 %v9386, 7
        %v9388 = vsub.s32 %v9385, %v9387
        %v9389 = vrot.slane %v9382, %v9388
        %v9390 = vcombine.low %v9381, %v9389
        %v9391 = vcombine.high %v9381, %v9389
        %v9393 = vunpack.c.l.s4 1934713408
        %v9394 = vunpack.c.0.s8 %v9393
        %v9395 = vlaneseq
        %v9396 = vshrl.u32 %v9395, 7
        %v9397 = vsub.s32 %v9394, %v9396
        %v9398 = vrot.slane %v9390, %v9397
        %v9399 = vcombine.high %v9398, 0
        %v9401 = vunpack.c.l.s4 1934713408
        %v9402 = vunpack.c.0.s8 %v9401
        %v9403 = vlaneseq
        %v9404 = vshrl.u32 %v9403, 7
        %v9405 = vsub.s32 %v9402, %v9404
        %v9406 = vrot.slane %v9391, %v9405
        %v9409 = vpack.i.b16 %v9398, %v9365
        %v9410 = vshrl.u32 %v9365, 16
        %v9411 = vshrl.u32 %v9398, 16
        %v9412 = vpack.i.b16 %v9411, %v9410
        %v9415 = vpack.i.b16 %v9399, %v9366
        %v9416 = vshrl.u32 %v9366, 16
        %v9417 = vshrl.u32 %v9399, 16
        %v9418 = vpack.i.b16 %v9417, %v9416
        %v9421 = vpack.i.b16 %v9406, %v9373
        %v9422 = vshrl.u32 %v9373, 16
        %v9423 = vshrl.u32 %v9406, 16
        %v9424 = vpack.i.b16 %v9423, %v9422
        %v9425 = vunpack.c.l.b16 %v9412
        %v9426 = vpack.c.b16 %v9425, %v9425
        %9427 = vrot.lane.b32.xlu0 %v9426, 4
        %v9428 = vpop.permute.xlu0 %9427
        %v9429 = vunpack.c.l.b16 %v9415
        %v9430 = vpack.c.b16 %v9429, %v9429
        %9431 = vrot.lane.b32.xlu0 %v9430, 8
        %v9432 = vpop.permute.xlu0 %9431
        %v9433 = vunpack.c.l.b16 %v9418
        %v9434 = vpack.c.b16 %v9433, %v9433
        %9435 = vrot.lane.b32.xlu0 %v9434, 12
        %v9436 = vpop.permute.xlu0 %9435
        %v9437 = vunpack.c.l.b16 %v9421
        %v9438 = vpack.c.b16 %v9437, %v9437
        %9439 = vrot.lane.b32.xlu0 %v9438, 16
        %v9440 = vpop.permute.xlu0 %9439
        %v9441 = vunpack.c.l.b16 %v9424
        %v9442 = vpack.c.b16 %v9441, %v9441
        %9443 = vrot.lane.b32.xlu0 %v9442, 20
        %v9444 = vpop.permute.xlu0 %9443
        %v9447 = vsel %vm862, %v9409, %v9428
        %v9449 = vsel %vm869, %v9447, %v9432
        %v9451 = vsel %vm874, %v9449, %v9436
        %v9453 = vsel %vm879, %v9451, %v9440
        %v9455 = vsel %vm884, %v9453, %v9444
        %9456 = vrot.lane.b32.xlu0 %v9179, 126
        %v9457 = vpop.permute.xlu0 %9456
        %9458 = vrot.lane.b32.xlu0 %v9181, 126
        %v9459 = vpop.permute.xlu0 %9458
        %9460 = vrot.lane.b32.xlu0 %v9183, 126
        %v9461 = vpop.permute.xlu0 %9460
        %9462 = vrot.lane.b32.xlu0 %v9185, 126
        %v9463 = vpop.permute.xlu0 %9462
        %9464 = vrot.lane.b32.xlu0 %v9187, 126
        %v9465 = vpop.permute.xlu0 %9464
        %9466 = vrot.lane.b32.xlu0 %v9189, 126
        %v9467 = vpop.permute.xlu0 %9466
        %9468 = vrot.lane.b32.xlu0 %v9191, 126
        %v9469 = vpop.permute.xlu0 %9468
        %9470 = vrot.lane.b32.xlu0 %v9193, 126
        %v9471 = vpop.permute.xlu0 %9470
        %v9480 = vcombine.low %v9457, %v9465
        %v9482 = vunpack.c.l.s4 1983009808
        %v9483 = vunpack.c.0.s8 %v9482
        %v9484 = vlaneseq
        %v9485 = vshrl.u32 %v9484, 7
        %v9486 = vsub.s32 %v9483, %v9485
        %v9487 = vrot.slane %v9480, %v9486
        %v9488 = vcombine.low %v9461, %v9469
        %v9490 = vunpack.c.l.s4 1983009808
        %v9491 = vunpack.c.0.s8 %v9490
        %v9492 = vlaneseq
        %v9493 = vshrl.u32 %v9492, 7
        %v9494 = vsub.s32 %v9491, %v9493
        %v9495 = vrot.slane %v9488, %v9494
        %v9496 = vcombine.low %v9487, %v9495
        %v9497 = vcombine.high %v9487, %v9495
        %v9499 = vunpack.c.l.s4 1934713408
        %v9500 = vunpack.c.0.s8 %v9499
        %v9501 = vlaneseq
        %v9502 = vshrl.u32 %v9501, 7
        %v9503 = vsub.s32 %v9500, %v9502
        %v9504 = vrot.slane %v9496, %v9503
        %v9505 = vcombine.high %v9504, 0
        %v9507 = vunpack.c.l.s4 1934713408
        %v9508 = vunpack.c.0.s8 %v9507
        %v9509 = vlaneseq
        %v9510 = vshrl.u32 %v9509, 7
        %v9511 = vsub.s32 %v9508, %v9510
        %v9512 = vrot.slane %v9497, %v9511
        %v9513 = vcombine.low %v9459, %v9467
        %v9515 = vunpack.c.l.s4 1983009808
        %v9516 = vunpack.c.0.s8 %v9515
        %v9517 = vlaneseq
        %v9518 = vshrl.u32 %v9517, 7
        %v9519 = vsub.s32 %v9516, %v9518
        %v9520 = vrot.slane %v9513, %v9519
        %v9521 = vcombine.low %v9463, %v9471
        %v9523 = vunpack.c.l.s4 1983009808
        %v9524 = vunpack.c.0.s8 %v9523
        %v9525 = vlaneseq
        %v9526 = vshrl.u32 %v9525, 7
        %v9527 = vsub.s32 %v9524, %v9526
        %v9528 = vrot.slane %v9521, %v9527
        %v9529 = vcombine.low %v9520, %v9528
        %v9530 = vcombine.high %v9520, %v9528
        %v9532 = vunpack.c.l.s4 1934713408
        %v9533 = vunpack.c.0.s8 %v9532
        %v9534 = vlaneseq
        %v9535 = vshrl.u32 %v9534, 7
        %v9536 = vsub.s32 %v9533, %v9535
        %v9537 = vrot.slane %v9529, %v9536
        %v9538 = vcombine.high %v9537, 0
        %v9540 = vunpack.c.l.s4 1934713408
        %v9541 = vunpack.c.0.s8 %v9540
        %v9542 = vlaneseq
        %v9543 = vshrl.u32 %v9542, 7
        %v9544 = vsub.s32 %v9541, %v9543
        %v9545 = vrot.slane %v9530, %v9544
        %v9548 = vpack.i.b16 %v9537, %v9504
        %v9549 = vshrl.u32 %v9504, 16
        %v9550 = vshrl.u32 %v9537, 16
        %v9551 = vpack.i.b16 %v9550, %v9549
        %v9554 = vpack.i.b16 %v9538, %v9505
        %v9555 = vshrl.u32 %v9505, 16
        %v9556 = vshrl.u32 %v9538, 16
        %v9557 = vpack.i.b16 %v9556, %v9555
        %v9560 = vpack.i.b16 %v9545, %v9512
        %v9561 = vshrl.u32 %v9512, 16
        %v9562 = vshrl.u32 %v9545, 16
        %v9563 = vpack.i.b16 %v9562, %v9561
        %v9564 = vunpack.c.l.b16 %v9551
        %v9565 = vpack.c.b16 %v9564, %v9564
        %9566 = vrot.lane.b32.xlu0 %v9565, 4
        %v9567 = vpop.permute.xlu0 %9566
        %v9568 = vunpack.c.l.b16 %v9554
        %v9569 = vpack.c.b16 %v9568, %v9568
        %9570 = vrot.lane.b32.xlu0 %v9569, 8
        %v9571 = vpop.permute.xlu0 %9570
        %v9572 = vunpack.c.l.b16 %v9557
        %v9573 = vpack.c.b16 %v9572, %v9572
        %9574 = vrot.lane.b32.xlu0 %v9573, 12
        %v9575 = vpop.permute.xlu0 %9574
        %v9576 = vunpack.c.l.b16 %v9560
        %v9577 = vpack.c.b16 %v9576, %v9576
        %9578 = vrot.lane.b32.xlu0 %v9577, 16
        %v9579 = vpop.permute.xlu0 %9578
        %v9580 = vunpack.c.l.b16 %v9563
        %v9581 = vpack.c.b16 %v9580, %v9580
        %9582 = vrot.lane.b32.xlu0 %v9581, 20
        %v9583 = vpop.permute.xlu0 %9582
        %v9586 = vsel %vm862, %v9548, %v9567
        %v9588 = vsel %vm869, %v9586, %v9571
        %v9590 = vsel %vm874, %v9588, %v9575
        %v9592 = vsel %vm879, %v9590, %v9579
        %v9594 = vsel %vm884, %v9592, %v9583
        %v9596 = vrot.slane %v8565, 4
        %v9598 = vrot.slane %v8899, 4
        %v9600 = vrot.slane %v9177, 4
        %v9602 = vrot.slane %v9455, 4
        %v9604 = vsel %vm5807, %v8418, %v9596
        %v9607 = vsel %vm5807, %v8704, %v9598
        %v9610 = vsel %vm5807, %v9038, %v9600
        %v9613 = vsel %vm5807, %v9316, %v9602
        %v9615 = vld [vmem:[%s6] sm:$0xff]
        %9617 = vset.pattern.permute.xlu0 0
        %9618 = vperm.xlu0 %9617, %v9615
        %v9619 = vpop.permute.xlu0 %9618
        %v9622 = vsel %vm8009, %v8295, 0
        %v9624 = vsel %vm5807, %v9594, 0
        %9626 = vmatprep.subr.bf16.mxu0 0
        %9627 = vmatpush1.bf16.msra.mxu0 %v9604
        %9628 = vmatprep.subr.bf16.mxu0 0
        %9629 = vmatpush1.bf16.msra.mxu0 %v9607
        %9630 = vmatprep.subr.bf16.mxu0 0
        %9631 = vmatpush1.bf16.msra.mxu0 %v9610
        %9632 = vmatprep.subr.bf16.mxu0 0
        %9633 = vmatpush1.bf16.msra.mxu0 %v9613
        %9634 = vmatprep.subr.bf16.mxu0 0
        %9635 = vmatpush1.bf16.msra.mxu0 %v9624
        %9636 = vmatprep.subr.bf16.mxu0 0
        %9637 = vmatpush1.bf16.msra.mxu0 0
        %9638 = vmatprep.subr.bf16.mxu0 0
        %9639 = vmatpush1.bf16.msra.mxu0 0
        %9640 = vmatprep.subr.bf16.mxu0 0
        %9641 = vmatpush1.bf16.msra.mxu0 0
        %9642 = vmatprep.subr.bf16.mxu0 0
        %9643 = vmatpush1.bf16.msra.mxu0 0
        %9644 = vmatprep.subr.bf16.mxu0 0
        %9645 = vmatpush1.bf16.msra.mxu0 0
        %9646 = vmatprep.subr.bf16.mxu0 0
        %9647 = vmatpush1.bf16.msra.mxu0 0
        %9648 = vmatprep.subr.bf16.mxu0 0
        %9649 = vmatpush1.bf16.msra.mxu0 0
        %9650 = vmatprep.subr.bf16.mxu0 0
        %9651 = vmatpush1.bf16.msra.mxu0 0
        %9652 = vmatprep.subr.bf16.mxu0 0
        %9653 = vmatpush1.bf16.msra.mxu0 0
        %9654 = vmatprep.subr.bf16.mxu0 0
        %9655 = vmatpush1.bf16.msra.mxu0 0
        %9656 = vmatprep.subr.bf16.mxu0 0
        %9657 = vmatpush1.bf16.msra.mxu0 0
        %9658 = vmatprep.mubr.bf16.mxu0 0
        %9659 = vmatmul.mubr.bf16.gmra.mrb[0].mxu0 %v9622
        %v9660 = vpop.f32.mrb[0].mxu0
        %v9661 = vadd.f32 %v9619, %v9660
        %v9662 = vpop.f32.mrb[0].mxu0
        %v9663 = vpop.f32.mrb[0].mxu0
        %v9664 = vpop.f32.mrb[0].mxu0
        %9665 = vdwg.mxu0
        %9667 = vrot.lane.b32.xlu0 %v9661, 124
        %v9668 = vpop.permute.xlu0 %9667
        %9670 = vrot.lane.b32.xlu0 %v9661, 120
        %v9671 = vpop.permute.xlu0 %9670
        %9673 = vrot.lane.b32.xlu0 %v9661, 116
        %v9674 = vpop.permute.xlu0 %9673
        %9676 = vrot.lane.b32.xlu0 %v9661, 112
        %v9677 = vpop.permute.xlu0 %9676
        %9679 = vrot.lane.b32.xlu0 %v9661, 108
        %v9680 = vpop.permute.xlu0 %9679
        %v9682 = vcombine.low %v9661, %v9671
        %v9683 = vcombine.high %v9661, %v9671
        %v9685 = vunpack.c.l.s4 1983009808
        %v9686 = vunpack.c.0.s8 %v9685
        %v9687 = vlaneseq
        %v9688 = vshrl.u32 %v9687, 7
        %v9689 = vsub.s32 %v9686, %v9688
        %v9690 = vrot.slane %v9682, %v9689
        %v9692 = vunpack.c.l.s4 1983009808
        %v9693 = vunpack.c.0.s8 %v9692
        %v9694 = vlaneseq
        %v9695 = vshrl.u32 %v9694, 7
        %v9696 = vsub.s32 %v9693, %v9695
        %v9697 = vrot.slane %v9683, %v9696
        %v9698 = vcombine.low %v9668, %v9674
        %v9699 = vcombine.high %v9668, %v9674
        %v9701 = vunpack.c.l.s4 1983009808
        %v9702 = vunpack.c.0.s8 %v9701
        %v9703 = vlaneseq
        %v9704 = vshrl.u32 %v9703, 7
        %v9705 = vsub.s32 %v9702, %v9704
        %v9706 = vrot.slane %v9698, %v9705
        %v9708 = vunpack.c.l.s4 1983009808
        %v9709 = vunpack.c.0.s8 %v9708
        %v9710 = vlaneseq
        %v9711 = vshrl.u32 %v9710, 7
        %v9712 = vsub.s32 %v9709, %v9711
        %v9713 = vrot.slane %v9699, %v9712
        %v9714 = vcombine.high %v9677, 0.0
        %v9716 = vunpack.c.l.s4 1983009808
        %v9717 = vunpack.c.0.s8 %v9716
        %v9718 = vlaneseq
        %v9719 = vshrl.u32 %v9718, 7
        %v9720 = vsub.s32 %v9717, %v9719
        %v9721 = vrot.slane %v9677, %v9720
        %v9723 = vunpack.c.l.s4 1983009808
        %v9724 = vunpack.c.0.s8 %v9723
        %v9725 = vlaneseq
        %v9726 = vshrl.u32 %v9725, 7
        %v9727 = vsub.s32 %v9724, %v9726
        %v9728 = vrot.slane %v9714, %v9727
        %v9729 = vcombine.high %v9680, 0.0
        %v9731 = vunpack.c.l.s4 1983009808
        %v9732 = vunpack.c.0.s8 %v9731
        %v9733 = vlaneseq
        %v9734 = vshrl.u32 %v9733, 7
        %v9735 = vsub.s32 %v9732, %v9734
        %v9736 = vrot.slane %v9680, %v9735
        %v9738 = vunpack.c.l.s4 1983009808
        %v9739 = vunpack.c.0.s8 %v9738
        %v9740 = vlaneseq
        %v9741 = vshrl.u32 %v9740, 7
        %v9742 = vsub.s32 %v9739, %v9741
        %v9743 = vrot.slane %v9729, %v9742
        %v9744 = vcombine.low %v9690, %v9706
        %v9745 = vcombine.high %v9690, %v9706
        %v9747 = vunpack.c.l.s4 1934713408
        %v9748 = vunpack.c.0.s8 %v9747
        %v9749 = vlaneseq
        %v9750 = vshrl.u32 %v9749, 7
        %v9751 = vsub.s32 %v9748, %v9750
        %v9752 = vrot.slane %v9744, %v9751
        %v9754 = vunpack.c.l.s4 1934713408
        %v9755 = vunpack.c.0.s8 %v9754
        %v9756 = vlaneseq
        %v9757 = vshrl.u32 %v9756, 7
        %v9758 = vsub.s32 %v9755, %v9757
        %v9759 = vrot.slane %v9745, %v9758
        %v9760 = vcombine.low %v9697, %v9713
        %v9761 = vcombine.high %v9697, %v9713
        %v9763 = vunpack.c.l.s4 1934713408
        %v9764 = vunpack.c.0.s8 %v9763
        %v9765 = vlaneseq
        %v9766 = vshrl.u32 %v9765, 7
        %v9767 = vsub.s32 %v9764, %v9766
        %v9768 = vrot.slane %v9760, %v9767
        %v9770 = vunpack.c.l.s4 1934713408
        %v9771 = vunpack.c.0.s8 %v9770
        %v9772 = vlaneseq
        %v9773 = vshrl.u32 %v9772, 7
        %v9774 = vsub.s32 %v9771, %v9773
        %v9775 = vrot.slane %v9761, %v9774
        %v9776 = vcombine.low %v9721, %v9736
        %v9777 = vcombine.high %v9721, %v9736
        %v9779 = vunpack.c.l.s4 1934713408
        %v9780 = vunpack.c.0.s8 %v9779
        %v9781 = vlaneseq
        %v9782 = vshrl.u32 %v9781, 7
        %v9783 = vsub.s32 %v9780, %v9782
        %v9784 = vrot.slane %v9776, %v9783
        %v9786 = vunpack.c.l.s4 1934713408
        %v9787 = vunpack.c.0.s8 %v9786
        %v9788 = vlaneseq
        %v9789 = vshrl.u32 %v9788, 7
        %v9790 = vsub.s32 %v9787, %v9789
        %v9791 = vrot.slane %v9777, %v9790
        %v9792 = vcombine.low %v9728, %v9743
        %v9793 = vcombine.high %v9728, %v9743
        %v9795 = vunpack.c.l.s4 1934713408
        %v9796 = vunpack.c.0.s8 %v9795
        %v9797 = vlaneseq
        %v9798 = vshrl.u32 %v9797, 7
        %v9799 = vsub.s32 %v9796, %v9798
        %v9800 = vrot.slane %v9792, %v9799
        %v9802 = vunpack.c.l.s4 1934713408
        %v9803 = vunpack.c.0.s8 %v9802
        %v9804 = vlaneseq
        %v9805 = vshrl.u32 %v9804, 7
        %v9806 = vsub.s32 %v9803, %v9805
        %v9807 = vrot.slane %v9793, %v9806
        %v9808 = vcombine.low %v9752, %v9784
        %v9809 = vcombine.high %v9752, %v9784
        %v9810 = vcombine.low %v9759, %v9791
        %v9811 = vcombine.high %v9759, %v9791
        %v9812 = vcombine.low %v9768, %v9800
        %v9813 = vcombine.high %v9768, %v9800
        %v9814 = vcombine.low %v9775, %v9807
        %v9815 = vcombine.high %v9775, %v9807
        %v9824 = vrot.slane %v6293, 2
        %v9825 = vrot.slane %v6294, 2
        %v9826 = vrot.slane %v6295, 2
        %v9827 = vrot.slane %v6296, 2
        %v9828 = vrot.slane %v6297, 2
        %v9829 = vrot.slane %v6298, 2
        %v9830 = vrot.slane %v6299, 2
        %v9831 = vrot.slane %v6300, 2
        %v9840 = vadd.f32 %v9808, %v9824
        %v9841 = vadd.f32 %v9809, %v9825
        %v9842 = vadd.f32 %v9810, %v9826
        %v9843 = vadd.f32 %v9811, %v9827
        %v9844 = vadd.f32 %v9812, %v9828
        %v9845 = vadd.f32 %v9813, %v9829
        %v9846 = vadd.f32 %v9814, %v9830
        %v9847 = vadd.f32 %v9815, %v9831
        %s9848 = ssub.s32 %s383, 1
        %v9849 = vstv %s9848
        %v9850 = vadd.s32 %v6277, %v9849
        %vm9851 = vcmp.ge.s32.totalorder %v9850, 0
        %vm9852 = vcmp.lt.s32.totalorder %v9850, 4
        %vm9853 = vmand %vm9851, %vm9852
        %v9854 = vsel %vm9853, 1, 0
        %v9855 = vcvt.s32.f32 %v9854
        %v9856 = vmul.f32 %v9840, %v9855
        %v9857 = vmul.f32 %v9841, %v9855
        %v9858 = vmul.f32 %v9842, %v9855
        %v9859 = vmul.f32 %v9843, %v9855
        %v9860 = vmul.f32 %v9844, %v9855
        %v9861 = vmul.f32 %v9845, %v9855
        %v9862 = vmul.f32 %v9846, %v9855
        %v9863 = vmul.f32 %v9847, %v9855
        %v9864 = vpack.c.bf16 %v9856, %v9856
        %v9865 = vpack.c.bf16 %v9857, %v9857
        %v9866 = vpack.c.bf16 %v9858, %v9858
        %v9867 = vpack.c.bf16 %v9859, %v9859
        %v9868 = vpack.c.bf16 %v9860, %v9860
        %v9869 = vpack.c.bf16 %v9861, %v9861
        %v9870 = vpack.c.bf16 %v9862, %v9862
        %v9871 = vpack.c.bf16 %v9863, %v9863
        %v9880 = vunpack.c.l.b16 %v9864
        %v9881 = vunpack.c.l.b16 %v9865
        %v9882 = vunpack.c.l.b16 %v9866
        %v9883 = vunpack.c.l.b16 %v9867
        %v9884 = vunpack.c.l.b16 %v9868
        %v9885 = vunpack.c.l.b16 %v9869
        %v9886 = vunpack.c.l.b16 %v9870
        %v9887 = vunpack.c.l.b16 %v9871
        %v9888 = vpack.c.b16 %v9880, %v9880
        %v9889 = vpack.c.b16 %v9881, %v9881
        %v9890 = vpack.c.b16 %v9882, %v9882
        %v9891 = vpack.c.b16 %v9883, %v9883
        %v9892 = vpack.c.b16 %v9884, %v9884
        %v9893 = vpack.c.b16 %v9885, %v9885
        %v9894 = vpack.c.b16 %v9886, %v9886
        %v9895 = vpack.c.b16 %v9887, %v9887
        %9896 = vrot.lane.b32.xlu0 %v9888, 1
        %v9897 = vpop.permute.xlu0 %9896
        %9898 = vrot.lane.b32.xlu0 %v9889, 1
        %v9899 = vpop.permute.xlu0 %9898
        %9900 = vrot.lane.b32.xlu0 %v9890, 1
        %v9901 = vpop.permute.xlu0 %9900
        %9902 = vrot.lane.b32.xlu0 %v9891, 1
        %v9903 = vpop.permute.xlu0 %9902
        %9904 = vrot.lane.b32.xlu0 %v9892, 1
        %v9905 = vpop.permute.xlu0 %9904
        %9906 = vrot.lane.b32.xlu0 %v9893, 1
        %v9907 = vpop.permute.xlu0 %9906
        %9908 = vrot.lane.b32.xlu0 %v9894, 1
        %v9909 = vpop.permute.xlu0 %9908
        %9910 = vrot.lane.b32.xlu0 %v9895, 1
        %v9911 = vpop.permute.xlu0 %9910
        %vm9920 = vcmask 34824
        %9921 = vst.msk [vmem:[#allocation2] sm:$0x7] %vm9920, %v9897
        %9922 = vst.msk [vmem:[#allocation2 + $0x8] sm:$0x7] %vm9920, %v9899
        %9923 = vst.msk [vmem:[#allocation2 + $0x10] sm:$0x7] %vm9920, %v9901
        %9924 = vst.msk [vmem:[#allocation2 + $0x18] sm:$0x7] %vm9920, %v9903
        %9925 = vst.msk [vmem:[#allocation2 + $0x20] sm:$0x7] %vm9920, %v9905
        %9926 = vst.msk [vmem:[#allocation2 + $0x28] sm:$0x7] %vm9920, %v9907
        %9927 = vst.msk [vmem:[#allocation2 + $0x30] sm:$0x7] %vm9920, %v9909
        %9928 = vst.msk [vmem:[#allocation2 + $0x38] sm:$0x7] %vm9920, %v9911
        %s9929 = sld [smem:[#allocation3]]
        %v9930 = vstv %s9929
        %v9931 = vadd.f32 %v9930, 0.0
        %v9932 = vld [vmem:[#allocation2] sm:$0x3]
        %v9933 = vld [vmem:[#allocation2 + $0x8] sm:$0x3]
        %v9934 = vld [vmem:[#allocation2 + $0x10] sm:$0x3]
        %v9935 = vld [vmem:[#allocation2 + $0x18] sm:$0x3]
        %v9936 = vld [vmem:[#allocation2 + $0x20] sm:$0x3]
        %v9937 = vld [vmem:[#allocation2 + $0x28] sm:$0x3]
        %v9938 = vld [vmem:[#allocation2 + $0x30] sm:$0x3]
        %v9939 = vld [vmem:[#allocation2 + $0x38] sm:$0x3]
        %v9940 = vunpack.c.l.bf16 %v9932
        %v9941 = vunpack.c.l.bf16 %v9933
        %v9942 = vunpack.c.l.bf16 %v9934
        %v9943 = vunpack.c.l.bf16 %v9935
        %v9944 = vunpack.c.l.bf16 %v9936
        %v9945 = vunpack.c.l.bf16 %v9937
        %v9946 = vunpack.c.l.bf16 %v9938
        %v9947 = vunpack.c.l.bf16 %v9939
        %s9948 = sld [smem:[#allocation4]]
        %v9949 = vstv %s9948
        %v9950 = vmul.f32 %v9949, %v9940
        %v9951 = vadd.f32 %v9931, %v9950
        %s9952 = sld [smem:[#allocation4 + $0x1]]
        %v9953 = vstv %s9952
        %v9954 = vmul.f32 %v9953, %v9941
        %v9955 = vadd.f32 %v9951, %v9954
        %s9956 = sld [smem:[#allocation4 + $0x2]]
        %v9957 = vstv %s9956
        %v9958 = vmul.f32 %v9957, %v9942
        %v9959 = vadd.f32 %v9955, %v9958
        %s9960 = sld [smem:[#allocation4 + $0x3]]
        %v9961 = vstv %s9960
        %v9962 = vmul.f32 %v9961, %v9943
        %v9963 = vadd.f32 %v9959, %v9962
        %s9964 = sld [smem:[#allocation4 + $0x4]]
        %v9965 = vstv %s9964
        %v9966 = vmul.f32 %v9965, %v9944
        %v9967 = vadd.f32 %v9963, %v9966
        %s9968 = sld [smem:[#allocation4 + $0x5]]
        %v9969 = vstv %s9968
        %v9970 = vmul.f32 %v9969, %v9945
        %v9971 = vadd.f32 %v9967, %v9970
        %s9972 = sld [smem:[#allocation4 + $0x6]]
        %v9973 = vstv %s9972
        %v9974 = vmul.f32 %v9973, %v9946
        %v9975 = vadd.f32 %v9971, %v9974
        %s9976 = sld [smem:[#allocation4 + $0x7]]
        %v9977 = vstv %s9976
        %v9978 = vmul.f32 %v9977, %v9947
        %v9979 = vadd.f32 %v9975, %v9978
        %s9980 = sld [smem:[#allocation4 + $0x80]]
        %v9981 = vstv %s9980
        %v9982 = vmul.f32 %v9981, %v9940
        %9984 = vrot.lane.b32.xlu0 %v9982, 127
        %v9985 = vpop.permute.xlu0 %9984
        %v9987 = vadd.f32 %v9979, %v9985
        %s9988 = sld [smem:[#allocation4 + $0x81]]
        %v9989 = vstv %s9988
        %v9990 = vmul.f32 %v9989, %v9941
        %9992 = vrot.lane.b32.xlu0 %v9990, 127
        %v9993 = vpop.permute.xlu0 %9992
        %v9995 = vadd.f32 %v9987, %v9993
        %s9996 = sld [smem:[#allocation4 + $0x82]]
        %v9997 = vstv %s9996
        %v9998 = vmul.f32 %v9997, %v9942
        %10000 = vrot.lane.b32.xlu0 %v9998, 127
        %v10001 = vpop.permute.xlu0 %10000
        %v10003 = vadd.f32 %v9995, %v10001
        %s10004 = sld [smem:[#allocation4 + $0x83]]
        %v10005 = vstv %s10004
        %v10006 = vmul.f32 %v10005, %v9943
        %10008 = vrot.lane.b32.xlu0 %v10006, 127
        %v10009 = vpop.permute.xlu0 %10008
        %v10011 = vadd.f32 %v10003, %v10009
        %s10012 = sld [smem:[#allocation4 + $0x84]]
        %v10013 = vstv %s10012
        %v10014 = vmul.f32 %v10013, %v9944
        %10016 = vrot.lane.b32.xlu0 %v10014, 127
        %v10017 = vpop.permute.xlu0 %10016
        %v10019 = vadd.f32 %v10011, %v10017
        %s10020 = sld [smem:[#allocation4 + $0x85]]
        %v10021 = vstv %s10020
        %v10022 = vmul.f32 %v10021, %v9945
        %10024 = vrot.lane.b32.xlu0 %v10022, 127
        %v10025 = vpop.permute.xlu0 %10024
        %v10027 = vadd.f32 %v10019, %v10025
        %s10028 = sld [smem:[#allocation4 + $0x86]]
        %v10029 = vstv %s10028
        %v10030 = vmul.f32 %v10029, %v9946
        %10032 = vrot.lane.b32.xlu0 %v10030, 127
        %v10033 = vpop.permute.xlu0 %10032
        %v10035 = vadd.f32 %v10027, %v10033
        %s10036 = sld [smem:[#allocation4 + $0x87]]
        %v10037 = vstv %s10036
        %v10038 = vmul.f32 %v10037, %v9947
        %10040 = vrot.lane.b32.xlu0 %v10038, 127
        %v10041 = vpop.permute.xlu0 %10040
        %v10043 = vadd.f32 %v10035, %v10041
        %s10044 = sld [smem:[#allocation4 + $0x100]]
        %v10045 = vstv %s10044
        %v10046 = vmul.f32 %v10045, %v9940
        %10048 = vrot.lane.b32.xlu0 %v10046, 126
        %v10049 = vpop.permute.xlu0 %10048
        %v10051 = vadd.f32 %v10043, %v10049
        %s10052 = sld [smem:[#allocation4 + $0x101]]
        %v10053 = vstv %s10052
        %v10054 = vmul.f32 %v10053, %v9941
        %10056 = vrot.lane.b32.xlu0 %v10054, 126
        %v10057 = vpop.permute.xlu0 %10056
        %v10059 = vadd.f32 %v10051, %v10057
        %s10060 = sld [smem:[#allocation4 + $0x102]]
        %v10061 = vstv %s10060
        %v10062 = vmul.f32 %v10061, %v9942
        %10064 = vrot.lane.b32.xlu0 %v10062, 126
        %v10065 = vpop.permute.xlu0 %10064
        %v10067 = vadd.f32 %v10059, %v10065
        %s10068 = sld [smem:[#allocation4 + $0x103]]
        %v10069 = vstv %s10068
        %v10070 = vmul.f32 %v10069, %v9943
        %10072 = vrot.lane.b32.xlu0 %v10070, 126
        %v10073 = vpop.permute.xlu0 %10072
        %v10075 = vadd.f32 %v10067, %v10073
        %s10076 = sld [smem:[#allocation4 + $0x104]]
        %v10077 = vstv %s10076
        %v10078 = vmul.f32 %v10077, %v9944
        %10080 = vrot.lane.b32.xlu0 %v10078, 126
        %v10081 = vpop.permute.xlu0 %10080
        %v10083 = vadd.f32 %v10075, %v10081
        %s10084 = sld [smem:[#allocation4 + $0x105]]
        %v10085 = vstv %s10084
        %v10086 = vmul.f32 %v10085, %v9945
        %10088 = vrot.lane.b32.xlu0 %v10086, 126
        %v10089 = vpop.permute.xlu0 %10088
        %v10091 = vadd.f32 %v10083, %v10089
        %s10092 = sld [smem:[#allocation4 + $0x106]]
        %v10093 = vstv %s10092
        %v10094 = vmul.f32 %v10093, %v9946
        %10096 = vrot.lane.b32.xlu0 %v10094, 126
        %v10097 = vpop.permute.xlu0 %10096
        %v10099 = vadd.f32 %v10091, %v10097
        %s10100 = sld [smem:[#allocation4 + $0x107]]
        %v10101 = vstv %s10100
        %v10102 = vmul.f32 %v10101, %v9947
        %10104 = vrot.lane.b32.xlu0 %v10102, 126
        %v10105 = vpop.permute.xlu0 %10104
        %v10107 = vadd.f32 %v10099, %v10105
        %v10108 = vld [vmem:[#allocation2] sm:$0x7]
        %v10109 = vld [vmem:[#allocation2 + $0x8] sm:$0x7]
        %v10110 = vld [vmem:[#allocation2 + $0x10] sm:$0x7]
        %v10111 = vld [vmem:[#allocation2 + $0x18] sm:$0x7]
        %v10112 = vld [vmem:[#allocation2 + $0x20] sm:$0x7]
        %v10113 = vld [vmem:[#allocation2 + $0x28] sm:$0x7]
        %v10114 = vld [vmem:[#allocation2 + $0x30] sm:$0x7]
        %v10115 = vld [vmem:[#allocation2 + $0x38] sm:$0x7]
        %v10116 = vunpack.c.l.bf16 %v10108
        %v10117 = vunpack.c.l.bf16 %v10109
        %v10118 = vunpack.c.l.bf16 %v10110
        %v10119 = vunpack.c.l.bf16 %v10111
        %v10120 = vunpack.c.l.bf16 %v10112
        %v10121 = vunpack.c.l.bf16 %v10113
        %v10122 = vunpack.c.l.bf16 %v10114
        %v10123 = vunpack.c.l.bf16 %v10115
        %s10124 = sld [smem:[#allocation4 + $0x180]]
        %v10125 = vstv %s10124
        %v10126 = vmul.f32 %v10125, %v10116
        %v10128 = vrot.slane %v10126, 1
        %v10130 = vadd.f32 %v10107, %v10128
        %s10131 = sld [smem:[#allocation4 + $0x181]]
        %v10132 = vstv %s10131
        %v10133 = vmul.f32 %v10132, %v10117
        %v10135 = vrot.slane %v10133, 1
        %v10137 = vadd.f32 %v10130, %v10135
        %s10138 = sld [smem:[#allocation4 + $0x182]]
        %v10139 = vstv %s10138
        %v10140 = vmul.f32 %v10139, %v10118
        %v10142 = vrot.slane %v10140, 1
        %v10144 = vadd.f32 %v10137, %v10142
        %s10145 = sld [smem:[#allocation4 + $0x183]]
        %v10146 = vstv %s10145
        %v10147 = vmul.f32 %v10146, %v10119
        %v10149 = vrot.slane %v10147, 1
        %v10151 = vadd.f32 %v10144, %v10149
        %s10152 = sld [smem:[#allocation4 + $0x184]]
        %v10153 = vstv %s10152
        %v10154 = vmul.f32 %v10153, %v10120
        %v10156 = vrot.slane %v10154, 1
        %v10158 = vadd.f32 %v10151, %v10156
        %s10159 = sld [smem:[#allocation4 + $0x185]]
        %v10160 = vstv %s10159
        %v10161 = vmul.f32 %v10160, %v10121
        %v10163 = vrot.slane %v10161, 1
        %v10165 = vadd.f32 %v10158, %v10163
        %s10166 = sld [smem:[#allocation4 + $0x186]]
        %v10167 = vstv %s10166
        %v10168 = vmul.f32 %v10167, %v10122
        %v10170 = vrot.slane %v10168, 1
        %v10172 = vadd.f32 %v10165, %v10170
        %s10173 = sld [smem:[#allocation4 + $0x187]]
        %v10174 = vstv %s10173
        %v10175 = vmul.f32 %v10174, %v10123
        %v10177 = vrot.slane %v10175, 1
        %v10179 = vadd.f32 %v10172, %v10177
        %s10180 = sld [smem:[#allocation4 + $0x200]]
        %v10181 = vstv %s10180
        %v10182 = vmul.f32 %v10181, %v10116
        %v10184 = vrot.slane %v10182, 1
        %10185 = vrot.lane.b32.xlu0 %v10184, 127
        %v10186 = vpop.permute.xlu0 %10185
        %v10188 = vadd.f32 %v10179, %v10186
        %s10189 = sld [smem:[#allocation4 + $0x201]]
        %v10190 = vstv %s10189
        %v10191 = vmul.f32 %v10190, %v10117
        %v10193 = vrot.slane %v10191, 1
        %10194 = vrot.lane.b32.xlu0 %v10193, 127
        %v10195 = vpop.permute.xlu0 %10194
        %v10197 = vadd.f32 %v10188, %v10195
        %s10198 = sld [smem:[#allocation4 + $0x202]]
        %v10199 = vstv %s10198
        %v10200 = vmul.f32 %v10199, %v10118
        %v10202 = vrot.slane %v10200, 1
        %10203 = vrot.lane.b32.xlu0 %v10202, 127
        %v10204 = vpop.permute.xlu0 %10203
        %v10206 = vadd.f32 %v10197, %v10204
        %s10207 = sld [smem:[#allocation4 + $0x203]]
        %v10208 = vstv %s10207
        %v10209 = vmul.f32 %v10208, %v10119
        %v10211 = vrot.slane %v10209, 1
        %10212 = vrot.lane.b32.xlu0 %v10211, 127
        %v10213 = vpop.permute.xlu0 %10212
        %v10215 = vadd.f32 %v10206, %v10213
        %s10216 = sld [smem:[#allocation4 + $0x204]]
        %v10217 = vstv %s10216
        %v10218 = vmul.f32 %v10217, %v10120
        %v10220 = vrot.slane %v10218, 1
        %10221 = vrot.lane.b32.xlu0 %v10220, 127
        %v10222 = vpop.permute.xlu0 %10221
        %v10224 = vadd.f32 %v10215, %v10222
        %s10225 = sld [smem:[#allocation4 + $0x205]]
        %v10226 = vstv %s10225
        %v10227 = vmul.f32 %v10226, %v10121
        %v10229 = vrot.slane %v10227, 1
        %10230 = vrot.lane.b32.xlu0 %v10229, 127
        %v10231 = vpop.permute.xlu0 %10230
        %v10233 = vadd.f32 %v10224, %v10231
        %s10234 = sld [smem:[#allocation4 + $0x206]]
        %v10235 = vstv %s10234
        %v10236 = vmul.f32 %v10235, %v10122
        %v10238 = vrot.slane %v10236, 1
        %10239 = vrot.lane.b32.xlu0 %v10238, 127
        %v10240 = vpop.permute.xlu0 %10239
        %v10242 = vadd.f32 %v10233, %v10240
        %s10243 = sld [smem:[#allocation4 + $0x207]]
        %v10244 = vstv %s10243
        %v10245 = vmul.f32 %v10244, %v10123
        %v10247 = vrot.slane %v10245, 1
        %10248 = vrot.lane.b32.xlu0 %v10247, 127
        %v10249 = vpop.permute.xlu0 %10248
        %v10251 = vadd.f32 %v10242, %v10249
        %s10252 = sld [smem:[#allocation4 + $0x280]]
        %v10253 = vstv %s10252
        %v10254 = vmul.f32 %v10253, %v10116
        %v10256 = vrot.slane %v10254, 1
        %10257 = vrot.lane.b32.xlu0 %v10256, 126
        %v10258 = vpop.permute.xlu0 %10257
        %v10260 = vadd.f32 %v10251, %v10258
        %s10261 = sld [smem:[#allocation4 + $0x281]]
        %v10262 = vstv %s10261
        %v10263 = vmul.f32 %v10262, %v10117
        %v10265 = vrot.slane %v10263, 1
        %10266 = vrot.lane.b32.xlu0 %v10265, 126
        %v10267 = vpop.permute.xlu0 %10266
        %v10269 = vadd.f32 %v10260, %v10267
        %s10270 = sld [smem:[#allocation4 + $0x282]]
        %v10271 = vstv %s10270
        %v10272 = vmul.f32 %v10271, %v10118
        %v10274 = vrot.slane %v10272, 1
        %10275 = vrot.lane.b32.xlu0 %v10274, 126
        %v10276 = vpop.permute.xlu0 %10275
        %v10278 = vadd.f32 %v10269, %v10276
        %s10279 = sld [smem:[#allocation4 + $0x283]]
        %v10280 = vstv %s10279
        %v10281 = vmul.f32 %v10280, %v10119
        %v10283 = vrot.slane %v10281, 1
        %10284 = vrot.lane.b32.xlu0 %v10283, 126
        %v10285 = vpop.permute.xlu0 %10284
        %v10287 = vadd.f32 %v10278, %v10285
        %s10288 = sld [smem:[#allocation4 + $0x284]]
        %v10289 = vstv %s10288
        %v10290 = vmul.f32 %v10289, %v10120
        %v10292 = vrot.slane %v10290, 1
        %10293 = vrot.lane.b32.xlu0 %v10292, 126
        %v10294 = vpop.permute.xlu0 %10293
        %v10296 = vadd.f32 %v10287, %v10294
        %s10297 = sld [smem:[#allocation4 + $0x285]]
        %v10298 = vstv %s10297
        %v10299 = vmul.f32 %v10298, %v10121
        %v10301 = vrot.slane %v10299, 1
        %10302 = vrot.lane.b32.xlu0 %v10301, 126
        %v10303 = vpop.permute.xlu0 %10302
        %v10305 = vadd.f32 %v10296, %v10303
        %s10306 = sld [smem:[#allocation4 + $0x286]]
        %v10307 = vstv %s10306
        %v10308 = vmul.f32 %v10307, %v10122
        %v10310 = vrot.slane %v10308, 1
        %10311 = vrot.lane.b32.xlu0 %v10310, 126
        %v10312 = vpop.permute.xlu0 %10311
        %v10314 = vadd.f32 %v10305, %v10312
        %s10315 = sld [smem:[#allocation4 + $0x287]]
        %v10316 = vstv %s10315
        %v10317 = vmul.f32 %v10316, %v10123
        %v10319 = vrot.slane %v10317, 1
        %10320 = vrot.lane.b32.xlu0 %v10319, 126
        %v10321 = vpop.permute.xlu0 %10320
        %v10323 = vadd.f32 %v10314, %v10321
        %v10324 = vld [vmem:[#allocation2] sm:$0x6]
        %v10325 = vld [vmem:[#allocation2 + $0x8] sm:$0x6]
        %v10326 = vld [vmem:[#allocation2 + $0x10] sm:$0x6]
        %v10327 = vld [vmem:[#allocation2 + $0x18] sm:$0x6]
        %v10328 = vld [vmem:[#allocation2 + $0x20] sm:$0x6]
        %v10329 = vld [vmem:[#allocation2 + $0x28] sm:$0x6]
        %v10330 = vld [vmem:[#allocation2 + $0x30] sm:$0x6]
        %v10331 = vld [vmem:[#allocation2 + $0x38] sm:$0x6]
        %v10332 = vunpack.c.l.bf16 %v10324
        %v10333 = vunpack.c.l.bf16 %v10325
        %v10334 = vunpack.c.l.bf16 %v10326
        %v10335 = vunpack.c.l.bf16 %v10327
        %v10336 = vunpack.c.l.bf16 %v10328
        %v10337 = vunpack.c.l.bf16 %v10329
        %v10338 = vunpack.c.l.bf16 %v10330
        %v10339 = vunpack.c.l.bf16 %v10331
        %s10340 = sld [smem:[#allocation4 + $0x300]]
        %v10341 = vstv %s10340
        %v10342 = vmul.f32 %v10341, %v10332
        %v10344 = vrot.slane %v10342, 2
        %v10346 = vadd.f32 %v10323, %v10344
        %s10347 = sld [smem:[#allocation4 + $0x301]]
        %v10348 = vstv %s10347
        %v10349 = vmul.f32 %v10348, %v10333
        %v10351 = vrot.slane %v10349, 2
        %v10353 = vadd.f32 %v10346, %v10351
        %s10354 = sld [smem:[#allocation4 + $0x302]]
        %v10355 = vstv %s10354
        %v10356 = vmul.f32 %v10355, %v10334
        %v10358 = vrot.slane %v10356, 2
        %v10360 = vadd.f32 %v10353, %v10358
        %s10361 = sld [smem:[#allocation4 + $0x303]]
        %v10362 = vstv %s10361
        %v10363 = vmul.f32 %v10362, %v10335
        %v10365 = vrot.slane %v10363, 2
        %v10367 = vadd.f32 %v10360, %v10365
        %s10368 = sld [smem:[#allocation4 + $0x304]]
        %v10369 = vstv %s10368
        %v10370 = vmul.f32 %v10369, %v10336
        %v10372 = vrot.slane %v10370, 2
        %v10374 = vadd.f32 %v10367, %v10372
        %s10375 = sld [smem:[#allocation4 + $0x305]]
        %v10376 = vstv %s10375
        %v10377 = vmul.f32 %v10376, %v10337
        %v10379 = vrot.slane %v10377, 2
        %v10381 = vadd.f32 %v10374, %v10379
        %s10382 = sld [smem:[#allocation4 + $0x306]]
        %v10383 = vstv %s10382
        %v10384 = vmul.f32 %v10383, %v10338
        %v10386 = vrot.slane %v10384, 2
        %v10388 = vadd.f32 %v10381, %v10386
        %s10389 = sld [smem:[#allocation4 + $0x307]]
        %v10390 = vstv %s10389
        %v10391 = vmul.f32 %v10390, %v10339
        %v10393 = vrot.slane %v10391, 2
        %v10395 = vadd.f32 %v10388, %v10393
        %s10396 = sld [smem:[#allocation4 + $0x380]]
        %v10397 = vstv %s10396
        %v10398 = vmul.f32 %v10397, %v10332
        %v10400 = vrot.slane %v10398, 2
        %10401 = vrot.lane.b32.xlu0 %v10400, 127
        %v10402 = vpop.permute.xlu0 %10401
        %v10404 = vadd.f32 %v10395, %v10402
        %s10405 = sld [smem:[#allocation4 + $0x381]]
        %v10406 = vstv %s10405
        %v10407 = vmul.f32 %v10406, %v10333
        %v10409 = vrot.slane %v10407, 2
        %10410 = vrot.lane.b32.xlu0 %v10409, 127
        %v10411 = vpop.permute.xlu0 %10410
        %v10413 = vadd.f32 %v10404, %v10411
        %s10414 = sld [smem:[#allocation4 + $0x382]]
        %v10415 = vstv %s10414
        %v10416 = vmul.f32 %v10415, %v10334
        %v10418 = vrot.slane %v10416, 2
        %10419 = vrot.lane.b32.xlu0 %v10418, 127
        %v10420 = vpop.permute.xlu0 %10419
        %v10422 = vadd.f32 %v10413, %v10420
        %s10423 = sld [smem:[#allocation4 + $0x383]]
        %v10424 = vstv %s10423
        %v10425 = vmul.f32 %v10424, %v10335
        %v10427 = vrot.slane %v10425, 2
        %10428 = vrot.lane.b32.xlu0 %v10427, 127
        %v10429 = vpop.permute.xlu0 %10428
        %v10431 = vadd.f32 %v10422, %v10429
        %s10432 = sld [smem:[#allocation4 + $0x384]]
        %v10433 = vstv %s10432
        %v10434 = vmul.f32 %v10433, %v10336
        %v10436 = vrot.slane %v10434, 2
        %10437 = vrot.lane.b32.xlu0 %v10436, 127
        %v10438 = vpop.permute.xlu0 %10437
        %v10440 = vadd.f32 %v10431, %v10438
        %s10441 = sld [smem:[#allocation4 + $0x385]]
        %v10442 = vstv %s10441
        %v10443 = vmul.f32 %v10442, %v10337
        %v10445 = vrot.slane %v10443, 2
        %10446 = vrot.lane.b32.xlu0 %v10445, 127
        %v10447 = vpop.permute.xlu0 %10446
        %v10449 = vadd.f32 %v10440, %v10447
        %s10450 = sld [smem:[#allocation4 + $0x386]]
        %v10451 = vstv %s10450
        %v10452 = vmul.f32 %v10451, %v10338
        %v10454 = vrot.slane %v10452, 2
        %10455 = vrot.lane.b32.xlu0 %v10454, 127
        %v10456 = vpop.permute.xlu0 %10455
        %v10458 = vadd.f32 %v10449, %v10456
        %s10459 = sld [smem:[#allocation4 + $0x387]]
        %v10460 = vstv %s10459
        %v10461 = vmul.f32 %v10460, %v10339
        %v10463 = vrot.slane %v10461, 2
        %10464 = vrot.lane.b32.xlu0 %v10463, 127
        %v10465 = vpop.permute.xlu0 %10464
        %v10467 = vadd.f32 %v10458, %v10465
        %s10468 = sld [smem:[#allocation4 + $0x400]]
        %v10469 = vstv %s10468
        %v10470 = vmul.f32 %v10469, %v10332
        %v10472 = vrot.slane %v10470, 2
        %10473 = vrot.lane.b32.xlu0 %v10472, 126
        %v10474 = vpop.permute.xlu0 %10473
        %v10476 = vadd.f32 %v10467, %v10474
        %s10477 = sld [smem:[#allocation4 + $0x401]]
        %v10478 = vstv %s10477
        %v10479 = vmul.f32 %v10478, %v10333
        %v10481 = vrot.slane %v10479, 2
        %10482 = vrot.lane.b32.xlu0 %v10481, 126
        %v10483 = vpop.permute.xlu0 %10482
        %v10485 = vadd.f32 %v10476, %v10483
        %s10486 = sld [smem:[#allocation4 + $0x402]]
        %v10487 = vstv %s10486
        %v10488 = vmul.f32 %v10487, %v10334
        %v10490 = vrot.slane %v10488, 2
        %10491 = vrot.lane.b32.xlu0 %v10490, 126
        %v10492 = vpop.permute.xlu0 %10491
        %v10494 = vadd.f32 %v10485, %v10492
        %s10495 = sld [smem:[#allocation4 + $0x403]]
        %v10496 = vstv %s10495
        %v10497 = vmul.f32 %v10496, %v10335
        %v10499 = vrot.slane %v10497, 2
        %10500 = vrot.lane.b32.xlu0 %v10499, 126
        %v10501 = vpop.permute.xlu0 %10500
        %v10503 = vadd.f32 %v10494, %v10501
        %s10504 = sld [smem:[#allocation4 + $0x404]]
        %v10505 = vstv %s10504
        %v10506 = vmul.f32 %v10505, %v10336
        %v10508 = vrot.slane %v10506, 2
        %10509 = vrot.lane.b32.xlu0 %v10508, 126
        %v10510 = vpop.permute.xlu0 %10509
        %v10512 = vadd.f32 %v10503, %v10510
        %s10513 = sld [smem:[#allocation4 + $0x405]]
        %v10514 = vstv %s10513
        %v10515 = vmul.f32 %v10514, %v10337
        %v10517 = vrot.slane %v10515, 2
        %10518 = vrot.lane.b32.xlu0 %v10517, 126
        %v10519 = vpop.permute.xlu0 %10518
        %v10521 = vadd.f32 %v10512, %v10519
        %s10522 = sld [smem:[#allocation4 + $0x406]]
        %v10523 = vstv %s10522
        %v10524 = vmul.f32 %v10523, %v10338
        %v10526 = vrot.slane %v10524, 2
        %10527 = vrot.lane.b32.xlu0 %v10526, 126
        %v10528 = vpop.permute.xlu0 %10527
        %v10530 = vadd.f32 %v10521, %v10528
        %s10531 = sld [smem:[#allocation4 + $0x407]]
        %v10532 = vstv %s10531
        %v10533 = vmul.f32 %v10532, %v10339
        %v10535 = vrot.slane %v10533, 2
        %10536 = vrot.lane.b32.xlu0 %v10535, 126
        %v10537 = vpop.permute.xlu0 %10536
        %v10539 = vadd.f32 %v10530, %v10537
        %vm10540 = vcmask 27648
        %10541 = vst.msk [vmem:[%s381] sm:$0xf] %vm10540, %v10539
        %p10542 = scmp.lt.s32.totalorder %s26, 1
        %s10543 = scalar_select %p10542, %s26, 1
        %p10544 = scmp.lt.s32.totalorder %s27, 0
        %s10545 = scalar_select %p10544, %s27, 0
        %s10546 = sadd.s32 %s10545, %s10543
        %s10547 = smul.addr %s10546, 4
        %s10548 = scalar_lea.vmem %s9, %s10547
        // Predicated region
        $region61: #{masknet_forward.2} parent=55 // pred_check
          %p10549 = pneg %p250
        $region62: #{masknet_forward.2} parent=55 // pred_check_branch
          %10551 = sbr.rel (%p10549) target = $region64
        $region63: #{masknet_forward.2} parent=55 // pred_region
          _
        $region64: #{masknet_forward.2} parent=55 // pred_fallthru
          _
      $region56: #{masknet_forward.2} parent=5 // pred_fallthru
        _
      %p10552 = scmp.le.s32.totalorder 2, %s17
      // Predicated region
      $region65: #{masknet_forward.2} parent=5 // pred_check
        %p10553 = pneg %p10552
      $region66: #{masknet_forward.2} parent=5 // pred_check_branch
        %10555 = sbr.rel (%p10553) target = $region68
      $region67: #{masknet_forward.2} parent=5 // pred_region
        %s10556 = ssub.s32 %s17, 2
        // Predicated region
        $region69: #{masknet_forward.2} parent=67 // pred_check
          %p10557 = pneg %p256
        $region70: #{masknet_forward.2} parent=67 // pred_check_branch
          %10559 = sbr.rel (%p10557) target = $region72
        $region71: #{masknet_forward.2} parent=67 // pred_region
          %p10560 = scmp.lt.s32.totalorder %s28, 1
          %s10561 = scalar_select %p10560, %s28, 1
          %p10562 = scmp.lt.s32.totalorder %s29, 0
          %s10563 = scalar_select %p10562, %s29, 0
          %s10564 = sadd.s32 %s10563, %s10561
          %s10565 = smul.addr %s10564, 4
          %s10566 = scalar_lea.vmem %s9, %s10565
        $region72: #{masknet_forward.2} parent=67 // pred_fallthru
          _
      $region68: #{masknet_forward.2} parent=5 // pred_fallthru
        _
    $region6: #{masknet_forward.2} parent=1 // loop_footer
      %s21 = sadd.s32 1, %s17
    $region7: #{masknet_forward.2} parent=1 // loop_footer_branch
      %16 = sbr.rel target = $region3
    $region8: #{masknet_forward.2} parent=1 // loop_exit
      _
    %10567 = vsyncpa [#allocation5], 1
    %s10568 = scalar_lea.sflag [#allocation5], 1
    %10569 = vsyncpa %s10568, 1

</llo_original>
